<compile_context>
chip_gen: v5e
topology: v5e:2x2
jax: 0.10.0
libtpu: 0.0.40
codegen_flags: <defaults>
</compile_context>

<pallas_src>
import jax
import jax.numpy as jnp
from jax import lax
from jax.experimental import pallas as pl
from jax.experimental.pallas import tpu as pltpu


# ----------------------------------------------------------------------------
# Fused whole-network kernel
# ----------------------------------------------------------------------------
def _acc(acc, val):
    return val if acc is None else acc + val


def _net_kernel(x_ref, w1e_ref, w1o_ref, b1_ref, w2e_ref, w2o_ref, b2_ref,
                fc1w_ref, fc1b_ref, fc2w_ref, fc2b_ref, o_ref):
    """One batch block of B images, end to end.

    x_ref:    (28, B, 28)   H-major input rows (lane axis = width)
    w1e/w1o:  (5, 28, 240)  conv1 width-banded weights, even/odd output cols
    b1:       (1, 240)      conv1 bias tiled over the 12 pooled width slots
    w2e/w2o:  (5, 240, 200) conv2 width-banded weights, even/odd output cols
    b2:       (1, 200)
    fc1w:     (4, 200, 512) fc1 split by pooled row h2 (padded 500 -> 512)
    fc1b:     (1, 512)      fc2w: (512, 10)   fc2b: (1, 10)
    o_ref:    (B, 10)       log-probabilities
    """
    B = x_ref.shape[1]
    f32 = jnp.float32

    def dot(a, w):
        # cast LHS to weight dtype (no-op for f32); accumulate in f32 on MXU
        return jnp.dot(a.astype(w.dtype), w, preferred_element_type=f32)

    # ---- conv1 (5x5, Cin=1, Cout=20) + ReLU + 2x2 maxpool -------------------
    xv = x_ref[...]                              # (28, B, 28)
    xrow = [xv[h] for h in range(28)]            # each (B, 28), one vreg group
    zee = zeo = zoe = zoo = None                 # four pool-phase accumulators
    for kh in range(5):
        w_e = w1e_ref[kh]                        # (28, 240)
        w_o = w1o_ref[kh]
        # rows for even / odd conv output rows (pool pair), M index = h1*B + b
        se = jnp.concatenate([xrow[kh + 2 * j] for j in range(12)], axis=0)
        so = jnp.concatenate([xrow[kh + 1 + 2 * j] for j in range(12)], axis=0)
        zee = _acc(zee, dot(se, w_e))
        zeo = _acc(zeo, dot(se, w_o))
        zoe = _acc(zoe, dot(so, w_e))
        zoo = _acc(zoo, dot(so, w_o))
    zmax = jnp.maximum(jnp.maximum(zee, zeo), jnp.maximum(zoe, zoo))
    pooled1 = jnp.maximum(zmax + b1_ref[...], 0.0)   # (12B, 240): row h1*B+b, col w1*20+ci

    # ---- conv2 (5x5, Cin=20, Cout=50) + ReLU + 2x2 maxpool ------------------
    p1 = [pooled1[r * B:(r + 1) * B, :] for r in range(12)]   # 8-aligned slices
    zee = zeo = zoe = zoo = None
    for kh in range(5):
        w_e = w2e_ref[kh]                        # (240, 200)
        w_o = w2o_ref[kh]
        le = jnp.concatenate([p1[kh + 2 * j] for j in range(4)], axis=0)      # (4B, 240)
        lo = jnp.concatenate([p1[kh + 1 + 2 * j] for j in range(4)], axis=0)
        zee = _acc(zee, dot(le, w_e))
        zeo = _acc(zeo, dot(le, w_o))
        zoe = _acc(zoe, dot(lo, w_e))
        zoo = _acc(zoo, dot(lo, w_o))
    zmax = jnp.maximum(jnp.maximum(zee, zeo), jnp.maximum(zoe, zoo))
    pooled2 = jnp.maximum(zmax + b2_ref[...], 0.0)   # (4B, 200): row h2*B+b, col w2*50+co

    # ---- fc1 + ReLU + fc2 + log_softmax ------------------------------------
    hacc = None
    for h2 in range(4):
        hacc = _acc(hacc, dot(pooled2[h2 * B:(h2 + 1) * B, :], fc1w_ref[h2]))
    h = jnp.maximum(hacc + fc1b_ref[...], 0.0)                 # (B, 512)
    logits = dot(h, fc2w_ref[...]) + fc2b_ref[...]             # (B, 10)
    logits = logits - jnp.max(logits, axis=-1, keepdims=True)
    out = logits - jnp.log(jnp.sum(jnp.exp(logits), axis=-1, keepdims=True))
    o_ref[...] = out.astype(o_ref.dtype)


# ----------------------------------------------------------------------------
# One-time parameter preparation (all layout glue hoisted out of the fwd pass)
# ----------------------------------------------------------------------------
def _banded(w_tap, w_in, w_out):
    """w_tap (K, Cin, Cout) -> (w_in*Cin, w_out*Cout) width-banded matrix M:
    M[wi*Cin+ci, wo*Cout+co] = w_tap[wi-wo, ci, co] for 0 <= wi-wo < K."""
    K, Cin, Cout = w_tap.shape
    m = jnp.zeros((w_in, Cin, w_out, Cout), w_tap.dtype)
    wo = jnp.arange(w_out)
    for kw in range(K):
        m = m.at[wo + kw, :, wo, :].set(w_tap[kw])
    return m.reshape(w_in * Cin, w_out * Cout)


def _split_even_odd(mat, w_out, cout):
    m3 = mat.reshape(mat.shape[0], w_out, cout)
    even = m3[:, 0::2, :].reshape(mat.shape[0], (w_out // 2) * cout)
    odd = m3[:, 1::2, :].reshape(mat.shape[0], (w_out // 2) * cout)
    return even, odd


def prepare_params(params, dtype=jnp.float32):
    """Pre-bake all weight layouts.  dtype=jnp.bfloat16 for v6e/v7x MXU paths."""
    w1t = jnp.transpose(params["conv1_w"], (2, 3, 1, 0))   # (kh, kw, ci=1, co=20)
    w2t = jnp.transpose(params["conv2_w"], (2, 3, 1, 0))   # (kh, kw, ci=20, co=50)
    w1e, w1o, w2e, w2o = [], [], [], []
    for kh in range(5):
        e, o = _split_even_odd(_banded(w1t[kh], 28, 24), 24, 20)
        w1e.append(e), w1o.append(o)
        e, o = _split_even_odd(_banded(w2t[kh], 12, 8), 8, 50)
        w2e.append(e), w2o.append(o)
    fc1 = params["fc1_w"].reshape(500, 50, 4, 4)            # (o, c, h2, w2)
    fc1 = jnp.transpose(fc1, (2, 3, 1, 0)).reshape(4, 200, 500)
    fc1 = jnp.pad(fc1, ((0, 0), (0, 0), (0, 12)))           # pad 500 -> 512
    fc2 = jnp.pad(params["fc2_w"].T, ((0, 12), (0, 0)))     # (512, 10)
    return {
        "w1e": jnp.stack(w1e).astype(dtype),                # (5, 28, 240)
        "w1o": jnp.stack(w1o).astype(dtype),
        "b1": jnp.tile(params["conv1_b"], 12).reshape(1, 240).astype(jnp.float32),
        "w2e": jnp.stack(w2e).astype(dtype),                # (5, 240, 200)
        "w2o": jnp.stack(w2o).astype(dtype),
        "b2": jnp.tile(params["conv2_b"], 4).reshape(1, 200).astype(jnp.float32),
        "fc1_w": fc1.astype(dtype),                         # (4, 200, 512)
        "fc1_b": jnp.pad(params["fc1_b"], (0, 12)).reshape(1, 512).astype(jnp.float32),
        "fc2_w": fc2.astype(dtype),                         # (512, 10)
        "fc2_b": params["fc2_b"].reshape(1, 10).astype(jnp.float32),
    }


# ----------------------------------------------------------------------------
# Forward pass (equivalent to PyTorch Net.forward)
# ----------------------------------------------------------------------------
def net_forward(x_nchw, fp, *, block_batch=8):
    N = x_nchw.shape[0]
    assert x_nchw.shape[1:] == (1, 28, 28), x_nchw.shape
    B = block_batch
    assert B % 8 == 0
    n_pad = -(-N // B) * B
    x = jnp.transpose(x_nchw.reshape(N, 28, 28), (1, 0, 2))   # (28, N, 28) H-major
    if n_pad != N:
        x = jnp.pad(x, ((0, 0), (0, n_pad - N), (0, 0)))

    w_elems = sum(int(v.size) for v in fp.values())
    flops = 2 * n_pad * 2_293_000
    out = pl.pallas_call(
        _net_kernel,
        out_shape=jax.ShapeDtypeStruct((n_pad, 10), jnp.float32),
        grid_spec=pltpu.PrefetchScalarGridSpec(
            num_scalar_prefetch=0,
            grid=(n_pad // B,),
            in_specs=[
                pl.BlockSpec((28, B, 28), lambda i: (0, i, 0)),
                pl.BlockSpec((5, 28, 240), lambda i: (0, 0, 0)),
                pl.BlockSpec((5, 28, 240), lambda i: (0, 0, 0)),
                pl.BlockSpec((1, 240), lambda i: (0, 0)),
                pl.BlockSpec((5, 240, 200), lambda i: (0, 0, 0)),
                pl.BlockSpec((5, 240, 200), lambda i: (0, 0, 0)),
                pl.BlockSpec((1, 200), lambda i: (0, 0)),
                pl.BlockSpec((4, 200, 512), lambda i: (0, 0, 0)),
                pl.BlockSpec((1, 512), lambda i: (0, 0)),
                pl.BlockSpec((512, 10), lambda i: (0, 0)),
                pl.BlockSpec((1, 10), lambda i: (0, 0)),
            ],
            out_specs=pl.BlockSpec((B, 10), lambda i: (i, 0)),
        ),
        compiler_params=pltpu.CompilerParams(
            dimension_semantics=("parallel",),
            vmem_limit_bytes=32 * 1024 * 1024,
        ),
        cost_estimate=pl.CostEstimate(
            flops=flops, transcendentals=n_pad * 16,
            bytes_accessed=4 * (n_pad * (28 * 28 + 10) + w_elems)),
    )(x, fp["w1e"], fp["w1o"], fp["b1"], fp["w2e"], fp["w2o"], fp["b2"],
      fp["fc1_w"], fp["fc1_b"], fp["fc2_w"], fp["fc2_b"])
    return out[:N]


# Pure-XLA reference mirroring PyTorch semantics exactly (NCHW, .view flatten).
def ref_forward(x_nchw, params):
    hp = lax.Precision.HIGHEST
    y = lax.conv_general_dilated(x_nchw, params["conv1_w"], (1, 1), "VALID",
                                 dimension_numbers=("NCHW", "OIHW", "NCHW"),
                                 precision=hp)
    y = jnp.maximum(y + params["conv1_b"][None, :, None, None], 0.0)
    y = lax.reduce_window(y, -jnp.inf, lax.max, (1, 1, 2, 2), (1, 1, 2, 2), "VALID")
    y = lax.conv_general_dilated(y, params["conv2_w"], (1, 1), "VALID",
                                 dimension_numbers=("NCHW", "OIHW", "NCHW"),
                                 precision=hp)
    y = jnp.maximum(y + params["conv2_b"][None, :, None, None], 0.0)
    y = lax.reduce_window(y, -jnp.inf, lax.max, (1, 1, 2, 2), (1, 1, 2, 2), "VALID")
    flat = y.reshape(y.shape[0], -1)                  # NCHW flatten, like torch .view
    h = jnp.maximum(jnp.dot(flat, params["fc1_w"].T, precision=hp)
                    + params["fc1_b"], 0.0)
    logits = jnp.dot(h, params["fc2_w"].T, precision=hp) + params["fc2_b"]
    return jax.nn.log_softmax(logits, axis=1)


def init_params(key):
    ks = jax.random.split(key, 8)
    s = 0.05
    return {
        "conv1_w": s * jax.random.normal(ks[0], (20, 1, 5, 5), jnp.float32),
        "conv1_b": s * jax.random.normal(ks[1], (20,), jnp.float32),
        "conv2_w": s * jax.random.normal(ks[2], (50, 20, 5, 5), jnp.float32),
        "conv2_b": s * jax.random.normal(ks[3], (50,), jnp.float32),
        "fc1_w": s * jax.random.normal(ks[4], (500, 4 * 4 * 50), jnp.float32),
        "fc1_b": s * jax.random.normal(ks[5], (500,), jnp.float32),
        "fc2_w": s * jax.random.normal(ks[6], (10, 500), jnp.float32),
        "fc2_b": s * jax.random.normal(ks[7], (10,), jnp.float32),
    }


if __name__ == "__main__":
    key = jax.random.PRNGKey(0)
    k_in, k_p = jax.random.split(key)
    params = init_params(k_p)
    fwd_params = prepare_params(params)          # one-time layout prep (f32)

    # MNIST-shaped input implied by the 4*4*50 flatten; N=12 exercises the
    # batch-padding path (padded to 16 = 2 grid steps of 8 images).
    x = jax.random.normal(k_in, (12, 1, 28, 28), jnp.float32)

    out = jax.block_until_ready(jax.jit(net_forward)(x, fwd_params))
    ref = jax.block_until_ready(ref_forward(x, params))

    assert out.shape == (12, 10), out.shape
    assert bool(jnp.all(jnp.isfinite(out)))
    # log_softmax rows exponentiate to 1
    assert jnp.allclose(jnp.sum(jnp.exp(out), axis=1), 1.0, atol=1e-3)
    assert jnp.allclose(out, ref, atol=5e-4, rtol=5e-4)

    print("KERNEL_OK")
</pallas_src>

<mosaic_0001>
module attributes {stable_mosaic.version = 11 : i64} {
  func.func @_net_kernel(%arg0: i32, %arg1: memref<28x8x28xf32, #tpu.memory_space<vmem>>, %arg2: memref<5x28x240xf32, #tpu.memory_space<vmem>>, %arg3: memref<5x28x240xf32, #tpu.memory_space<vmem>>, %arg4: memref<1x240xf32, #tpu.memory_space<vmem>>, %arg5: memref<5x240x200xf32, #tpu.memory_space<vmem>>, %arg6: memref<5x240x200xf32, #tpu.memory_space<vmem>>, %arg7: memref<1x200xf32, #tpu.memory_space<vmem>>, %arg8: memref<4x200x512xf32, #tpu.memory_space<vmem>>, %arg9: memref<1x512xf32, #tpu.memory_space<vmem>>, %arg10: memref<512x10xf32, #tpu.memory_space<vmem>>, %arg11: memref<1x10xf32, #tpu.memory_space<vmem>>, %arg12: memref<8x10xf32, #tpu.memory_space<vmem>>) attributes {dimension_semantics = [#tpu.dimension_semantics<parallel>], iteration_bounds = array<i64: 2>, scalar_prefetch = 0 : i64, scratch_operands = 0 : i64, tpu.core_type = #tpu.core_type<tc>, window_params = [{transform_indices = @transform_0, window_bounds = array<i64: 28, 8, 28>}, {pipeline_mode = #tpu.pipeline_mode<synchronous>, transform_indices = @transform_1, window_bounds = array<i64: 5, 28, 240>}, {pipeline_mode = #tpu.pipeline_mode<synchronous>, transform_indices = @transform_2, window_bounds = array<i64: 5, 28, 240>}, {pipeline_mode = #tpu.pipeline_mode<synchronous>, transform_indices = @transform_3, window_bounds = array<i64: 1, 240>}, {pipeline_mode = #tpu.pipeline_mode<synchronous>, transform_indices = @transform_4, window_bounds = array<i64: 5, 240, 200>}, {pipeline_mode = #tpu.pipeline_mode<synchronous>, transform_indices = @transform_5, window_bounds = array<i64: 5, 240, 200>}, {pipeline_mode = #tpu.pipeline_mode<synchronous>, transform_indices = @transform_6, window_bounds = array<i64: 1, 200>}, {pipeline_mode = #tpu.pipeline_mode<synchronous>, transform_indices = @transform_7, window_bounds = array<i64: 4, 200, 512>}, {pipeline_mode = #tpu.pipeline_mode<synchronous>, transform_indices = @transform_8, window_bounds = array<i64: 1, 512>}, {pipeline_mode = #tpu.pipeline_mode<synchronous>, transform_indices = @transform_9, window_bounds = array<i64: 512, 10>}, {pipeline_mode = #tpu.pipeline_mode<synchronous>, transform_indices = @transform_10, window_bounds = array<i64: 1, 10>}, {transform_indices = @transform_11, window_bounds = array<i64: 8, 10>}]} {
    %c0 = arith.constant 0 : index
    %c0_0 = arith.constant 0 : index
    %c0_1 = arith.constant 0 : index
    %0 = vector.load %arg1[%c0, %c0_0, %c0_1] : memref<28x8x28xf32, #tpu.memory_space<vmem>>, vector<28x8x28xf32>
    %1 = vector.extract_strided_slice %0 {offsets = [0, 0, 0], sizes = [1, 8, 28], strides = [1, 1, 1]} : vector<28x8x28xf32> to vector<1x8x28xf32>
    %2 = vector.shape_cast %1 : vector<1x8x28xf32> to vector<8x28xf32>
    %3 = vector.extract_strided_slice %0 {offsets = [1, 0, 0], sizes = [1, 8, 28], strides = [1, 1, 1]} : vector<28x8x28xf32> to vector<1x8x28xf32>
    %4 = vector.shape_cast %3 : vector<1x8x28xf32> to vector<8x28xf32>
    %5 = vector.extract_strided_slice %0 {offsets = [2, 0, 0], sizes = [1, 8, 28], strides = [1, 1, 1]} : vector<28x8x28xf32> to vector<1x8x28xf32>
    %6 = vector.shape_cast %5 : vector<1x8x28xf32> to vector<8x28xf32>
    %7 = vector.extract_strided_slice %0 {offsets = [3, 0, 0], sizes = [1, 8, 28], strides = [1, 1, 1]} : vector<28x8x28xf32> to vector<1x8x28xf32>
    %8 = vector.shape_cast %7 : vector<1x8x28xf32> to vector<8x28xf32>
    %9 = vector.extract_strided_slice %0 {offsets = [4, 0, 0], sizes = [1, 8, 28], strides = [1, 1, 1]} : vector<28x8x28xf32> to vector<1x8x28xf32>
    %10 = vector.shape_cast %9 : vector<1x8x28xf32> to vector<8x28xf32>
    %11 = vector.extract_strided_slice %0 {offsets = [5, 0, 0], sizes = [1, 8, 28], strides = [1, 1, 1]} : vector<28x8x28xf32> to vector<1x8x28xf32>
    %12 = vector.shape_cast %11 : vector<1x8x28xf32> to vector<8x28xf32>
    %13 = vector.extract_strided_slice %0 {offsets = [6, 0, 0], sizes = [1, 8, 28], strides = [1, 1, 1]} : vector<28x8x28xf32> to vector<1x8x28xf32>
    %14 = vector.shape_cast %13 : vector<1x8x28xf32> to vector<8x28xf32>
    %15 = vector.extract_strided_slice %0 {offsets = [7, 0, 0], sizes = [1, 8, 28], strides = [1, 1, 1]} : vector<28x8x28xf32> to vector<1x8x28xf32>
    %16 = vector.shape_cast %15 : vector<1x8x28xf32> to vector<8x28xf32>
    %17 = vector.extract_strided_slice %0 {offsets = [8, 0, 0], sizes = [1, 8, 28], strides = [1, 1, 1]} : vector<28x8x28xf32> to vector<1x8x28xf32>
    %18 = vector.shape_cast %17 : vector<1x8x28xf32> to vector<8x28xf32>
    %19 = vector.extract_strided_slice %0 {offsets = [9, 0, 0], sizes = [1, 8, 28], strides = [1, 1, 1]} : vector<28x8x28xf32> to vector<1x8x28xf32>
    %20 = vector.shape_cast %19 : vector<1x8x28xf32> to vector<8x28xf32>
    %21 = vector.extract_strided_slice %0 {offsets = [10, 0, 0], sizes = [1, 8, 28], strides = [1, 1, 1]} : vector<28x8x28xf32> to vector<1x8x28xf32>
    %22 = vector.shape_cast %21 : vector<1x8x28xf32> to vector<8x28xf32>
    %23 = vector.extract_strided_slice %0 {offsets = [11, 0, 0], sizes = [1, 8, 28], strides = [1, 1, 1]} : vector<28x8x28xf32> to vector<1x8x28xf32>
    %24 = vector.shape_cast %23 : vector<1x8x28xf32> to vector<8x28xf32>
    %25 = vector.extract_strided_slice %0 {offsets = [12, 0, 0], sizes = [1, 8, 28], strides = [1, 1, 1]} : vector<28x8x28xf32> to vector<1x8x28xf32>
    %26 = vector.shape_cast %25 : vector<1x8x28xf32> to vector<8x28xf32>
    %27 = vector.extract_strided_slice %0 {offsets = [13, 0, 0], sizes = [1, 8, 28], strides = [1, 1, 1]} : vector<28x8x28xf32> to vector<1x8x28xf32>
    %28 = vector.shape_cast %27 : vector<1x8x28xf32> to vector<8x28xf32>
    %29 = vector.extract_strided_slice %0 {offsets = [14, 0, 0], sizes = [1, 8, 28], strides = [1, 1, 1]} : vector<28x8x28xf32> to vector<1x8x28xf32>
    %30 = vector.shape_cast %29 : vector<1x8x28xf32> to vector<8x28xf32>
    %31 = vector.extract_strided_slice %0 {offsets = [15, 0, 0], sizes = [1, 8, 28], strides = [1, 1, 1]} : vector<28x8x28xf32> to vector<1x8x28xf32>
    %32 = vector.shape_cast %31 : vector<1x8x28xf32> to vector<8x28xf32>
    %33 = vector.extract_strided_slice %0 {offsets = [16, 0, 0], sizes = [1, 8, 28], strides = [1, 1, 1]} : vector<28x8x28xf32> to vector<1x8x28xf32>
    %34 = vector.shape_cast %33 : vector<1x8x28xf32> to vector<8x28xf32>
    %35 = vector.extract_strided_slice %0 {offsets = [17, 0, 0], sizes = [1, 8, 28], strides = [1, 1, 1]} : vector<28x8x28xf32> to vector<1x8x28xf32>
    %36 = vector.shape_cast %35 : vector<1x8x28xf32> to vector<8x28xf32>
    %37 = vector.extract_strided_slice %0 {offsets = [18, 0, 0], sizes = [1, 8, 28], strides = [1, 1, 1]} : vector<28x8x28xf32> to vector<1x8x28xf32>
    %38 = vector.shape_cast %37 : vector<1x8x28xf32> to vector<8x28xf32>
    %39 = vector.extract_strided_slice %0 {offsets = [19, 0, 0], sizes = [1, 8, 28], strides = [1, 1, 1]} : vector<28x8x28xf32> to vector<1x8x28xf32>
    %40 = vector.shape_cast %39 : vector<1x8x28xf32> to vector<8x28xf32>
    %41 = vector.extract_strided_slice %0 {offsets = [20, 0, 0], sizes = [1, 8, 28], strides = [1, 1, 1]} : vector<28x8x28xf32> to vector<1x8x28xf32>
    %42 = vector.shape_cast %41 : vector<1x8x28xf32> to vector<8x28xf32>
    %43 = vector.extract_strided_slice %0 {offsets = [21, 0, 0], sizes = [1, 8, 28], strides = [1, 1, 1]} : vector<28x8x28xf32> to vector<1x8x28xf32>
    %44 = vector.shape_cast %43 : vector<1x8x28xf32> to vector<8x28xf32>
    %45 = vector.extract_strided_slice %0 {offsets = [22, 0, 0], sizes = [1, 8, 28], strides = [1, 1, 1]} : vector<28x8x28xf32> to vector<1x8x28xf32>
    %46 = vector.shape_cast %45 : vector<1x8x28xf32> to vector<8x28xf32>
    %47 = vector.extract_strided_slice %0 {offsets = [23, 0, 0], sizes = [1, 8, 28], strides = [1, 1, 1]} : vector<28x8x28xf32> to vector<1x8x28xf32>
    %48 = vector.shape_cast %47 : vector<1x8x28xf32> to vector<8x28xf32>
    %49 = vector.extract_strided_slice %0 {offsets = [24, 0, 0], sizes = [1, 8, 28], strides = [1, 1, 1]} : vector<28x8x28xf32> to vector<1x8x28xf32>
    %50 = vector.shape_cast %49 : vector<1x8x28xf32> to vector<8x28xf32>
    %51 = vector.extract_strided_slice %0 {offsets = [25, 0, 0], sizes = [1, 8, 28], strides = [1, 1, 1]} : vector<28x8x28xf32> to vector<1x8x28xf32>
    %52 = vector.shape_cast %51 : vector<1x8x28xf32> to vector<8x28xf32>
    %53 = vector.extract_strided_slice %0 {offsets = [26, 0, 0], sizes = [1, 8, 28], strides = [1, 1, 1]} : vector<28x8x28xf32> to vector<1x8x28xf32>
    %54 = vector.shape_cast %53 : vector<1x8x28xf32> to vector<8x28xf32>
    %55 = vector.extract_strided_slice %0 {offsets = [27, 0, 0], sizes = [1, 8, 28], strides = [1, 1, 1]} : vector<28x8x28xf32> to vector<1x8x28xf32>
    %56 = vector.shape_cast %55 : vector<1x8x28xf32> to vector<8x28xf32>
    %c0_2 = arith.constant 0 : index
    %c0_3 = arith.constant 0 : index
    %c0_4 = arith.constant 0 : index
    %57 = vector.load %arg2[%c0_2, %c0_3, %c0_4] : memref<5x28x240xf32, #tpu.memory_space<vmem>>, vector<1x28x240xf32>
    %58 = vector.shape_cast %57 : vector<1x28x240xf32> to vector<28x240xf32>
    %c0_5 = arith.constant 0 : index
    %c0_6 = arith.constant 0 : index
    %c0_7 = arith.constant 0 : index
    %59 = vector.load %arg3[%c0_5, %c0_6, %c0_7] : memref<5x28x240xf32, #tpu.memory_space<vmem>>, vector<1x28x240xf32>
    %60 = vector.shape_cast %59 : vector<1x28x240xf32> to vector<28x240xf32>
    %61 = tpu.concatenate %2, %6, %10, %14, %18, %22, %26, %30, %34, %38, %42, %46 in 0 : vector<8x28xf32>, vector<8x28xf32>, vector<8x28xf32>, vector<8x28xf32>, vector<8x28xf32>, vector<8x28xf32>, vector<8x28xf32>, vector<8x28xf32>, vector<8x28xf32>, vector<8x28xf32>, vector<8x28xf32>, vector<8x28xf32> -> vector<96x28xf32>
    %62 = tpu.concatenate %4, %8, %12, %16, %20, %24, %28, %32, %36, %40, %44, %48 in 0 : vector<8x28xf32>, vector<8x28xf32>, vector<8x28xf32>, vector<8x28xf32>, vector<8x28xf32>, vector<8x28xf32>, vector<8x28xf32>, vector<8x28xf32>, vector<8x28xf32>, vector<8x28xf32>, vector<8x28xf32>, vector<8x28xf32> -> vector<96x28xf32>
    %cst = arith.constant dense<0.000000e+00> : vector<96x240xf32>
    %63 = tpu.matmul %61, %58, %cst {dimension_numbers = #tpu.dot_dimension_numbers<[1], [0], [0], [1], [0, 0, 1, 1], [], []>} : vector<96x28xf32>, vector<28x240xf32>, vector<96x240xf32> -> vector<96x240xf32>
    %cst_8 = arith.constant dense<0.000000e+00> : vector<96x240xf32>
    %64 = tpu.matmul %61, %60, %cst_8 {dimension_numbers = #tpu.dot_dimension_numbers<[1], [0], [0], [1], [0, 0, 1, 1], [], []>} : vector<96x28xf32>, vector<28x240xf32>, vector<96x240xf32> -> vector<96x240xf32>
    %cst_9 = arith.constant dense<0.000000e+00> : vector<96x240xf32>
    %65 = tpu.matmul %62, %58, %cst_9 {dimension_numbers = #tpu.dot_dimension_numbers<[1], [0], [0], [1], [0, 0, 1, 1], [], []>} : vector<96x28xf32>, vector<28x240xf32>, vector<96x240xf32> -> vector<96x240xf32>
    %cst_10 = arith.constant dense<0.000000e+00> : vector<96x240xf32>
    %66 = tpu.matmul %62, %60, %cst_10 {dimension_numbers = #tpu.dot_dimension_numbers<[1], [0], [0], [1], [0, 0, 1, 1], [], []>} : vector<96x28xf32>, vector<28x240xf32>, vector<96x240xf32> -> vector<96x240xf32>
    %c1 = arith.constant 1 : index
    %c0_11 = arith.constant 0 : index
    %c0_12 = arith.constant 0 : index
    %67 = vector.load %arg2[%c1, %c0_11, %c0_12] : memref<5x28x240xf32, #tpu.memory_space<vmem>>, vector<1x28x240xf32>
    %68 = vector.shape_cast %67 : vector<1x28x240xf32> to vector<28x240xf32>
    %c1_13 = arith.constant 1 : index
    %c0_14 = arith.constant 0 : index
    %c0_15 = arith.constant 0 : index
    %69 = vector.load %arg3[%c1_13, %c0_14, %c0_15] : memref<5x28x240xf32, #tpu.memory_space<vmem>>, vector<1x28x240xf32>
    %70 = vector.shape_cast %69 : vector<1x28x240xf32> to vector<28x240xf32>
    %71 = tpu.concatenate %4, %8, %12, %16, %20, %24, %28, %32, %36, %40, %44, %48 in 0 : vector<8x28xf32>, vector<8x28xf32>, vector<8x28xf32>, vector<8x28xf32>, vector<8x28xf32>, vector<8x28xf32>, vector<8x28xf32>, vector<8x28xf32>, vector<8x28xf32>, vector<8x28xf32>, vector<8x28xf32>, vector<8x28xf32> -> vector<96x28xf32>
    %72 = tpu.concatenate %6, %10, %14, %18, %22, %26, %30, %34, %38, %42, %46, %50 in 0 : vector<8x28xf32>, vector<8x28xf32>, vector<8x28xf32>, vector<8x28xf32>, vector<8x28xf32>, vector<8x28xf32>, vector<8x28xf32>, vector<8x28xf32>, vector<8x28xf32>, vector<8x28xf32>, vector<8x28xf32>, vector<8x28xf32> -> vector<96x28xf32>
    %cst_16 = arith.constant dense<0.000000e+00> : vector<96x240xf32>
    %73 = tpu.matmul %71, %68, %cst_16 {dimension_numbers = #tpu.dot_dimension_numbers<[1], [0], [0], [1], [0, 0, 1, 1], [], []>} : vector<96x28xf32>, vector<28x240xf32>, vector<96x240xf32> -> vector<96x240xf32>
    %74 = arith.addf %63, %73 : vector<96x240xf32>
    %cst_17 = arith.constant dense<0.000000e+00> : vector<96x240xf32>
    %75 = tpu.matmul %71, %70, %cst_17 {dimension_numbers = #tpu.dot_dimension_numbers<[1], [0], [0], [1], [0, 0, 1, 1], [], []>} : vector<96x28xf32>, vector<28x240xf32>, vector<96x240xf32> -> vector<96x240xf32>
    %76 = arith.addf %64, %75 : vector<96x240xf32>
    %cst_18 = arith.constant dense<0.000000e+00> : vector<96x240xf32>
    %77 = tpu.matmul %72, %68, %cst_18 {dimension_numbers = #tpu.dot_dimension_numbers<[1], [0], [0], [1], [0, 0, 1, 1], [], []>} : vector<96x28xf32>, vector<28x240xf32>, vector<96x240xf32> -> vector<96x240xf32>
    %78 = arith.addf %65, %77 : vector<96x240xf32>
    %cst_19 = arith.constant dense<0.000000e+00> : vector<96x240xf32>
    %79 = tpu.matmul %72, %70, %cst_19 {dimension_numbers = #tpu.dot_dimension_numbers<[1], [0], [0], [1], [0, 0, 1, 1], [], []>} : vector<96x28xf32>, vector<28x240xf32>, vector<96x240xf32> -> vector<96x240xf32>
    %80 = arith.addf %66, %79 : vector<96x240xf32>
    %c2 = arith.constant 2 : index
    %c0_20 = arith.constant 0 : index
    %c0_21 = arith.constant 0 : index
    %81 = vector.load %arg2[%c2, %c0_20, %c0_21] : memref<5x28x240xf32, #tpu.memory_space<vmem>>, vector<1x28x240xf32>
    %82 = vector.shape_cast %81 : vector<1x28x240xf32> to vector<28x240xf32>
    %c2_22 = arith.constant 2 : index
    %c0_23 = arith.constant 0 : index
    %c0_24 = arith.constant 0 : index
    %83 = vector.load %arg3[%c2_22, %c0_23, %c0_24] : memref<5x28x240xf32, #tpu.memory_space<vmem>>, vector<1x28x240xf32>
    %84 = vector.shape_cast %83 : vector<1x28x240xf32> to vector<28x240xf32>
    %85 = tpu.concatenate %6, %10, %14, %18, %22, %26, %30, %34, %38, %42, %46, %50 in 0 : vector<8x28xf32>, vector<8x28xf32>, vector<8x28xf32>, vector<8x28xf32>, vector<8x28xf32>, vector<8x28xf32>, vector<8x28xf32>, vector<8x28xf32>, vector<8x28xf32>, vector<8x28xf32>, vector<8x28xf32>, vector<8x28xf32> -> vector<96x28xf32>
    %86 = tpu.concatenate %8, %12, %16, %20, %24, %28, %32, %36, %40, %44, %48, %52 in 0 : vector<8x28xf32>, vector<8x28xf32>, vector<8x28xf32>, vector<8x28xf32>, vector<8x28xf32>, vector<8x28xf32>, vector<8x28xf32>, vector<8x28xf32>, vector<8x28xf32>, vector<8x28xf32>, vector<8x28xf32>, vector<8x28xf32> -> vector<96x28xf32>
    %cst_25 = arith.constant dense<0.000000e+00> : vector<96x240xf32>
    %87 = tpu.matmul %85, %82, %cst_25 {dimension_numbers = #tpu.dot_dimension_numbers<[1], [0], [0], [1], [0, 0, 1, 1], [], []>} : vector<96x28xf32>, vector<28x240xf32>, vector<96x240xf32> -> vector<96x240xf32>
    %88 = arith.addf %74, %87 : vector<96x240xf32>
    %cst_26 = arith.constant dense<0.000000e+00> : vector<96x240xf32>
    %89 = tpu.matmul %85, %84, %cst_26 {dimension_numbers = #tpu.dot_dimension_numbers<[1], [0], [0], [1], [0, 0, 1, 1], [], []>} : vector<96x28xf32>, vector<28x240xf32>, vector<96x240xf32> -> vector<96x240xf32>
    %90 = arith.addf %76, %89 : vector<96x240xf32>
    %cst_27 = arith.constant dense<0.000000e+00> : vector<96x240xf32>
    %91 = tpu.matmul %86, %82, %cst_27 {dimension_numbers = #tpu.dot_dimension_numbers<[1], [0], [0], [1], [0, 0, 1, 1], [], []>} : vector<96x28xf32>, vector<28x240xf32>, vector<96x240xf32> -> vector<96x240xf32>
    %92 = arith.addf %78, %91 : vector<96x240xf32>
    %cst_28 = arith.constant dense<0.000000e+00> : vector<96x240xf32>
    %93 = tpu.matmul %86, %84, %cst_28 {dimension_numbers = #tpu.dot_dimension_numbers<[1], [0], [0], [1], [0, 0, 1, 1], [], []>} : vector<96x28xf32>, vector<28x240xf32>, vector<96x240xf32> -> vector<96x240xf32>
    %94 = arith.addf %80, %93 : vector<96x240xf32>
    %c3 = arith.constant 3 : index
    %c0_29 = arith.constant 0 : index
    %c0_30 = arith.constant 0 : index
    %95 = vector.load %arg2[%c3, %c0_29, %c0_30] : memref<5x28x240xf32, #tpu.memory_space<vmem>>, vector<1x28x240xf32>
    %96 = vector.shape_cast %95 : vector<1x28x240xf32> to vector<28x240xf32>
    %c3_31 = arith.constant 3 : index
    %c0_32 = arith.constant 0 : index
    %c0_33 = arith.constant 0 : index
    %97 = vector.load %arg3[%c3_31, %c0_32, %c0_33] : memref<5x28x240xf32, #tpu.memory_space<vmem>>, vector<1x28x240xf32>
    %98 = vector.shape_cast %97 : vector<1x28x240xf32> to vector<28x240xf32>
    %99 = tpu.concatenate %8, %12, %16, %20, %24, %28, %32, %36, %40, %44, %48, %52 in 0 : vector<8x28xf32>, vector<8x28xf32>, vector<8x28xf32>, vector<8x28xf32>, vector<8x28xf32>, vector<8x28xf32>, vector<8x28xf32>, vector<8x28xf32>, vector<8x28xf32>, vector<8x28xf32>, vector<8x28xf32>, vector<8x28xf32> -> vector<96x28xf32>
    %100 = tpu.concatenate %10, %14, %18, %22, %26, %30, %34, %38, %42, %46, %50, %54 in 0 : vector<8x28xf32>, vector<8x28xf32>, vector<8x28xf32>, vector<8x28xf32>, vector<8x28xf32>, vector<8x28xf32>, vector<8x28xf32>, vector<8x28xf32>, vector<8x28xf32>, vector<8x28xf32>, vector<8x28xf32>, vector<8x28xf32> -> vector<96x28xf32>
    %cst_34 = arith.constant dense<0.000000e+00> : vector<96x240xf32>
    %101 = tpu.matmul %99, %96, %cst_34 {dimension_numbers = #tpu.dot_dimension_numbers<[1], [0], [0], [1], [0, 0, 1, 1], [], []>} : vector<96x28xf32>, vector<28x240xf32>, vector<96x240xf32> -> vector<96x240xf32>
    %102 = arith.addf %88, %101 : vector<96x240xf32>
    %cst_35 = arith.constant dense<0.000000e+00> : vector<96x240xf32>
    %103 = tpu.matmul %99, %98, %cst_35 {dimension_numbers = #tpu.dot_dimension_numbers<[1], [0], [0], [1], [0, 0, 1, 1], [], []>} : vector<96x28xf32>, vector<28x240xf32>, vector<96x240xf32> -> vector<96x240xf32>
    %104 = arith.addf %90, %103 : vector<96x240xf32>
    %cst_36 = arith.constant dense<0.000000e+00> : vector<96x240xf32>
    %105 = tpu.matmul %100, %96, %cst_36 {dimension_numbers = #tpu.dot_dimension_numbers<[1], [0], [0], [1], [0, 0, 1, 1], [], []>} : vector<96x28xf32>, vector<28x240xf32>, vector<96x240xf32> -> vector<96x240xf32>
    %106 = arith.addf %92, %105 : vector<96x240xf32>
    %cst_37 = arith.constant dense<0.000000e+00> : vector<96x240xf32>
    %107 = tpu.matmul %100, %98, %cst_37 {dimension_numbers = #tpu.dot_dimension_numbers<[1], [0], [0], [1], [0, 0, 1, 1], [], []>} : vector<96x28xf32>, vector<28x240xf32>, vector<96x240xf32> -> vector<96x240xf32>
    %108 = arith.addf %94, %107 : vector<96x240xf32>
    %c4 = arith.constant 4 : index
    %c0_38 = arith.constant 0 : index
    %c0_39 = arith.constant 0 : index
    %109 = vector.load %arg2[%c4, %c0_38, %c0_39] : memref<5x28x240xf32, #tpu.memory_space<vmem>>, vector<1x28x240xf32>
    %110 = vector.shape_cast %109 : vector<1x28x240xf32> to vector<28x240xf32>
    %c4_40 = arith.constant 4 : index
    %c0_41 = arith.constant 0 : index
    %c0_42 = arith.constant 0 : index
    %111 = vector.load %arg3[%c4_40, %c0_41, %c0_42] : memref<5x28x240xf32, #tpu.memory_space<vmem>>, vector<1x28x240xf32>
    %112 = vector.shape_cast %111 : vector<1x28x240xf32> to vector<28x240xf32>
    %113 = tpu.concatenate %10, %14, %18, %22, %26, %30, %34, %38, %42, %46, %50, %54 in 0 : vector<8x28xf32>, vector<8x28xf32>, vector<8x28xf32>, vector<8x28xf32>, vector<8x28xf32>, vector<8x28xf32>, vector<8x28xf32>, vector<8x28xf32>, vector<8x28xf32>, vector<8x28xf32>, vector<8x28xf32>, vector<8x28xf32> -> vector<96x28xf32>
    %114 = tpu.concatenate %12, %16, %20, %24, %28, %32, %36, %40, %44, %48, %52, %56 in 0 : vector<8x28xf32>, vector<8x28xf32>, vector<8x28xf32>, vector<8x28xf32>, vector<8x28xf32>, vector<8x28xf32>, vector<8x28xf32>, vector<8x28xf32>, vector<8x28xf32>, vector<8x28xf32>, vector<8x28xf32>, vector<8x28xf32> -> vector<96x28xf32>
    %cst_43 = arith.constant dense<0.000000e+00> : vector<96x240xf32>
    %115 = tpu.matmul %113, %110, %cst_43 {dimension_numbers = #tpu.dot_dimension_numbers<[1], [0], [0], [1], [0, 0, 1, 1], [], []>} : vector<96x28xf32>, vector<28x240xf32>, vector<96x240xf32> -> vector<96x240xf32>
    %116 = arith.addf %102, %115 : vector<96x240xf32>
    %cst_44 = arith.constant dense<0.000000e+00> : vector<96x240xf32>
    %117 = tpu.matmul %113, %112, %cst_44 {dimension_numbers = #tpu.dot_dimension_numbers<[1], [0], [0], [1], [0, 0, 1, 1], [], []>} : vector<96x28xf32>, vector<28x240xf32>, vector<96x240xf32> -> vector<96x240xf32>
    %118 = arith.addf %104, %117 : vector<96x240xf32>
    %cst_45 = arith.constant dense<0.000000e+00> : vector<96x240xf32>
    %119 = tpu.matmul %114, %110, %cst_45 {dimension_numbers = #tpu.dot_dimension_numbers<[1], [0], [0], [1], [0, 0, 1, 1], [], []>} : vector<96x28xf32>, vector<28x240xf32>, vector<96x240xf32> -> vector<96x240xf32>
    %120 = arith.addf %106, %119 : vector<96x240xf32>
    %cst_46 = arith.constant dense<0.000000e+00> : vector<96x240xf32>
    %121 = tpu.matmul %114, %112, %cst_46 {dimension_numbers = #tpu.dot_dimension_numbers<[1], [0], [0], [1], [0, 0, 1, 1], [], []>} : vector<96x28xf32>, vector<28x240xf32>, vector<96x240xf32> -> vector<96x240xf32>
    %122 = arith.addf %108, %121 : vector<96x240xf32>
    %123 = arith.maximumf %116, %118 : vector<96x240xf32>
    %124 = arith.maximumf %120, %122 : vector<96x240xf32>
    %125 = arith.maximumf %123, %124 : vector<96x240xf32>
    %c0_47 = arith.constant 0 : index
    %c0_48 = arith.constant 0 : index
    %126 = vector.load %arg4[%c0_47, %c0_48] : memref<1x240xf32, #tpu.memory_space<vmem>>, vector<1x240xf32>
    %127 = vector.broadcast %126 : vector<1x240xf32> to vector<96x240xf32>
    %128 = arith.addf %125, %127 : vector<96x240xf32>
    %cst_49 = arith.constant 0.000000e+00 : f32
    %129 = vector.broadcast %cst_49 : f32 to vector<96x240xf32>
    %130 = arith.maximumf %128, %129 : vector<96x240xf32>
    %131 = vector.extract_strided_slice %130 {offsets = [0, 0], sizes = [8, 240], strides = [1, 1]} : vector<96x240xf32> to vector<8x240xf32>
    %132 = vector.extract_strided_slice %130 {offsets = [8, 0], sizes = [8, 240], strides = [1, 1]} : vector<96x240xf32> to vector<8x240xf32>
    %133 = vector.extract_strided_slice %130 {offsets = [16, 0], sizes = [8, 240], strides = [1, 1]} : vector<96x240xf32> to vector<8x240xf32>
    %134 = vector.extract_strided_slice %130 {offsets = [24, 0], sizes = [8, 240], strides = [1, 1]} : vector<96x240xf32> to vector<8x240xf32>
    %135 = vector.extract_strided_slice %130 {offsets = [32, 0], sizes = [8, 240], strides = [1, 1]} : vector<96x240xf32> to vector<8x240xf32>
    %136 = vector.extract_strided_slice %130 {offsets = [40, 0], sizes = [8, 240], strides = [1, 1]} : vector<96x240xf32> to vector<8x240xf32>
    %137 = vector.extract_strided_slice %130 {offsets = [48, 0], sizes = [8, 240], strides = [1, 1]} : vector<96x240xf32> to vector<8x240xf32>
    %138 = vector.extract_strided_slice %130 {offsets = [56, 0], sizes = [8, 240], strides = [1, 1]} : vector<96x240xf32> to vector<8x240xf32>
    %139 = vector.extract_strided_slice %130 {offsets = [64, 0], sizes = [8, 240], strides = [1, 1]} : vector<96x240xf32> to vector<8x240xf32>
    %140 = vector.extract_strided_slice %130 {offsets = [72, 0], sizes = [8, 240], strides = [1, 1]} : vector<96x240xf32> to vector<8x240xf32>
    %141 = vector.extract_strided_slice %130 {offsets = [80, 0], sizes = [8, 240], strides = [1, 1]} : vector<96x240xf32> to vector<8x240xf32>
    %142 = vector.extract_strided_slice %130 {offsets = [88, 0], sizes = [8, 240], strides = [1, 1]} : vector<96x240xf32> to vector<8x240xf32>
    %c0_50 = arith.constant 0 : index
    %c0_51 = arith.constant 0 : index
    %c0_52 = arith.constant 0 : index
    %143 = vector.load %arg5[%c0_50, %c0_51, %c0_52] : memref<5x240x200xf32, #tpu.memory_space<vmem>>, vector<1x240x200xf32>
    %144 = vector.shape_cast %143 : vector<1x240x200xf32> to vector<240x200xf32>
    %c0_53 = arith.constant 0 : index
    %c0_54 = arith.constant 0 : index
    %c0_55 = arith.constant 0 : index
    %145 = vector.load %arg6[%c0_53, %c0_54, %c0_55] : memref<5x240x200xf32, #tpu.memory_space<vmem>>, vector<1x240x200xf32>
    %146 = vector.shape_cast %145 : vector<1x240x200xf32> to vector<240x200xf32>
    %147 = tpu.concatenate %131, %133, %135, %137 in 0 : vector<8x240xf32>, vector<8x240xf32>, vector<8x240xf32>, vector<8x240xf32> -> vector<32x240xf32>
    %148 = tpu.concatenate %132, %134, %136, %138 in 0 : vector<8x240xf32>, vector<8x240xf32>, vector<8x240xf32>, vector<8x240xf32> -> vector<32x240xf32>
    %cst_56 = arith.constant dense<0.000000e+00> : vector<32x200xf32>
    %149 = tpu.matmul %147, %144, %cst_56 {dimension_numbers = #tpu.dot_dimension_numbers<[1], [0], [0], [1], [0, 0, 1, 1], [], []>} : vector<32x240xf32>, vector<240x200xf32>, vector<32x200xf32> -> vector<32x200xf32>
    %cst_57 = arith.constant dense<0.000000e+00> : vector<32x200xf32>
    %150 = tpu.matmul %147, %146, %cst_57 {dimension_numbers = #tpu.dot_dimension_numbers<[1], [0], [0], [1], [0, 0, 1, 1], [], []>} : vector<32x240xf32>, vector<240x200xf32>, vector<32x200xf32> -> vector<32x200xf32>
    %cst_58 = arith.constant dense<0.000000e+00> : vector<32x200xf32>
    %151 = tpu.matmul %148, %144, %cst_58 {dimension_numbers = #tpu.dot_dimension_numbers<[1], [0], [0], [1], [0, 0, 1, 1], [], []>} : vector<32x240xf32>, vector<240x200xf32>, vector<32x200xf32> -> vector<32x200xf32>
    %cst_59 = arith.constant dense<0.000000e+00> : vector<32x200xf32>
    %152 = tpu.matmul %148, %146, %cst_59 {dimension_numbers = #tpu.dot_dimension_numbers<[1], [0], [0], [1], [0, 0, 1, 1], [], []>} : vector<32x240xf32>, vector<240x200xf32>, vector<32x200xf32> -> vector<32x200xf32>
    %c1_60 = arith.constant 1 : index
    %c0_61 = arith.constant 0 : index
    %c0_62 = arith.constant 0 : index
    %153 = vector.load %arg5[%c1_60, %c0_61, %c0_62] : memref<5x240x200xf32, #tpu.memory_space<vmem>>, vector<1x240x200xf32>
    %154 = vector.shape_cast %153 : vector<1x240x200xf32> to vector<240x200xf32>
    %c1_63 = arith.constant 1 : index
    %c0_64 = arith.constant 0 : index
    %c0_65 = arith.constant 0 : index
    %155 = vector.load %arg6[%c1_63, %c0_64, %c0_65] : memref<5x240x200xf32, #tpu.memory_space<vmem>>, vector<1x240x200xf32>
    %156 = vector.shape_cast %155 : vector<1x240x200xf32> to vector<240x200xf32>
    %157 = tpu.concatenate %132, %134, %136, %138 in 0 : vector<8x240xf32>, vector<8x240xf32>, vector<8x240xf32>, vector<8x240xf32> -> vector<32x240xf32>
    %158 = tpu.concatenate %133, %135, %137, %139 in 0 : vector<8x240xf32>, vector<8x240xf32>, vector<8x240xf32>, vector<8x240xf32> -> vector<32x240xf32>
    %cst_66 = arith.constant dense<0.000000e+00> : vector<32x200xf32>
    %159 = tpu.matmul %157, %154, %cst_66 {dimension_numbers = #tpu.dot_dimension_numbers<[1], [0], [0], [1], [0, 0, 1, 1], [], []>} : vector<32x240xf32>, vector<240x200xf32>, vector<32x200xf32> -> vector<32x200xf32>
    %160 = arith.addf %149, %159 : vector<32x200xf32>
    %cst_67 = arith.constant dense<0.000000e+00> : vector<32x200xf32>
    %161 = tpu.matmul %157, %156, %cst_67 {dimension_numbers = #tpu.dot_dimension_numbers<[1], [0], [0], [1], [0, 0, 1, 1], [], []>} : vector<32x240xf32>, vector<240x200xf32>, vector<32x200xf32> -> vector<32x200xf32>
    %162 = arith.addf %150, %161 : vector<32x200xf32>
    %cst_68 = arith.constant dense<0.000000e+00> : vector<32x200xf32>
    %163 = tpu.matmul %158, %154, %cst_68 {dimension_numbers = #tpu.dot_dimension_numbers<[1], [0], [0], [1], [0, 0, 1, 1], [], []>} : vector<32x240xf32>, vector<240x200xf32>, vector<32x200xf32> -> vector<32x200xf32>
    %164 = arith.addf %151, %163 : vector<32x200xf32>
    %cst_69 = arith.constant dense<0.000000e+00> : vector<32x200xf32>
    %165 = tpu.matmul %158, %156, %cst_69 {dimension_numbers = #tpu.dot_dimension_numbers<[1], [0], [0], [1], [0, 0, 1, 1], [], []>} : vector<32x240xf32>, vector<240x200xf32>, vector<32x200xf32> -> vector<32x200xf32>
    %166 = arith.addf %152, %165 : vector<32x200xf32>
    %c2_70 = arith.constant 2 : index
    %c0_71 = arith.constant 0 : index
    %c0_72 = arith.constant 0 : index
    %167 = vector.load %arg5[%c2_70, %c0_71, %c0_72] : memref<5x240x200xf32, #tpu.memory_space<vmem>>, vector<1x240x200xf32>
    %168 = vector.shape_cast %167 : vector<1x240x200xf32> to vector<240x200xf32>
    %c2_73 = arith.constant 2 : index
    %c0_74 = arith.constant 0 : index
    %c0_75 = arith.constant 0 : index
    %169 = vector.load %arg6[%c2_73, %c0_74, %c0_75] : memref<5x240x200xf32, #tpu.memory_space<vmem>>, vector<1x240x200xf32>
    %170 = vector.shape_cast %169 : vector<1x240x200xf32> to vector<240x200xf32>
    %171 = tpu.concatenate %133, %135, %137, %139 in 0 : vector<8x240xf32>, vector<8x240xf32>, vector<8x240xf32>, vector<8x240xf32> -> vector<32x240xf32>
    %172 = tpu.concatenate %134, %136, %138, %140 in 0 : vector<8x240xf32>, vector<8x240xf32>, vector<8x240xf32>, vector<8x240xf32> -> vector<32x240xf32>
    %cst_76 = arith.constant dense<0.000000e+00> : vector<32x200xf32>
    %173 = tpu.matmul %171, %168, %cst_76 {dimension_numbers = #tpu.dot_dimension_numbers<[1], [0], [0], [1], [0, 0, 1, 1], [], []>} : vector<32x240xf32>, vector<240x200xf32>, vector<32x200xf32> -> vector<32x200xf32>
    %174 = arith.addf %160, %173 : vector<32x200xf32>
    %cst_77 = arith.constant dense<0.000000e+00> : vector<32x200xf32>
    %175 = tpu.matmul %171, %170, %cst_77 {dimension_numbers = #tpu.dot_dimension_numbers<[1], [0], [0], [1], [0, 0, 1, 1], [], []>} : vector<32x240xf32>, vector<240x200xf32>, vector<32x200xf32> -> vector<32x200xf32>
    %176 = arith.addf %162, %175 : vector<32x200xf32>
    %cst_78 = arith.constant dense<0.000000e+00> : vector<32x200xf32>
    %177 = tpu.matmul %172, %168, %cst_78 {dimension_numbers = #tpu.dot_dimension_numbers<[1], [0], [0], [1], [0, 0, 1, 1], [], []>} : vector<32x240xf32>, vector<240x200xf32>, vector<32x200xf32> -> vector<32x200xf32>
    %178 = arith.addf %164, %177 : vector<32x200xf32>
    %cst_79 = arith.constant dense<0.000000e+00> : vector<32x200xf32>
    %179 = tpu.matmul %172, %170, %cst_79 {dimension_numbers = #tpu.dot_dimension_numbers<[1], [0], [0], [1], [0, 0, 1, 1], [], []>} : vector<32x240xf32>, vector<240x200xf32>, vector<32x200xf32> -> vector<32x200xf32>
    %180 = arith.addf %166, %179 : vector<32x200xf32>
    %c3_80 = arith.constant 3 : index
    %c0_81 = arith.constant 0 : index
    %c0_82 = arith.constant 0 : index
    %181 = vector.load %arg5[%c3_80, %c0_81, %c0_82] : memref<5x240x200xf32, #tpu.memory_space<vmem>>, vector<1x240x200xf32>
    %182 = vector.shape_cast %181 : vector<1x240x200xf32> to vector<240x200xf32>
    %c3_83 = arith.constant 3 : index
    %c0_84 = arith.constant 0 : index
    %c0_85 = arith.constant 0 : index
    %183 = vector.load %arg6[%c3_83, %c0_84, %c0_85] : memref<5x240x200xf32, #tpu.memory_space<vmem>>, vector<1x240x200xf32>
    %184 = vector.shape_cast %183 : vector<1x240x200xf32> to vector<240x200xf32>
    %185 = tpu.concatenate %134, %136, %138, %140 in 0 : vector<8x240xf32>, vector<8x240xf32>, vector<8x240xf32>, vector<8x240xf32> -> vector<32x240xf32>
    %186 = tpu.concatenate %135, %137, %139, %141 in 0 : vector<8x240xf32>, vector<8x240xf32>, vector<8x240xf32>, vector<8x240xf32> -> vector<32x240xf32>
    %cst_86 = arith.constant dense<0.000000e+00> : vector<32x200xf32>
    %187 = tpu.matmul %185, %182, %cst_86 {dimension_numbers = #tpu.dot_dimension_numbers<[1], [0], [0], [1], [0, 0, 1, 1], [], []>} : vector<32x240xf32>, vector<240x200xf32>, vector<32x200xf32> -> vector<32x200xf32>
    %188 = arith.addf %174, %187 : vector<32x200xf32>
    %cst_87 = arith.constant dense<0.000000e+00> : vector<32x200xf32>
    %189 = tpu.matmul %185, %184, %cst_87 {dimension_numbers = #tpu.dot_dimension_numbers<[1], [0], [0], [1], [0, 0, 1, 1], [], []>} : vector<32x240xf32>, vector<240x200xf32>, vector<32x200xf32> -> vector<32x200xf32>
    %190 = arith.addf %176, %189 : vector<32x200xf32>
    %cst_88 = arith.constant dense<0.000000e+00> : vector<32x200xf32>
    %191 = tpu.matmul %186, %182, %cst_88 {dimension_numbers = #tpu.dot_dimension_numbers<[1], [0], [0], [1], [0, 0, 1, 1], [], []>} : vector<32x240xf32>, vector<240x200xf32>, vector<32x200xf32> -> vector<32x200xf32>
    %192 = arith.addf %178, %191 : vector<32x200xf32>
    %cst_89 = arith.constant dense<0.000000e+00> : vector<32x200xf32>
    %193 = tpu.matmul %186, %184, %cst_89 {dimension_numbers = #tpu.dot_dimension_numbers<[1], [0], [0], [1], [0, 0, 1, 1], [], []>} : vector<32x240xf32>, vector<240x200xf32>, vector<32x200xf32> -> vector<32x200xf32>
    %194 = arith.addf %180, %193 : vector<32x200xf32>
    %c4_90 = arith.constant 4 : index
    %c0_91 = arith.constant 0 : index
    %c0_92 = arith.constant 0 : index
    %195 = vector.load %arg5[%c4_90, %c0_91, %c0_92] : memref<5x240x200xf32, #tpu.memory_space<vmem>>, vector<1x240x200xf32>
    %196 = vector.shape_cast %195 : vector<1x240x200xf32> to vector<240x200xf32>
    %c4_93 = arith.constant 4 : index
    %c0_94 = arith.constant 0 : index
    %c0_95 = arith.constant 0 : index
    %197 = vector.load %arg6[%c4_93, %c0_94, %c0_95] : memref<5x240x200xf32, #tpu.memory_space<vmem>>, vector<1x240x200xf32>
    %198 = vector.shape_cast %197 : vector<1x240x200xf32> to vector<240x200xf32>
    %199 = tpu.concatenate %135, %137, %139, %141 in 0 : vector<8x240xf32>, vector<8x240xf32>, vector<8x240xf32>, vector<8x240xf32> -> vector<32x240xf32>
    %200 = tpu.concatenate %136, %138, %140, %142 in 0 : vector<8x240xf32>, vector<8x240xf32>, vector<8x240xf32>, vector<8x240xf32> -> vector<32x240xf32>
    %cst_96 = arith.constant dense<0.000000e+00> : vector<32x200xf32>
    %201 = tpu.matmul %199, %196, %cst_96 {dimension_numbers = #tpu.dot_dimension_numbers<[1], [0], [0], [1], [0, 0, 1, 1], [], []>} : vector<32x240xf32>, vector<240x200xf32>, vector<32x200xf32> -> vector<32x200xf32>
    %202 = arith.addf %188, %201 : vector<32x200xf32>
    %cst_97 = arith.constant dense<0.000000e+00> : vector<32x200xf32>
    %203 = tpu.matmul %199, %198, %cst_97 {dimension_numbers = #tpu.dot_dimension_numbers<[1], [0], [0], [1], [0, 0, 1, 1], [], []>} : vector<32x240xf32>, vector<240x200xf32>, vector<32x200xf32> -> vector<32x200xf32>
    %204 = arith.addf %190, %203 : vector<32x200xf32>
    %cst_98 = arith.constant dense<0.000000e+00> : vector<32x200xf32>
    %205 = tpu.matmul %200, %196, %cst_98 {dimension_numbers = #tpu.dot_dimension_numbers<[1], [0], [0], [1], [0, 0, 1, 1], [], []>} : vector<32x240xf32>, vector<240x200xf32>, vector<32x200xf32> -> vector<32x200xf32>
    %206 = arith.addf %192, %205 : vector<32x200xf32>
    %cst_99 = arith.constant dense<0.000000e+00> : vector<32x200xf32>
    %207 = tpu.matmul %200, %198, %cst_99 {dimension_numbers = #tpu.dot_dimension_numbers<[1], [0], [0], [1], [0, 0, 1, 1], [], []>} : vector<32x240xf32>, vector<240x200xf32>, vector<32x200xf32> -> vector<32x200xf32>
    %208 = arith.addf %194, %207 : vector<32x200xf32>
    %209 = arith.maximumf %202, %204 : vector<32x200xf32>
    %210 = arith.maximumf %206, %208 : vector<32x200xf32>
    %211 = arith.maximumf %209, %210 : vector<32x200xf32>
    %c0_100 = arith.constant 0 : index
    %c0_101 = arith.constant 0 : index
    %212 = vector.load %arg7[%c0_100, %c0_101] : memref<1x200xf32, #tpu.memory_space<vmem>>, vector<1x200xf32>
    %213 = vector.broadcast %212 : vector<1x200xf32> to vector<32x200xf32>
    %214 = arith.addf %211, %213 : vector<32x200xf32>
    %cst_102 = arith.constant 0.000000e+00 : f32
    %215 = vector.broadcast %cst_102 : f32 to vector<32x200xf32>
    %216 = arith.maximumf %214, %215 : vector<32x200xf32>
    %217 = vector.extract_strided_slice %216 {offsets = [0, 0], sizes = [8, 200], strides = [1, 1]} : vector<32x200xf32> to vector<8x200xf32>
    %c0_103 = arith.constant 0 : index
    %c0_104 = arith.constant 0 : index
    %c0_105 = arith.constant 0 : index
    %218 = vector.load %arg8[%c0_103, %c0_104, %c0_105] : memref<4x200x512xf32, #tpu.memory_space<vmem>>, vector<1x200x512xf32>
    %219 = vector.shape_cast %218 : vector<1x200x512xf32> to vector<200x512xf32>
    %cst_106 = arith.constant dense<0.000000e+00> : vector<8x512xf32>
    %220 = tpu.matmul %217, %219, %cst_106 {dimension_numbers = #tpu.dot_dimension_numbers<[1], [0], [0], [1], [0, 0, 1, 1], [], []>} : vector<8x200xf32>, vector<200x512xf32>, vector<8x512xf32> -> vector<8x512xf32>
    %221 = vector.extract_strided_slice %216 {offsets = [8, 0], sizes = [8, 200], strides = [1, 1]} : vector<32x200xf32> to vector<8x200xf32>
    %c1_107 = arith.constant 1 : index
    %c0_108 = arith.constant 0 : index
    %c0_109 = arith.constant 0 : index
    %222 = vector.load %arg8[%c1_107, %c0_108, %c0_109] : memref<4x200x512xf32, #tpu.memory_space<vmem>>, vector<1x200x512xf32>
    %223 = vector.shape_cast %222 : vector<1x200x512xf32> to vector<200x512xf32>
    %cst_110 = arith.constant dense<0.000000e+00> : vector<8x512xf32>
    %224 = tpu.matmul %221, %223, %cst_110 {dimension_numbers = #tpu.dot_dimension_numbers<[1], [0], [0], [1], [0, 0, 1, 1], [], []>} : vector<8x200xf32>, vector<200x512xf32>, vector<8x512xf32> -> vector<8x512xf32>
    %225 = arith.addf %220, %224 : vector<8x512xf32>
    %226 = vector.extract_strided_slice %216 {offsets = [16, 0], sizes = [8, 200], strides = [1, 1]} : vector<32x200xf32> to vector<8x200xf32>
    %c2_111 = arith.constant 2 : index
    %c0_112 = arith.constant 0 : index
    %c0_113 = arith.constant 0 : index
    %227 = vector.load %arg8[%c2_111, %c0_112, %c0_113] : memref<4x200x512xf32, #tpu.memory_space<vmem>>, vector<1x200x512xf32>
    %228 = vector.shape_cast %227 : vector<1x200x512xf32> to vector<200x512xf32>
    %cst_114 = arith.constant dense<0.000000e+00> : vector<8x512xf32>
    %229 = tpu.matmul %226, %228, %cst_114 {dimension_numbers = #tpu.dot_dimension_numbers<[1], [0], [0], [1], [0, 0, 1, 1], [], []>} : vector<8x200xf32>, vector<200x512xf32>, vector<8x512xf32> -> vector<8x512xf32>
    %230 = arith.addf %225, %229 : vector<8x512xf32>
    %231 = vector.extract_strided_slice %216 {offsets = [24, 0], sizes = [8, 200], strides = [1, 1]} : vector<32x200xf32> to vector<8x200xf32>
    %c3_115 = arith.constant 3 : index
    %c0_116 = arith.constant 0 : index
    %c0_117 = arith.constant 0 : index
    %232 = vector.load %arg8[%c3_115, %c0_116, %c0_117] : memref<4x200x512xf32, #tpu.memory_space<vmem>>, vector<1x200x512xf32>
    %233 = vector.shape_cast %232 : vector<1x200x512xf32> to vector<200x512xf32>
    %cst_118 = arith.constant dense<0.000000e+00> : vector<8x512xf32>
    %234 = tpu.matmul %231, %233, %cst_118 {dimension_numbers = #tpu.dot_dimension_numbers<[1], [0], [0], [1], [0, 0, 1, 1], [], []>} : vector<8x200xf32>, vector<200x512xf32>, vector<8x512xf32> -> vector<8x512xf32>
    %235 = arith.addf %230, %234 : vector<8x512xf32>
    %c0_119 = arith.constant 0 : index
    %c0_120 = arith.constant 0 : index
    %236 = vector.load %arg9[%c0_119, %c0_120] : memref<1x512xf32, #tpu.memory_space<vmem>>, vector<1x512xf32>
    %237 = vector.broadcast %236 : vector<1x512xf32> to vector<8x512xf32>
    %238 = arith.addf %235, %237 : vector<8x512xf32>
    %cst_121 = arith.constant 0.000000e+00 : f32
    %239 = vector.broadcast %cst_121 : f32 to vector<8x512xf32>
    %240 = arith.maximumf %238, %239 : vector<8x512xf32>
    %c0_122 = arith.constant 0 : index
    %c0_123 = arith.constant 0 : index
    %241 = vector.load %arg10[%c0_122, %c0_123] : memref<512x10xf32, #tpu.memory_space<vmem>>, vector<512x10xf32>
    %cst_124 = arith.constant dense<0.000000e+00> : vector<8x10xf32>
    %242 = tpu.matmul %240, %241, %cst_124 {dimension_numbers = #tpu.dot_dimension_numbers<[1], [0], [0], [1], [0, 0, 1, 1], [], []>} : vector<8x512xf32>, vector<512x10xf32>, vector<8x10xf32> -> vector<8x10xf32>
    %c0_125 = arith.constant 0 : index
    %c0_126 = arith.constant 0 : index
    %243 = vector.load %arg11[%c0_125, %c0_126] : memref<1x10xf32, #tpu.memory_space<vmem>>, vector<1x10xf32>
    %244 = vector.broadcast %243 : vector<1x10xf32> to vector<8x10xf32>
    %245 = arith.addf %242, %244 : vector<8x10xf32>
    %cst_127 = arith.constant dense<0xFF800000> : vector<8xf32>
    %246 = vector.multi_reduction <maximumf>, %245, %cst_127 [1] : vector<8x10xf32> to vector<8xf32>
    %247 = vector.shape_cast %246 : vector<8xf32> to vector<8x1xf32>
    %248 = vector.broadcast %247 : vector<8x1xf32> to vector<8x10xf32>
    %249 = arith.subf %245, %248 : vector<8x10xf32>
    %250 = math.exp %249 : vector<8x10xf32>
    %cst_128 = arith.constant dense<0.000000e+00> : vector<8xf32>
    %251 = vector.multi_reduction <add>, %250, %cst_128 [1] : vector<8x10xf32> to vector<8xf32>
    %252 = vector.shape_cast %251 : vector<8xf32> to vector<8x1xf32>
    %253 = math.log %252 : vector<8x1xf32>
    %254 = vector.broadcast %253 : vector<8x1xf32> to vector<8x10xf32>
    %255 = arith.subf %249, %254 : vector<8x10xf32>
    %c0_129 = arith.constant 0 : index
    %c0_130 = arith.constant 0 : index
    %256 = vector.load %arg12[%c0_129, %c0_130] : memref<8x10xf32, #tpu.memory_space<vmem>>, vector<8x10xf32>
    tpu.vector_store %arg12[%c0_129, %c0_130], %255 {strides = array<i32>} : memref<8x10xf32, #tpu.memory_space<vmem>>, vector<8x10xf32>,
    return
  }
  func.func @transform_0(%arg0: i32) -> (i32, i32, i32) {
    %c0_i32 = arith.constant 0 : i32
    %c0_i32_0 = arith.constant 0 : i32
    %c0_i32_1 = arith.constant 0 : i32
    return %c0_i32, %arg0, %c0_i32_0 : i32, i32, i32
  }
  func.func @transform_1(%arg0: i32) -> (i32, i32, i32) {
    %c0_i32 = arith.constant 0 : i32
    %c0_i32_0 = arith.constant 0 : i32
    %c0_i32_1 = arith.constant 0 : i32
    %c0_i32_2 = arith.constant 0 : i32
    return %c0_i32, %c0_i32_0, %c0_i32_1 : i32, i32, i32
  }
  func.func @transform_2(%arg0: i32) -> (i32, i32, i32) {
    %c0_i32 = arith.constant 0 : i32
    %c0_i32_0 = arith.constant 0 : i32
    %c0_i32_1 = arith.constant 0 : i32
    %c0_i32_2 = arith.constant 0 : i32
    return %c0_i32, %c0_i32_0, %c0_i32_1 : i32, i32, i32
  }
  func.func @transform_3(%arg0: i32) -> (i32, i32) {
    %c0_i32 = arith.constant 0 : i32
    %c0_i32_0 = arith.constant 0 : i32
    %c0_i32_1 = arith.constant 0 : i32
    return %c0_i32, %c0_i32_0 : i32, i32
  }
  func.func @transform_4(%arg0: i32) -> (i32, i32, i32) {
    %c0_i32 = arith.constant 0 : i32
    %c0_i32_0 = arith.constant 0 : i32
    %c0_i32_1 = arith.constant 0 : i32
    %c0_i32_2 = arith.constant 0 : i32
    return %c0_i32, %c0_i32_0, %c0_i32_1 : i32, i32, i32
  }
  func.func @transform_5(%arg0: i32) -> (i32, i32, i32) {
    %c0_i32 = arith.constant 0 : i32
    %c0_i32_0 = arith.constant 0 : i32
    %c0_i32_1 = arith.constant 0 : i32
    %c0_i32_2 = arith.constant 0 : i32
    return %c0_i32, %c0_i32_0, %c0_i32_1 : i32, i32, i32
  }
  func.func @transform_6(%arg0: i32) -> (i32, i32) {
    %c0_i32 = arith.constant 0 : i32
    %c0_i32_0 = arith.constant 0 : i32
    %c0_i32_1 = arith.constant 0 : i32
    return %c0_i32, %c0_i32_0 : i32, i32
  }
  func.func @transform_7(%arg0: i32) -> (i32, i32, i32) {
    %c0_i32 = arith.constant 0 : i32
    %c0_i32_0 = arith.constant 0 : i32
    %c0_i32_1 = arith.constant 0 : i32
    %c0_i32_2 = arith.constant 0 : i32
    return %c0_i32, %c0_i32_0, %c0_i32_1 : i32, i32, i32
  }
  func.func @transform_8(%arg0: i32) -> (i32, i32) {
    %c0_i32 = arith.constant 0 : i32
    %c0_i32_0 = arith.constant 0 : i32
    %c0_i32_1 = arith.constant 0 : i32
    return %c0_i32, %c0_i32_0 : i32, i32
  }
  func.func @transform_9(%arg0: i32) -> (i32, i32) {
    %c0_i32 = arith.constant 0 : i32
    %c0_i32_0 = arith.constant 0 : i32
    %c0_i32_1 = arith.constant 0 : i32
    return %c0_i32, %c0_i32_0 : i32, i32
  }
  func.func @transform_10(%arg0: i32) -> (i32, i32) {
    %c0_i32 = arith.constant 0 : i32
    %c0_i32_0 = arith.constant 0 : i32
    %c0_i32_1 = arith.constant 0 : i32
    return %c0_i32, %c0_i32_0 : i32, i32
  }
  func.func @transform_11(%arg0: i32) -> (i32, i32) {
    %c0_i32 = arith.constant 0 : i32
    %c0_i32_0 = arith.constant 0 : i32
    return %arg0, %c0_i32 : i32, i32
  }
}

</mosaic_0001>

<llo_original>
// kernel: net_forward.1
$region0: #{net_forward.1}
  #allocation0 [shape = 'u32[]', space=smem, size = 0x4, offset = 0x4, fixed_abs, tag = 'smem constant byte address 0x4 - core index']
  #allocation1 [shape = 'u32[72,128]{1,0:T(1,128)}', space=vmem, size = 0x9000, scoped, tag = 'internal scratch']
  %s0 = inlined_call_operand.vmem [shape: f32[28,16,28], index: 0, kind: input, shape index: {}]
  %s1 = inlined_call_operand.vmem [shape: f32[5,28,240], index: 1, kind: input, shape index: {}]
  %s2 = inlined_call_operand.vmem [shape: f32[5,28,240], index: 2, kind: input, shape index: {}]
  %s3 = inlined_call_operand.vmem [shape: f32[1,240], index: 3, kind: input, shape index: {}]
  %s4 = inlined_call_operand.vmem [shape: f32[5,240,200], index: 4, kind: input, shape index: {}]
  %s5 = inlined_call_operand.vmem [shape: f32[5,240,200], index: 5, kind: input, shape index: {}]
  %s6 = inlined_call_operand.vmem [shape: f32[1,200], index: 6, kind: input, shape index: {}]
  %s7 = inlined_call_operand.vmem [shape: f32[4,200,512], index: 7, kind: input, shape index: {}]
  %s8 = inlined_call_operand.vmem [shape: f32[1,512], index: 8, kind: input, shape index: {}]
  %s9 = inlined_call_operand.vmem [shape: f32[512,10], index: 9, kind: input, shape index: {}]
  %s10 = inlined_call_operand.vmem [shape: f32[1,10], index: 10, kind: input, shape index: {}]
  %s11 = inlined_call_operand.hbm [shape: f32[16,10], index: 11, kind: output, shape index: {}]
  %s12 = sld [smem:[#allocation0]]
  $region115: #{net_forward.1} parent=0
    _
  %s14 = ssub.s32 1, %s12
  %s15 = scalar_select 0, %s14, %s12
  $region1: #{net_forward.1} parent=0
    #allocation2 [shape = 'u8[229376]{0}', space=vmem, size = 0x38000, scoped, tag = 'input window, operand 0']
    #allocation3 [shape = 'u8[8192]{0}', space=vmem, size = 0x2000, scoped, tag = 'output window, operand 0']
    #allocation4 [shape = 's32[2]{0}', space=sflag, size = 0x8, scoped, tag = 'scoped memory for net_forward.1']
    %16 = vsyncpa [#allocation4], 0
    %s17 = scalar_lea.sflag [#allocation4], 1
    %18 = vsyncpa %s17, 0
    loop: start=0, step=1, limit=4
    $region2: #{net_forward.1} parent=1 // loop_pre_header
      _
    $region3: #{net_forward.1} parent=1 // loop_header
      %s20 = sphi 0, %s24
      %p21 = scmp.ge.s32.totalorder %s20, 4
      %s30 = sphi 0, %s32
      %s33 = sphi 0, %s30
      %s34 = sphi 0, %s33
      %s50 = sphi 0, %s34
      %s54 = sphi 0, %s54
      %s56 = sphi 0, %s54
      %s57 = sphi 0, %s56
      %s71 = sphi 0, %s57
      %s75 = sphi 0, %s75
      %s77 = sphi 0, %s75
      %s78 = sphi 0, %s77
      %s92 = sphi 0, %s78
      %s96 = sphi 0, %s96
      %s98 = sphi 0, %s96
      %s99 = sphi 0, %s98
      %s113 = sphi 0, %s99
      %s117 = sphi 0, %s117
      %s119 = sphi 0, %s117
      %s120 = sphi 0, %s119
      %s134 = sphi 0, %s120
      %s138 = sphi 0, %s138
      %s140 = sphi 0, %s138
      %s141 = sphi 0, %s140
      %s155 = sphi 0, %s141
      %s159 = sphi 0, %s159
      %s161 = sphi 0, %s159
      %s162 = sphi 0, %s161
      %s176 = sphi 0, %s162
      %s180 = sphi 0, %s180
      %s182 = sphi 0, %s180
      %s183 = sphi 0, %s182
      %s197 = sphi 0, %s183
      %s201 = sphi 0, %s201
      %s203 = sphi 0, %s201
      %s204 = sphi 0, %s203
      %s218 = sphi 0, %s204
      %s222 = sphi 0, %s222
      %s224 = sphi 0, %s222
      %s225 = sphi 0, %s224
      %s239 = sphi 0, %s225
      %s243 = sphi 0, %s243
      %s245 = sphi 0, %s243
      %s246 = sphi 0, %s245
      %s260 = sphi 0, %s246
      %s266 = sphi 0, %s268
      %s269 = sphi 0, %s266
      %s270 = sphi 0, %s269
      %s286 = sphi 0, %s270
    $region4: #{net_forward.1} parent=1 // loop_header_branch
      %23 = sbr.rel (%p21) target = $region8
    $region5: #{net_forward.1} parent=1 // loop_body
      %s25 = ssub.s32 %s20, 1
      %s26 = ssub.s32 %s20, 2
      %s27 = sadd.s32 %s20, 1
      %s28 = ssub.s32 %s20, %s27
      %p29 = scmp.eq.s32.totalorder %s28, 0
      %s31 = sadd.s32 %s30, 1
      %s32 = scalar_select %p29, %s30, %s31
      %p35 = pneg %p29
      %p36 = scmp.eq.s32.totalorder %s20, 1
      %p37 = por %p35, %p36
      %p38 = scmp.ne.s32.totalorder %s30, %s33
      %p39 = scmp.eq.s32.totalorder %s20, 0
      %p40 = por %p38, %p39
      %p41 = scmp.ne.s32.totalorder %s30, %s33
      %p42 = scmp.eq.s32.totalorder %s25, 1
      %p43 = por %p41, %p42
      %p44 = scmp.ne.s32.totalorder %s33, %s34
      %p45 = scmp.eq.s32.totalorder %s25, 0
      %p46 = por %p44, %p45
      %p47 = scmp.ne.s32.totalorder %s33, %s34
      %p48 = scmp.eq.s32.totalorder %s26, 1
      %p49 = por %p47, %p48
      %p51 = scmp.ne.s32.totalorder %s34, %s50
      %p52 = scmp.eq.s32.totalorder %s26, 0
      %p53 = por %p51, %p52
      %s55 = sadd.s32 %s54, 1
      %p58 = scmp.eq.s32.totalorder %s20, 1
      %p59 = scmp.ne.s32.totalorder %s54, %s56
      %p60 = scmp.eq.s32.totalorder %s20, 0
      %p61 = por %p59, %p60
      %p62 = scmp.ne.s32.totalorder %s54, %s56
      %p63 = scmp.eq.s32.totalorder %s25, 1
      %p64 = por %p62, %p63
      %p65 = scmp.ne.s32.totalorder %s56, %s57
      %p66 = scmp.eq.s32.totalorder %s25, 0
      %p67 = por %p65, %p66
      %p68 = scmp.ne.s32.totalorder %s56, %s57
      %p69 = scmp.eq.s32.totalorder %s26, 1
      %p70 = por %p68, %p69
      %p72 = scmp.ne.s32.totalorder %s57, %s71
      %p73 = scmp.eq.s32.totalorder %s26, 0
      %p74 = por %p72, %p73
      %s76 = sadd.s32 %s75, 1
      %p79 = scmp.eq.s32.totalorder %s20, 1
      %p80 = scmp.ne.s32.totalorder %s75, %s77
      %p81 = scmp.eq.s32.totalorder %s20, 0
      %p82 = por %p80, %p81
      %p83 = scmp.ne.s32.totalorder %s75, %s77
      %p84 = scmp.eq.s32.totalorder %s25, 1
      %p85 = por %p83, %p84
      %p86 = scmp.ne.s32.totalorder %s77, %s78
      %p87 = scmp.eq.s32.totalorder %s25, 0
      %p88 = por %p86, %p87
      %p89 = scmp.ne.s32.totalorder %s77, %s78
      %p90 = scmp.eq.s32.totalorder %s26, 1
      %p91 = por %p89, %p90
      %p93 = scmp.ne.s32.totalorder %s78, %s92
      %p94 = scmp.eq.s32.totalorder %s26, 0
      %p95 = por %p93, %p94
      %s97 = sadd.s32 %s96, 1
      %p100 = scmp.eq.s32.totalorder %s20, 1
      %p101 = scmp.ne.s32.totalorder %s96, %s98
      %p102 = scmp.eq.s32.totalorder %s20, 0
      %p103 = por %p101, %p102
      %p104 = scmp.ne.s32.totalorder %s96, %s98
      %p105 = scmp.eq.s32.totalorder %s25, 1
      %p106 = por %p104, %p105
      %p107 = scmp.ne.s32.totalorder %s98, %s99
      %p108 = scmp.eq.s32.totalorder %s25, 0
      %p109 = por %p107, %p108
      %p110 = scmp.ne.s32.totalorder %s98, %s99
      %p111 = scmp.eq.s32.totalorder %s26, 1
      %p112 = por %p110, %p111
      %p114 = scmp.ne.s32.totalorder %s99, %s113
      %p115 = scmp.eq.s32.totalorder %s26, 0
      %p116 = por %p114, %p115
      %s118 = sadd.s32 %s117, 1
      %p121 = scmp.eq.s32.totalorder %s20, 1
      %p122 = scmp.ne.s32.totalorder %s117, %s119
      %p123 = scmp.eq.s32.totalorder %s20, 0
      %p124 = por %p122, %p123
      %p125 = scmp.ne.s32.totalorder %s117, %s119
      %p126 = scmp.eq.s32.totalorder %s25, 1
      %p127 = por %p125, %p126
      %p128 = scmp.ne.s32.totalorder %s119, %s120
      %p129 = scmp.eq.s32.totalorder %s25, 0
      %p130 = por %p128, %p129
      %p131 = scmp.ne.s32.totalorder %s119, %s120
      %p132 = scmp.eq.s32.totalorder %s26, 1
      %p133 = por %p131, %p132
      %p135 = scmp.ne.s32.totalorder %s120, %s134
      %p136 = scmp.eq.s32.totalorder %s26, 0
      %p137 = por %p135, %p136
      %s139 = sadd.s32 %s138, 1
      %p142 = scmp.eq.s32.totalorder %s20, 1
      %p143 = scmp.ne.s32.totalorder %s138, %s140
      %p144 = scmp.eq.s32.totalorder %s20, 0
      %p145 = por %p143, %p144
      %p146 = scmp.ne.s32.totalorder %s138, %s140
      %p147 = scmp.eq.s32.totalorder %s25, 1
      %p148 = por %p146, %p147
      %p149 = scmp.ne.s32.totalorder %s140, %s141
      %p150 = scmp.eq.s32.totalorder %s25, 0
      %p151 = por %p149, %p150
      %p152 = scmp.ne.s32.totalorder %s140, %s141
      %p153 = scmp.eq.s32.totalorder %s26, 1
      %p154 = por %p152, %p153
      %p156 = scmp.ne.s32.totalorder %s141, %s155
      %p157 = scmp.eq.s32.totalorder %s26, 0
      %p158 = por %p156, %p157
      %s160 = sadd.s32 %s159, 1
      %p163 = scmp.eq.s32.totalorder %s20, 1
      %p164 = scmp.ne.s32.totalorder %s159, %s161
      %p165 = scmp.eq.s32.totalorder %s20, 0
      %p166 = por %p164, %p165
      %p167 = scmp.ne.s32.totalorder %s159, %s161
      %p168 = scmp.eq.s32.totalorder %s25, 1
      %p169 = por %p167, %p168
      %p170 = scmp.ne.s32.totalorder %s161, %s162
      %p171 = scmp.eq.s32.totalorder %s25, 0
      %p172 = por %p170, %p171
      %p173 = scmp.ne.s32.totalorder %s161, %s162
      %p174 = scmp.eq.s32.totalorder %s26, 1
      %p175 = por %p173, %p174
      %p177 = scmp.ne.s32.totalorder %s162, %s176
      %p178 = scmp.eq.s32.totalorder %s26, 0
      %p179 = por %p177, %p178
      %s181 = sadd.s32 %s180, 1
      %p184 = scmp.eq.s32.totalorder %s20, 1
      %p185 = scmp.ne.s32.totalorder %s180, %s182
      %p186 = scmp.eq.s32.totalorder %s20, 0
      %p187 = por %p185, %p186
      %p188 = scmp.ne.s32.totalorder %s180, %s182
      %p189 = scmp.eq.s32.totalorder %s25, 1
      %p190 = por %p188, %p189
      %p191 = scmp.ne.s32.totalorder %s182, %s183
      %p192 = scmp.eq.s32.totalorder %s25, 0
      %p193 = por %p191, %p192
      %p194 = scmp.ne.s32.totalorder %s182, %s183
      %p195 = scmp.eq.s32.totalorder %s26, 1
      %p196 = por %p194, %p195
      %p198 = scmp.ne.s32.totalorder %s183, %s197
      %p199 = scmp.eq.s32.totalorder %s26, 0
      %p200 = por %p198, %p199
      %s202 = sadd.s32 %s201, 1
      %p205 = scmp.eq.s32.totalorder %s20, 1
      %p206 = scmp.ne.s32.totalorder %s201, %s203
      %p207 = scmp.eq.s32.totalorder %s20, 0
      %p208 = por %p206, %p207
      %p209 = scmp.ne.s32.totalorder %s201, %s203
      %p210 = scmp.eq.s32.totalorder %s25, 1
      %p211 = por %p209, %p210
      %p212 = scmp.ne.s32.totalorder %s203, %s204
      %p213 = scmp.eq.s32.totalorder %s25, 0
      %p214 = por %p212, %p213
      %p215 = scmp.ne.s32.totalorder %s203, %s204
      %p216 = scmp.eq.s32.totalorder %s26, 1
      %p217 = por %p215, %p216
      %p219 = scmp.ne.s32.totalorder %s204, %s218
      %p220 = scmp.eq.s32.totalorder %s26, 0
      %p221 = por %p219, %p220
      %s223 = sadd.s32 %s222, 1
      %p226 = scmp.eq.s32.totalorder %s20, 1
      %p227 = scmp.ne.s32.totalorder %s222, %s224
      %p228 = scmp.eq.s32.totalorder %s20, 0
      %p229 = por %p227, %p228
      %p230 = scmp.ne.s32.totalorder %s222, %s224
      %p231 = scmp.eq.s32.totalorder %s25, 1
      %p232 = por %p230, %p231
      %p233 = scmp.ne.s32.totalorder %s224, %s225
      %p234 = scmp.eq.s32.totalorder %s25, 0
      %p235 = por %p233, %p234
      %p236 = scmp.ne.s32.totalorder %s224, %s225
      %p237 = scmp.eq.s32.totalorder %s26, 1
      %p238 = por %p236, %p237
      %p240 = scmp.ne.s32.totalorder %s225, %s239
      %p241 = scmp.eq.s32.totalorder %s26, 0
      %p242 = por %p240, %p241
      %s244 = sadd.s32 %s243, 1
      %p247 = scmp.eq.s32.totalorder %s20, 1
      %p248 = scmp.ne.s32.totalorder %s243, %s245
      %p249 = scmp.eq.s32.totalorder %s20, 0
      %p250 = por %p248, %p249
      %p251 = scmp.ne.s32.totalorder %s243, %s245
      %p252 = scmp.eq.s32.totalorder %s25, 1
      %p253 = por %p251, %p252
      %p254 = scmp.ne.s32.totalorder %s245, %s246
      %p255 = scmp.eq.s32.totalorder %s25, 0
      %p256 = por %p254, %p255
      %p257 = scmp.ne.s32.totalorder %s245, %s246
      %p258 = scmp.eq.s32.totalorder %s26, 1
      %p259 = por %p257, %p258
      %p261 = scmp.ne.s32.totalorder %s246, %s260
      %p262 = scmp.eq.s32.totalorder %s26, 0
      %p263 = por %p261, %p262
      %s264 = ssub.s32 %s20, %s27
      %p265 = scmp.eq.s32.totalorder %s264, 0
      %s267 = sadd.s32 %s266, 1
      %s268 = scalar_select %p265, %s266, %s267
      %p271 = pneg %p265
      %p272 = scmp.eq.s32.totalorder %s20, 1
      %p273 = por %p271, %p272
      %p274 = scmp.ne.s32.totalorder %s266, %s269
      %p275 = scmp.eq.s32.totalorder %s20, 0
      %p276 = por %p274, %p275
      %p277 = scmp.ne.s32.totalorder %s266, %s269
      %p278 = scmp.eq.s32.totalorder %s25, 1
      %p279 = por %p277, %p278
      %p280 = scmp.ne.s32.totalorder %s269, %s270
      %p281 = scmp.eq.s32.totalorder %s25, 0
      %p282 = por %p280, %p281
      %p283 = scmp.ne.s32.totalorder %s269, %s270
      %p284 = scmp.eq.s32.totalorder %s26, 1
      %p285 = por %p283, %p284
      %p287 = scmp.ne.s32.totalorder %s270, %s286
      %p288 = scmp.eq.s32.totalorder %s26, 0
      %p289 = por %p287, %p288
      %p290 = scmp.le.s32.totalorder 1, %s20
      %p291 = scmp.lt.s32.totalorder %s20, 3
      %p292 = pnand %p290, %p291
      %p293 = pneg %p292
      // Predicated region
      $region9: #{net_forward.1} parent=5 // pred_check
        _
      $region10: #{net_forward.1} parent=5 // pred_check_branch
        %295 = sbr.rel (%p292) target = $region12
      $region11: #{net_forward.1} parent=5 // pred_region
        %s296 = ssub.s32 %s20, 1
        // Predicated region
        $region13: #{net_forward.1} parent=11 // pred_check
          %p297 = pneg %p67
        $region14: #{net_forward.1} parent=11 // pred_check_branch
          %299 = sbr.rel (%p297) target = $region16
        $region15: #{net_forward.1} parent=11 // pred_region
          _
        $region16: #{net_forward.1} parent=11 // pred_fallthru
          _
        // Predicated region
        $region17: #{net_forward.1} parent=11 // pred_check
          %p300 = pneg %p88
        $region18: #{net_forward.1} parent=11 // pred_check_branch
          %302 = sbr.rel (%p300) target = $region20
        $region19: #{net_forward.1} parent=11 // pred_region
          _
        $region20: #{net_forward.1} parent=11 // pred_fallthru
          _
        // Predicated region
        $region21: #{net_forward.1} parent=11 // pred_check
          %p303 = pneg %p109
        $region22: #{net_forward.1} parent=11 // pred_check_branch
          %305 = sbr.rel (%p303) target = $region24
        $region23: #{net_forward.1} parent=11 // pred_region
          _
        $region24: #{net_forward.1} parent=11 // pred_fallthru
          _
        // Predicated region
        $region25: #{net_forward.1} parent=11 // pred_check
          %p306 = pneg %p130
        $region26: #{net_forward.1} parent=11 // pred_check_branch
          %308 = sbr.rel (%p306) target = $region28
        $region27: #{net_forward.1} parent=11 // pred_region
          _
        $region28: #{net_forward.1} parent=11 // pred_fallthru
          _
        // Predicated region
        $region29: #{net_forward.1} parent=11 // pred_check
          %p309 = pneg %p151
        $region30: #{net_forward.1} parent=11 // pred_check_branch
          %311 = sbr.rel (%p309) target = $region32
        $region31: #{net_forward.1} parent=11 // pred_region
          _
        $region32: #{net_forward.1} parent=11 // pred_fallthru
          _
        // Predicated region
        $region33: #{net_forward.1} parent=11 // pred_check
          %p312 = pneg %p172
        $region34: #{net_forward.1} parent=11 // pred_check_branch
          %314 = sbr.rel (%p312) target = $region36
        $region35: #{net_forward.1} parent=11 // pred_region
          _
        $region36: #{net_forward.1} parent=11 // pred_fallthru
          _
        // Predicated region
        $region37: #{net_forward.1} parent=11 // pred_check
          %p315 = pneg %p193
        $region38: #{net_forward.1} parent=11 // pred_check_branch
          %317 = sbr.rel (%p315) target = $region40
        $region39: #{net_forward.1} parent=11 // pred_region
          _
        $region40: #{net_forward.1} parent=11 // pred_fallthru
          _
        // Predicated region
        $region41: #{net_forward.1} parent=11 // pred_check
          %p318 = pneg %p214
        $region42: #{net_forward.1} parent=11 // pred_check_branch
          %320 = sbr.rel (%p318) target = $region44
        $region43: #{net_forward.1} parent=11 // pred_region
          _
        $region44: #{net_forward.1} parent=11 // pred_fallthru
          _
        // Predicated region
        $region45: #{net_forward.1} parent=11 // pred_check
          %p321 = pneg %p235
        $region46: #{net_forward.1} parent=11 // pred_check_branch
          %323 = sbr.rel (%p321) target = $region48
        $region47: #{net_forward.1} parent=11 // pred_region
          _
        $region48: #{net_forward.1} parent=11 // pred_fallthru
          _
        // Predicated region
        $region49: #{net_forward.1} parent=11 // pred_check
          %p324 = pneg %p256
        $region50: #{net_forward.1} parent=11 // pred_check_branch
          %326 = sbr.rel (%p324) target = $region52
        $region51: #{net_forward.1} parent=11 // pred_region
          _
        $region52: #{net_forward.1} parent=11 // pred_fallthru
          _
      $region12: #{net_forward.1} parent=5 // pred_fallthru
        _
      %p327 = scmp.lt.s32.totalorder %s20, 2
      // Predicated region
      $region53: #{net_forward.1} parent=5 // pred_check
        %p328 = pneg %p327
      $region54: #{net_forward.1} parent=5 // pred_check_branch
        %330 = sbr.rel (%p328) target = $region56
      $region55: #{net_forward.1} parent=5 // pred_region
        // Predicated region
        $region57: #{net_forward.1} parent=55 // pred_check
          %p331 = pneg %p40
        $region58: #{net_forward.1} parent=55 // pred_check_branch
          %333 = sbr.rel (%p331) target = $region60
        $region59: #{net_forward.1} parent=55 // pred_region
          %s334 = sand.u32 %s30, 1
          %s335 = sand.u32 %s30, 1
          %s336 = smul.addr %s335, 224
          %s337 = scalar_lea.vmem [#allocation2], %s336
          %s338 = smul.addr %s20, 8
          %s339 = scalar_lea.vmem %s0, %s338
          // Predicated region
          $region61: #{net_forward.1} parent=59 // pred_check
            _
          $region62: #{net_forward.1} parent=59 // pred_check_branch
            %341 = sbr.rel (0) target = $region64
          $region63: #{net_forward.1} parent=59 // pred_region
            // Predicated region
            $region65: #{net_forward.1} parent=63 // pred_check
              _
            $region66: #{net_forward.1} parent=63 // pred_check_branch
              %343 = sbr.rel (0) target = $region68
            $region67: #{net_forward.1} parent=63 // pred_region
              // Predicated region
              $region80: #{net_forward.1} parent=67 // pred_check
                _
              $region81: #{net_forward.1} parent=67 // pred_check_branch
                %413 = sbr.rel (0) target = $region83
              $region82: #{net_forward.1} parent=67 // pred_region
                loop: start=0, step=1, limit=1
                $region84: #{net_forward.1} parent=82 // loop_pre_header
                  _
                $region85: #{net_forward.1} parent=82 // loop_header
                  %s415 = sphi 0, %s419
                  %p416 = scmp.ge.s32.totalorder %s415, 1
                  %s420 = sphi %s339, %s339
                  %s421 = sphi %s337, %s337
                $region86: #{net_forward.1} parent=82 // loop_header_branch
                  %418 = sbr.rel (%p416) target = $region90
                $region87: #{net_forward.1} parent=82 // loop_body
                  %v422 = vld [vmem:[%s420] sm:$0xff]
                  %423 = vst [vmem:[%s421] sm:$0xff] %v422
                  %v424 = vld [vmem:[%s420 + $0x10] sm:$0xff]
                  %425 = vst [vmem:[%s421 + $0x8] sm:$0xff] %v424
                  %v426 = vld [vmem:[%s420 + $0x20] sm:$0xff]
                  %427 = vst [vmem:[%s421 + $0x10] sm:$0xff] %v426
                  %v428 = vld [vmem:[%s420 + $0x30] sm:$0xff]
                  %429 = vst [vmem:[%s421 + $0x18] sm:$0xff] %v428
                  %v430 = vld [vmem:[%s420 + $0x40] sm:$0xff]
                  %431 = vst [vmem:[%s421 + $0x20] sm:$0xff] %v430
                  %v432 = vld [vmem:[%s420 + $0x50] sm:$0xff]
                  %433 = vst [vmem:[%s421 + $0x28] sm:$0xff] %v432
                  %v434 = vld [vmem:[%s420 + $0x60] sm:$0xff]
                  %435 = vst [vmem:[%s421 + $0x30] sm:$0xff] %v434
                  %v436 = vld [vmem:[%s420 + $0x70] sm:$0xff]
                  %437 = vst [vmem:[%s421 + $0x38] sm:$0xff] %v436
                  %v438 = vld [vmem:[%s420 + $0x80] sm:$0xff]
                  %439 = vst [vmem:[%s421 + $0x40] sm:$0xff] %v438
                  %v440 = vld [vmem:[%s420 + $0x90] sm:$0xff]
                  %441 = vst [vmem:[%s421 + $0x48] sm:$0xff] %v440
                  %v442 = vld [vmem:[%s420 + $0xa0] sm:$0xff]
                  %443 = vst [vmem:[%s421 + $0x50] sm:$0xff] %v442
                  %v444 = vld [vmem:[%s420 + $0xb0] sm:$0xff]
                  %445 = vst [vmem:[%s421 + $0x58] sm:$0xff] %v444
                  %v446 = vld [vmem:[%s420 + $0xc0] sm:$0xff]
                  %447 = vst [vmem:[%s421 + $0x60] sm:$0xff] %v446
                  %v448 = vld [vmem:[%s420 + $0xd0] sm:$0xff]
                  %449 = vst [vmem:[%s421 + $0x68] sm:$0xff] %v448
                  %v450 = vld [vmem:[%s420 + $0xe0] sm:$0xff]
                  %451 = vst [vmem:[%s421 + $0x70] sm:$0xff] %v450
                  %v452 = vld [vmem:[%s420 + $0xf0] sm:$0xff]
                  %453 = vst [vmem:[%s421 + $0x78] sm:$0xff] %v452
                  %v454 = vld [vmem:[%s420 + $0x100] sm:$0xff]
                  %455 = vst [vmem:[%s421 + $0x80] sm:$0xff] %v454
                  %v456 = vld [vmem:[%s420 + $0x110] sm:$0xff]
                  %457 = vst [vmem:[%s421 + $0x88] sm:$0xff] %v456
                  %v458 = vld [vmem:[%s420 + $0x120] sm:$0xff]
                  %459 = vst [vmem:[%s421 + $0x90] sm:$0xff] %v458
                  %v460 = vld [vmem:[%s420 + $0x130] sm:$0xff]
                  %461 = vst [vmem:[%s421 + $0x98] sm:$0xff] %v460
                  %v462 = vld [vmem:[%s420 + $0x140] sm:$0xff]
                  %463 = vst [vmem:[%s421 + $0xa0] sm:$0xff] %v462
                  %v464 = vld [vmem:[%s420 + $0x150] sm:$0xff]
                  %465 = vst [vmem:[%s421 + $0xa8] sm:$0xff] %v464
                  %v466 = vld [vmem:[%s420 + $0x160] sm:$0xff]
                  %467 = vst [vmem:[%s421 + $0xb0] sm:$0xff] %v466
                  %v468 = vld [vmem:[%s420 + $0x170] sm:$0xff]
                  %469 = vst [vmem:[%s421 + $0xb8] sm:$0xff] %v468
                  %v470 = vld [vmem:[%s420 + $0x180] sm:$0xff]
                  %471 = vst [vmem:[%s421 + $0xc0] sm:$0xff] %v470
                  %v472 = vld [vmem:[%s420 + $0x190] sm:$0xff]
                  %473 = vst [vmem:[%s421 + $0xc8] sm:$0xff] %v472
                  %v474 = vld [vmem:[%s420 + $0x1a0] sm:$0xff]
                  %475 = vst [vmem:[%s421 + $0xd0] sm:$0xff] %v474
                  %v476 = vld [vmem:[%s420 + $0x1b0] sm:$0xff]
                  %477 = vst [vmem:[%s421 + $0xd8] sm:$0xff] %v476
                $region88: #{net_forward.1} parent=82 // loop_footer
                  %s419 = sadd.s32 1, %s415
                $region89: #{net_forward.1} parent=82 // loop_footer_branch
                  %414 = sbr.rel target = $region85
                $region90: #{net_forward.1} parent=82 // loop_exit
                  _
              $region83: #{net_forward.1} parent=67 // pred_fallthru
                _
              // Predicated region
              $region91: #{net_forward.1} parent=67 // pred_check
                _
              $region92: #{net_forward.1} parent=67 // pred_check_branch
                %479 = sbr.rel target = $region94
              $region93: #{net_forward.1} parent=67 // pred_region
                _
              $region94: #{net_forward.1} parent=67 // pred_fallthru
                _
            $region68: #{net_forward.1} parent=63 // pred_fallthru
              _
            // Predicated region
            $region69: #{net_forward.1} parent=63 // pred_check
              _
            $region70: #{net_forward.1} parent=63 // pred_check_branch
              %345 = sbr.rel target = $region72
            $region71: #{net_forward.1} parent=63 // pred_region
              %s347 = ssub.s32 256, 1
              loop: start=0, step=1, limit=1
              $region73: #{net_forward.1} parent=71 // loop_pre_header
                _
              $region74: #{net_forward.1} parent=71 // loop_header
                %s349 = sphi 0, %s353
                %p350 = scmp.ge.s32.totalorder %s349, 1
                %s354 = sphi %s339, %s339
                %s355 = sphi %s337, %s337
              $region75: #{net_forward.1} parent=71 // loop_header_branch
                %352 = sbr.rel (%p350) target = $region79
              $region76: #{net_forward.1} parent=71 // loop_body
                %v356 = vld [vmem:[%s354] sm:%s347]
                %357 = vst [vmem:[%s355] sm:%s347] %v356
                %v358 = vld [vmem:[%s354 + $0x10] sm:%s347]
                %359 = vst [vmem:[%s355 + $0x8] sm:%s347] %v358
                %v360 = vld [vmem:[%s354 + $0x20] sm:%s347]
                %361 = vst [vmem:[%s355 + $0x10] sm:%s347] %v360
                %v362 = vld [vmem:[%s354 + $0x30] sm:%s347]
                %363 = vst [vmem:[%s355 + $0x18] sm:%s347] %v362
                %v364 = vld [vmem:[%s354 + $0x40] sm:%s347]
                %365 = vst [vmem:[%s355 + $0x20] sm:%s347] %v364
                %v366 = vld [vmem:[%s354 + $0x50] sm:%s347]
                %367 = vst [vmem:[%s355 + $0x28] sm:%s347] %v366
                %v368 = vld [vmem:[%s354 + $0x60] sm:%s347]
                %369 = vst [vmem:[%s355 + $0x30] sm:%s347] %v368
                %v370 = vld [vmem:[%s354 + $0x70] sm:%s347]
                %371 = vst [vmem:[%s355 + $0x38] sm:%s347] %v370
                %v372 = vld [vmem:[%s354 + $0x80] sm:%s347]
                %373 = vst [vmem:[%s355 + $0x40] sm:%s347] %v372
                %v374 = vld [vmem:[%s354 + $0x90] sm:%s347]
                %375 = vst [vmem:[%s355 + $0x48] sm:%s347] %v374
                %v376 = vld [vmem:[%s354 + $0xa0] sm:%s347]
                %377 = vst [vmem:[%s355 + $0x50] sm:%s347] %v376
                %v378 = vld [vmem:[%s354 + $0xb0] sm:%s347]
                %379 = vst [vmem:[%s355 + $0x58] sm:%s347] %v378
                %v380 = vld [vmem:[%s354 + $0xc0] sm:%s347]
                %381 = vst [vmem:[%s355 + $0x60] sm:%s347] %v380
                %v382 = vld [vmem:[%s354 + $0xd0] sm:%s347]
                %383 = vst [vmem:[%s355 + $0x68] sm:%s347] %v382
                %v384 = vld [vmem:[%s354 + $0xe0] sm:%s347]
                %385 = vst [vmem:[%s355 + $0x70] sm:%s347] %v384
                %v386 = vld [vmem:[%s354 + $0xf0] sm:%s347]
                %387 = vst [vmem:[%s355 + $0x78] sm:%s347] %v386
                %v388 = vld [vmem:[%s354 + $0x100] sm:%s347]
                %389 = vst [vmem:[%s355 + $0x80] sm:%s347] %v388
                %v390 = vld [vmem:[%s354 + $0x110] sm:%s347]
                %391 = vst [vmem:[%s355 + $0x88] sm:%s347] %v390
                %v392 = vld [vmem:[%s354 + $0x120] sm:%s347]
                %393 = vst [vmem:[%s355 + $0x90] sm:%s347] %v392
                %v394 = vld [vmem:[%s354 + $0x130] sm:%s347]
                %395 = vst [vmem:[%s355 + $0x98] sm:%s347] %v394
                %v396 = vld [vmem:[%s354 + $0x140] sm:%s347]
                %397 = vst [vmem:[%s355 + $0xa0] sm:%s347] %v396
                %v398 = vld [vmem:[%s354 + $0x150] sm:%s347]
                %399 = vst [vmem:[%s355 + $0xa8] sm:%s347] %v398
                %v400 = vld [vmem:[%s354 + $0x160] sm:%s347]
                %401 = vst [vmem:[%s355 + $0xb0] sm:%s347] %v400
                %v402 = vld [vmem:[%s354 + $0x170] sm:%s347]
                %403 = vst [vmem:[%s355 + $0xb8] sm:%s347] %v402
                %v404 = vld [vmem:[%s354 + $0x180] sm:%s347]
                %405 = vst [vmem:[%s355 + $0xc0] sm:%s347] %v404
                %v406 = vld [vmem:[%s354 + $0x190] sm:%s347]
                %407 = vst [vmem:[%s355 + $0xc8] sm:%s347] %v406
                %v408 = vld [vmem:[%s354 + $0x1a0] sm:%s347]
                %409 = vst [vmem:[%s355 + $0xd0] sm:%s347] %v408
                %v410 = vld [vmem:[%s354 + $0x1b0] sm:%s347]
                %411 = vst [vmem:[%s355 + $0xd8] sm:%s347] %v410
              $region77: #{net_forward.1} parent=71 // loop_footer
                %s353 = sadd.s32 1, %s349
              $region78: #{net_forward.1} parent=71 // loop_footer_branch
                %348 = sbr.rel target = $region74
              $region79: #{net_forward.1} parent=71 // loop_exit
                _
            $region72: #{net_forward.1} parent=63 // pred_fallthru
              _
          $region64: #{net_forward.1} parent=59 // pred_fallthru
            _
          %480 = vnop
        $region60: #{net_forward.1} parent=55 // pred_fallthru
          _
      $region56: #{net_forward.1} parent=5 // pred_fallthru
        _
      %p481 = scmp.le.s32.totalorder 1, %s20
      %p482 = scmp.lt.s32.totalorder %s20, 3
      %p483 = pnand %p481, %p482
      %p484 = pneg %p483
      // Predicated region
      $region95: #{net_forward.1} parent=5 // pred_check
        _
      $region96: #{net_forward.1} parent=5 // pred_check_branch
        %486 = sbr.rel (%p483) target = $region98
      $region97: #{net_forward.1} parent=5 // pred_region
        %s487 = ssub.s32 %s20, 1
        %s488 = sand.u32 %s33, 1
        %s489 = sand.u32 %s33, 1
        %s490 = smul.addr %s489, 224
        %s491 = scalar_lea.vmem [#allocation2], %s490
        // Predicated region
        $region99: #{net_forward.1} parent=97 // pred_check
          %p492 = pneg %p46
        $region100: #{net_forward.1} parent=97 // pred_check_branch
          %494 = sbr.rel (%p492) target = $region102
        $region101: #{net_forward.1} parent=97 // pred_region
          _
        $region102: #{net_forward.1} parent=97 // pred_fallthru
          _
        %s495 = sand.u32 %s33, 1
        %s496 = sand.u32 %s33, 1
        %s497 = smul.addr %s496, 224
        %s498 = scalar_lea.vmem [#allocation2], %s497
        %p499 = pneg %p46
        %p500 = pneg %p43
        %p501 = pneg %p67
        %p502 = pneg %p64
        %p503 = pneg %p88
        %p504 = pneg %p85
        %p505 = pneg %p109
        %p506 = pneg %p106
        %p507 = pneg %p130
        %p508 = pneg %p127
        %p509 = pneg %p151
        %p510 = pneg %p148
        %p511 = pneg %p172
        %p512 = pneg %p169
        %p513 = pneg %p193
        %p514 = pneg %p190
        %p515 = pneg %p214
        %p516 = pneg %p211
        %p517 = pneg %p235
        %p518 = pneg %p232
        %p519 = pneg %p256
        %p520 = pneg %p253
        %p521 = pneg %p282
        %p522 = pneg %p279
        %s523 = sand.u32 %s269, 1
        %s524 = scalar_lea.sflag [#allocation4], %s523
        %s525 = sand.u32 %s269, 1
        %s526 = smul.addr %s525, 8
        %s527 = scalar_lea.vmem [#allocation3], %s526
        %v528 = vld [vmem:[%s491] sm:$0xff]
        %v529 = vld [vmem:[%s491 + $0x8] sm:$0xff]
        %v530 = vld [vmem:[%s491 + $0x10] sm:$0xff]
        %v531 = vld [vmem:[%s491 + $0x18] sm:$0xff]
        %v532 = vld [vmem:[%s491 + $0x20] sm:$0xff]
        %v533 = vld [vmem:[%s491 + $0x28] sm:$0xff]
        %v534 = vld [vmem:[%s491 + $0x30] sm:$0xff]
        %v535 = vld [vmem:[%s491 + $0x38] sm:$0xff]
        %v536 = vld [vmem:[%s491 + $0x40] sm:$0xff]
        %v537 = vld [vmem:[%s491 + $0x48] sm:$0xff]
        %v538 = vld [vmem:[%s491 + $0x50] sm:$0xff]
        %v539 = vld [vmem:[%s491 + $0x58] sm:$0xff]
        %v540 = vld [vmem:[%s491 + $0x60] sm:$0xff]
        %v541 = vld [vmem:[%s491 + $0x68] sm:$0xff]
        %v542 = vld [vmem:[%s491 + $0x70] sm:$0xff]
        %v543 = vld [vmem:[%s491 + $0x78] sm:$0xff]
        %v544 = vld [vmem:[%s491 + $0x80] sm:$0xff]
        %v545 = vld [vmem:[%s491 + $0x88] sm:$0xff]
        %v546 = vld [vmem:[%s491 + $0x90] sm:$0xff]
        %v547 = vld [vmem:[%s491 + $0x98] sm:$0xff]
        %v548 = vld [vmem:[%s491 + $0xa0] sm:$0xff]
        %v549 = vld [vmem:[%s491 + $0xa8] sm:$0xff]
        %v550 = vld [vmem:[%s491 + $0xb0] sm:$0xff]
        %v551 = vld [vmem:[%s491 + $0xb8] sm:$0xff]
        %v552 = vld [vmem:[%s491 + $0xc0] sm:$0xff]
        %v553 = vld [vmem:[%s491 + $0xc8] sm:$0xff]
        %v554 = vld [vmem:[%s491 + $0xd0] sm:$0xff]
        %v555 = vld [vmem:[%s491 + $0xd8] sm:$0xff]
        %v556 = vld [vmem:[%s1] sm:$0xff]
        %v557 = vld [vmem:[%s1 + $0x8] sm:$0xff]
        %v558 = vld [vmem:[%s1 + $0x10] sm:$0xff]
        %v559 = vld [vmem:[%s1 + $0x18] sm:$0xff]
        %v560 = vld [vmem:[%s1 + $0x20] sm:$0xff]
        %v561 = vld [vmem:[%s1 + $0x28] sm:$0xff]
        %v562 = vld [vmem:[%s1 + $0x30] sm:$0xf]
        %v563 = vld [vmem:[%s1 + $0x38] sm:$0xf]
        %v564 = vld [vmem:[%s2] sm:$0xff]
        %v565 = vld [vmem:[%s2 + $0x8] sm:$0xff]
        %v566 = vld [vmem:[%s2 + $0x10] sm:$0xff]
        %v567 = vld [vmem:[%s2 + $0x18] sm:$0xff]
        %v568 = vld [vmem:[%s2 + $0x20] sm:$0xff]
        %v569 = vld [vmem:[%s2 + $0x28] sm:$0xff]
        %v570 = vld [vmem:[%s2 + $0x30] sm:$0xf]
        %v571 = vld [vmem:[%s2 + $0x38] sm:$0xf]
        %s572 = scalar_lea.vmem %s1, 64
        %v573 = vld [vmem:[%s572] sm:$0xff]
        %v574 = vld [vmem:[%s572 + $0x8] sm:$0xff]
        %v575 = vld [vmem:[%s572 + $0x10] sm:$0xff]
        %v576 = vld [vmem:[%s572 + $0x18] sm:$0xff]
        %v577 = vld [vmem:[%s572 + $0x20] sm:$0xff]
        %v578 = vld [vmem:[%s572 + $0x28] sm:$0xff]
        %v579 = vld [vmem:[%s572 + $0x30] sm:$0xf]
        %v580 = vld [vmem:[%s572 + $0x38] sm:$0xf]
        %s581 = scalar_lea.vmem %s2, 64
        %v582 = vld [vmem:[%s581] sm:$0xff]
        %v583 = vld [vmem:[%s581 + $0x8] sm:$0xff]
        %v584 = vld [vmem:[%s581 + $0x10] sm:$0xff]
        %v585 = vld [vmem:[%s581 + $0x18] sm:$0xff]
        %v586 = vld [vmem:[%s581 + $0x20] sm:$0xff]
        %v587 = vld [vmem:[%s581 + $0x28] sm:$0xff]
        %v588 = vld [vmem:[%s581 + $0x30] sm:$0xf]
        %v589 = vld [vmem:[%s581 + $0x38] sm:$0xf]
        %vm590 = vcmask 228352
        %v592 = vsel %vm590, %v529, 0
        %v595 = vsel %vm590, %v531, 0
        %v598 = vsel %vm590, %v533, 0
        %v601 = vsel %vm590, %v535, 0
        %v604 = vsel %vm590, %v537, 0
        %v607 = vsel %vm590, %v539, 0
        %v610 = vsel %vm590, %v541, 0
        %v613 = vsel %vm590, %v543, 0
        %v616 = vsel %vm590, %v545, 0
        %v619 = vsel %vm590, %v547, 0
        %v622 = vsel %vm590, %v549, 0
        %v625 = vsel %vm590, %v551, 0
        %vm627 = vcmask 1043456
        %v629 = vsel %vm627, %v579, 0
        %v632 = vsel %vm627, %v580, 0
        %634 = vmatpush.msra.mxu0 0.0
        %635 = vmatpush.msra.mxu0 0.0
        %636 = vmatpush.msra.mxu0 0.0
        %637 = vmatpush.msra.mxu0 0.0
        %638 = vmatpush.msra.mxu0 0.0
        %639 = vmatpush.msra.mxu0 0.0
        %640 = vmatpush.msra.mxu0 0.0
        %641 = vmatpush.msra.mxu0 0.0
        %642 = vmatpush.msra.mxu0 0.0
        %643 = vmatpush.msra.mxu0 0.0
        %644 = vmatpush.msra.mxu0 0.0
        %645 = vmatpush.msra.mxu0 0.0
        %646 = vmatpush.msra.mxu0 %v629
        %647 = vmatpush.msra.mxu0 %v577
        %648 = vmatpush.msra.mxu0 %v575
        %649 = vmatpush.msra.mxu0 %v573
        %650 = vmatmul.f32.gmra.mxu0 %v592
        %v651 = vpop.f32.mrf.mxu0
        %v652 = vadd.f32 0.0, %v651
        %653 = vmatmul.f32.gmra.mxu0 %v595
        %v654 = vpop.f32.mrf.mxu0
        %v655 = vadd.f32 0.0, %v654
        %656 = vmatmul.f32.gmra.mxu0 %v598
        %v657 = vpop.f32.mrf.mxu0
        %v658 = vadd.f32 0.0, %v657
        %659 = vmatmul.f32.gmra.mxu0 %v601
        %v660 = vpop.f32.mrf.mxu0
        %v661 = vadd.f32 0.0, %v660
        %662 = vmatmul.f32.gmra.mxu0 %v604
        %v663 = vpop.f32.mrf.mxu0
        %v664 = vadd.f32 0.0, %v663
        %665 = vmatmul.f32.gmra.mxu0 %v607
        %v666 = vpop.f32.mrf.mxu0
        %v667 = vadd.f32 0.0, %v666
        %668 = vmatmul.f32.gmra.mxu0 %v610
        %v669 = vpop.f32.mrf.mxu0
        %v670 = vadd.f32 0.0, %v669
        %671 = vmatmul.f32.gmra.mxu0 %v613
        %v672 = vpop.f32.mrf.mxu0
        %v673 = vadd.f32 0.0, %v672
        %674 = vmatmul.f32.gmra.mxu0 %v616
        %v675 = vpop.f32.mrf.mxu0
        %v676 = vadd.f32 0.0, %v675
        %677 = vmatmul.f32.gmra.mxu0 %v619
        %v678 = vpop.f32.mrf.mxu0
        %v679 = vadd.f32 0.0, %v678
        %680 = vmatmul.f32.gmra.mxu0 %v622
        %v681 = vpop.f32.mrf.mxu0
        %v682 = vadd.f32 0.0, %v681
        %683 = vmatmul.f32.gmra.mxu0 %v625
        %v684 = vpop.f32.mrf.mxu0
        %v685 = vadd.f32 0.0, %v684
        %686 = vdwg.mxu0
        %687 = vmatpush.msra.mxu0 0.0
        %688 = vmatpush.msra.mxu0 0.0
        %689 = vmatpush.msra.mxu0 0.0
        %690 = vmatpush.msra.mxu0 0.0
        %691 = vmatpush.msra.mxu0 0.0
        %692 = vmatpush.msra.mxu0 0.0
        %693 = vmatpush.msra.mxu0 0.0
        %694 = vmatpush.msra.mxu0 0.0
        %695 = vmatpush.msra.mxu0 0.0
        %696 = vmatpush.msra.mxu0 0.0
        %697 = vmatpush.msra.mxu0 0.0
        %698 = vmatpush.msra.mxu0 0.0
        %699 = vmatpush.msra.mxu0 %v632
        %700 = vmatpush.msra.mxu0 %v578
        %701 = vmatpush.msra.mxu0 %v576
        %702 = vmatpush.msra.mxu0 %v574
        %703 = vmatmul.f32.gmra.mxu0 %v592
        %v704 = vpop.f32.mrf.mxu0
        %v705 = vadd.f32 0.0, %v704
        %706 = vmatmul.f32.gmra.mxu0 %v595
        %v707 = vpop.f32.mrf.mxu0
        %v708 = vadd.f32 0.0, %v707
        %709 = vmatmul.f32.gmra.mxu0 %v598
        %v710 = vpop.f32.mrf.mxu0
        %v711 = vadd.f32 0.0, %v710
        %712 = vmatmul.f32.gmra.mxu0 %v601
        %v713 = vpop.f32.mrf.mxu0
        %v714 = vadd.f32 0.0, %v713
        %715 = vmatmul.f32.gmra.mxu0 %v604
        %v716 = vpop.f32.mrf.mxu0
        %v717 = vadd.f32 0.0, %v716
        %718 = vmatmul.f32.gmra.mxu0 %v607
        %v719 = vpop.f32.mrf.mxu0
        %v720 = vadd.f32 0.0, %v719
        %721 = vmatmul.f32.gmra.mxu0 %v610
        %v722 = vpop.f32.mrf.mxu0
        %v723 = vadd.f32 0.0, %v722
        %724 = vmatmul.f32.gmra.mxu0 %v613
        %v725 = vpop.f32.mrf.mxu0
        %v726 = vadd.f32 0.0, %v725
        %727 = vmatmul.f32.gmra.mxu0 %v616
        %v728 = vpop.f32.mrf.mxu0
        %v729 = vadd.f32 0.0, %v728
        %730 = vmatmul.f32.gmra.mxu0 %v619
        %v731 = vpop.f32.mrf.mxu0
        %v732 = vadd.f32 0.0, %v731
        %733 = vmatmul.f32.gmra.mxu0 %v622
        %v734 = vpop.f32.mrf.mxu0
        %v735 = vadd.f32 0.0, %v734
        %736 = vmatmul.f32.gmra.mxu0 %v625
        %v737 = vpop.f32.mrf.mxu0
        %v738 = vadd.f32 0.0, %v737
        %739 = vdwg.mxu0
        %v741 = vsel %vm590, %v528, 0
        %v744 = vsel %vm590, %v530, 0
        %v747 = vsel %vm590, %v532, 0
        %v750 = vsel %vm590, %v534, 0
        %v753 = vsel %vm590, %v536, 0
        %v756 = vsel %vm590, %v538, 0
        %v759 = vsel %vm590, %v540, 0
        %v762 = vsel %vm590, %v542, 0
        %v765 = vsel %vm590, %v544, 0
        %v768 = vsel %vm590, %v546, 0
        %v771 = vsel %vm590, %v548, 0
        %v774 = vsel %vm590, %v550, 0
        %v777 = vsel %vm627, %v562, 0
        %v780 = vsel %vm627, %v563, 0
        %782 = vmatpush.msra.mxu0 0.0
        %783 = vmatpush.msra.mxu0 0.0
        %784 = vmatpush.msra.mxu0 0.0
        %785 = vmatpush.msra.mxu0 0.0
        %786 = vmatpush.msra.mxu0 0.0
        %787 = vmatpush.msra.mxu0 0.0
        %788 = vmatpush.msra.mxu0 0.0
        %789 = vmatpush.msra.mxu0 0.0
        %790 = vmatpush.msra.mxu0 0.0
        %791 = vmatpush.msra.mxu0 0.0
        %792 = vmatpush.msra.mxu0 0.0
        %793 = vmatpush.msra.mxu0 0.0
        %794 = vmatpush.msra.mxu0 %v777
        %795 = vmatpush.msra.mxu0 %v560
        %796 = vmatpush.msra.mxu0 %v558
        %797 = vmatpush.msra.mxu0 %v556
        %798 = vmatmul.f32.gmra.mxu0 %v741
        %v799 = vpop.f32.mrf.mxu0
        %v800 = vadd.f32 %v652, %v799
        %801 = vmatmul.f32.gmra.mxu0 %v744
        %v802 = vpop.f32.mrf.mxu0
        %v803 = vadd.f32 %v655, %v802
        %804 = vmatmul.f32.gmra.mxu0 %v747
        %v805 = vpop.f32.mrf.mxu0
        %v806 = vadd.f32 %v658, %v805
        %807 = vmatmul.f32.gmra.mxu0 %v750
        %v808 = vpop.f32.mrf.mxu0
        %v809 = vadd.f32 %v661, %v808
        %810 = vmatmul.f32.gmra.mxu0 %v753
        %v811 = vpop.f32.mrf.mxu0
        %v812 = vadd.f32 %v664, %v811
        %813 = vmatmul.f32.gmra.mxu0 %v756
        %v814 = vpop.f32.mrf.mxu0
        %v815 = vadd.f32 %v667, %v814
        %816 = vmatmul.f32.gmra.mxu0 %v759
        %v817 = vpop.f32.mrf.mxu0
        %v818 = vadd.f32 %v670, %v817
        %819 = vmatmul.f32.gmra.mxu0 %v762
        %v820 = vpop.f32.mrf.mxu0
        %v821 = vadd.f32 %v673, %v820
        %822 = vmatmul.f32.gmra.mxu0 %v765
        %v823 = vpop.f32.mrf.mxu0
        %v824 = vadd.f32 %v676, %v823
        %825 = vmatmul.f32.gmra.mxu0 %v768
        %v826 = vpop.f32.mrf.mxu0
        %v827 = vadd.f32 %v679, %v826
        %828 = vmatmul.f32.gmra.mxu0 %v771
        %v829 = vpop.f32.mrf.mxu0
        %v830 = vadd.f32 %v682, %v829
        %831 = vmatmul.f32.gmra.mxu0 %v774
        %v832 = vpop.f32.mrf.mxu0
        %v833 = vadd.f32 %v685, %v832
        %834 = vdwg.mxu0
        %835 = vmatpush.msra.mxu0 0.0
        %836 = vmatpush.msra.mxu0 0.0
        %837 = vmatpush.msra.mxu0 0.0
        %838 = vmatpush.msra.mxu0 0.0
        %839 = vmatpush.msra.mxu0 0.0
        %840 = vmatpush.msra.mxu0 0.0
        %841 = vmatpush.msra.mxu0 0.0
        %842 = vmatpush.msra.mxu0 0.0
        %843 = vmatpush.msra.mxu0 0.0
        %844 = vmatpush.msra.mxu0 0.0
        %845 = vmatpush.msra.mxu0 0.0
        %846 = vmatpush.msra.mxu0 0.0
        %847 = vmatpush.msra.mxu0 %v780
        %848 = vmatpush.msra.mxu0 %v561
        %849 = vmatpush.msra.mxu0 %v559
        %850 = vmatpush.msra.mxu0 %v557
        %851 = vmatmul.f32.gmra.mxu0 %v741
        %v852 = vpop.f32.mrf.mxu0
        %v853 = vadd.f32 %v705, %v852
        %854 = vmatmul.f32.gmra.mxu0 %v744
        %v855 = vpop.f32.mrf.mxu0
        %v856 = vadd.f32 %v708, %v855
        %857 = vmatmul.f32.gmra.mxu0 %v747
        %v858 = vpop.f32.mrf.mxu0
        %v859 = vadd.f32 %v711, %v858
        %860 = vmatmul.f32.gmra.mxu0 %v750
        %v861 = vpop.f32.mrf.mxu0
        %v862 = vadd.f32 %v714, %v861
        %863 = vmatmul.f32.gmra.mxu0 %v753
        %v864 = vpop.f32.mrf.mxu0
        %v865 = vadd.f32 %v717, %v864
        %866 = vmatmul.f32.gmra.mxu0 %v756
        %v867 = vpop.f32.mrf.mxu0
        %v868 = vadd.f32 %v720, %v867
        %869 = vmatmul.f32.gmra.mxu0 %v759
        %v870 = vpop.f32.mrf.mxu0
        %v871 = vadd.f32 %v723, %v870
        %872 = vmatmul.f32.gmra.mxu0 %v762
        %v873 = vpop.f32.mrf.mxu0
        %v874 = vadd.f32 %v726, %v873
        %875 = vmatmul.f32.gmra.mxu0 %v765
        %v876 = vpop.f32.mrf.mxu0
        %v877 = vadd.f32 %v729, %v876
        %878 = vmatmul.f32.gmra.mxu0 %v768
        %v879 = vpop.f32.mrf.mxu0
        %v880 = vadd.f32 %v732, %v879
        %881 = vmatmul.f32.gmra.mxu0 %v771
        %v882 = vpop.f32.mrf.mxu0
        %v883 = vadd.f32 %v735, %v882
        %884 = vmatmul.f32.gmra.mxu0 %v774
        %v885 = vpop.f32.mrf.mxu0
        %v886 = vadd.f32 %v738, %v885
        %887 = vdwg.mxu0
        %v889 = vsel %vm627, %v588, 0
        %v892 = vsel %vm627, %v589, 0
        %894 = vmatpush.msra.mxu0 0.0
        %895 = vmatpush.msra.mxu0 0.0
        %896 = vmatpush.msra.mxu0 0.0
        %897 = vmatpush.msra.mxu0 0.0
        %898 = vmatpush.msra.mxu0 0.0
        %899 = vmatpush.msra.mxu0 0.0
        %900 = vmatpush.msra.mxu0 0.0
        %901 = vmatpush.msra.mxu0 0.0
        %902 = vmatpush.msra.mxu0 0.0
        %903 = vmatpush.msra.mxu0 0.0
        %904 = vmatpush.msra.mxu0 0.0
        %905 = vmatpush.msra.mxu0 0.0
        %906 = vmatpush.msra.mxu0 %v889
        %907 = vmatpush.msra.mxu0 %v586
        %908 = vmatpush.msra.mxu0 %v584
        %909 = vmatpush.msra.mxu0 %v582
        %910 = vmatmul.f32.gmra.mxu0 %v592
        %v911 = vpop.f32.mrf.mxu0
        %v912 = vadd.f32 0.0, %v911
        %913 = vmatmul.f32.gmra.mxu0 %v595
        %v914 = vpop.f32.mrf.mxu0
        %v915 = vadd.f32 0.0, %v914
        %916 = vmatmul.f32.gmra.mxu0 %v598
        %v917 = vpop.f32.mrf.mxu0
        %v918 = vadd.f32 0.0, %v917
        %919 = vmatmul.f32.gmra.mxu0 %v601
        %v920 = vpop.f32.mrf.mxu0
        %v921 = vadd.f32 0.0, %v920
        %922 = vmatmul.f32.gmra.mxu0 %v604
        %v923 = vpop.f32.mrf.mxu0
        %v924 = vadd.f32 0.0, %v923
        %925 = vmatmul.f32.gmra.mxu0 %v607
        %v926 = vpop.f32.mrf.mxu0
        %v927 = vadd.f32 0.0, %v926
        %928 = vmatmul.f32.gmra.mxu0 %v610
        %v929 = vpop.f32.mrf.mxu0
        %v930 = vadd.f32 0.0, %v929
        %931 = vmatmul.f32.gmra.mxu0 %v613
        %v932 = vpop.f32.mrf.mxu0
        %v933 = vadd.f32 0.0, %v932
        %934 = vmatmul.f32.gmra.mxu0 %v616
        %v935 = vpop.f32.mrf.mxu0
        %v936 = vadd.f32 0.0, %v935
        %937 = vmatmul.f32.gmra.mxu0 %v619
        %v938 = vpop.f32.mrf.mxu0
        %v939 = vadd.f32 0.0, %v938
        %940 = vmatmul.f32.gmra.mxu0 %v622
        %v941 = vpop.f32.mrf.mxu0
        %v942 = vadd.f32 0.0, %v941
        %943 = vmatmul.f32.gmra.mxu0 %v625
        %v944 = vpop.f32.mrf.mxu0
        %v945 = vadd.f32 0.0, %v944
        %946 = vdwg.mxu0
        %947 = vmatpush.msra.mxu0 0.0
        %948 = vmatpush.msra.mxu0 0.0
        %949 = vmatpush.msra.mxu0 0.0
        %950 = vmatpush.msra.mxu0 0.0
        %951 = vmatpush.msra.mxu0 0.0
        %952 = vmatpush.msra.mxu0 0.0
        %953 = vmatpush.msra.mxu0 0.0
        %954 = vmatpush.msra.mxu0 0.0
        %955 = vmatpush.msra.mxu0 0.0
        %956 = vmatpush.msra.mxu0 0.0
        %957 = vmatpush.msra.mxu0 0.0
        %958 = vmatpush.msra.mxu0 0.0
        %959 = vmatpush.msra.mxu0 %v892
        %960 = vmatpush.msra.mxu0 %v587
        %961 = vmatpush.msra.mxu0 %v585
        %962 = vmatpush.msra.mxu0 %v583
        %963 = vmatmul.f32.gmra.mxu0 %v592
        %v964 = vpop.f32.mrf.mxu0
        %v965 = vadd.f32 0.0, %v964
        %966 = vmatmul.f32.gmra.mxu0 %v595
        %v967 = vpop.f32.mrf.mxu0
        %v968 = vadd.f32 0.0, %v967
        %969 = vmatmul.f32.gmra.mxu0 %v598
        %v970 = vpop.f32.mrf.mxu0
        %v971 = vadd.f32 0.0, %v970
        %972 = vmatmul.f32.gmra.mxu0 %v601
        %v973 = vpop.f32.mrf.mxu0
        %v974 = vadd.f32 0.0, %v973
        %975 = vmatmul.f32.gmra.mxu0 %v604
        %v976 = vpop.f32.mrf.mxu0
        %v977 = vadd.f32 0.0, %v976
        %978 = vmatmul.f32.gmra.mxu0 %v607
        %v979 = vpop.f32.mrf.mxu0
        %v980 = vadd.f32 0.0, %v979
        %981 = vmatmul.f32.gmra.mxu0 %v610
        %v982 = vpop.f32.mrf.mxu0
        %v983 = vadd.f32 0.0, %v982
        %984 = vmatmul.f32.gmra.mxu0 %v613
        %v985 = vpop.f32.mrf.mxu0
        %v986 = vadd.f32 0.0, %v985
        %987 = vmatmul.f32.gmra.mxu0 %v616
        %v988 = vpop.f32.mrf.mxu0
        %v989 = vadd.f32 0.0, %v988
        %990 = vmatmul.f32.gmra.mxu0 %v619
        %v991 = vpop.f32.mrf.mxu0
        %v992 = vadd.f32 0.0, %v991
        %993 = vmatmul.f32.gmra.mxu0 %v622
        %v994 = vpop.f32.mrf.mxu0
        %v995 = vadd.f32 0.0, %v994
        %996 = vmatmul.f32.gmra.mxu0 %v625
        %v997 = vpop.f32.mrf.mxu0
        %v998 = vadd.f32 0.0, %v997
        %999 = vdwg.mxu0
        %v1001 = vsel %vm627, %v570, 0
        %v1004 = vsel %vm627, %v571, 0
        %1006 = vmatpush.msra.mxu0 0.0
        %1007 = vmatpush.msra.mxu0 0.0
        %1008 = vmatpush.msra.mxu0 0.0
        %1009 = vmatpush.msra.mxu0 0.0
        %1010 = vmatpush.msra.mxu0 0.0
        %1011 = vmatpush.msra.mxu0 0.0
        %1012 = vmatpush.msra.mxu0 0.0
        %1013 = vmatpush.msra.mxu0 0.0
        %1014 = vmatpush.msra.mxu0 0.0
        %1015 = vmatpush.msra.mxu0 0.0
        %1016 = vmatpush.msra.mxu0 0.0
        %1017 = vmatpush.msra.mxu0 0.0
        %1018 = vmatpush.msra.mxu0 %v1001
        %1019 = vmatpush.msra.mxu0 %v568
        %1020 = vmatpush.msra.mxu0 %v566
        %1021 = vmatpush.msra.mxu0 %v564
        %1022 = vmatmul.f32.gmra.mxu0 %v741
        %v1023 = vpop.f32.mrf.mxu0
        %v1024 = vadd.f32 %v912, %v1023
        %1025 = vmatmul.f32.gmra.mxu0 %v744
        %v1026 = vpop.f32.mrf.mxu0
        %v1027 = vadd.f32 %v915, %v1026
        %1028 = vmatmul.f32.gmra.mxu0 %v747
        %v1029 = vpop.f32.mrf.mxu0
        %v1030 = vadd.f32 %v918, %v1029
        %1031 = vmatmul.f32.gmra.mxu0 %v750
        %v1032 = vpop.f32.mrf.mxu0
        %v1033 = vadd.f32 %v921, %v1032
        %1034 = vmatmul.f32.gmra.mxu0 %v753
        %v1035 = vpop.f32.mrf.mxu0
        %v1036 = vadd.f32 %v924, %v1035
        %1037 = vmatmul.f32.gmra.mxu0 %v756
        %v1038 = vpop.f32.mrf.mxu0
        %v1039 = vadd.f32 %v927, %v1038
        %1040 = vmatmul.f32.gmra.mxu0 %v759
        %v1041 = vpop.f32.mrf.mxu0
        %v1042 = vadd.f32 %v930, %v1041
        %1043 = vmatmul.f32.gmra.mxu0 %v762
        %v1044 = vpop.f32.mrf.mxu0
        %v1045 = vadd.f32 %v933, %v1044
        %1046 = vmatmul.f32.gmra.mxu0 %v765
        %v1047 = vpop.f32.mrf.mxu0
        %v1048 = vadd.f32 %v936, %v1047
        %1049 = vmatmul.f32.gmra.mxu0 %v768
        %v1050 = vpop.f32.mrf.mxu0
        %v1051 = vadd.f32 %v939, %v1050
        %1052 = vmatmul.f32.gmra.mxu0 %v771
        %v1053 = vpop.f32.mrf.mxu0
        %v1054 = vadd.f32 %v942, %v1053
        %1055 = vmatmul.f32.gmra.mxu0 %v774
        %v1056 = vpop.f32.mrf.mxu0
        %v1057 = vadd.f32 %v945, %v1056
        %1058 = vdwg.mxu0
        %1059 = vmatpush.msra.mxu0 0.0
        %1060 = vmatpush.msra.mxu0 0.0
        %1061 = vmatpush.msra.mxu0 0.0
        %1062 = vmatpush.msra.mxu0 0.0
        %1063 = vmatpush.msra.mxu0 0.0
        %1064 = vmatpush.msra.mxu0 0.0
        %1065 = vmatpush.msra.mxu0 0.0
        %1066 = vmatpush.msra.mxu0 0.0
        %1067 = vmatpush.msra.mxu0 0.0
        %1068 = vmatpush.msra.mxu0 0.0
        %1069 = vmatpush.msra.mxu0 0.0
        %1070 = vmatpush.msra.mxu0 0.0
        %1071 = vmatpush.msra.mxu0 %v1004
        %1072 = vmatpush.msra.mxu0 %v569
        %1073 = vmatpush.msra.mxu0 %v567
        %1074 = vmatpush.msra.mxu0 %v565
        %1075 = vmatmul.f32.gmra.mxu0 %v741
        %v1076 = vpop.f32.mrf.mxu0
        %v1077 = vadd.f32 %v965, %v1076
        %1078 = vmatmul.f32.gmra.mxu0 %v744
        %v1079 = vpop.f32.mrf.mxu0
        %v1080 = vadd.f32 %v968, %v1079
        %1081 = vmatmul.f32.gmra.mxu0 %v747
        %v1082 = vpop.f32.mrf.mxu0
        %v1083 = vadd.f32 %v971, %v1082
        %1084 = vmatmul.f32.gmra.mxu0 %v750
        %v1085 = vpop.f32.mrf.mxu0
        %v1086 = vadd.f32 %v974, %v1085
        %1087 = vmatmul.f32.gmra.mxu0 %v753
        %v1088 = vpop.f32.mrf.mxu0
        %v1089 = vadd.f32 %v977, %v1088
        %1090 = vmatmul.f32.gmra.mxu0 %v756
        %v1091 = vpop.f32.mrf.mxu0
        %v1092 = vadd.f32 %v980, %v1091
        %1093 = vmatmul.f32.gmra.mxu0 %v759
        %v1094 = vpop.f32.mrf.mxu0
        %v1095 = vadd.f32 %v983, %v1094
        %1096 = vmatmul.f32.gmra.mxu0 %v762
        %v1097 = vpop.f32.mrf.mxu0
        %v1098 = vadd.f32 %v986, %v1097
        %1099 = vmatmul.f32.gmra.mxu0 %v765
        %v1100 = vpop.f32.mrf.mxu0
        %v1101 = vadd.f32 %v989, %v1100
        %1102 = vmatmul.f32.gmra.mxu0 %v768
        %v1103 = vpop.f32.mrf.mxu0
        %v1104 = vadd.f32 %v992, %v1103
        %1105 = vmatmul.f32.gmra.mxu0 %v771
        %v1106 = vpop.f32.mrf.mxu0
        %v1107 = vadd.f32 %v995, %v1106
        %1108 = vmatmul.f32.gmra.mxu0 %v774
        %v1109 = vpop.f32.mrf.mxu0
        %v1110 = vadd.f32 %v998, %v1109
        %1111 = vdwg.mxu0
        %v1113 = vsel %vm590, %v552, 0
        %1115 = vmatpush.msra.mxu0 0.0
        %1116 = vmatpush.msra.mxu0 0.0
        %1117 = vmatpush.msra.mxu0 0.0
        %1118 = vmatpush.msra.mxu0 0.0
        %1119 = vmatpush.msra.mxu0 0.0
        %1120 = vmatpush.msra.mxu0 0.0
        %1121 = vmatpush.msra.mxu0 0.0
        %1122 = vmatpush.msra.mxu0 0.0
        %1123 = vmatpush.msra.mxu0 0.0
        %1124 = vmatpush.msra.mxu0 0.0
        %1125 = vmatpush.msra.mxu0 0.0
        %1126 = vmatpush.msra.mxu0 0.0
        %1127 = vmatpush.msra.mxu0 %v629
        %1128 = vmatpush.msra.mxu0 %v577
        %1129 = vmatpush.msra.mxu0 %v575
        %1130 = vmatpush.msra.mxu0 %v573
        %1131 = vmatmul.f32.gmra.mxu0 %v744
        %v1132 = vpop.f32.mrf.mxu0
        %v1133 = vadd.f32 0.0, %v1132
        %1134 = vmatmul.f32.gmra.mxu0 %v747
        %v1135 = vpop.f32.mrf.mxu0
        %v1136 = vadd.f32 0.0, %v1135
        %1137 = vmatmul.f32.gmra.mxu0 %v750
        %v1138 = vpop.f32.mrf.mxu0
        %v1139 = vadd.f32 0.0, %v1138
        %1140 = vmatmul.f32.gmra.mxu0 %v753
        %v1141 = vpop.f32.mrf.mxu0
        %v1142 = vadd.f32 0.0, %v1141
        %1143 = vmatmul.f32.gmra.mxu0 %v756
        %v1144 = vpop.f32.mrf.mxu0
        %v1145 = vadd.f32 0.0, %v1144
        %1146 = vmatmul.f32.gmra.mxu0 %v759
        %v1147 = vpop.f32.mrf.mxu0
        %v1148 = vadd.f32 0.0, %v1147
        %1149 = vmatmul.f32.gmra.mxu0 %v762
        %v1150 = vpop.f32.mrf.mxu0
        %v1151 = vadd.f32 0.0, %v1150
        %1152 = vmatmul.f32.gmra.mxu0 %v765
        %v1153 = vpop.f32.mrf.mxu0
        %v1154 = vadd.f32 0.0, %v1153
        %1155 = vmatmul.f32.gmra.mxu0 %v768
        %v1156 = vpop.f32.mrf.mxu0
        %v1157 = vadd.f32 0.0, %v1156
        %1158 = vmatmul.f32.gmra.mxu0 %v771
        %v1159 = vpop.f32.mrf.mxu0
        %v1160 = vadd.f32 0.0, %v1159
        %1161 = vmatmul.f32.gmra.mxu0 %v774
        %v1162 = vpop.f32.mrf.mxu0
        %v1163 = vadd.f32 0.0, %v1162
        %1164 = vmatmul.f32.gmra.mxu0 %v1113
        %v1165 = vpop.f32.mrf.mxu0
        %v1166 = vadd.f32 0.0, %v1165
        %1167 = vdwg.mxu0
        %1168 = vmatpush.msra.mxu0 0.0
        %1169 = vmatpush.msra.mxu0 0.0
        %1170 = vmatpush.msra.mxu0 0.0
        %1171 = vmatpush.msra.mxu0 0.0
        %1172 = vmatpush.msra.mxu0 0.0
        %1173 = vmatpush.msra.mxu0 0.0
        %1174 = vmatpush.msra.mxu0 0.0
        %1175 = vmatpush.msra.mxu0 0.0
        %1176 = vmatpush.msra.mxu0 0.0
        %1177 = vmatpush.msra.mxu0 0.0
        %1178 = vmatpush.msra.mxu0 0.0
        %1179 = vmatpush.msra.mxu0 0.0
        %1180 = vmatpush.msra.mxu0 %v632
        %1181 = vmatpush.msra.mxu0 %v578
        %1182 = vmatpush.msra.mxu0 %v576
        %1183 = vmatpush.msra.mxu0 %v574
        %1184 = vmatmul.f32.gmra.mxu0 %v744
        %v1185 = vpop.f32.mrf.mxu0
        %v1186 = vadd.f32 0.0, %v1185
        %1187 = vmatmul.f32.gmra.mxu0 %v747
        %v1188 = vpop.f32.mrf.mxu0
        %v1189 = vadd.f32 0.0, %v1188
        %1190 = vmatmul.f32.gmra.mxu0 %v750
        %v1191 = vpop.f32.mrf.mxu0
        %v1192 = vadd.f32 0.0, %v1191
        %1193 = vmatmul.f32.gmra.mxu0 %v753
        %v1194 = vpop.f32.mrf.mxu0
        %v1195 = vadd.f32 0.0, %v1194
        %1196 = vmatmul.f32.gmra.mxu0 %v756
        %v1197 = vpop.f32.mrf.mxu0
        %v1198 = vadd.f32 0.0, %v1197
        %1199 = vmatmul.f32.gmra.mxu0 %v759
        %v1200 = vpop.f32.mrf.mxu0
        %v1201 = vadd.f32 0.0, %v1200
        %1202 = vmatmul.f32.gmra.mxu0 %v762
        %v1203 = vpop.f32.mrf.mxu0
        %v1204 = vadd.f32 0.0, %v1203
        %1205 = vmatmul.f32.gmra.mxu0 %v765
        %v1206 = vpop.f32.mrf.mxu0
        %v1207 = vadd.f32 0.0, %v1206
        %1208 = vmatmul.f32.gmra.mxu0 %v768
        %v1209 = vpop.f32.mrf.mxu0
        %v1210 = vadd.f32 0.0, %v1209
        %1211 = vmatmul.f32.gmra.mxu0 %v771
        %v1212 = vpop.f32.mrf.mxu0
        %v1213 = vadd.f32 0.0, %v1212
        %1214 = vmatmul.f32.gmra.mxu0 %v774
        %v1215 = vpop.f32.mrf.mxu0
        %v1216 = vadd.f32 0.0, %v1215
        %1217 = vmatmul.f32.gmra.mxu0 %v1113
        %v1218 = vpop.f32.mrf.mxu0
        %v1219 = vadd.f32 0.0, %v1218
        %1220 = vdwg.mxu0
        %1221 = vmatpush.msra.mxu0 0.0
        %1222 = vmatpush.msra.mxu0 0.0
        %1223 = vmatpush.msra.mxu0 0.0
        %1224 = vmatpush.msra.mxu0 0.0
        %1225 = vmatpush.msra.mxu0 0.0
        %1226 = vmatpush.msra.mxu0 0.0
        %1227 = vmatpush.msra.mxu0 0.0
        %1228 = vmatpush.msra.mxu0 0.0
        %1229 = vmatpush.msra.mxu0 0.0
        %1230 = vmatpush.msra.mxu0 0.0
        %1231 = vmatpush.msra.mxu0 0.0
        %1232 = vmatpush.msra.mxu0 0.0
        %1233 = vmatpush.msra.mxu0 %v777
        %1234 = vmatpush.msra.mxu0 %v560
        %1235 = vmatpush.msra.mxu0 %v558
        %1236 = vmatpush.msra.mxu0 %v556
        %1237 = vmatmul.f32.gmra.mxu0 %v592
        %v1238 = vpop.f32.mrf.mxu0
        %v1239 = vadd.f32 %v1133, %v1238
        %1240 = vmatmul.f32.gmra.mxu0 %v595
        %v1241 = vpop.f32.mrf.mxu0
        %v1242 = vadd.f32 %v1136, %v1241
        %1243 = vmatmul.f32.gmra.mxu0 %v598
        %v1244 = vpop.f32.mrf.mxu0
        %v1245 = vadd.f32 %v1139, %v1244
        %1246 = vmatmul.f32.gmra.mxu0 %v601
        %v1247 = vpop.f32.mrf.mxu0
        %v1248 = vadd.f32 %v1142, %v1247
        %1249 = vmatmul.f32.gmra.mxu0 %v604
        %v1250 = vpop.f32.mrf.mxu0
        %v1251 = vadd.f32 %v1145, %v1250
        %1252 = vmatmul.f32.gmra.mxu0 %v607
        %v1253 = vpop.f32.mrf.mxu0
        %v1254 = vadd.f32 %v1148, %v1253
        %1255 = vmatmul.f32.gmra.mxu0 %v610
        %v1256 = vpop.f32.mrf.mxu0
        %v1257 = vadd.f32 %v1151, %v1256
        %1258 = vmatmul.f32.gmra.mxu0 %v613
        %v1259 = vpop.f32.mrf.mxu0
        %v1260 = vadd.f32 %v1154, %v1259
        %1261 = vmatmul.f32.gmra.mxu0 %v616
        %v1262 = vpop.f32.mrf.mxu0
        %v1263 = vadd.f32 %v1157, %v1262
        %1264 = vmatmul.f32.gmra.mxu0 %v619
        %v1265 = vpop.f32.mrf.mxu0
        %v1266 = vadd.f32 %v1160, %v1265
        %1267 = vmatmul.f32.gmra.mxu0 %v622
        %v1268 = vpop.f32.mrf.mxu0
        %v1269 = vadd.f32 %v1163, %v1268
        %1270 = vmatmul.f32.gmra.mxu0 %v625
        %v1271 = vpop.f32.mrf.mxu0
        %v1272 = vadd.f32 %v1166, %v1271
        %1273 = vdwg.mxu0
        %1274 = vmatpush.msra.mxu0 0.0
        %1275 = vmatpush.msra.mxu0 0.0
        %1276 = vmatpush.msra.mxu0 0.0
        %1277 = vmatpush.msra.mxu0 0.0
        %1278 = vmatpush.msra.mxu0 0.0
        %1279 = vmatpush.msra.mxu0 0.0
        %1280 = vmatpush.msra.mxu0 0.0
        %1281 = vmatpush.msra.mxu0 0.0
        %1282 = vmatpush.msra.mxu0 0.0
        %1283 = vmatpush.msra.mxu0 0.0
        %1284 = vmatpush.msra.mxu0 0.0
        %1285 = vmatpush.msra.mxu0 0.0
        %1286 = vmatpush.msra.mxu0 %v780
        %1287 = vmatpush.msra.mxu0 %v561
        %1288 = vmatpush.msra.mxu0 %v559
        %1289 = vmatpush.msra.mxu0 %v557
        %1290 = vmatmul.f32.gmra.mxu0 %v592
        %v1291 = vpop.f32.mrf.mxu0
        %v1292 = vadd.f32 %v1186, %v1291
        %1293 = vmatmul.f32.gmra.mxu0 %v595
        %v1294 = vpop.f32.mrf.mxu0
        %v1295 = vadd.f32 %v1189, %v1294
        %1296 = vmatmul.f32.gmra.mxu0 %v598
        %v1297 = vpop.f32.mrf.mxu0
        %v1298 = vadd.f32 %v1192, %v1297
        %1299 = vmatmul.f32.gmra.mxu0 %v601
        %v1300 = vpop.f32.mrf.mxu0
        %v1301 = vadd.f32 %v1195, %v1300
        %1302 = vmatmul.f32.gmra.mxu0 %v604
        %v1303 = vpop.f32.mrf.mxu0
        %v1304 = vadd.f32 %v1198, %v1303
        %1305 = vmatmul.f32.gmra.mxu0 %v607
        %v1306 = vpop.f32.mrf.mxu0
        %v1307 = vadd.f32 %v1201, %v1306
        %1308 = vmatmul.f32.gmra.mxu0 %v610
        %v1309 = vpop.f32.mrf.mxu0
        %v1310 = vadd.f32 %v1204, %v1309
        %1311 = vmatmul.f32.gmra.mxu0 %v613
        %v1312 = vpop.f32.mrf.mxu0
        %v1313 = vadd.f32 %v1207, %v1312
        %1314 = vmatmul.f32.gmra.mxu0 %v616
        %v1315 = vpop.f32.mrf.mxu0
        %v1316 = vadd.f32 %v1210, %v1315
        %1317 = vmatmul.f32.gmra.mxu0 %v619
        %v1318 = vpop.f32.mrf.mxu0
        %v1319 = vadd.f32 %v1213, %v1318
        %1320 = vmatmul.f32.gmra.mxu0 %v622
        %v1321 = vpop.f32.mrf.mxu0
        %v1322 = vadd.f32 %v1216, %v1321
        %1323 = vmatmul.f32.gmra.mxu0 %v625
        %v1324 = vpop.f32.mrf.mxu0
        %v1325 = vadd.f32 %v1219, %v1324
        %1326 = vdwg.mxu0
        %1327 = vmatpush.msra.mxu0 0.0
        %1328 = vmatpush.msra.mxu0 0.0
        %1329 = vmatpush.msra.mxu0 0.0
        %1330 = vmatpush.msra.mxu0 0.0
        %1331 = vmatpush.msra.mxu0 0.0
        %1332 = vmatpush.msra.mxu0 0.0
        %1333 = vmatpush.msra.mxu0 0.0
        %1334 = vmatpush.msra.mxu0 0.0
        %1335 = vmatpush.msra.mxu0 0.0
        %1336 = vmatpush.msra.mxu0 0.0
        %1337 = vmatpush.msra.mxu0 0.0
        %1338 = vmatpush.msra.mxu0 0.0
        %1339 = vmatpush.msra.mxu0 %v889
        %1340 = vmatpush.msra.mxu0 %v586
        %1341 = vmatpush.msra.mxu0 %v584
        %1342 = vmatpush.msra.mxu0 %v582
        %1343 = vmatmul.f32.gmra.mxu0 %v744
        %v1344 = vpop.f32.mrf.mxu0
        %v1345 = vadd.f32 0.0, %v1344
        %1346 = vmatmul.f32.gmra.mxu0 %v747
        %v1347 = vpop.f32.mrf.mxu0
        %v1348 = vadd.f32 0.0, %v1347
        %1349 = vmatmul.f32.gmra.mxu0 %v750
        %v1350 = vpop.f32.mrf.mxu0
        %v1351 = vadd.f32 0.0, %v1350
        %1352 = vmatmul.f32.gmra.mxu0 %v753
        %v1353 = vpop.f32.mrf.mxu0
        %v1354 = vadd.f32 0.0, %v1353
        %1355 = vmatmul.f32.gmra.mxu0 %v756
        %v1356 = vpop.f32.mrf.mxu0
        %v1357 = vadd.f32 0.0, %v1356
        %1358 = vmatmul.f32.gmra.mxu0 %v759
        %v1359 = vpop.f32.mrf.mxu0
        %v1360 = vadd.f32 0.0, %v1359
        %1361 = vmatmul.f32.gmra.mxu0 %v762
        %v1362 = vpop.f32.mrf.mxu0
        %v1363 = vadd.f32 0.0, %v1362
        %1364 = vmatmul.f32.gmra.mxu0 %v765
        %v1365 = vpop.f32.mrf.mxu0
        %v1366 = vadd.f32 0.0, %v1365
        %1367 = vmatmul.f32.gmra.mxu0 %v768
        %v1368 = vpop.f32.mrf.mxu0
        %v1369 = vadd.f32 0.0, %v1368
        %1370 = vmatmul.f32.gmra.mxu0 %v771
        %v1371 = vpop.f32.mrf.mxu0
        %v1372 = vadd.f32 0.0, %v1371
        %1373 = vmatmul.f32.gmra.mxu0 %v774
        %v1374 = vpop.f32.mrf.mxu0
        %v1375 = vadd.f32 0.0, %v1374
        %1376 = vmatmul.f32.gmra.mxu0 %v1113
        %v1377 = vpop.f32.mrf.mxu0
        %v1378 = vadd.f32 0.0, %v1377
        %1379 = vdwg.mxu0
        %1380 = vmatpush.msra.mxu0 0.0
        %1381 = vmatpush.msra.mxu0 0.0
        %1382 = vmatpush.msra.mxu0 0.0
        %1383 = vmatpush.msra.mxu0 0.0
        %1384 = vmatpush.msra.mxu0 0.0
        %1385 = vmatpush.msra.mxu0 0.0
        %1386 = vmatpush.msra.mxu0 0.0
        %1387 = vmatpush.msra.mxu0 0.0
        %1388 = vmatpush.msra.mxu0 0.0
        %1389 = vmatpush.msra.mxu0 0.0
        %1390 = vmatpush.msra.mxu0 0.0
        %1391 = vmatpush.msra.mxu0 0.0
        %1392 = vmatpush.msra.mxu0 %v892
        %1393 = vmatpush.msra.mxu0 %v587
        %1394 = vmatpush.msra.mxu0 %v585
        %1395 = vmatpush.msra.mxu0 %v583
        %1396 = vmatmul.f32.gmra.mxu0 %v744
        %v1397 = vpop.f32.mrf.mxu0
        %v1398 = vadd.f32 0.0, %v1397
        %1399 = vmatmul.f32.gmra.mxu0 %v747
        %v1400 = vpop.f32.mrf.mxu0
        %v1401 = vadd.f32 0.0, %v1400
        %1402 = vmatmul.f32.gmra.mxu0 %v750
        %v1403 = vpop.f32.mrf.mxu0
        %v1404 = vadd.f32 0.0, %v1403
        %1405 = vmatmul.f32.gmra.mxu0 %v753
        %v1406 = vpop.f32.mrf.mxu0
        %v1407 = vadd.f32 0.0, %v1406
        %1408 = vmatmul.f32.gmra.mxu0 %v756
        %v1409 = vpop.f32.mrf.mxu0
        %v1410 = vadd.f32 0.0, %v1409
        %1411 = vmatmul.f32.gmra.mxu0 %v759
        %v1412 = vpop.f32.mrf.mxu0
        %v1413 = vadd.f32 0.0, %v1412
        %1414 = vmatmul.f32.gmra.mxu0 %v762
        %v1415 = vpop.f32.mrf.mxu0
        %v1416 = vadd.f32 0.0, %v1415
        %1417 = vmatmul.f32.gmra.mxu0 %v765
        %v1418 = vpop.f32.mrf.mxu0
        %v1419 = vadd.f32 0.0, %v1418
        %1420 = vmatmul.f32.gmra.mxu0 %v768
        %v1421 = vpop.f32.mrf.mxu0
        %v1422 = vadd.f32 0.0, %v1421
        %1423 = vmatmul.f32.gmra.mxu0 %v771
        %v1424 = vpop.f32.mrf.mxu0
        %v1425 = vadd.f32 0.0, %v1424
        %1426 = vmatmul.f32.gmra.mxu0 %v774
        %v1427 = vpop.f32.mrf.mxu0
        %v1428 = vadd.f32 0.0, %v1427
        %1429 = vmatmul.f32.gmra.mxu0 %v1113
        %v1430 = vpop.f32.mrf.mxu0
        %v1431 = vadd.f32 0.0, %v1430
        %1432 = vdwg.mxu0
        %1433 = vmatpush.msra.mxu0 0.0
        %1434 = vmatpush.msra.mxu0 0.0
        %1435 = vmatpush.msra.mxu0 0.0
        %1436 = vmatpush.msra.mxu0 0.0
        %1437 = vmatpush.msra.mxu0 0.0
        %1438 = vmatpush.msra.mxu0 0.0
        %1439 = vmatpush.msra.mxu0 0.0
        %1440 = vmatpush.msra.mxu0 0.0
        %1441 = vmatpush.msra.mxu0 0.0
        %1442 = vmatpush.msra.mxu0 0.0
        %1443 = vmatpush.msra.mxu0 0.0
        %1444 = vmatpush.msra.mxu0 0.0
        %1445 = vmatpush.msra.mxu0 %v1001
        %1446 = vmatpush.msra.mxu0 %v568
        %1447 = vmatpush.msra.mxu0 %v566
        %1448 = vmatpush.msra.mxu0 %v564
        %1449 = vmatmul.f32.gmra.mxu0 %v592
        %v1450 = vpop.f32.mrf.mxu0
        %v1451 = vadd.f32 %v1345, %v1450
        %1452 = vmatmul.f32.gmra.mxu0 %v595
        %v1453 = vpop.f32.mrf.mxu0
        %v1454 = vadd.f32 %v1348, %v1453
        %1455 = vmatmul.f32.gmra.mxu0 %v598
        %v1456 = vpop.f32.mrf.mxu0
        %v1457 = vadd.f32 %v1351, %v1456
        %1458 = vmatmul.f32.gmra.mxu0 %v601
        %v1459 = vpop.f32.mrf.mxu0
        %v1460 = vadd.f32 %v1354, %v1459
        %1461 = vmatmul.f32.gmra.mxu0 %v604
        %v1462 = vpop.f32.mrf.mxu0
        %v1463 = vadd.f32 %v1357, %v1462
        %1464 = vmatmul.f32.gmra.mxu0 %v607
        %v1465 = vpop.f32.mrf.mxu0
        %v1466 = vadd.f32 %v1360, %v1465
        %1467 = vmatmul.f32.gmra.mxu0 %v610
        %v1468 = vpop.f32.mrf.mxu0
        %v1469 = vadd.f32 %v1363, %v1468
        %1470 = vmatmul.f32.gmra.mxu0 %v613
        %v1471 = vpop.f32.mrf.mxu0
        %v1472 = vadd.f32 %v1366, %v1471
        %1473 = vmatmul.f32.gmra.mxu0 %v616
        %v1474 = vpop.f32.mrf.mxu0
        %v1475 = vadd.f32 %v1369, %v1474
        %1476 = vmatmul.f32.gmra.mxu0 %v619
        %v1477 = vpop.f32.mrf.mxu0
        %v1478 = vadd.f32 %v1372, %v1477
        %1479 = vmatmul.f32.gmra.mxu0 %v622
        %v1480 = vpop.f32.mrf.mxu0
        %v1481 = vadd.f32 %v1375, %v1480
        %1482 = vmatmul.f32.gmra.mxu0 %v625
        %v1483 = vpop.f32.mrf.mxu0
        %v1484 = vadd.f32 %v1378, %v1483
        %1485 = vdwg.mxu0
        %1486 = vmatpush.msra.mxu0 0.0
        %1487 = vmatpush.msra.mxu0 0.0
        %1488 = vmatpush.msra.mxu0 0.0
        %1489 = vmatpush.msra.mxu0 0.0
        %1490 = vmatpush.msra.mxu0 0.0
        %1491 = vmatpush.msra.mxu0 0.0
        %1492 = vmatpush.msra.mxu0 0.0
        %1493 = vmatpush.msra.mxu0 0.0
        %1494 = vmatpush.msra.mxu0 0.0
        %1495 = vmatpush.msra.mxu0 0.0
        %1496 = vmatpush.msra.mxu0 0.0
        %1497 = vmatpush.msra.mxu0 0.0
        %1498 = vmatpush.msra.mxu0 %v1004
        %1499 = vmatpush.msra.mxu0 %v569
        %1500 = vmatpush.msra.mxu0 %v567
        %1501 = vmatpush.msra.mxu0 %v565
        %1502 = vmatmul.f32.gmra.mxu0 %v592
        %v1503 = vpop.f32.mrf.mxu0
        %v1504 = vadd.f32 %v1398, %v1503
        %1505 = vmatmul.f32.gmra.mxu0 %v595
        %v1506 = vpop.f32.mrf.mxu0
        %v1507 = vadd.f32 %v1401, %v1506
        %1508 = vmatmul.f32.gmra.mxu0 %v598
        %v1509 = vpop.f32.mrf.mxu0
        %v1510 = vadd.f32 %v1404, %v1509
        %1511 = vmatmul.f32.gmra.mxu0 %v601
        %v1512 = vpop.f32.mrf.mxu0
        %v1513 = vadd.f32 %v1407, %v1512
        %1514 = vmatmul.f32.gmra.mxu0 %v604
        %v1515 = vpop.f32.mrf.mxu0
        %v1516 = vadd.f32 %v1410, %v1515
        %1517 = vmatmul.f32.gmra.mxu0 %v607
        %v1518 = vpop.f32.mrf.mxu0
        %v1519 = vadd.f32 %v1413, %v1518
        %1520 = vmatmul.f32.gmra.mxu0 %v610
        %v1521 = vpop.f32.mrf.mxu0
        %v1522 = vadd.f32 %v1416, %v1521
        %1523 = vmatmul.f32.gmra.mxu0 %v613
        %v1524 = vpop.f32.mrf.mxu0
        %v1525 = vadd.f32 %v1419, %v1524
        %1526 = vmatmul.f32.gmra.mxu0 %v616
        %v1527 = vpop.f32.mrf.mxu0
        %v1528 = vadd.f32 %v1422, %v1527
        %1529 = vmatmul.f32.gmra.mxu0 %v619
        %v1530 = vpop.f32.mrf.mxu0
        %v1531 = vadd.f32 %v1425, %v1530
        %1532 = vmatmul.f32.gmra.mxu0 %v622
        %v1533 = vpop.f32.mrf.mxu0
        %v1534 = vadd.f32 %v1428, %v1533
        %1535 = vmatmul.f32.gmra.mxu0 %v625
        %v1536 = vpop.f32.mrf.mxu0
        %v1537 = vadd.f32 %v1431, %v1536
        %1538 = vdwg.mxu0
        %s1539 = scalar_lea.vmem %s1, 128
        %v1540 = vld [vmem:[%s1539] sm:$0xff]
        %v1541 = vld [vmem:[%s1539 + $0x8] sm:$0xff]
        %v1542 = vld [vmem:[%s1539 + $0x10] sm:$0xff]
        %v1543 = vld [vmem:[%s1539 + $0x18] sm:$0xff]
        %v1544 = vld [vmem:[%s1539 + $0x20] sm:$0xff]
        %v1545 = vld [vmem:[%s1539 + $0x28] sm:$0xff]
        %v1546 = vld [vmem:[%s1539 + $0x30] sm:$0xf]
        %v1547 = vld [vmem:[%s1539 + $0x38] sm:$0xf]
        %s1548 = scalar_lea.vmem %s2, 128
        %v1549 = vld [vmem:[%s1548] sm:$0xff]
        %v1550 = vld [vmem:[%s1548 + $0x8] sm:$0xff]
        %v1551 = vld [vmem:[%s1548 + $0x10] sm:$0xff]
        %v1552 = vld [vmem:[%s1548 + $0x18] sm:$0xff]
        %v1553 = vld [vmem:[%s1548 + $0x20] sm:$0xff]
        %v1554 = vld [vmem:[%s1548 + $0x28] sm:$0xff]
        %v1555 = vld [vmem:[%s1548 + $0x30] sm:$0xf]
        %v1556 = vld [vmem:[%s1548 + $0x38] sm:$0xf]
        %v1558 = vsel %vm627, %v1546, 0
        %v1561 = vsel %vm627, %v1547, 0
        %1563 = vmatpush.msra.mxu0 0.0
        %1564 = vmatpush.msra.mxu0 0.0
        %1565 = vmatpush.msra.mxu0 0.0
        %1566 = vmatpush.msra.mxu0 0.0
        %1567 = vmatpush.msra.mxu0 0.0
        %1568 = vmatpush.msra.mxu0 0.0
        %1569 = vmatpush.msra.mxu0 0.0
        %1570 = vmatpush.msra.mxu0 0.0
        %1571 = vmatpush.msra.mxu0 0.0
        %1572 = vmatpush.msra.mxu0 0.0
        %1573 = vmatpush.msra.mxu0 0.0
        %1574 = vmatpush.msra.mxu0 0.0
        %1575 = vmatpush.msra.mxu0 %v1558
        %1576 = vmatpush.msra.mxu0 %v1544
        %1577 = vmatpush.msra.mxu0 %v1542
        %1578 = vmatpush.msra.mxu0 %v1540
        %1579 = vmatmul.f32.gmra.mxu0 %v744
        %v1580 = vpop.f32.mrf.mxu0
        %v1581 = vadd.f32 0.0, %v1580
        %1582 = vmatmul.f32.gmra.mxu0 %v747
        %v1583 = vpop.f32.mrf.mxu0
        %v1584 = vadd.f32 0.0, %v1583
        %1585 = vmatmul.f32.gmra.mxu0 %v750
        %v1586 = vpop.f32.mrf.mxu0
        %v1587 = vadd.f32 0.0, %v1586
        %1588 = vmatmul.f32.gmra.mxu0 %v753
        %v1589 = vpop.f32.mrf.mxu0
        %v1590 = vadd.f32 0.0, %v1589
        %1591 = vmatmul.f32.gmra.mxu0 %v756
        %v1592 = vpop.f32.mrf.mxu0
        %v1593 = vadd.f32 0.0, %v1592
        %1594 = vmatmul.f32.gmra.mxu0 %v759
        %v1595 = vpop.f32.mrf.mxu0
        %v1596 = vadd.f32 0.0, %v1595
        %1597 = vmatmul.f32.gmra.mxu0 %v762
        %v1598 = vpop.f32.mrf.mxu0
        %v1599 = vadd.f32 0.0, %v1598
        %1600 = vmatmul.f32.gmra.mxu0 %v765
        %v1601 = vpop.f32.mrf.mxu0
        %v1602 = vadd.f32 0.0, %v1601
        %1603 = vmatmul.f32.gmra.mxu0 %v768
        %v1604 = vpop.f32.mrf.mxu0
        %v1605 = vadd.f32 0.0, %v1604
        %1606 = vmatmul.f32.gmra.mxu0 %v771
        %v1607 = vpop.f32.mrf.mxu0
        %v1608 = vadd.f32 0.0, %v1607
        %1609 = vmatmul.f32.gmra.mxu0 %v774
        %v1610 = vpop.f32.mrf.mxu0
        %v1611 = vadd.f32 0.0, %v1610
        %1612 = vmatmul.f32.gmra.mxu0 %v1113
        %v1613 = vpop.f32.mrf.mxu0
        %v1614 = vadd.f32 0.0, %v1613
        %1615 = vdwg.mxu0
        %1616 = vmatpush.msra.mxu0 0.0
        %1617 = vmatpush.msra.mxu0 0.0
        %1618 = vmatpush.msra.mxu0 0.0
        %1619 = vmatpush.msra.mxu0 0.0
        %1620 = vmatpush.msra.mxu0 0.0
        %1621 = vmatpush.msra.mxu0 0.0
        %1622 = vmatpush.msra.mxu0 0.0
        %1623 = vmatpush.msra.mxu0 0.0
        %1624 = vmatpush.msra.mxu0 0.0
        %1625 = vmatpush.msra.mxu0 0.0
        %1626 = vmatpush.msra.mxu0 0.0
        %1627 = vmatpush.msra.mxu0 0.0
        %1628 = vmatpush.msra.mxu0 %v1561
        %1629 = vmatpush.msra.mxu0 %v1545
        %1630 = vmatpush.msra.mxu0 %v1543
        %1631 = vmatpush.msra.mxu0 %v1541
        %1632 = vmatmul.f32.gmra.mxu0 %v744
        %v1633 = vpop.f32.mrf.mxu0
        %v1634 = vadd.f32 0.0, %v1633
        %1635 = vmatmul.f32.gmra.mxu0 %v747
        %v1636 = vpop.f32.mrf.mxu0
        %v1637 = vadd.f32 0.0, %v1636
        %1638 = vmatmul.f32.gmra.mxu0 %v750
        %v1639 = vpop.f32.mrf.mxu0
        %v1640 = vadd.f32 0.0, %v1639
        %1641 = vmatmul.f32.gmra.mxu0 %v753
        %v1642 = vpop.f32.mrf.mxu0
        %v1643 = vadd.f32 0.0, %v1642
        %1644 = vmatmul.f32.gmra.mxu0 %v756
        %v1645 = vpop.f32.mrf.mxu0
        %v1646 = vadd.f32 0.0, %v1645
        %1647 = vmatmul.f32.gmra.mxu0 %v759
        %v1648 = vpop.f32.mrf.mxu0
        %v1649 = vadd.f32 0.0, %v1648
        %1650 = vmatmul.f32.gmra.mxu0 %v762
        %v1651 = vpop.f32.mrf.mxu0
        %v1652 = vadd.f32 0.0, %v1651
        %1653 = vmatmul.f32.gmra.mxu0 %v765
        %v1654 = vpop.f32.mrf.mxu0
        %v1655 = vadd.f32 0.0, %v1654
        %1656 = vmatmul.f32.gmra.mxu0 %v768
        %v1657 = vpop.f32.mrf.mxu0
        %v1658 = vadd.f32 0.0, %v1657
        %1659 = vmatmul.f32.gmra.mxu0 %v771
        %v1660 = vpop.f32.mrf.mxu0
        %v1661 = vadd.f32 0.0, %v1660
        %1662 = vmatmul.f32.gmra.mxu0 %v774
        %v1663 = vpop.f32.mrf.mxu0
        %v1664 = vadd.f32 0.0, %v1663
        %1665 = vmatmul.f32.gmra.mxu0 %v1113
        %v1666 = vpop.f32.mrf.mxu0
        %v1667 = vadd.f32 0.0, %v1666
        %1668 = vdwg.mxu0
        %v1669 = vadd.f32 %v800, %v1581
        %v1670 = vadd.f32 %v853, %v1634
        %v1671 = vadd.f32 %v803, %v1584
        %v1672 = vadd.f32 %v856, %v1637
        %v1673 = vadd.f32 %v806, %v1587
        %v1674 = vadd.f32 %v859, %v1640
        %v1675 = vadd.f32 %v809, %v1590
        %v1676 = vadd.f32 %v862, %v1643
        %v1677 = vadd.f32 %v812, %v1593
        %v1678 = vadd.f32 %v865, %v1646
        %v1679 = vadd.f32 %v815, %v1596
        %v1680 = vadd.f32 %v868, %v1649
        %v1681 = vadd.f32 %v818, %v1599
        %v1682 = vadd.f32 %v871, %v1652
        %v1683 = vadd.f32 %v821, %v1602
        %v1684 = vadd.f32 %v874, %v1655
        %v1685 = vadd.f32 %v824, %v1605
        %v1686 = vadd.f32 %v877, %v1658
        %v1687 = vadd.f32 %v827, %v1608
        %v1688 = vadd.f32 %v880, %v1661
        %v1689 = vadd.f32 %v830, %v1611
        %v1690 = vadd.f32 %v883, %v1664
        %v1691 = vadd.f32 %v833, %v1614
        %v1692 = vadd.f32 %v886, %v1667
        %v1694 = vsel %vm627, %v1555, 0
        %v1697 = vsel %vm627, %v1556, 0
        %1699 = vmatpush.msra.mxu0 0.0
        %1700 = vmatpush.msra.mxu0 0.0
        %1701 = vmatpush.msra.mxu0 0.0
        %1702 = vmatpush.msra.mxu0 0.0
        %1703 = vmatpush.msra.mxu0 0.0
        %1704 = vmatpush.msra.mxu0 0.0
        %1705 = vmatpush.msra.mxu0 0.0
        %1706 = vmatpush.msra.mxu0 0.0
        %1707 = vmatpush.msra.mxu0 0.0
        %1708 = vmatpush.msra.mxu0 0.0
        %1709 = vmatpush.msra.mxu0 0.0
        %1710 = vmatpush.msra.mxu0 0.0
        %1711 = vmatpush.msra.mxu0 %v1694
        %1712 = vmatpush.msra.mxu0 %v1553
        %1713 = vmatpush.msra.mxu0 %v1551
        %1714 = vmatpush.msra.mxu0 %v1549
        %1715 = vmatmul.f32.gmra.mxu0 %v744
        %v1716 = vpop.f32.mrf.mxu0
        %v1717 = vadd.f32 0.0, %v1716
        %1718 = vmatmul.f32.gmra.mxu0 %v747
        %v1719 = vpop.f32.mrf.mxu0
        %v1720 = vadd.f32 0.0, %v1719
        %1721 = vmatmul.f32.gmra.mxu0 %v750
        %v1722 = vpop.f32.mrf.mxu0
        %v1723 = vadd.f32 0.0, %v1722
        %1724 = vmatmul.f32.gmra.mxu0 %v753
        %v1725 = vpop.f32.mrf.mxu0
        %v1726 = vadd.f32 0.0, %v1725
        %1727 = vmatmul.f32.gmra.mxu0 %v756
        %v1728 = vpop.f32.mrf.mxu0
        %v1729 = vadd.f32 0.0, %v1728
        %1730 = vmatmul.f32.gmra.mxu0 %v759
        %v1731 = vpop.f32.mrf.mxu0
        %v1732 = vadd.f32 0.0, %v1731
        %1733 = vmatmul.f32.gmra.mxu0 %v762
        %v1734 = vpop.f32.mrf.mxu0
        %v1735 = vadd.f32 0.0, %v1734
        %1736 = vmatmul.f32.gmra.mxu0 %v765
        %v1737 = vpop.f32.mrf.mxu0
        %v1738 = vadd.f32 0.0, %v1737
        %1739 = vmatmul.f32.gmra.mxu0 %v768
        %v1740 = vpop.f32.mrf.mxu0
        %v1741 = vadd.f32 0.0, %v1740
        %1742 = vmatmul.f32.gmra.mxu0 %v771
        %v1743 = vpop.f32.mrf.mxu0
        %v1744 = vadd.f32 0.0, %v1743
        %1745 = vmatmul.f32.gmra.mxu0 %v774
        %v1746 = vpop.f32.mrf.mxu0
        %v1747 = vadd.f32 0.0, %v1746
        %1748 = vmatmul.f32.gmra.mxu0 %v1113
        %v1749 = vpop.f32.mrf.mxu0
        %v1750 = vadd.f32 0.0, %v1749
        %1751 = vdwg.mxu0
        %1752 = vmatpush.msra.mxu0 0.0
        %1753 = vmatpush.msra.mxu0 0.0
        %1754 = vmatpush.msra.mxu0 0.0
        %1755 = vmatpush.msra.mxu0 0.0
        %1756 = vmatpush.msra.mxu0 0.0
        %1757 = vmatpush.msra.mxu0 0.0
        %1758 = vmatpush.msra.mxu0 0.0
        %1759 = vmatpush.msra.mxu0 0.0
        %1760 = vmatpush.msra.mxu0 0.0
        %1761 = vmatpush.msra.mxu0 0.0
        %1762 = vmatpush.msra.mxu0 0.0
        %1763 = vmatpush.msra.mxu0 0.0
        %1764 = vmatpush.msra.mxu0 %v1697
        %1765 = vmatpush.msra.mxu0 %v1554
        %1766 = vmatpush.msra.mxu0 %v1552
        %1767 = vmatpush.msra.mxu0 %v1550
        %1768 = vmatmul.f32.gmra.mxu0 %v744
        %v1769 = vpop.f32.mrf.mxu0
        %v1770 = vadd.f32 0.0, %v1769
        %1771 = vmatmul.f32.gmra.mxu0 %v747
        %v1772 = vpop.f32.mrf.mxu0
        %v1773 = vadd.f32 0.0, %v1772
        %1774 = vmatmul.f32.gmra.mxu0 %v750
        %v1775 = vpop.f32.mrf.mxu0
        %v1776 = vadd.f32 0.0, %v1775
        %1777 = vmatmul.f32.gmra.mxu0 %v753
        %v1778 = vpop.f32.mrf.mxu0
        %v1779 = vadd.f32 0.0, %v1778
        %1780 = vmatmul.f32.gmra.mxu0 %v756
        %v1781 = vpop.f32.mrf.mxu0
        %v1782 = vadd.f32 0.0, %v1781
        %1783 = vmatmul.f32.gmra.mxu0 %v759
        %v1784 = vpop.f32.mrf.mxu0
        %v1785 = vadd.f32 0.0, %v1784
        %1786 = vmatmul.f32.gmra.mxu0 %v762
        %v1787 = vpop.f32.mrf.mxu0
        %v1788 = vadd.f32 0.0, %v1787
        %1789 = vmatmul.f32.gmra.mxu0 %v765
        %v1790 = vpop.f32.mrf.mxu0
        %v1791 = vadd.f32 0.0, %v1790
        %1792 = vmatmul.f32.gmra.mxu0 %v768
        %v1793 = vpop.f32.mrf.mxu0
        %v1794 = vadd.f32 0.0, %v1793
        %1795 = vmatmul.f32.gmra.mxu0 %v771
        %v1796 = vpop.f32.mrf.mxu0
        %v1797 = vadd.f32 0.0, %v1796
        %1798 = vmatmul.f32.gmra.mxu0 %v774
        %v1799 = vpop.f32.mrf.mxu0
        %v1800 = vadd.f32 0.0, %v1799
        %1801 = vmatmul.f32.gmra.mxu0 %v1113
        %v1802 = vpop.f32.mrf.mxu0
        %v1803 = vadd.f32 0.0, %v1802
        %1804 = vdwg.mxu0
        %v1805 = vadd.f32 %v1024, %v1717
        %v1806 = vadd.f32 %v1077, %v1770
        %v1807 = vadd.f32 %v1027, %v1720
        %v1808 = vadd.f32 %v1080, %v1773
        %v1809 = vadd.f32 %v1030, %v1723
        %v1810 = vadd.f32 %v1083, %v1776
        %v1811 = vadd.f32 %v1033, %v1726
        %v1812 = vadd.f32 %v1086, %v1779
        %v1813 = vadd.f32 %v1036, %v1729
        %v1814 = vadd.f32 %v1089, %v1782
        %v1815 = vadd.f32 %v1039, %v1732
        %v1816 = vadd.f32 %v1092, %v1785
        %v1817 = vadd.f32 %v1042, %v1735
        %v1818 = vadd.f32 %v1095, %v1788
        %v1819 = vadd.f32 %v1045, %v1738
        %v1820 = vadd.f32 %v1098, %v1791
        %v1821 = vadd.f32 %v1048, %v1741
        %v1822 = vadd.f32 %v1101, %v1794
        %v1823 = vadd.f32 %v1051, %v1744
        %v1824 = vadd.f32 %v1104, %v1797
        %v1825 = vadd.f32 %v1054, %v1747
        %v1826 = vadd.f32 %v1107, %v1800
        %v1827 = vadd.f32 %v1057, %v1750
        %v1828 = vadd.f32 %v1110, %v1803
        %v1830 = vsel %vm590, %v553, 0
        %1832 = vmatpush.msra.mxu0 0.0
        %1833 = vmatpush.msra.mxu0 0.0
        %1834 = vmatpush.msra.mxu0 0.0
        %1835 = vmatpush.msra.mxu0 0.0
        %1836 = vmatpush.msra.mxu0 0.0
        %1837 = vmatpush.msra.mxu0 0.0
        %1838 = vmatpush.msra.mxu0 0.0
        %1839 = vmatpush.msra.mxu0 0.0
        %1840 = vmatpush.msra.mxu0 0.0
        %1841 = vmatpush.msra.mxu0 0.0
        %1842 = vmatpush.msra.mxu0 0.0
        %1843 = vmatpush.msra.mxu0 0.0
        %1844 = vmatpush.msra.mxu0 %v1558
        %1845 = vmatpush.msra.mxu0 %v1544
        %1846 = vmatpush.msra.mxu0 %v1542
        %1847 = vmatpush.msra.mxu0 %v1540
        %1848 = vmatmul.f32.gmra.mxu0 %v595
        %v1849 = vpop.f32.mrf.mxu0
        %v1850 = vadd.f32 0.0, %v1849
        %1851 = vmatmul.f32.gmra.mxu0 %v598
        %v1852 = vpop.f32.mrf.mxu0
        %v1853 = vadd.f32 0.0, %v1852
        %1854 = vmatmul.f32.gmra.mxu0 %v601
        %v1855 = vpop.f32.mrf.mxu0
        %v1856 = vadd.f32 0.0, %v1855
        %1857 = vmatmul.f32.gmra.mxu0 %v604
        %v1858 = vpop.f32.mrf.mxu0
        %v1859 = vadd.f32 0.0, %v1858
        %1860 = vmatmul.f32.gmra.mxu0 %v607
        %v1861 = vpop.f32.mrf.mxu0
        %v1862 = vadd.f32 0.0, %v1861
        %1863 = vmatmul.f32.gmra.mxu0 %v610
        %v1864 = vpop.f32.mrf.mxu0
        %v1865 = vadd.f32 0.0, %v1864
        %1866 = vmatmul.f32.gmra.mxu0 %v613
        %v1867 = vpop.f32.mrf.mxu0
        %v1868 = vadd.f32 0.0, %v1867
        %1869 = vmatmul.f32.gmra.mxu0 %v616
        %v1870 = vpop.f32.mrf.mxu0
        %v1871 = vadd.f32 0.0, %v1870
        %1872 = vmatmul.f32.gmra.mxu0 %v619
        %v1873 = vpop.f32.mrf.mxu0
        %v1874 = vadd.f32 0.0, %v1873
        %1875 = vmatmul.f32.gmra.mxu0 %v622
        %v1876 = vpop.f32.mrf.mxu0
        %v1877 = vadd.f32 0.0, %v1876
        %1878 = vmatmul.f32.gmra.mxu0 %v625
        %v1879 = vpop.f32.mrf.mxu0
        %v1880 = vadd.f32 0.0, %v1879
        %1881 = vmatmul.f32.gmra.mxu0 %v1830
        %v1882 = vpop.f32.mrf.mxu0
        %v1883 = vadd.f32 0.0, %v1882
        %1884 = vdwg.mxu0
        %1885 = vmatpush.msra.mxu0 0.0
        %1886 = vmatpush.msra.mxu0 0.0
        %1887 = vmatpush.msra.mxu0 0.0
        %1888 = vmatpush.msra.mxu0 0.0
        %1889 = vmatpush.msra.mxu0 0.0
        %1890 = vmatpush.msra.mxu0 0.0
        %1891 = vmatpush.msra.mxu0 0.0
        %1892 = vmatpush.msra.mxu0 0.0
        %1893 = vmatpush.msra.mxu0 0.0
        %1894 = vmatpush.msra.mxu0 0.0
        %1895 = vmatpush.msra.mxu0 0.0
        %1896 = vmatpush.msra.mxu0 0.0
        %1897 = vmatpush.msra.mxu0 %v1561
        %1898 = vmatpush.msra.mxu0 %v1545
        %1899 = vmatpush.msra.mxu0 %v1543
        %1900 = vmatpush.msra.mxu0 %v1541
        %1901 = vmatmul.f32.gmra.mxu0 %v595
        %v1902 = vpop.f32.mrf.mxu0
        %v1903 = vadd.f32 0.0, %v1902
        %1904 = vmatmul.f32.gmra.mxu0 %v598
        %v1905 = vpop.f32.mrf.mxu0
        %v1906 = vadd.f32 0.0, %v1905
        %1907 = vmatmul.f32.gmra.mxu0 %v601
        %v1908 = vpop.f32.mrf.mxu0
        %v1909 = vadd.f32 0.0, %v1908
        %1910 = vmatmul.f32.gmra.mxu0 %v604
        %v1911 = vpop.f32.mrf.mxu0
        %v1912 = vadd.f32 0.0, %v1911
        %1913 = vmatmul.f32.gmra.mxu0 %v607
        %v1914 = vpop.f32.mrf.mxu0
        %v1915 = vadd.f32 0.0, %v1914
        %1916 = vmatmul.f32.gmra.mxu0 %v610
        %v1917 = vpop.f32.mrf.mxu0
        %v1918 = vadd.f32 0.0, %v1917
        %1919 = vmatmul.f32.gmra.mxu0 %v613
        %v1920 = vpop.f32.mrf.mxu0
        %v1921 = vadd.f32 0.0, %v1920
        %1922 = vmatmul.f32.gmra.mxu0 %v616
        %v1923 = vpop.f32.mrf.mxu0
        %v1924 = vadd.f32 0.0, %v1923
        %1925 = vmatmul.f32.gmra.mxu0 %v619
        %v1926 = vpop.f32.mrf.mxu0
        %v1927 = vadd.f32 0.0, %v1926
        %1928 = vmatmul.f32.gmra.mxu0 %v622
        %v1929 = vpop.f32.mrf.mxu0
        %v1930 = vadd.f32 0.0, %v1929
        %1931 = vmatmul.f32.gmra.mxu0 %v625
        %v1932 = vpop.f32.mrf.mxu0
        %v1933 = vadd.f32 0.0, %v1932
        %1934 = vmatmul.f32.gmra.mxu0 %v1830
        %v1935 = vpop.f32.mrf.mxu0
        %v1936 = vadd.f32 0.0, %v1935
        %1937 = vdwg.mxu0
        %v1938 = vadd.f32 %v1239, %v1850
        %v1939 = vadd.f32 %v1292, %v1903
        %v1940 = vadd.f32 %v1242, %v1853
        %v1941 = vadd.f32 %v1295, %v1906
        %v1942 = vadd.f32 %v1245, %v1856
        %v1943 = vadd.f32 %v1298, %v1909
        %v1944 = vadd.f32 %v1248, %v1859
        %v1945 = vadd.f32 %v1301, %v1912
        %v1946 = vadd.f32 %v1251, %v1862
        %v1947 = vadd.f32 %v1304, %v1915
        %v1948 = vadd.f32 %v1254, %v1865
        %v1949 = vadd.f32 %v1307, %v1918
        %v1950 = vadd.f32 %v1257, %v1868
        %v1951 = vadd.f32 %v1310, %v1921
        %v1952 = vadd.f32 %v1260, %v1871
        %v1953 = vadd.f32 %v1313, %v1924
        %v1954 = vadd.f32 %v1263, %v1874
        %v1955 = vadd.f32 %v1316, %v1927
        %v1956 = vadd.f32 %v1266, %v1877
        %v1957 = vadd.f32 %v1319, %v1930
        %v1958 = vadd.f32 %v1269, %v1880
        %v1959 = vadd.f32 %v1322, %v1933
        %v1960 = vadd.f32 %v1272, %v1883
        %v1961 = vadd.f32 %v1325, %v1936
        %1962 = vmatpush.msra.mxu0 0.0
        %1963 = vmatpush.msra.mxu0 0.0
        %1964 = vmatpush.msra.mxu0 0.0
        %1965 = vmatpush.msra.mxu0 0.0
        %1966 = vmatpush.msra.mxu0 0.0
        %1967 = vmatpush.msra.mxu0 0.0
        %1968 = vmatpush.msra.mxu0 0.0
        %1969 = vmatpush.msra.mxu0 0.0
        %1970 = vmatpush.msra.mxu0 0.0
        %1971 = vmatpush.msra.mxu0 0.0
        %1972 = vmatpush.msra.mxu0 0.0
        %1973 = vmatpush.msra.mxu0 0.0
        %1974 = vmatpush.msra.mxu0 %v1694
        %1975 = vmatpush.msra.mxu0 %v1553
        %1976 = vmatpush.msra.mxu0 %v1551
        %1977 = vmatpush.msra.mxu0 %v1549
        %1978 = vmatmul.f32.gmra.mxu0 %v595
        %v1979 = vpop.f32.mrf.mxu0
        %v1980 = vadd.f32 0.0, %v1979
        %1981 = vmatmul.f32.gmra.mxu0 %v598
        %v1982 = vpop.f32.mrf.mxu0
        %v1983 = vadd.f32 0.0, %v1982
        %1984 = vmatmul.f32.gmra.mxu0 %v601
        %v1985 = vpop.f32.mrf.mxu0
        %v1986 = vadd.f32 0.0, %v1985
        %1987 = vmatmul.f32.gmra.mxu0 %v604
        %v1988 = vpop.f32.mrf.mxu0
        %v1989 = vadd.f32 0.0, %v1988
        %1990 = vmatmul.f32.gmra.mxu0 %v607
        %v1991 = vpop.f32.mrf.mxu0
        %v1992 = vadd.f32 0.0, %v1991
        %1993 = vmatmul.f32.gmra.mxu0 %v610
        %v1994 = vpop.f32.mrf.mxu0
        %v1995 = vadd.f32 0.0, %v1994
        %1996 = vmatmul.f32.gmra.mxu0 %v613
        %v1997 = vpop.f32.mrf.mxu0
        %v1998 = vadd.f32 0.0, %v1997
        %1999 = vmatmul.f32.gmra.mxu0 %v616
        %v2000 = vpop.f32.mrf.mxu0
        %v2001 = vadd.f32 0.0, %v2000
        %2002 = vmatmul.f32.gmra.mxu0 %v619
        %v2003 = vpop.f32.mrf.mxu0
        %v2004 = vadd.f32 0.0, %v2003
        %2005 = vmatmul.f32.gmra.mxu0 %v622
        %v2006 = vpop.f32.mrf.mxu0
        %v2007 = vadd.f32 0.0, %v2006
        %2008 = vmatmul.f32.gmra.mxu0 %v625
        %v2009 = vpop.f32.mrf.mxu0
        %v2010 = vadd.f32 0.0, %v2009
        %2011 = vmatmul.f32.gmra.mxu0 %v1830
        %v2012 = vpop.f32.mrf.mxu0
        %v2013 = vadd.f32 0.0, %v2012
        %2014 = vdwg.mxu0
        %2015 = vmatpush.msra.mxu0 0.0
        %2016 = vmatpush.msra.mxu0 0.0
        %2017 = vmatpush.msra.mxu0 0.0
        %2018 = vmatpush.msra.mxu0 0.0
        %2019 = vmatpush.msra.mxu0 0.0
        %2020 = vmatpush.msra.mxu0 0.0
        %2021 = vmatpush.msra.mxu0 0.0
        %2022 = vmatpush.msra.mxu0 0.0
        %2023 = vmatpush.msra.mxu0 0.0
        %2024 = vmatpush.msra.mxu0 0.0
        %2025 = vmatpush.msra.mxu0 0.0
        %2026 = vmatpush.msra.mxu0 0.0
        %2027 = vmatpush.msra.mxu0 %v1697
        %2028 = vmatpush.msra.mxu0 %v1554
        %2029 = vmatpush.msra.mxu0 %v1552
        %2030 = vmatpush.msra.mxu0 %v1550
        %2031 = vmatmul.f32.gmra.mxu0 %v595
        %v2032 = vpop.f32.mrf.mxu0
        %v2033 = vadd.f32 0.0, %v2032
        %2034 = vmatmul.f32.gmra.mxu0 %v598
        %v2035 = vpop.f32.mrf.mxu0
        %v2036 = vadd.f32 0.0, %v2035
        %2037 = vmatmul.f32.gmra.mxu0 %v601
        %v2038 = vpop.f32.mrf.mxu0
        %v2039 = vadd.f32 0.0, %v2038
        %2040 = vmatmul.f32.gmra.mxu0 %v604
        %v2041 = vpop.f32.mrf.mxu0
        %v2042 = vadd.f32 0.0, %v2041
        %2043 = vmatmul.f32.gmra.mxu0 %v607
        %v2044 = vpop.f32.mrf.mxu0
        %v2045 = vadd.f32 0.0, %v2044
        %2046 = vmatmul.f32.gmra.mxu0 %v610
        %v2047 = vpop.f32.mrf.mxu0
        %v2048 = vadd.f32 0.0, %v2047
        %2049 = vmatmul.f32.gmra.mxu0 %v613
        %v2050 = vpop.f32.mrf.mxu0
        %v2051 = vadd.f32 0.0, %v2050
        %2052 = vmatmul.f32.gmra.mxu0 %v616
        %v2053 = vpop.f32.mrf.mxu0
        %v2054 = vadd.f32 0.0, %v2053
        %2055 = vmatmul.f32.gmra.mxu0 %v619
        %v2056 = vpop.f32.mrf.mxu0
        %v2057 = vadd.f32 0.0, %v2056
        %2058 = vmatmul.f32.gmra.mxu0 %v622
        %v2059 = vpop.f32.mrf.mxu0
        %v2060 = vadd.f32 0.0, %v2059
        %2061 = vmatmul.f32.gmra.mxu0 %v625
        %v2062 = vpop.f32.mrf.mxu0
        %v2063 = vadd.f32 0.0, %v2062
        %2064 = vmatmul.f32.gmra.mxu0 %v1830
        %v2065 = vpop.f32.mrf.mxu0
        %v2066 = vadd.f32 0.0, %v2065
        %2067 = vdwg.mxu0
        %v2068 = vadd.f32 %v1451, %v1980
        %v2069 = vadd.f32 %v1504, %v2033
        %v2070 = vadd.f32 %v1454, %v1983
        %v2071 = vadd.f32 %v1507, %v2036
        %v2072 = vadd.f32 %v1457, %v1986
        %v2073 = vadd.f32 %v1510, %v2039
        %v2074 = vadd.f32 %v1460, %v1989
        %v2075 = vadd.f32 %v1513, %v2042
        %v2076 = vadd.f32 %v1463, %v1992
        %v2077 = vadd.f32 %v1516, %v2045
        %v2078 = vadd.f32 %v1466, %v1995
        %v2079 = vadd.f32 %v1519, %v2048
        %v2080 = vadd.f32 %v1469, %v1998
        %v2081 = vadd.f32 %v1522, %v2051
        %v2082 = vadd.f32 %v1472, %v2001
        %v2083 = vadd.f32 %v1525, %v2054
        %v2084 = vadd.f32 %v1475, %v2004
        %v2085 = vadd.f32 %v1528, %v2057
        %v2086 = vadd.f32 %v1478, %v2007
        %v2087 = vadd.f32 %v1531, %v2060
        %v2088 = vadd.f32 %v1481, %v2010
        %v2089 = vadd.f32 %v1534, %v2063
        %v2090 = vadd.f32 %v1484, %v2013
        %v2091 = vadd.f32 %v1537, %v2066
        %s2092 = scalar_lea.vmem %s1, 192
        %v2093 = vld [vmem:[%s2092] sm:$0xff]
        %v2094 = vld [vmem:[%s2092 + $0x8] sm:$0xff]
        %v2095 = vld [vmem:[%s2092 + $0x10] sm:$0xff]
        %v2096 = vld [vmem:[%s2092 + $0x18] sm:$0xff]
        %v2097 = vld [vmem:[%s2092 + $0x20] sm:$0xff]
        %v2098 = vld [vmem:[%s2092 + $0x28] sm:$0xff]
        %v2099 = vld [vmem:[%s2092 + $0x30] sm:$0xf]
        %v2100 = vld [vmem:[%s2092 + $0x38] sm:$0xf]
        %s2101 = scalar_lea.vmem %s2, 192
        %v2102 = vld [vmem:[%s2101] sm:$0xff]
        %v2103 = vld [vmem:[%s2101 + $0x8] sm:$0xff]
        %v2104 = vld [vmem:[%s2101 + $0x10] sm:$0xff]
        %v2105 = vld [vmem:[%s2101 + $0x18] sm:$0xff]
        %v2106 = vld [vmem:[%s2101 + $0x20] sm:$0xff]
        %v2107 = vld [vmem:[%s2101 + $0x28] sm:$0xff]
        %v2108 = vld [vmem:[%s2101 + $0x30] sm:$0xf]
        %v2109 = vld [vmem:[%s2101 + $0x38] sm:$0xf]
        %v2111 = vsel %vm627, %v2099, 0
        %v2114 = vsel %vm627, %v2100, 0
        %2116 = vmatpush.msra.mxu0 0.0
        %2117 = vmatpush.msra.mxu0 0.0
        %2118 = vmatpush.msra.mxu0 0.0
        %2119 = vmatpush.msra.mxu0 0.0
        %2120 = vmatpush.msra.mxu0 0.0
        %2121 = vmatpush.msra.mxu0 0.0
        %2122 = vmatpush.msra.mxu0 0.0
        %2123 = vmatpush.msra.mxu0 0.0
        %2124 = vmatpush.msra.mxu0 0.0
        %2125 = vmatpush.msra.mxu0 0.0
        %2126 = vmatpush.msra.mxu0 0.0
        %2127 = vmatpush.msra.mxu0 0.0
        %2128 = vmatpush.msra.mxu0 %v2111
        %2129 = vmatpush.msra.mxu0 %v2097
        %2130 = vmatpush.msra.mxu0 %v2095
        %2131 = vmatpush.msra.mxu0 %v2093
        %2132 = vmatmul.f32.gmra.mxu0 %v595
        %v2133 = vpop.f32.mrf.mxu0
        %v2134 = vadd.f32 0.0, %v2133
        %2135 = vmatmul.f32.gmra.mxu0 %v598
        %v2136 = vpop.f32.mrf.mxu0
        %v2137 = vadd.f32 0.0, %v2136
        %2138 = vmatmul.f32.gmra.mxu0 %v601
        %v2139 = vpop.f32.mrf.mxu0
        %v2140 = vadd.f32 0.0, %v2139
        %2141 = vmatmul.f32.gmra.mxu0 %v604
        %v2142 = vpop.f32.mrf.mxu0
        %v2143 = vadd.f32 0.0, %v2142
        %2144 = vmatmul.f32.gmra.mxu0 %v607
        %v2145 = vpop.f32.mrf.mxu0
        %v2146 = vadd.f32 0.0, %v2145
        %2147 = vmatmul.f32.gmra.mxu0 %v610
        %v2148 = vpop.f32.mrf.mxu0
        %v2149 = vadd.f32 0.0, %v2148
        %2150 = vmatmul.f32.gmra.mxu0 %v613
        %v2151 = vpop.f32.mrf.mxu0
        %v2152 = vadd.f32 0.0, %v2151
        %2153 = vmatmul.f32.gmra.mxu0 %v616
        %v2154 = vpop.f32.mrf.mxu0
        %v2155 = vadd.f32 0.0, %v2154
        %2156 = vmatmul.f32.gmra.mxu0 %v619
        %v2157 = vpop.f32.mrf.mxu0
        %v2158 = vadd.f32 0.0, %v2157
        %2159 = vmatmul.f32.gmra.mxu0 %v622
        %v2160 = vpop.f32.mrf.mxu0
        %v2161 = vadd.f32 0.0, %v2160
        %2162 = vmatmul.f32.gmra.mxu0 %v625
        %v2163 = vpop.f32.mrf.mxu0
        %v2164 = vadd.f32 0.0, %v2163
        %2165 = vmatmul.f32.gmra.mxu0 %v1830
        %v2166 = vpop.f32.mrf.mxu0
        %v2167 = vadd.f32 0.0, %v2166
        %2168 = vdwg.mxu0
        %2169 = vmatpush.msra.mxu0 0.0
        %2170 = vmatpush.msra.mxu0 0.0
        %2171 = vmatpush.msra.mxu0 0.0
        %2172 = vmatpush.msra.mxu0 0.0
        %2173 = vmatpush.msra.mxu0 0.0
        %2174 = vmatpush.msra.mxu0 0.0
        %2175 = vmatpush.msra.mxu0 0.0
        %2176 = vmatpush.msra.mxu0 0.0
        %2177 = vmatpush.msra.mxu0 0.0
        %2178 = vmatpush.msra.mxu0 0.0
        %2179 = vmatpush.msra.mxu0 0.0
        %2180 = vmatpush.msra.mxu0 0.0
        %2181 = vmatpush.msra.mxu0 %v2114
        %2182 = vmatpush.msra.mxu0 %v2098
        %2183 = vmatpush.msra.mxu0 %v2096
        %2184 = vmatpush.msra.mxu0 %v2094
        %2185 = vmatmul.f32.gmra.mxu0 %v595
        %v2186 = vpop.f32.mrf.mxu0
        %v2187 = vadd.f32 0.0, %v2186
        %2188 = vmatmul.f32.gmra.mxu0 %v598
        %v2189 = vpop.f32.mrf.mxu0
        %v2190 = vadd.f32 0.0, %v2189
        %2191 = vmatmul.f32.gmra.mxu0 %v601
        %v2192 = vpop.f32.mrf.mxu0
        %v2193 = vadd.f32 0.0, %v2192
        %2194 = vmatmul.f32.gmra.mxu0 %v604
        %v2195 = vpop.f32.mrf.mxu0
        %v2196 = vadd.f32 0.0, %v2195
        %2197 = vmatmul.f32.gmra.mxu0 %v607
        %v2198 = vpop.f32.mrf.mxu0
        %v2199 = vadd.f32 0.0, %v2198
        %2200 = vmatmul.f32.gmra.mxu0 %v610
        %v2201 = vpop.f32.mrf.mxu0
        %v2202 = vadd.f32 0.0, %v2201
        %2203 = vmatmul.f32.gmra.mxu0 %v613
        %v2204 = vpop.f32.mrf.mxu0
        %v2205 = vadd.f32 0.0, %v2204
        %2206 = vmatmul.f32.gmra.mxu0 %v616
        %v2207 = vpop.f32.mrf.mxu0
        %v2208 = vadd.f32 0.0, %v2207
        %2209 = vmatmul.f32.gmra.mxu0 %v619
        %v2210 = vpop.f32.mrf.mxu0
        %v2211 = vadd.f32 0.0, %v2210
        %2212 = vmatmul.f32.gmra.mxu0 %v622
        %v2213 = vpop.f32.mrf.mxu0
        %v2214 = vadd.f32 0.0, %v2213
        %2215 = vmatmul.f32.gmra.mxu0 %v625
        %v2216 = vpop.f32.mrf.mxu0
        %v2217 = vadd.f32 0.0, %v2216
        %2218 = vmatmul.f32.gmra.mxu0 %v1830
        %v2219 = vpop.f32.mrf.mxu0
        %v2220 = vadd.f32 0.0, %v2219
        %2221 = vdwg.mxu0
        %v2222 = vadd.f32 %v1669, %v2134
        %v2223 = vadd.f32 %v1670, %v2187
        %v2224 = vadd.f32 %v1671, %v2137
        %v2225 = vadd.f32 %v1672, %v2190
        %v2226 = vadd.f32 %v1673, %v2140
        %v2227 = vadd.f32 %v1674, %v2193
        %v2228 = vadd.f32 %v1675, %v2143
        %v2229 = vadd.f32 %v1676, %v2196
        %v2230 = vadd.f32 %v1677, %v2146
        %v2231 = vadd.f32 %v1678, %v2199
        %v2232 = vadd.f32 %v1679, %v2149
        %v2233 = vadd.f32 %v1680, %v2202
        %v2234 = vadd.f32 %v1681, %v2152
        %v2235 = vadd.f32 %v1682, %v2205
        %v2236 = vadd.f32 %v1683, %v2155
        %v2237 = vadd.f32 %v1684, %v2208
        %v2238 = vadd.f32 %v1685, %v2158
        %v2239 = vadd.f32 %v1686, %v2211
        %v2240 = vadd.f32 %v1687, %v2161
        %v2241 = vadd.f32 %v1688, %v2214
        %v2242 = vadd.f32 %v1689, %v2164
        %v2243 = vadd.f32 %v1690, %v2217
        %v2244 = vadd.f32 %v1691, %v2167
        %v2245 = vadd.f32 %v1692, %v2220
        %v2247 = vsel %vm627, %v2108, 0
        %v2250 = vsel %vm627, %v2109, 0
        %2252 = vmatpush.msra.mxu0 0.0
        %2253 = vmatpush.msra.mxu0 0.0
        %2254 = vmatpush.msra.mxu0 0.0
        %2255 = vmatpush.msra.mxu0 0.0
        %2256 = vmatpush.msra.mxu0 0.0
        %2257 = vmatpush.msra.mxu0 0.0
        %2258 = vmatpush.msra.mxu0 0.0
        %2259 = vmatpush.msra.mxu0 0.0
        %2260 = vmatpush.msra.mxu0 0.0
        %2261 = vmatpush.msra.mxu0 0.0
        %2262 = vmatpush.msra.mxu0 0.0
        %2263 = vmatpush.msra.mxu0 0.0
        %2264 = vmatpush.msra.mxu0 %v2247
        %2265 = vmatpush.msra.mxu0 %v2106
        %2266 = vmatpush.msra.mxu0 %v2104
        %2267 = vmatpush.msra.mxu0 %v2102
        %2268 = vmatmul.f32.gmra.mxu0 %v595
        %v2269 = vpop.f32.mrf.mxu0
        %v2270 = vadd.f32 0.0, %v2269
        %2271 = vmatmul.f32.gmra.mxu0 %v598
        %v2272 = vpop.f32.mrf.mxu0
        %v2273 = vadd.f32 0.0, %v2272
        %2274 = vmatmul.f32.gmra.mxu0 %v601
        %v2275 = vpop.f32.mrf.mxu0
        %v2276 = vadd.f32 0.0, %v2275
        %2277 = vmatmul.f32.gmra.mxu0 %v604
        %v2278 = vpop.f32.mrf.mxu0
        %v2279 = vadd.f32 0.0, %v2278
        %2280 = vmatmul.f32.gmra.mxu0 %v607
        %v2281 = vpop.f32.mrf.mxu0
        %v2282 = vadd.f32 0.0, %v2281
        %2283 = vmatmul.f32.gmra.mxu0 %v610
        %v2284 = vpop.f32.mrf.mxu0
        %v2285 = vadd.f32 0.0, %v2284
        %2286 = vmatmul.f32.gmra.mxu0 %v613
        %v2287 = vpop.f32.mrf.mxu0
        %v2288 = vadd.f32 0.0, %v2287
        %2289 = vmatmul.f32.gmra.mxu0 %v616
        %v2290 = vpop.f32.mrf.mxu0
        %v2291 = vadd.f32 0.0, %v2290
        %2292 = vmatmul.f32.gmra.mxu0 %v619
        %v2293 = vpop.f32.mrf.mxu0
        %v2294 = vadd.f32 0.0, %v2293
        %2295 = vmatmul.f32.gmra.mxu0 %v622
        %v2296 = vpop.f32.mrf.mxu0
        %v2297 = vadd.f32 0.0, %v2296
        %2298 = vmatmul.f32.gmra.mxu0 %v625
        %v2299 = vpop.f32.mrf.mxu0
        %v2300 = vadd.f32 0.0, %v2299
        %2301 = vmatmul.f32.gmra.mxu0 %v1830
        %v2302 = vpop.f32.mrf.mxu0
        %v2303 = vadd.f32 0.0, %v2302
        %2304 = vdwg.mxu0
        %2305 = vmatpush.msra.mxu0 0.0
        %2306 = vmatpush.msra.mxu0 0.0
        %2307 = vmatpush.msra.mxu0 0.0
        %2308 = vmatpush.msra.mxu0 0.0
        %2309 = vmatpush.msra.mxu0 0.0
        %2310 = vmatpush.msra.mxu0 0.0
        %2311 = vmatpush.msra.mxu0 0.0
        %2312 = vmatpush.msra.mxu0 0.0
        %2313 = vmatpush.msra.mxu0 0.0
        %2314 = vmatpush.msra.mxu0 0.0
        %2315 = vmatpush.msra.mxu0 0.0
        %2316 = vmatpush.msra.mxu0 0.0
        %2317 = vmatpush.msra.mxu0 %v2250
        %2318 = vmatpush.msra.mxu0 %v2107
        %2319 = vmatpush.msra.mxu0 %v2105
        %2320 = vmatpush.msra.mxu0 %v2103
        %2321 = vmatmul.f32.gmra.mxu0 %v595
        %v2322 = vpop.f32.mrf.mxu0
        %v2323 = vadd.f32 0.0, %v2322
        %2324 = vmatmul.f32.gmra.mxu0 %v598
        %v2325 = vpop.f32.mrf.mxu0
        %v2326 = vadd.f32 0.0, %v2325
        %2327 = vmatmul.f32.gmra.mxu0 %v601
        %v2328 = vpop.f32.mrf.mxu0
        %v2329 = vadd.f32 0.0, %v2328
        %2330 = vmatmul.f32.gmra.mxu0 %v604
        %v2331 = vpop.f32.mrf.mxu0
        %v2332 = vadd.f32 0.0, %v2331
        %2333 = vmatmul.f32.gmra.mxu0 %v607
        %v2334 = vpop.f32.mrf.mxu0
        %v2335 = vadd.f32 0.0, %v2334
        %2336 = vmatmul.f32.gmra.mxu0 %v610
        %v2337 = vpop.f32.mrf.mxu0
        %v2338 = vadd.f32 0.0, %v2337
        %2339 = vmatmul.f32.gmra.mxu0 %v613
        %v2340 = vpop.f32.mrf.mxu0
        %v2341 = vadd.f32 0.0, %v2340
        %2342 = vmatmul.f32.gmra.mxu0 %v616
        %v2343 = vpop.f32.mrf.mxu0
        %v2344 = vadd.f32 0.0, %v2343
        %2345 = vmatmul.f32.gmra.mxu0 %v619
        %v2346 = vpop.f32.mrf.mxu0
        %v2347 = vadd.f32 0.0, %v2346
        %2348 = vmatmul.f32.gmra.mxu0 %v622
        %v2349 = vpop.f32.mrf.mxu0
        %v2350 = vadd.f32 0.0, %v2349
        %2351 = vmatmul.f32.gmra.mxu0 %v625
        %v2352 = vpop.f32.mrf.mxu0
        %v2353 = vadd.f32 0.0, %v2352
        %2354 = vmatmul.f32.gmra.mxu0 %v1830
        %v2355 = vpop.f32.mrf.mxu0
        %v2356 = vadd.f32 0.0, %v2355
        %2357 = vdwg.mxu0
        %v2358 = vadd.f32 %v1805, %v2270
        %v2359 = vadd.f32 %v1806, %v2323
        %v2360 = vadd.f32 %v1807, %v2273
        %v2361 = vadd.f32 %v1808, %v2326
        %v2362 = vadd.f32 %v1809, %v2276
        %v2363 = vadd.f32 %v1810, %v2329
        %v2364 = vadd.f32 %v1811, %v2279
        %v2365 = vadd.f32 %v1812, %v2332
        %v2366 = vadd.f32 %v1813, %v2282
        %v2367 = vadd.f32 %v1814, %v2335
        %v2368 = vadd.f32 %v1815, %v2285
        %v2369 = vadd.f32 %v1816, %v2338
        %v2370 = vadd.f32 %v1817, %v2288
        %v2371 = vadd.f32 %v1818, %v2341
        %v2372 = vadd.f32 %v1819, %v2291
        %v2373 = vadd.f32 %v1820, %v2344
        %v2374 = vadd.f32 %v1821, %v2294
        %v2375 = vadd.f32 %v1822, %v2347
        %v2376 = vadd.f32 %v1823, %v2297
        %v2377 = vadd.f32 %v1824, %v2350
        %v2378 = vadd.f32 %v1825, %v2300
        %v2379 = vadd.f32 %v1826, %v2353
        %v2380 = vadd.f32 %v1827, %v2303
        %v2381 = vadd.f32 %v1828, %v2356
        %v2383 = vsel %vm590, %v554, 0
        %2385 = vmatpush.msra.mxu0 0.0
        %2386 = vmatpush.msra.mxu0 0.0
        %2387 = vmatpush.msra.mxu0 0.0
        %2388 = vmatpush.msra.mxu0 0.0
        %2389 = vmatpush.msra.mxu0 0.0
        %2390 = vmatpush.msra.mxu0 0.0
        %2391 = vmatpush.msra.mxu0 0.0
        %2392 = vmatpush.msra.mxu0 0.0
        %2393 = vmatpush.msra.mxu0 0.0
        %2394 = vmatpush.msra.mxu0 0.0
        %2395 = vmatpush.msra.mxu0 0.0
        %2396 = vmatpush.msra.mxu0 0.0
        %2397 = vmatpush.msra.mxu0 %v2111
        %2398 = vmatpush.msra.mxu0 %v2097
        %2399 = vmatpush.msra.mxu0 %v2095
        %2400 = vmatpush.msra.mxu0 %v2093
        %2401 = vmatmul.f32.gmra.mxu0 %v747
        %v2402 = vpop.f32.mrf.mxu0
        %v2403 = vadd.f32 0.0, %v2402
        %2404 = vmatmul.f32.gmra.mxu0 %v750
        %v2405 = vpop.f32.mrf.mxu0
        %v2406 = vadd.f32 0.0, %v2405
        %2407 = vmatmul.f32.gmra.mxu0 %v753
        %v2408 = vpop.f32.mrf.mxu0
        %v2409 = vadd.f32 0.0, %v2408
        %2410 = vmatmul.f32.gmra.mxu0 %v756
        %v2411 = vpop.f32.mrf.mxu0
        %v2412 = vadd.f32 0.0, %v2411
        %2413 = vmatmul.f32.gmra.mxu0 %v759
        %v2414 = vpop.f32.mrf.mxu0
        %v2415 = vadd.f32 0.0, %v2414
        %2416 = vmatmul.f32.gmra.mxu0 %v762
        %v2417 = vpop.f32.mrf.mxu0
        %v2418 = vadd.f32 0.0, %v2417
        %2419 = vmatmul.f32.gmra.mxu0 %v765
        %v2420 = vpop.f32.mrf.mxu0
        %v2421 = vadd.f32 0.0, %v2420
        %2422 = vmatmul.f32.gmra.mxu0 %v768
        %v2423 = vpop.f32.mrf.mxu0
        %v2424 = vadd.f32 0.0, %v2423
        %2425 = vmatmul.f32.gmra.mxu0 %v771
        %v2426 = vpop.f32.mrf.mxu0
        %v2427 = vadd.f32 0.0, %v2426
        %2428 = vmatmul.f32.gmra.mxu0 %v774
        %v2429 = vpop.f32.mrf.mxu0
        %v2430 = vadd.f32 0.0, %v2429
        %2431 = vmatmul.f32.gmra.mxu0 %v1113
        %v2432 = vpop.f32.mrf.mxu0
        %v2433 = vadd.f32 0.0, %v2432
        %2434 = vmatmul.f32.gmra.mxu0 %v2383
        %v2435 = vpop.f32.mrf.mxu0
        %v2436 = vadd.f32 0.0, %v2435
        %2437 = vdwg.mxu0
        %2438 = vmatpush.msra.mxu0 0.0
        %2439 = vmatpush.msra.mxu0 0.0
        %2440 = vmatpush.msra.mxu0 0.0
        %2441 = vmatpush.msra.mxu0 0.0
        %2442 = vmatpush.msra.mxu0 0.0
        %2443 = vmatpush.msra.mxu0 0.0
        %2444 = vmatpush.msra.mxu0 0.0
        %2445 = vmatpush.msra.mxu0 0.0
        %2446 = vmatpush.msra.mxu0 0.0
        %2447 = vmatpush.msra.mxu0 0.0
        %2448 = vmatpush.msra.mxu0 0.0
        %2449 = vmatpush.msra.mxu0 0.0
        %2450 = vmatpush.msra.mxu0 %v2114
        %2451 = vmatpush.msra.mxu0 %v2098
        %2452 = vmatpush.msra.mxu0 %v2096
        %2453 = vmatpush.msra.mxu0 %v2094
        %2454 = vmatmul.f32.gmra.mxu0 %v747
        %v2455 = vpop.f32.mrf.mxu0
        %v2456 = vadd.f32 0.0, %v2455
        %2457 = vmatmul.f32.gmra.mxu0 %v750
        %v2458 = vpop.f32.mrf.mxu0
        %v2459 = vadd.f32 0.0, %v2458
        %2460 = vmatmul.f32.gmra.mxu0 %v753
        %v2461 = vpop.f32.mrf.mxu0
        %v2462 = vadd.f32 0.0, %v2461
        %2463 = vmatmul.f32.gmra.mxu0 %v756
        %v2464 = vpop.f32.mrf.mxu0
        %v2465 = vadd.f32 0.0, %v2464
        %2466 = vmatmul.f32.gmra.mxu0 %v759
        %v2467 = vpop.f32.mrf.mxu0
        %v2468 = vadd.f32 0.0, %v2467
        %2469 = vmatmul.f32.gmra.mxu0 %v762
        %v2470 = vpop.f32.mrf.mxu0
        %v2471 = vadd.f32 0.0, %v2470
        %2472 = vmatmul.f32.gmra.mxu0 %v765
        %v2473 = vpop.f32.mrf.mxu0
        %v2474 = vadd.f32 0.0, %v2473
        %2475 = vmatmul.f32.gmra.mxu0 %v768
        %v2476 = vpop.f32.mrf.mxu0
        %v2477 = vadd.f32 0.0, %v2476
        %2478 = vmatmul.f32.gmra.mxu0 %v771
        %v2479 = vpop.f32.mrf.mxu0
        %v2480 = vadd.f32 0.0, %v2479
        %2481 = vmatmul.f32.gmra.mxu0 %v774
        %v2482 = vpop.f32.mrf.mxu0
        %v2483 = vadd.f32 0.0, %v2482
        %2484 = vmatmul.f32.gmra.mxu0 %v1113
        %v2485 = vpop.f32.mrf.mxu0
        %v2486 = vadd.f32 0.0, %v2485
        %2487 = vmatmul.f32.gmra.mxu0 %v2383
        %v2488 = vpop.f32.mrf.mxu0
        %v2489 = vadd.f32 0.0, %v2488
        %2490 = vdwg.mxu0
        %v2491 = vadd.f32 %v1938, %v2403
        %v2492 = vadd.f32 %v1939, %v2456
        %v2493 = vadd.f32 %v1940, %v2406
        %v2494 = vadd.f32 %v1941, %v2459
        %v2495 = vadd.f32 %v1942, %v2409
        %v2496 = vadd.f32 %v1943, %v2462
        %v2497 = vadd.f32 %v1944, %v2412
        %v2498 = vadd.f32 %v1945, %v2465
        %v2499 = vadd.f32 %v1946, %v2415
        %v2500 = vadd.f32 %v1947, %v2468
        %v2501 = vadd.f32 %v1948, %v2418
        %v2502 = vadd.f32 %v1949, %v2471
        %v2503 = vadd.f32 %v1950, %v2421
        %v2504 = vadd.f32 %v1951, %v2474
        %v2505 = vadd.f32 %v1952, %v2424
        %v2506 = vadd.f32 %v1953, %v2477
        %v2507 = vadd.f32 %v1954, %v2427
        %v2508 = vadd.f32 %v1955, %v2480
        %v2509 = vadd.f32 %v1956, %v2430
        %v2510 = vadd.f32 %v1957, %v2483
        %v2511 = vadd.f32 %v1958, %v2433
        %v2512 = vadd.f32 %v1959, %v2486
        %v2513 = vadd.f32 %v1960, %v2436
        %v2514 = vadd.f32 %v1961, %v2489
        %2515 = vmatpush.msra.mxu0 0.0
        %2516 = vmatpush.msra.mxu0 0.0
        %2517 = vmatpush.msra.mxu0 0.0
        %2518 = vmatpush.msra.mxu0 0.0
        %2519 = vmatpush.msra.mxu0 0.0
        %2520 = vmatpush.msra.mxu0 0.0
        %2521 = vmatpush.msra.mxu0 0.0
        %2522 = vmatpush.msra.mxu0 0.0
        %2523 = vmatpush.msra.mxu0 0.0
        %2524 = vmatpush.msra.mxu0 0.0
        %2525 = vmatpush.msra.mxu0 0.0
        %2526 = vmatpush.msra.mxu0 0.0
        %2527 = vmatpush.msra.mxu0 %v2247
        %2528 = vmatpush.msra.mxu0 %v2106
        %2529 = vmatpush.msra.mxu0 %v2104
        %2530 = vmatpush.msra.mxu0 %v2102
        %2531 = vmatmul.f32.gmra.mxu0 %v747
        %v2532 = vpop.f32.mrf.mxu0
        %v2533 = vadd.f32 0.0, %v2532
        %2534 = vmatmul.f32.gmra.mxu0 %v750
        %v2535 = vpop.f32.mrf.mxu0
        %v2536 = vadd.f32 0.0, %v2535
        %2537 = vmatmul.f32.gmra.mxu0 %v753
        %v2538 = vpop.f32.mrf.mxu0
        %v2539 = vadd.f32 0.0, %v2538
        %2540 = vmatmul.f32.gmra.mxu0 %v756
        %v2541 = vpop.f32.mrf.mxu0
        %v2542 = vadd.f32 0.0, %v2541
        %2543 = vmatmul.f32.gmra.mxu0 %v759
        %v2544 = vpop.f32.mrf.mxu0
        %v2545 = vadd.f32 0.0, %v2544
        %2546 = vmatmul.f32.gmra.mxu0 %v762
        %v2547 = vpop.f32.mrf.mxu0
        %v2548 = vadd.f32 0.0, %v2547
        %2549 = vmatmul.f32.gmra.mxu0 %v765
        %v2550 = vpop.f32.mrf.mxu0
        %v2551 = vadd.f32 0.0, %v2550
        %2552 = vmatmul.f32.gmra.mxu0 %v768
        %v2553 = vpop.f32.mrf.mxu0
        %v2554 = vadd.f32 0.0, %v2553
        %2555 = vmatmul.f32.gmra.mxu0 %v771
        %v2556 = vpop.f32.mrf.mxu0
        %v2557 = vadd.f32 0.0, %v2556
        %2558 = vmatmul.f32.gmra.mxu0 %v774
        %v2559 = vpop.f32.mrf.mxu0
        %v2560 = vadd.f32 0.0, %v2559
        %2561 = vmatmul.f32.gmra.mxu0 %v1113
        %v2562 = vpop.f32.mrf.mxu0
        %v2563 = vadd.f32 0.0, %v2562
        %2564 = vmatmul.f32.gmra.mxu0 %v2383
        %v2565 = vpop.f32.mrf.mxu0
        %v2566 = vadd.f32 0.0, %v2565
        %2567 = vdwg.mxu0
        %2568 = vmatpush.msra.mxu0 0.0
        %2569 = vmatpush.msra.mxu0 0.0
        %2570 = vmatpush.msra.mxu0 0.0
        %2571 = vmatpush.msra.mxu0 0.0
        %2572 = vmatpush.msra.mxu0 0.0
        %2573 = vmatpush.msra.mxu0 0.0
        %2574 = vmatpush.msra.mxu0 0.0
        %2575 = vmatpush.msra.mxu0 0.0
        %2576 = vmatpush.msra.mxu0 0.0
        %2577 = vmatpush.msra.mxu0 0.0
        %2578 = vmatpush.msra.mxu0 0.0
        %2579 = vmatpush.msra.mxu0 0.0
        %2580 = vmatpush.msra.mxu0 %v2250
        %2581 = vmatpush.msra.mxu0 %v2107
        %2582 = vmatpush.msra.mxu0 %v2105
        %2583 = vmatpush.msra.mxu0 %v2103
        %2584 = vmatmul.f32.gmra.mxu0 %v747
        %v2585 = vpop.f32.mrf.mxu0
        %v2586 = vadd.f32 0.0, %v2585
        %2587 = vmatmul.f32.gmra.mxu0 %v750
        %v2588 = vpop.f32.mrf.mxu0
        %v2589 = vadd.f32 0.0, %v2588
        %2590 = vmatmul.f32.gmra.mxu0 %v753
        %v2591 = vpop.f32.mrf.mxu0
        %v2592 = vadd.f32 0.0, %v2591
        %2593 = vmatmul.f32.gmra.mxu0 %v756
        %v2594 = vpop.f32.mrf.mxu0
        %v2595 = vadd.f32 0.0, %v2594
        %2596 = vmatmul.f32.gmra.mxu0 %v759
        %v2597 = vpop.f32.mrf.mxu0
        %v2598 = vadd.f32 0.0, %v2597
        %2599 = vmatmul.f32.gmra.mxu0 %v762
        %v2600 = vpop.f32.mrf.mxu0
        %v2601 = vadd.f32 0.0, %v2600
        %2602 = vmatmul.f32.gmra.mxu0 %v765
        %v2603 = vpop.f32.mrf.mxu0
        %v2604 = vadd.f32 0.0, %v2603
        %2605 = vmatmul.f32.gmra.mxu0 %v768
        %v2606 = vpop.f32.mrf.mxu0
        %v2607 = vadd.f32 0.0, %v2606
        %2608 = vmatmul.f32.gmra.mxu0 %v771
        %v2609 = vpop.f32.mrf.mxu0
        %v2610 = vadd.f32 0.0, %v2609
        %2611 = vmatmul.f32.gmra.mxu0 %v774
        %v2612 = vpop.f32.mrf.mxu0
        %v2613 = vadd.f32 0.0, %v2612
        %2614 = vmatmul.f32.gmra.mxu0 %v1113
        %v2615 = vpop.f32.mrf.mxu0
        %v2616 = vadd.f32 0.0, %v2615
        %2617 = vmatmul.f32.gmra.mxu0 %v2383
        %v2618 = vpop.f32.mrf.mxu0
        %v2619 = vadd.f32 0.0, %v2618
        %2620 = vdwg.mxu0
        %v2621 = vadd.f32 %v2068, %v2533
        %v2622 = vadd.f32 %v2069, %v2586
        %v2623 = vadd.f32 %v2070, %v2536
        %v2624 = vadd.f32 %v2071, %v2589
        %v2625 = vadd.f32 %v2072, %v2539
        %v2626 = vadd.f32 %v2073, %v2592
        %v2627 = vadd.f32 %v2074, %v2542
        %v2628 = vadd.f32 %v2075, %v2595
        %v2629 = vadd.f32 %v2076, %v2545
        %v2630 = vadd.f32 %v2077, %v2598
        %v2631 = vadd.f32 %v2078, %v2548
        %v2632 = vadd.f32 %v2079, %v2601
        %v2633 = vadd.f32 %v2080, %v2551
        %v2634 = vadd.f32 %v2081, %v2604
        %v2635 = vadd.f32 %v2082, %v2554
        %v2636 = vadd.f32 %v2083, %v2607
        %v2637 = vadd.f32 %v2084, %v2557
        %v2638 = vadd.f32 %v2085, %v2610
        %v2639 = vadd.f32 %v2086, %v2560
        %v2640 = vadd.f32 %v2087, %v2613
        %v2641 = vadd.f32 %v2088, %v2563
        %v2642 = vadd.f32 %v2089, %v2616
        %v2643 = vadd.f32 %v2090, %v2566
        %v2644 = vadd.f32 %v2091, %v2619
        %s2645 = scalar_lea.vmem %s1, 256
        %v2646 = vld [vmem:[%s2645] sm:$0xff]
        %v2647 = vld [vmem:[%s2645 + $0x8] sm:$0xff]
        %v2648 = vld [vmem:[%s2645 + $0x10] sm:$0xff]
        %v2649 = vld [vmem:[%s2645 + $0x18] sm:$0xff]
        %v2650 = vld [vmem:[%s2645 + $0x20] sm:$0xff]
        %v2651 = vld [vmem:[%s2645 + $0x28] sm:$0xff]
        %v2652 = vld [vmem:[%s2645 + $0x30] sm:$0xf]
        %v2653 = vld [vmem:[%s2645 + $0x38] sm:$0xf]
        %s2654 = scalar_lea.vmem %s2, 256
        %v2655 = vld [vmem:[%s2654] sm:$0xff]
        %v2656 = vld [vmem:[%s2654 + $0x8] sm:$0xff]
        %v2657 = vld [vmem:[%s2654 + $0x10] sm:$0xff]
        %v2658 = vld [vmem:[%s2654 + $0x18] sm:$0xff]
        %v2659 = vld [vmem:[%s2654 + $0x20] sm:$0xff]
        %v2660 = vld [vmem:[%s2654 + $0x28] sm:$0xff]
        %v2661 = vld [vmem:[%s2654 + $0x30] sm:$0xf]
        %v2662 = vld [vmem:[%s2654 + $0x38] sm:$0xf]
        %v2664 = vsel %vm627, %v2652, 0
        %v2667 = vsel %vm627, %v2653, 0
        %2669 = vmatpush.msra.mxu0 0.0
        %2670 = vmatpush.msra.mxu0 0.0
        %2671 = vmatpush.msra.mxu0 0.0
        %2672 = vmatpush.msra.mxu0 0.0
        %2673 = vmatpush.msra.mxu0 0.0
        %2674 = vmatpush.msra.mxu0 0.0
        %2675 = vmatpush.msra.mxu0 0.0
        %2676 = vmatpush.msra.mxu0 0.0
        %2677 = vmatpush.msra.mxu0 0.0
        %2678 = vmatpush.msra.mxu0 0.0
        %2679 = vmatpush.msra.mxu0 0.0
        %2680 = vmatpush.msra.mxu0 0.0
        %2681 = vmatpush.msra.mxu0 %v2664
        %2682 = vmatpush.msra.mxu0 %v2650
        %2683 = vmatpush.msra.mxu0 %v2648
        %2684 = vmatpush.msra.mxu0 %v2646
        %2685 = vmatmul.f32.gmra.mxu0 %v747
        %v2686 = vpop.f32.mrf.mxu0
        %v2687 = vadd.f32 0.0, %v2686
        %2688 = vmatmul.f32.gmra.mxu0 %v750
        %v2689 = vpop.f32.mrf.mxu0
        %v2690 = vadd.f32 0.0, %v2689
        %2691 = vmatmul.f32.gmra.mxu0 %v753
        %v2692 = vpop.f32.mrf.mxu0
        %v2693 = vadd.f32 0.0, %v2692
        %2694 = vmatmul.f32.gmra.mxu0 %v756
        %v2695 = vpop.f32.mrf.mxu0
        %v2696 = vadd.f32 0.0, %v2695
        %2697 = vmatmul.f32.gmra.mxu0 %v759
        %v2698 = vpop.f32.mrf.mxu0
        %v2699 = vadd.f32 0.0, %v2698
        %2700 = vmatmul.f32.gmra.mxu0 %v762
        %v2701 = vpop.f32.mrf.mxu0
        %v2702 = vadd.f32 0.0, %v2701
        %2703 = vmatmul.f32.gmra.mxu0 %v765
        %v2704 = vpop.f32.mrf.mxu0
        %v2705 = vadd.f32 0.0, %v2704
        %2706 = vmatmul.f32.gmra.mxu0 %v768
        %v2707 = vpop.f32.mrf.mxu0
        %v2708 = vadd.f32 0.0, %v2707
        %2709 = vmatmul.f32.gmra.mxu0 %v771
        %v2710 = vpop.f32.mrf.mxu0
        %v2711 = vadd.f32 0.0, %v2710
        %2712 = vmatmul.f32.gmra.mxu0 %v774
        %v2713 = vpop.f32.mrf.mxu0
        %v2714 = vadd.f32 0.0, %v2713
        %2715 = vmatmul.f32.gmra.mxu0 %v1113
        %v2716 = vpop.f32.mrf.mxu0
        %v2717 = vadd.f32 0.0, %v2716
        %2718 = vmatmul.f32.gmra.mxu0 %v2383
        %v2719 = vpop.f32.mrf.mxu0
        %v2720 = vadd.f32 0.0, %v2719
        %2721 = vdwg.mxu0
        %2722 = vmatpush.msra.mxu0 0.0
        %2723 = vmatpush.msra.mxu0 0.0
        %2724 = vmatpush.msra.mxu0 0.0
        %2725 = vmatpush.msra.mxu0 0.0
        %2726 = vmatpush.msra.mxu0 0.0
        %2727 = vmatpush.msra.mxu0 0.0
        %2728 = vmatpush.msra.mxu0 0.0
        %2729 = vmatpush.msra.mxu0 0.0
        %2730 = vmatpush.msra.mxu0 0.0
        %2731 = vmatpush.msra.mxu0 0.0
        %2732 = vmatpush.msra.mxu0 0.0
        %2733 = vmatpush.msra.mxu0 0.0
        %2734 = vmatpush.msra.mxu0 %v2667
        %2735 = vmatpush.msra.mxu0 %v2651
        %2736 = vmatpush.msra.mxu0 %v2649
        %2737 = vmatpush.msra.mxu0 %v2647
        %2738 = vmatmul.f32.gmra.mxu0 %v747
        %v2739 = vpop.f32.mrf.mxu0
        %v2740 = vadd.f32 0.0, %v2739
        %2741 = vmatmul.f32.gmra.mxu0 %v750
        %v2742 = vpop.f32.mrf.mxu0
        %v2743 = vadd.f32 0.0, %v2742
        %2744 = vmatmul.f32.gmra.mxu0 %v753
        %v2745 = vpop.f32.mrf.mxu0
        %v2746 = vadd.f32 0.0, %v2745
        %2747 = vmatmul.f32.gmra.mxu0 %v756
        %v2748 = vpop.f32.mrf.mxu0
        %v2749 = vadd.f32 0.0, %v2748
        %2750 = vmatmul.f32.gmra.mxu0 %v759
        %v2751 = vpop.f32.mrf.mxu0
        %v2752 = vadd.f32 0.0, %v2751
        %2753 = vmatmul.f32.gmra.mxu0 %v762
        %v2754 = vpop.f32.mrf.mxu0
        %v2755 = vadd.f32 0.0, %v2754
        %2756 = vmatmul.f32.gmra.mxu0 %v765
        %v2757 = vpop.f32.mrf.mxu0
        %v2758 = vadd.f32 0.0, %v2757
        %2759 = vmatmul.f32.gmra.mxu0 %v768
        %v2760 = vpop.f32.mrf.mxu0
        %v2761 = vadd.f32 0.0, %v2760
        %2762 = vmatmul.f32.gmra.mxu0 %v771
        %v2763 = vpop.f32.mrf.mxu0
        %v2764 = vadd.f32 0.0, %v2763
        %2765 = vmatmul.f32.gmra.mxu0 %v774
        %v2766 = vpop.f32.mrf.mxu0
        %v2767 = vadd.f32 0.0, %v2766
        %2768 = vmatmul.f32.gmra.mxu0 %v1113
        %v2769 = vpop.f32.mrf.mxu0
        %v2770 = vadd.f32 0.0, %v2769
        %2771 = vmatmul.f32.gmra.mxu0 %v2383
        %v2772 = vpop.f32.mrf.mxu0
        %v2773 = vadd.f32 0.0, %v2772
        %2774 = vdwg.mxu0
        %v2775 = vadd.f32 %v2222, %v2687
        %v2776 = vadd.f32 %v2223, %v2740
        %v2777 = vadd.f32 %v2224, %v2690
        %v2778 = vadd.f32 %v2225, %v2743
        %v2779 = vadd.f32 %v2226, %v2693
        %v2780 = vadd.f32 %v2227, %v2746
        %v2781 = vadd.f32 %v2228, %v2696
        %v2782 = vadd.f32 %v2229, %v2749
        %v2783 = vadd.f32 %v2230, %v2699
        %v2784 = vadd.f32 %v2231, %v2752
        %v2785 = vadd.f32 %v2232, %v2702
        %v2786 = vadd.f32 %v2233, %v2755
        %v2787 = vadd.f32 %v2234, %v2705
        %v2788 = vadd.f32 %v2235, %v2758
        %v2789 = vadd.f32 %v2236, %v2708
        %v2790 = vadd.f32 %v2237, %v2761
        %v2791 = vadd.f32 %v2238, %v2711
        %v2792 = vadd.f32 %v2239, %v2764
        %v2793 = vadd.f32 %v2240, %v2714
        %v2794 = vadd.f32 %v2241, %v2767
        %v2795 = vadd.f32 %v2242, %v2717
        %v2796 = vadd.f32 %v2243, %v2770
        %v2797 = vadd.f32 %v2244, %v2720
        %v2798 = vadd.f32 %v2245, %v2773
        %v2800 = vsel %vm627, %v2661, 0
        %v2803 = vsel %vm627, %v2662, 0
        %2805 = vmatpush.msra.mxu0 0.0
        %2806 = vmatpush.msra.mxu0 0.0
        %2807 = vmatpush.msra.mxu0 0.0
        %2808 = vmatpush.msra.mxu0 0.0
        %2809 = vmatpush.msra.mxu0 0.0
        %2810 = vmatpush.msra.mxu0 0.0
        %2811 = vmatpush.msra.mxu0 0.0
        %2812 = vmatpush.msra.mxu0 0.0
        %2813 = vmatpush.msra.mxu0 0.0
        %2814 = vmatpush.msra.mxu0 0.0
        %2815 = vmatpush.msra.mxu0 0.0
        %2816 = vmatpush.msra.mxu0 0.0
        %2817 = vmatpush.msra.mxu0 %v2800
        %2818 = vmatpush.msra.mxu0 %v2659
        %2819 = vmatpush.msra.mxu0 %v2657
        %2820 = vmatpush.msra.mxu0 %v2655
        %2821 = vmatmul.f32.gmra.mxu0 %v747
        %v2822 = vpop.f32.mrf.mxu0
        %v2823 = vadd.f32 0.0, %v2822
        %2824 = vmatmul.f32.gmra.mxu0 %v750
        %v2825 = vpop.f32.mrf.mxu0
        %v2826 = vadd.f32 0.0, %v2825
        %2827 = vmatmul.f32.gmra.mxu0 %v753
        %v2828 = vpop.f32.mrf.mxu0
        %v2829 = vadd.f32 0.0, %v2828
        %2830 = vmatmul.f32.gmra.mxu0 %v756
        %v2831 = vpop.f32.mrf.mxu0
        %v2832 = vadd.f32 0.0, %v2831
        %2833 = vmatmul.f32.gmra.mxu0 %v759
        %v2834 = vpop.f32.mrf.mxu0
        %v2835 = vadd.f32 0.0, %v2834
        %2836 = vmatmul.f32.gmra.mxu0 %v762
        %v2837 = vpop.f32.mrf.mxu0
        %v2838 = vadd.f32 0.0, %v2837
        %2839 = vmatmul.f32.gmra.mxu0 %v765
        %v2840 = vpop.f32.mrf.mxu0
        %v2841 = vadd.f32 0.0, %v2840
        %2842 = vmatmul.f32.gmra.mxu0 %v768
        %v2843 = vpop.f32.mrf.mxu0
        %v2844 = vadd.f32 0.0, %v2843
        %2845 = vmatmul.f32.gmra.mxu0 %v771
        %v2846 = vpop.f32.mrf.mxu0
        %v2847 = vadd.f32 0.0, %v2846
        %2848 = vmatmul.f32.gmra.mxu0 %v774
        %v2849 = vpop.f32.mrf.mxu0
        %v2850 = vadd.f32 0.0, %v2849
        %2851 = vmatmul.f32.gmra.mxu0 %v1113
        %v2852 = vpop.f32.mrf.mxu0
        %v2853 = vadd.f32 0.0, %v2852
        %2854 = vmatmul.f32.gmra.mxu0 %v2383
        %v2855 = vpop.f32.mrf.mxu0
        %v2856 = vadd.f32 0.0, %v2855
        %2857 = vdwg.mxu0
        %2858 = vmatpush.msra.mxu0 0.0
        %2859 = vmatpush.msra.mxu0 0.0
        %2860 = vmatpush.msra.mxu0 0.0
        %2861 = vmatpush.msra.mxu0 0.0
        %2862 = vmatpush.msra.mxu0 0.0
        %2863 = vmatpush.msra.mxu0 0.0
        %2864 = vmatpush.msra.mxu0 0.0
        %2865 = vmatpush.msra.mxu0 0.0
        %2866 = vmatpush.msra.mxu0 0.0
        %2867 = vmatpush.msra.mxu0 0.0
        %2868 = vmatpush.msra.mxu0 0.0
        %2869 = vmatpush.msra.mxu0 0.0
        %2870 = vmatpush.msra.mxu0 %v2803
        %2871 = vmatpush.msra.mxu0 %v2660
        %2872 = vmatpush.msra.mxu0 %v2658
        %2873 = vmatpush.msra.mxu0 %v2656
        %2874 = vmatmul.f32.gmra.mxu0 %v747
        %v2875 = vpop.f32.mrf.mxu0
        %v2876 = vadd.f32 0.0, %v2875
        %2877 = vmatmul.f32.gmra.mxu0 %v750
        %v2878 = vpop.f32.mrf.mxu0
        %v2879 = vadd.f32 0.0, %v2878
        %2880 = vmatmul.f32.gmra.mxu0 %v753
        %v2881 = vpop.f32.mrf.mxu0
        %v2882 = vadd.f32 0.0, %v2881
        %2883 = vmatmul.f32.gmra.mxu0 %v756
        %v2884 = vpop.f32.mrf.mxu0
        %v2885 = vadd.f32 0.0, %v2884
        %2886 = vmatmul.f32.gmra.mxu0 %v759
        %v2887 = vpop.f32.mrf.mxu0
        %v2888 = vadd.f32 0.0, %v2887
        %2889 = vmatmul.f32.gmra.mxu0 %v762
        %v2890 = vpop.f32.mrf.mxu0
        %v2891 = vadd.f32 0.0, %v2890
        %2892 = vmatmul.f32.gmra.mxu0 %v765
        %v2893 = vpop.f32.mrf.mxu0
        %v2894 = vadd.f32 0.0, %v2893
        %2895 = vmatmul.f32.gmra.mxu0 %v768
        %v2896 = vpop.f32.mrf.mxu0
        %v2897 = vadd.f32 0.0, %v2896
        %2898 = vmatmul.f32.gmra.mxu0 %v771
        %v2899 = vpop.f32.mrf.mxu0
        %v2900 = vadd.f32 0.0, %v2899
        %2901 = vmatmul.f32.gmra.mxu0 %v774
        %v2902 = vpop.f32.mrf.mxu0
        %v2903 = vadd.f32 0.0, %v2902
        %2904 = vmatmul.f32.gmra.mxu0 %v1113
        %v2905 = vpop.f32.mrf.mxu0
        %v2906 = vadd.f32 0.0, %v2905
        %2907 = vmatmul.f32.gmra.mxu0 %v2383
        %v2908 = vpop.f32.mrf.mxu0
        %v2909 = vadd.f32 0.0, %v2908
        %2910 = vdwg.mxu0
        %v2911 = vadd.f32 %v2358, %v2823
        %v2912 = vadd.f32 %v2359, %v2876
        %v2913 = vadd.f32 %v2360, %v2826
        %v2914 = vadd.f32 %v2361, %v2879
        %v2915 = vadd.f32 %v2362, %v2829
        %v2916 = vadd.f32 %v2363, %v2882
        %v2917 = vadd.f32 %v2364, %v2832
        %v2918 = vadd.f32 %v2365, %v2885
        %v2919 = vadd.f32 %v2366, %v2835
        %v2920 = vadd.f32 %v2367, %v2888
        %v2921 = vadd.f32 %v2368, %v2838
        %v2922 = vadd.f32 %v2369, %v2891
        %v2923 = vadd.f32 %v2370, %v2841
        %v2924 = vadd.f32 %v2371, %v2894
        %v2925 = vadd.f32 %v2372, %v2844
        %v2926 = vadd.f32 %v2373, %v2897
        %v2927 = vadd.f32 %v2374, %v2847
        %v2928 = vadd.f32 %v2375, %v2900
        %v2929 = vadd.f32 %v2376, %v2850
        %v2930 = vadd.f32 %v2377, %v2903
        %v2931 = vadd.f32 %v2378, %v2853
        %v2932 = vadd.f32 %v2379, %v2906
        %v2933 = vadd.f32 %v2380, %v2856
        %v2934 = vadd.f32 %v2381, %v2909
        %v2936 = vsel %vm590, %v555, 0
        %2938 = vmatpush.msra.mxu0 0.0
        %2939 = vmatpush.msra.mxu0 0.0
        %2940 = vmatpush.msra.mxu0 0.0
        %2941 = vmatpush.msra.mxu0 0.0
        %2942 = vmatpush.msra.mxu0 0.0
        %2943 = vmatpush.msra.mxu0 0.0
        %2944 = vmatpush.msra.mxu0 0.0
        %2945 = vmatpush.msra.mxu0 0.0
        %2946 = vmatpush.msra.mxu0 0.0
        %2947 = vmatpush.msra.mxu0 0.0
        %2948 = vmatpush.msra.mxu0 0.0
        %2949 = vmatpush.msra.mxu0 0.0
        %2950 = vmatpush.msra.mxu0 %v2664
        %2951 = vmatpush.msra.mxu0 %v2650
        %2952 = vmatpush.msra.mxu0 %v2648
        %2953 = vmatpush.msra.mxu0 %v2646
        %2954 = vmatmul.f32.gmra.mxu0 %v598
        %v2955 = vpop.f32.mrf.mxu0
        %v2956 = vadd.f32 0.0, %v2955
        %2957 = vmatmul.f32.gmra.mxu0 %v601
        %v2958 = vpop.f32.mrf.mxu0
        %v2959 = vadd.f32 0.0, %v2958
        %2960 = vmatmul.f32.gmra.mxu0 %v604
        %v2961 = vpop.f32.mrf.mxu0
        %v2962 = vadd.f32 0.0, %v2961
        %2963 = vmatmul.f32.gmra.mxu0 %v607
        %v2964 = vpop.f32.mrf.mxu0
        %v2965 = vadd.f32 0.0, %v2964
        %2966 = vmatmul.f32.gmra.mxu0 %v610
        %v2967 = vpop.f32.mrf.mxu0
        %v2968 = vadd.f32 0.0, %v2967
        %2969 = vmatmul.f32.gmra.mxu0 %v613
        %v2970 = vpop.f32.mrf.mxu0
        %v2971 = vadd.f32 0.0, %v2970
        %2972 = vmatmul.f32.gmra.mxu0 %v616
        %v2973 = vpop.f32.mrf.mxu0
        %v2974 = vadd.f32 0.0, %v2973
        %2975 = vmatmul.f32.gmra.mxu0 %v619
        %v2976 = vpop.f32.mrf.mxu0
        %v2977 = vadd.f32 0.0, %v2976
        %2978 = vmatmul.f32.gmra.mxu0 %v622
        %v2979 = vpop.f32.mrf.mxu0
        %v2980 = vadd.f32 0.0, %v2979
        %2981 = vmatmul.f32.gmra.mxu0 %v625
        %v2982 = vpop.f32.mrf.mxu0
        %v2983 = vadd.f32 0.0, %v2982
        %2984 = vmatmul.f32.gmra.mxu0 %v1830
        %v2985 = vpop.f32.mrf.mxu0
        %v2986 = vadd.f32 0.0, %v2985
        %2987 = vmatmul.f32.gmra.mxu0 %v2936
        %v2988 = vpop.f32.mrf.mxu0
        %v2989 = vadd.f32 0.0, %v2988
        %2990 = vdwg.mxu0
        %2991 = vmatpush.msra.mxu0 0.0
        %2992 = vmatpush.msra.mxu0 0.0
        %2993 = vmatpush.msra.mxu0 0.0
        %2994 = vmatpush.msra.mxu0 0.0
        %2995 = vmatpush.msra.mxu0 0.0
        %2996 = vmatpush.msra.mxu0 0.0
        %2997 = vmatpush.msra.mxu0 0.0
        %2998 = vmatpush.msra.mxu0 0.0
        %2999 = vmatpush.msra.mxu0 0.0
        %3000 = vmatpush.msra.mxu0 0.0
        %3001 = vmatpush.msra.mxu0 0.0
        %3002 = vmatpush.msra.mxu0 0.0
        %3003 = vmatpush.msra.mxu0 %v2667
        %3004 = vmatpush.msra.mxu0 %v2651
        %3005 = vmatpush.msra.mxu0 %v2649
        %3006 = vmatpush.msra.mxu0 %v2647
        %3007 = vmatmul.f32.gmra.mxu0 %v598
        %v3008 = vpop.f32.mrf.mxu0
        %v3009 = vadd.f32 0.0, %v3008
        %3010 = vmatmul.f32.gmra.mxu0 %v601
        %v3011 = vpop.f32.mrf.mxu0
        %v3012 = vadd.f32 0.0, %v3011
        %3013 = vmatmul.f32.gmra.mxu0 %v604
        %v3014 = vpop.f32.mrf.mxu0
        %v3015 = vadd.f32 0.0, %v3014
        %3016 = vmatmul.f32.gmra.mxu0 %v607
        %v3017 = vpop.f32.mrf.mxu0
        %v3018 = vadd.f32 0.0, %v3017
        %3019 = vmatmul.f32.gmra.mxu0 %v610
        %v3020 = vpop.f32.mrf.mxu0
        %v3021 = vadd.f32 0.0, %v3020
        %3022 = vmatmul.f32.gmra.mxu0 %v613
        %v3023 = vpop.f32.mrf.mxu0
        %v3024 = vadd.f32 0.0, %v3023
        %3025 = vmatmul.f32.gmra.mxu0 %v616
        %v3026 = vpop.f32.mrf.mxu0
        %v3027 = vadd.f32 0.0, %v3026
        %3028 = vmatmul.f32.gmra.mxu0 %v619
        %v3029 = vpop.f32.mrf.mxu0
        %v3030 = vadd.f32 0.0, %v3029
        %3031 = vmatmul.f32.gmra.mxu0 %v622
        %v3032 = vpop.f32.mrf.mxu0
        %v3033 = vadd.f32 0.0, %v3032
        %3034 = vmatmul.f32.gmra.mxu0 %v625
        %v3035 = vpop.f32.mrf.mxu0
        %v3036 = vadd.f32 0.0, %v3035
        %3037 = vmatmul.f32.gmra.mxu0 %v1830
        %v3038 = vpop.f32.mrf.mxu0
        %v3039 = vadd.f32 0.0, %v3038
        %3040 = vmatmul.f32.gmra.mxu0 %v2936
        %v3041 = vpop.f32.mrf.mxu0
        %v3042 = vadd.f32 0.0, %v3041
        %3043 = vdwg.mxu0
        %v3044 = vadd.f32 %v2491, %v2956
        %v3045 = vadd.f32 %v2492, %v3009
        %v3046 = vadd.f32 %v2493, %v2959
        %v3047 = vadd.f32 %v2494, %v3012
        %v3048 = vadd.f32 %v2495, %v2962
        %v3049 = vadd.f32 %v2496, %v3015
        %v3050 = vadd.f32 %v2497, %v2965
        %v3051 = vadd.f32 %v2498, %v3018
        %v3052 = vadd.f32 %v2499, %v2968
        %v3053 = vadd.f32 %v2500, %v3021
        %v3054 = vadd.f32 %v2501, %v2971
        %v3055 = vadd.f32 %v2502, %v3024
        %v3056 = vadd.f32 %v2503, %v2974
        %v3057 = vadd.f32 %v2504, %v3027
        %v3058 = vadd.f32 %v2505, %v2977
        %v3059 = vadd.f32 %v2506, %v3030
        %v3060 = vadd.f32 %v2507, %v2980
        %v3061 = vadd.f32 %v2508, %v3033
        %v3062 = vadd.f32 %v2509, %v2983
        %v3063 = vadd.f32 %v2510, %v3036
        %v3064 = vadd.f32 %v2511, %v2986
        %v3065 = vadd.f32 %v2512, %v3039
        %v3066 = vadd.f32 %v2513, %v2989
        %v3067 = vadd.f32 %v2514, %v3042
        %3068 = vmatpush.msra.mxu0 0.0
        %3069 = vmatpush.msra.mxu0 0.0
        %3070 = vmatpush.msra.mxu0 0.0
        %3071 = vmatpush.msra.mxu0 0.0
        %3072 = vmatpush.msra.mxu0 0.0
        %3073 = vmatpush.msra.mxu0 0.0
        %3074 = vmatpush.msra.mxu0 0.0
        %3075 = vmatpush.msra.mxu0 0.0
        %3076 = vmatpush.msra.mxu0 0.0
        %3077 = vmatpush.msra.mxu0 0.0
        %3078 = vmatpush.msra.mxu0 0.0
        %3079 = vmatpush.msra.mxu0 0.0
        %3080 = vmatpush.msra.mxu0 %v2800
        %3081 = vmatpush.msra.mxu0 %v2659
        %3082 = vmatpush.msra.mxu0 %v2657
        %3083 = vmatpush.msra.mxu0 %v2655
        %3084 = vmatmul.f32.gmra.mxu0 %v598
        %v3085 = vpop.f32.mrf.mxu0
        %v3086 = vadd.f32 0.0, %v3085
        %3087 = vmatmul.f32.gmra.mxu0 %v601
        %v3088 = vpop.f32.mrf.mxu0
        %v3089 = vadd.f32 0.0, %v3088
        %3090 = vmatmul.f32.gmra.mxu0 %v604
        %v3091 = vpop.f32.mrf.mxu0
        %v3092 = vadd.f32 0.0, %v3091
        %3093 = vmatmul.f32.gmra.mxu0 %v607
        %v3094 = vpop.f32.mrf.mxu0
        %v3095 = vadd.f32 0.0, %v3094
        %3096 = vmatmul.f32.gmra.mxu0 %v610
        %v3097 = vpop.f32.mrf.mxu0
        %v3098 = vadd.f32 0.0, %v3097
        %3099 = vmatmul.f32.gmra.mxu0 %v613
        %v3100 = vpop.f32.mrf.mxu0
        %v3101 = vadd.f32 0.0, %v3100
        %3102 = vmatmul.f32.gmra.mxu0 %v616
        %v3103 = vpop.f32.mrf.mxu0
        %v3104 = vadd.f32 0.0, %v3103
        %3105 = vmatmul.f32.gmra.mxu0 %v619
        %v3106 = vpop.f32.mrf.mxu0
        %v3107 = vadd.f32 0.0, %v3106
        %3108 = vmatmul.f32.gmra.mxu0 %v622
        %v3109 = vpop.f32.mrf.mxu0
        %v3110 = vadd.f32 0.0, %v3109
        %3111 = vmatmul.f32.gmra.mxu0 %v625
        %v3112 = vpop.f32.mrf.mxu0
        %v3113 = vadd.f32 0.0, %v3112
        %3114 = vmatmul.f32.gmra.mxu0 %v1830
        %v3115 = vpop.f32.mrf.mxu0
        %v3116 = vadd.f32 0.0, %v3115
        %3117 = vmatmul.f32.gmra.mxu0 %v2936
        %v3118 = vpop.f32.mrf.mxu0
        %v3119 = vadd.f32 0.0, %v3118
        %3120 = vdwg.mxu0
        %3121 = vmatpush.msra.mxu0 0.0
        %3122 = vmatpush.msra.mxu0 0.0
        %3123 = vmatpush.msra.mxu0 0.0
        %3124 = vmatpush.msra.mxu0 0.0
        %3125 = vmatpush.msra.mxu0 0.0
        %3126 = vmatpush.msra.mxu0 0.0
        %3127 = vmatpush.msra.mxu0 0.0
        %3128 = vmatpush.msra.mxu0 0.0
        %3129 = vmatpush.msra.mxu0 0.0
        %3130 = vmatpush.msra.mxu0 0.0
        %3131 = vmatpush.msra.mxu0 0.0
        %3132 = vmatpush.msra.mxu0 0.0
        %3133 = vmatpush.msra.mxu0 %v2803
        %3134 = vmatpush.msra.mxu0 %v2660
        %3135 = vmatpush.msra.mxu0 %v2658
        %3136 = vmatpush.msra.mxu0 %v2656
        %3137 = vmatmul.f32.gmra.mxu0 %v598
        %v3138 = vpop.f32.mrf.mxu0
        %v3139 = vadd.f32 0.0, %v3138
        %3140 = vmatmul.f32.gmra.mxu0 %v601
        %v3141 = vpop.f32.mrf.mxu0
        %v3142 = vadd.f32 0.0, %v3141
        %3143 = vmatmul.f32.gmra.mxu0 %v604
        %v3144 = vpop.f32.mrf.mxu0
        %v3145 = vadd.f32 0.0, %v3144
        %3146 = vmatmul.f32.gmra.mxu0 %v607
        %v3147 = vpop.f32.mrf.mxu0
        %v3148 = vadd.f32 0.0, %v3147
        %3149 = vmatmul.f32.gmra.mxu0 %v610
        %v3150 = vpop.f32.mrf.mxu0
        %v3151 = vadd.f32 0.0, %v3150
        %3152 = vmatmul.f32.gmra.mxu0 %v613
        %v3153 = vpop.f32.mrf.mxu0
        %v3154 = vadd.f32 0.0, %v3153
        %3155 = vmatmul.f32.gmra.mxu0 %v616
        %v3156 = vpop.f32.mrf.mxu0
        %v3157 = vadd.f32 0.0, %v3156
        %3158 = vmatmul.f32.gmra.mxu0 %v619
        %v3159 = vpop.f32.mrf.mxu0
        %v3160 = vadd.f32 0.0, %v3159
        %3161 = vmatmul.f32.gmra.mxu0 %v622
        %v3162 = vpop.f32.mrf.mxu0
        %v3163 = vadd.f32 0.0, %v3162
        %3164 = vmatmul.f32.gmra.mxu0 %v625
        %v3165 = vpop.f32.mrf.mxu0
        %v3166 = vadd.f32 0.0, %v3165
        %3167 = vmatmul.f32.gmra.mxu0 %v1830
        %v3168 = vpop.f32.mrf.mxu0
        %v3169 = vadd.f32 0.0, %v3168
        %3170 = vmatmul.f32.gmra.mxu0 %v2936
        %v3171 = vpop.f32.mrf.mxu0
        %v3172 = vadd.f32 0.0, %v3171
        %3173 = vdwg.mxu0
        %v3174 = vadd.f32 %v2621, %v3086
        %v3175 = vadd.f32 %v2622, %v3139
        %v3176 = vadd.f32 %v2623, %v3089
        %v3177 = vadd.f32 %v2624, %v3142
        %v3178 = vadd.f32 %v2625, %v3092
        %v3179 = vadd.f32 %v2626, %v3145
        %v3180 = vadd.f32 %v2627, %v3095
        %v3181 = vadd.f32 %v2628, %v3148
        %v3182 = vadd.f32 %v2629, %v3098
        %v3183 = vadd.f32 %v2630, %v3151
        %v3184 = vadd.f32 %v2631, %v3101
        %v3185 = vadd.f32 %v2632, %v3154
        %v3186 = vadd.f32 %v2633, %v3104
        %v3187 = vadd.f32 %v2634, %v3157
        %v3188 = vadd.f32 %v2635, %v3107
        %v3189 = vadd.f32 %v2636, %v3160
        %v3190 = vadd.f32 %v2637, %v3110
        %v3191 = vadd.f32 %v2638, %v3163
        %v3192 = vadd.f32 %v2639, %v3113
        %v3193 = vadd.f32 %v2640, %v3166
        %v3194 = vadd.f32 %v2641, %v3116
        %v3195 = vadd.f32 %v2642, %v3169
        %v3196 = vadd.f32 %v2643, %v3119
        %v3197 = vadd.f32 %v2644, %v3172
        %v3198 = vmax.f32 %v2775, %v2911
        %v3199 = vmax.f32 %v2776, %v2912
        %v3200 = vmax.f32 %v2777, %v2913
        %v3201 = vmax.f32 %v2778, %v2914
        %v3202 = vmax.f32 %v2779, %v2915
        %v3203 = vmax.f32 %v2780, %v2916
        %v3204 = vmax.f32 %v2781, %v2917
        %v3205 = vmax.f32 %v2782, %v2918
        %v3206 = vmax.f32 %v2783, %v2919
        %v3207 = vmax.f32 %v2784, %v2920
        %v3208 = vmax.f32 %v2785, %v2921
        %v3209 = vmax.f32 %v2786, %v2922
        %v3210 = vmax.f32 %v2787, %v2923
        %v3211 = vmax.f32 %v2788, %v2924
        %v3212 = vmax.f32 %v2789, %v2925
        %v3213 = vmax.f32 %v2790, %v2926
        %v3214 = vmax.f32 %v2791, %v2927
        %v3215 = vmax.f32 %v2792, %v2928
        %v3216 = vmax.f32 %v2793, %v2929
        %v3217 = vmax.f32 %v2794, %v2930
        %v3218 = vmax.f32 %v2795, %v2931
        %v3219 = vmax.f32 %v2796, %v2932
        %v3220 = vmax.f32 %v2797, %v2933
        %v3221 = vmax.f32 %v2798, %v2934
        %v3222 = vmax.f32 %v3044, %v3174
        %v3223 = vmax.f32 %v3045, %v3175
        %v3224 = vmax.f32 %v3046, %v3176
        %v3225 = vmax.f32 %v3047, %v3177
        %v3226 = vmax.f32 %v3048, %v3178
        %v3227 = vmax.f32 %v3049, %v3179
        %v3228 = vmax.f32 %v3050, %v3180
        %v3229 = vmax.f32 %v3051, %v3181
        %v3230 = vmax.f32 %v3052, %v3182
        %v3231 = vmax.f32 %v3053, %v3183
        %v3232 = vmax.f32 %v3054, %v3184
        %v3233 = vmax.f32 %v3055, %v3185
        %v3234 = vmax.f32 %v3056, %v3186
        %v3235 = vmax.f32 %v3057, %v3187
        %v3236 = vmax.f32 %v3058, %v3188
        %v3237 = vmax.f32 %v3059, %v3189
        %v3238 = vmax.f32 %v3060, %v3190
        %v3239 = vmax.f32 %v3061, %v3191
        %v3240 = vmax.f32 %v3062, %v3192
        %v3241 = vmax.f32 %v3063, %v3193
        %v3242 = vmax.f32 %v3064, %v3194
        %v3243 = vmax.f32 %v3065, %v3195
        %v3244 = vmax.f32 %v3066, %v3196
        %v3245 = vmax.f32 %v3067, %v3197
        %v3246 = vmax.f32 %v3198, %v3222
        %v3247 = vmax.f32 %v3199, %v3223
        %v3248 = vmax.f32 %v3200, %v3224
        %v3249 = vmax.f32 %v3201, %v3225
        %v3250 = vmax.f32 %v3202, %v3226
        %v3251 = vmax.f32 %v3203, %v3227
        %v3252 = vmax.f32 %v3204, %v3228
        %v3253 = vmax.f32 %v3205, %v3229
        %v3254 = vmax.f32 %v3206, %v3230
        %v3255 = vmax.f32 %v3207, %v3231
        %v3256 = vmax.f32 %v3208, %v3232
        %v3257 = vmax.f32 %v3209, %v3233
        %v3258 = vmax.f32 %v3210, %v3234
        %v3259 = vmax.f32 %v3211, %v3235
        %v3260 = vmax.f32 %v3212, %v3236
        %v3261 = vmax.f32 %v3213, %v3237
        %v3262 = vmax.f32 %v3214, %v3238
        %v3263 = vmax.f32 %v3215, %v3239
        %v3264 = vmax.f32 %v3216, %v3240
        %v3265 = vmax.f32 %v3217, %v3241
        %v3266 = vmax.f32 %v3218, %v3242
        %v3267 = vmax.f32 %v3219, %v3243
        %v3268 = vmax.f32 %v3220, %v3244
        %v3269 = vmax.f32 %v3221, %v3245
        %v3270 = vld [vmem:[%s3] sm:$0x3]
        %v3272 = vperm.slane %v3270, 0
        %v3273 = vperm.slane %v3270, 1
        %v3276 = vadd.f32 %v3246, %v3272
        %v3277 = vadd.f32 %v3247, %v3273
        %v3278 = vadd.f32 %v3248, %v3272
        %v3279 = vadd.f32 %v3249, %v3273
        %v3280 = vadd.f32 %v3250, %v3272
        %v3281 = vadd.f32 %v3251, %v3273
        %v3282 = vadd.f32 %v3252, %v3272
        %v3283 = vadd.f32 %v3253, %v3273
        %v3284 = vadd.f32 %v3254, %v3272
        %v3285 = vadd.f32 %v3255, %v3273
        %v3286 = vadd.f32 %v3256, %v3272
        %v3287 = vadd.f32 %v3257, %v3273
        %v3288 = vadd.f32 %v3258, %v3272
        %v3289 = vadd.f32 %v3259, %v3273
        %v3290 = vadd.f32 %v3260, %v3272
        %v3291 = vadd.f32 %v3261, %v3273
        %v3292 = vadd.f32 %v3262, %v3272
        %v3293 = vadd.f32 %v3263, %v3273
        %v3294 = vadd.f32 %v3264, %v3272
        %v3295 = vadd.f32 %v3265, %v3273
        %v3296 = vadd.f32 %v3266, %v3272
        %v3297 = vadd.f32 %v3267, %v3273
        %v3298 = vadd.f32 %v3268, %v3272
        %v3299 = vadd.f32 %v3269, %v3273
        %v3300 = vmax.f32 %v3276, 0.0
        %v3301 = vmax.f32 %v3277, 0.0
        %v3302 = vmax.f32 %v3278, 0.0
        %v3303 = vmax.f32 %v3279, 0.0
        %v3304 = vmax.f32 %v3280, 0.0
        %v3305 = vmax.f32 %v3281, 0.0
        %v3306 = vmax.f32 %v3282, 0.0
        %v3307 = vmax.f32 %v3283, 0.0
        %v3308 = vmax.f32 %v3284, 0.0
        %v3309 = vmax.f32 %v3285, 0.0
        %v3310 = vmax.f32 %v3286, 0.0
        %v3311 = vmax.f32 %v3287, 0.0
        %v3312 = vmax.f32 %v3288, 0.0
        %v3313 = vmax.f32 %v3289, 0.0
        %v3314 = vmax.f32 %v3290, 0.0
        %v3315 = vmax.f32 %v3291, 0.0
        %v3316 = vmax.f32 %v3292, 0.0
        %v3317 = vmax.f32 %v3293, 0.0
        %v3318 = vmax.f32 %v3294, 0.0
        %v3319 = vmax.f32 %v3295, 0.0
        %v3320 = vmax.f32 %v3296, 0.0
        %v3321 = vmax.f32 %v3297, 0.0
        %v3322 = vmax.f32 %v3298, 0.0
        %v3323 = vmax.f32 %v3299, 0.0
        %v3324 = vld [vmem:[%s4] sm:$0xff]
        %v3325 = vld [vmem:[%s4 + $0x8] sm:$0xff]
        %v3326 = vld [vmem:[%s4 + $0x10] sm:$0xff]
        %v3327 = vld [vmem:[%s4 + $0x18] sm:$0xff]
        %v3328 = vld [vmem:[%s4 + $0x20] sm:$0xff]
        %v3329 = vld [vmem:[%s4 + $0x28] sm:$0xff]
        %v3330 = vld [vmem:[%s4 + $0x30] sm:$0xff]
        %v3331 = vld [vmem:[%s4 + $0x38] sm:$0xff]
        %v3332 = vld [vmem:[%s4 + $0x40] sm:$0xff]
        %v3333 = vld [vmem:[%s4 + $0x48] sm:$0xff]
        %v3334 = vld [vmem:[%s4 + $0x50] sm:$0xff]
        %v3335 = vld [vmem:[%s4 + $0x58] sm:$0xff]
        %v3336 = vld [vmem:[%s4 + $0x60] sm:$0xff]
        %v3337 = vld [vmem:[%s4 + $0x68] sm:$0xff]
        %v3338 = vld [vmem:[%s4 + $0x70] sm:$0xff]
        %v3339 = vld [vmem:[%s4 + $0x78] sm:$0xff]
        %v3340 = vld [vmem:[%s4 + $0x80] sm:$0xff]
        %v3341 = vld [vmem:[%s4 + $0x88] sm:$0xff]
        %v3342 = vld [vmem:[%s4 + $0x90] sm:$0xff]
        %v3343 = vld [vmem:[%s4 + $0x98] sm:$0xff]
        %v3344 = vld [vmem:[%s4 + $0xa0] sm:$0xff]
        %v3345 = vld [vmem:[%s4 + $0xa8] sm:$0xff]
        %v3346 = vld [vmem:[%s4 + $0xb0] sm:$0xff]
        %v3347 = vld [vmem:[%s4 + $0xb8] sm:$0xff]
        %v3348 = vld [vmem:[%s4 + $0xc0] sm:$0xff]
        %v3349 = vld [vmem:[%s4 + $0xc8] sm:$0xff]
        %v3350 = vld [vmem:[%s4 + $0xd0] sm:$0xff]
        %v3351 = vld [vmem:[%s4 + $0xd8] sm:$0xff]
        %v3352 = vld [vmem:[%s4 + $0xe0] sm:$0xff]
        %v3353 = vld [vmem:[%s4 + $0xe8] sm:$0xff]
        %v3354 = vld [vmem:[%s4 + $0xf0] sm:$0xff]
        %v3355 = vld [vmem:[%s4 + $0xf8] sm:$0xff]
        %v3356 = vld [vmem:[%s4 + $0x100] sm:$0xff]
        %v3357 = vld [vmem:[%s4 + $0x108] sm:$0xff]
        %v3358 = vld [vmem:[%s4 + $0x110] sm:$0xff]
        %v3359 = vld [vmem:[%s4 + $0x118] sm:$0xff]
        %v3360 = vld [vmem:[%s4 + $0x120] sm:$0xff]
        %v3361 = vld [vmem:[%s4 + $0x128] sm:$0xff]
        %v3362 = vld [vmem:[%s4 + $0x130] sm:$0xff]
        %v3363 = vld [vmem:[%s4 + $0x138] sm:$0xff]
        %v3364 = vld [vmem:[%s4 + $0x140] sm:$0xff]
        %v3365 = vld [vmem:[%s4 + $0x148] sm:$0xff]
        %v3366 = vld [vmem:[%s4 + $0x150] sm:$0xff]
        %v3367 = vld [vmem:[%s4 + $0x158] sm:$0xff]
        %v3368 = vld [vmem:[%s4 + $0x160] sm:$0xff]
        %v3369 = vld [vmem:[%s4 + $0x168] sm:$0xff]
        %v3370 = vld [vmem:[%s4 + $0x170] sm:$0xff]
        %v3371 = vld [vmem:[%s4 + $0x178] sm:$0xff]
        %v3372 = vld [vmem:[%s4 + $0x180] sm:$0xff]
        %v3373 = vld [vmem:[%s4 + $0x188] sm:$0xff]
        %v3374 = vld [vmem:[%s4 + $0x190] sm:$0xff]
        %v3375 = vld [vmem:[%s4 + $0x198] sm:$0xff]
        %v3376 = vld [vmem:[%s4 + $0x1a0] sm:$0xff]
        %v3377 = vld [vmem:[%s4 + $0x1a8] sm:$0xff]
        %v3378 = vld [vmem:[%s4 + $0x1b0] sm:$0xff]
        %v3379 = vld [vmem:[%s4 + $0x1b8] sm:$0xff]
        %v3380 = vld [vmem:[%s4 + $0x1c0] sm:$0xff]
        %v3381 = vld [vmem:[%s4 + $0x1c8] sm:$0xff]
        %v3382 = vld [vmem:[%s4 + $0x1d0] sm:$0xff]
        %v3383 = vld [vmem:[%s4 + $0x1d8] sm:$0xff]
        %v3384 = vld [vmem:[%s5] sm:$0xff]
        %v3385 = vld [vmem:[%s5 + $0x8] sm:$0xff]
        %v3386 = vld [vmem:[%s5 + $0x10] sm:$0xff]
        %v3387 = vld [vmem:[%s5 + $0x18] sm:$0xff]
        %v3388 = vld [vmem:[%s5 + $0x20] sm:$0xff]
        %v3389 = vld [vmem:[%s5 + $0x28] sm:$0xff]
        %v3390 = vld [vmem:[%s5 + $0x30] sm:$0xff]
        %v3391 = vld [vmem:[%s5 + $0x38] sm:$0xff]
        %v3392 = vld [vmem:[%s5 + $0x40] sm:$0xff]
        %v3393 = vld [vmem:[%s5 + $0x48] sm:$0xff]
        %v3394 = vld [vmem:[%s5 + $0x50] sm:$0xff]
        %v3395 = vld [vmem:[%s5 + $0x58] sm:$0xff]
        %v3396 = vld [vmem:[%s5 + $0x60] sm:$0xff]
        %v3397 = vld [vmem:[%s5 + $0x68] sm:$0xff]
        %v3398 = vld [vmem:[%s5 + $0x70] sm:$0xff]
        %v3399 = vld [vmem:[%s5 + $0x78] sm:$0xff]
        %v3400 = vld [vmem:[%s5 + $0x80] sm:$0xff]
        %v3401 = vld [vmem:[%s5 + $0x88] sm:$0xff]
        %v3402 = vld [vmem:[%s5 + $0x90] sm:$0xff]
        %v3403 = vld [vmem:[%s5 + $0x98] sm:$0xff]
        %v3404 = vld [vmem:[%s5 + $0xa0] sm:$0xff]
        %v3405 = vld [vmem:[%s5 + $0xa8] sm:$0xff]
        %v3406 = vld [vmem:[%s5 + $0xb0] sm:$0xff]
        %v3407 = vld [vmem:[%s5 + $0xb8] sm:$0xff]
        %v3408 = vld [vmem:[%s5 + $0xc0] sm:$0xff]
        %v3409 = vld [vmem:[%s5 + $0xc8] sm:$0xff]
        %v3410 = vld [vmem:[%s5 + $0xd0] sm:$0xff]
        %v3411 = vld [vmem:[%s5 + $0xd8] sm:$0xff]
        %v3412 = vld [vmem:[%s5 + $0xe0] sm:$0xff]
        %v3413 = vld [vmem:[%s5 + $0xe8] sm:$0xff]
        %v3414 = vld [vmem:[%s5 + $0xf0] sm:$0xff]
        %v3415 = vld [vmem:[%s5 + $0xf8] sm:$0xff]
        %v3416 = vld [vmem:[%s5 + $0x100] sm:$0xff]
        %v3417 = vld [vmem:[%s5 + $0x108] sm:$0xff]
        %v3418 = vld [vmem:[%s5 + $0x110] sm:$0xff]
        %v3419 = vld [vmem:[%s5 + $0x118] sm:$0xff]
        %v3420 = vld [vmem:[%s5 + $0x120] sm:$0xff]
        %v3421 = vld [vmem:[%s5 + $0x128] sm:$0xff]
        %v3422 = vld [vmem:[%s5 + $0x130] sm:$0xff]
        %v3423 = vld [vmem:[%s5 + $0x138] sm:$0xff]
        %v3424 = vld [vmem:[%s5 + $0x140] sm:$0xff]
        %v3425 = vld [vmem:[%s5 + $0x148] sm:$0xff]
        %v3426 = vld [vmem:[%s5 + $0x150] sm:$0xff]
        %v3427 = vld [vmem:[%s5 + $0x158] sm:$0xff]
        %v3428 = vld [vmem:[%s5 + $0x160] sm:$0xff]
        %v3429 = vld [vmem:[%s5 + $0x168] sm:$0xff]
        %v3430 = vld [vmem:[%s5 + $0x170] sm:$0xff]
        %v3431 = vld [vmem:[%s5 + $0x178] sm:$0xff]
        %v3432 = vld [vmem:[%s5 + $0x180] sm:$0xff]
        %v3433 = vld [vmem:[%s5 + $0x188] sm:$0xff]
        %v3434 = vld [vmem:[%s5 + $0x190] sm:$0xff]
        %v3435 = vld [vmem:[%s5 + $0x198] sm:$0xff]
        %v3436 = vld [vmem:[%s5 + $0x1a0] sm:$0xff]
        %v3437 = vld [vmem:[%s5 + $0x1a8] sm:$0xff]
        %v3438 = vld [vmem:[%s5 + $0x1b0] sm:$0xff]
        %v3439 = vld [vmem:[%s5 + $0x1b8] sm:$0xff]
        %v3440 = vld [vmem:[%s5 + $0x1c0] sm:$0xff]
        %v3441 = vld [vmem:[%s5 + $0x1c8] sm:$0xff]
        %v3442 = vld [vmem:[%s5 + $0x1d0] sm:$0xff]
        %v3443 = vld [vmem:[%s5 + $0x1d8] sm:$0xff]
        %s3444 = scalar_lea.vmem %s4, 480
        %v3445 = vld [vmem:[%s3444] sm:$0xff]
        %v3446 = vld [vmem:[%s3444 + $0x8] sm:$0xff]
        %v3447 = vld [vmem:[%s3444 + $0x10] sm:$0xff]
        %v3448 = vld [vmem:[%s3444 + $0x18] sm:$0xff]
        %v3449 = vld [vmem:[%s3444 + $0x20] sm:$0xff]
        %v3450 = vld [vmem:[%s3444 + $0x28] sm:$0xff]
        %v3451 = vld [vmem:[%s3444 + $0x30] sm:$0xff]
        %v3452 = vld [vmem:[%s3444 + $0x38] sm:$0xff]
        %v3453 = vld [vmem:[%s3444 + $0x40] sm:$0xff]
        %v3454 = vld [vmem:[%s3444 + $0x48] sm:$0xff]
        %v3455 = vld [vmem:[%s3444 + $0x50] sm:$0xff]
        %v3456 = vld [vmem:[%s3444 + $0x58] sm:$0xff]
        %v3457 = vld [vmem:[%s3444 + $0x60] sm:$0xff]
        %v3458 = vld [vmem:[%s3444 + $0x68] sm:$0xff]
        %v3459 = vld [vmem:[%s3444 + $0x70] sm:$0xff]
        %v3460 = vld [vmem:[%s3444 + $0x78] sm:$0xff]
        %v3461 = vld [vmem:[%s3444 + $0x80] sm:$0xff]
        %v3462 = vld [vmem:[%s3444 + $0x88] sm:$0xff]
        %v3463 = vld [vmem:[%s3444 + $0x90] sm:$0xff]
        %v3464 = vld [vmem:[%s3444 + $0x98] sm:$0xff]
        %v3465 = vld [vmem:[%s3444 + $0xa0] sm:$0xff]
        %v3466 = vld [vmem:[%s3444 + $0xa8] sm:$0xff]
        %v3467 = vld [vmem:[%s3444 + $0xb0] sm:$0xff]
        %v3468 = vld [vmem:[%s3444 + $0xb8] sm:$0xff]
        %v3469 = vld [vmem:[%s3444 + $0xc0] sm:$0xff]
        %v3470 = vld [vmem:[%s3444 + $0xc8] sm:$0xff]
        %v3471 = vld [vmem:[%s3444 + $0xd0] sm:$0xff]
        %v3472 = vld [vmem:[%s3444 + $0xd8] sm:$0xff]
        %v3473 = vld [vmem:[%s3444 + $0xe0] sm:$0xff]
        %v3474 = vld [vmem:[%s3444 + $0xe8] sm:$0xff]
        %v3475 = vld [vmem:[%s3444 + $0xf0] sm:$0xff]
        %v3476 = vld [vmem:[%s3444 + $0xf8] sm:$0xff]
        %v3477 = vld [vmem:[%s3444 + $0x100] sm:$0xff]
        %v3478 = vld [vmem:[%s3444 + $0x108] sm:$0xff]
        %v3479 = vld [vmem:[%s3444 + $0x110] sm:$0xff]
        %v3480 = vld [vmem:[%s3444 + $0x118] sm:$0xff]
        %v3481 = vld [vmem:[%s3444 + $0x120] sm:$0xff]
        %v3482 = vld [vmem:[%s3444 + $0x128] sm:$0xff]
        %v3483 = vld [vmem:[%s3444 + $0x130] sm:$0xff]
        %v3484 = vld [vmem:[%s3444 + $0x138] sm:$0xff]
        %v3485 = vld [vmem:[%s3444 + $0x140] sm:$0xff]
        %v3486 = vld [vmem:[%s3444 + $0x148] sm:$0xff]
        %v3487 = vld [vmem:[%s3444 + $0x150] sm:$0xff]
        %v3488 = vld [vmem:[%s3444 + $0x158] sm:$0xff]
        %v3489 = vld [vmem:[%s3444 + $0x160] sm:$0xff]
        %v3490 = vld [vmem:[%s3444 + $0x168] sm:$0xff]
        %v3491 = vld [vmem:[%s3444 + $0x170] sm:$0xff]
        %v3492 = vld [vmem:[%s3444 + $0x178] sm:$0xff]
        %v3493 = vld [vmem:[%s3444 + $0x180] sm:$0xff]
        %v3494 = vld [vmem:[%s3444 + $0x188] sm:$0xff]
        %v3495 = vld [vmem:[%s3444 + $0x190] sm:$0xff]
        %v3496 = vld [vmem:[%s3444 + $0x198] sm:$0xff]
        %v3497 = vld [vmem:[%s3444 + $0x1a0] sm:$0xff]
        %v3498 = vld [vmem:[%s3444 + $0x1a8] sm:$0xff]
        %v3499 = vld [vmem:[%s3444 + $0x1b0] sm:$0xff]
        %v3500 = vld [vmem:[%s3444 + $0x1b8] sm:$0xff]
        %v3501 = vld [vmem:[%s3444 + $0x1c0] sm:$0xff]
        %v3502 = vld [vmem:[%s3444 + $0x1c8] sm:$0xff]
        %v3503 = vld [vmem:[%s3444 + $0x1d0] sm:$0xff]
        %v3504 = vld [vmem:[%s3444 + $0x1d8] sm:$0xff]
        %s3505 = scalar_lea.vmem %s5, 480
        %v3506 = vld [vmem:[%s3505] sm:$0xff]
        %v3507 = vld [vmem:[%s3505 + $0x8] sm:$0xff]
        %v3508 = vld [vmem:[%s3505 + $0x10] sm:$0xff]
        %v3509 = vld [vmem:[%s3505 + $0x18] sm:$0xff]
        %v3510 = vld [vmem:[%s3505 + $0x20] sm:$0xff]
        %v3511 = vld [vmem:[%s3505 + $0x28] sm:$0xff]
        %v3512 = vld [vmem:[%s3505 + $0x30] sm:$0xff]
        %v3513 = vld [vmem:[%s3505 + $0x38] sm:$0xff]
        %v3514 = vld [vmem:[%s3505 + $0x40] sm:$0xff]
        %v3515 = vld [vmem:[%s3505 + $0x48] sm:$0xff]
        %v3516 = vld [vmem:[%s3505 + $0x50] sm:$0xff]
        %v3517 = vld [vmem:[%s3505 + $0x58] sm:$0xff]
        %v3518 = vld [vmem:[%s3505 + $0x60] sm:$0xff]
        %v3519 = vld [vmem:[%s3505 + $0x68] sm:$0xff]
        %v3520 = vld [vmem:[%s3505 + $0x70] sm:$0xff]
        %v3521 = vld [vmem:[%s3505 + $0x78] sm:$0xff]
        %v3522 = vld [vmem:[%s3505 + $0x80] sm:$0xff]
        %v3523 = vld [vmem:[%s3505 + $0x88] sm:$0xff]
        %v3524 = vld [vmem:[%s3505 + $0x90] sm:$0xff]
        %v3525 = vld [vmem:[%s3505 + $0x98] sm:$0xff]
        %v3526 = vld [vmem:[%s3505 + $0xa0] sm:$0xff]
        %v3527 = vld [vmem:[%s3505 + $0xa8] sm:$0xff]
        %v3528 = vld [vmem:[%s3505 + $0xb0] sm:$0xff]
        %v3529 = vld [vmem:[%s3505 + $0xb8] sm:$0xff]
        %v3530 = vld [vmem:[%s3505 + $0xc0] sm:$0xff]
        %v3531 = vld [vmem:[%s3505 + $0xc8] sm:$0xff]
        %v3532 = vld [vmem:[%s3505 + $0xd0] sm:$0xff]
        %v3533 = vld [vmem:[%s3505 + $0xd8] sm:$0xff]
        %v3534 = vld [vmem:[%s3505 + $0xe0] sm:$0xff]
        %v3535 = vld [vmem:[%s3505 + $0xe8] sm:$0xff]
        %v3536 = vld [vmem:[%s3505 + $0xf0] sm:$0xff]
        %v3537 = vld [vmem:[%s3505 + $0xf8] sm:$0xff]
        %v3538 = vld [vmem:[%s3505 + $0x100] sm:$0xff]
        %v3539 = vld [vmem:[%s3505 + $0x108] sm:$0xff]
        %v3540 = vld [vmem:[%s3505 + $0x110] sm:$0xff]
        %v3541 = vld [vmem:[%s3505 + $0x118] sm:$0xff]
        %v3542 = vld [vmem:[%s3505 + $0x120] sm:$0xff]
        %v3543 = vld [vmem:[%s3505 + $0x128] sm:$0xff]
        %v3544 = vld [vmem:[%s3505 + $0x130] sm:$0xff]
        %v3545 = vld [vmem:[%s3505 + $0x138] sm:$0xff]
        %v3546 = vld [vmem:[%s3505 + $0x140] sm:$0xff]
        %v3547 = vld [vmem:[%s3505 + $0x148] sm:$0xff]
        %v3548 = vld [vmem:[%s3505 + $0x150] sm:$0xff]
        %v3549 = vld [vmem:[%s3505 + $0x158] sm:$0xff]
        %v3550 = vld [vmem:[%s3505 + $0x160] sm:$0xff]
        %v3551 = vld [vmem:[%s3505 + $0x168] sm:$0xff]
        %v3552 = vld [vmem:[%s3505 + $0x170] sm:$0xff]
        %v3553 = vld [vmem:[%s3505 + $0x178] sm:$0xff]
        %v3554 = vld [vmem:[%s3505 + $0x180] sm:$0xff]
        %v3555 = vld [vmem:[%s3505 + $0x188] sm:$0xff]
        %v3556 = vld [vmem:[%s3505 + $0x190] sm:$0xff]
        %v3557 = vld [vmem:[%s3505 + $0x198] sm:$0xff]
        %v3558 = vld [vmem:[%s3505 + $0x1a0] sm:$0xff]
        %v3559 = vld [vmem:[%s3505 + $0x1a8] sm:$0xff]
        %v3560 = vld [vmem:[%s3505 + $0x1b0] sm:$0xff]
        %v3561 = vld [vmem:[%s3505 + $0x1b8] sm:$0xff]
        %v3562 = vld [vmem:[%s3505 + $0x1c0] sm:$0xff]
        %v3563 = vld [vmem:[%s3505 + $0x1c8] sm:$0xff]
        %v3564 = vld [vmem:[%s3505 + $0x1d0] sm:$0xff]
        %v3565 = vld [vmem:[%s3505 + $0x1d8] sm:$0xff]
        %vm3566 = vcmask 916480
        %v3568 = vsel %vm3566, %v3303, 0
        %v3571 = vsel %vm3566, %v3307, 0
        %v3574 = vsel %vm3566, %v3311, 0
        %v3577 = vsel %vm3566, %v3315, 0
        %3579 = vmatpush.msra.mxu0 %v3475
        %3580 = vmatpush.msra.mxu0 %v3473
        %3581 = vmatpush.msra.mxu0 %v3471
        %3582 = vmatpush.msra.mxu0 %v3469
        %3583 = vmatpush.msra.mxu0 %v3467
        %3584 = vmatpush.msra.mxu0 %v3465
        %3585 = vmatpush.msra.mxu0 %v3463
        %3586 = vmatpush.msra.mxu0 %v3461
        %3587 = vmatpush.msra.mxu0 %v3459
        %3588 = vmatpush.msra.mxu0 %v3457
        %3589 = vmatpush.msra.mxu0 %v3455
        %3590 = vmatpush.msra.mxu0 %v3453
        %3591 = vmatpush.msra.mxu0 %v3451
        %3592 = vmatpush.msra.mxu0 %v3449
        %3593 = vmatpush.msra.mxu0 %v3447
        %3594 = vmatpush.msra.mxu0 %v3445
        %3595 = vmatmul.f32.gmra.mxu0 %v3302
        %v3596 = vpop.f32.mrf.mxu0
        %v3597 = vadd.f32 0.0, %v3596
        %3598 = vmatmul.f32.gmra.mxu0 %v3306
        %v3599 = vpop.f32.mrf.mxu0
        %v3600 = vadd.f32 0.0, %v3599
        %3601 = vmatmul.f32.gmra.mxu0 %v3310
        %v3602 = vpop.f32.mrf.mxu0
        %v3603 = vadd.f32 0.0, %v3602
        %3604 = vmatmul.f32.gmra.mxu0 %v3314
        %v3605 = vpop.f32.mrf.mxu0
        %v3606 = vadd.f32 0.0, %v3605
        %3607 = vdwg.mxu0
        %3608 = vmatpush.msra.mxu0 0.0
        %3609 = vmatpush.msra.mxu0 0.0
        %3610 = vmatpush.msra.mxu0 %v3503
        %3611 = vmatpush.msra.mxu0 %v3501
        %3612 = vmatpush.msra.mxu0 %v3499
        %3613 = vmatpush.msra.mxu0 %v3497
        %3614 = vmatpush.msra.mxu0 %v3495
        %3615 = vmatpush.msra.mxu0 %v3493
        %3616 = vmatpush.msra.mxu0 %v3491
        %3617 = vmatpush.msra.mxu0 %v3489
        %3618 = vmatpush.msra.mxu0 %v3487
        %3619 = vmatpush.msra.mxu0 %v3485
        %3620 = vmatpush.msra.mxu0 %v3483
        %3621 = vmatpush.msra.mxu0 %v3481
        %3622 = vmatpush.msra.mxu0 %v3479
        %3623 = vmatpush.msra.mxu0 %v3477
        %3624 = vmatmul.f32.gmra.mxu0 %v3568
        %v3625 = vpop.f32.mrf.mxu0
        %v3626 = vadd.f32 %v3597, %v3625
        %3627 = vmatmul.f32.gmra.mxu0 %v3571
        %v3628 = vpop.f32.mrf.mxu0
        %v3629 = vadd.f32 %v3600, %v3628
        %3630 = vmatmul.f32.gmra.mxu0 %v3574
        %v3631 = vpop.f32.mrf.mxu0
        %v3632 = vadd.f32 %v3603, %v3631
        %3633 = vmatmul.f32.gmra.mxu0 %v3577
        %v3634 = vpop.f32.mrf.mxu0
        %v3635 = vadd.f32 %v3606, %v3634
        %3636 = vdwg.mxu0
        %3637 = vmatpush.msra.mxu0 %v3476
        %3638 = vmatpush.msra.mxu0 %v3474
        %3639 = vmatpush.msra.mxu0 %v3472
        %3640 = vmatpush.msra.mxu0 %v3470
        %3641 = vmatpush.msra.mxu0 %v3468
        %3642 = vmatpush.msra.mxu0 %v3466
        %3643 = vmatpush.msra.mxu0 %v3464
        %3644 = vmatpush.msra.mxu0 %v3462
        %3645 = vmatpush.msra.mxu0 %v3460
        %3646 = vmatpush.msra.mxu0 %v3458
        %3647 = vmatpush.msra.mxu0 %v3456
        %3648 = vmatpush.msra.mxu0 %v3454
        %3649 = vmatpush.msra.mxu0 %v3452
        %3650 = vmatpush.msra.mxu0 %v3450
        %3651 = vmatpush.msra.mxu0 %v3448
        %3652 = vmatpush.msra.mxu0 %v3446
        %3653 = vmatmul.f32.gmra.mxu0 %v3302
        %v3654 = vpop.f32.mrf.mxu0
        %v3655 = vadd.f32 0.0, %v3654
        %3656 = vmatmul.f32.gmra.mxu0 %v3306
        %v3657 = vpop.f32.mrf.mxu0
        %v3658 = vadd.f32 0.0, %v3657
        %3659 = vmatmul.f32.gmra.mxu0 %v3310
        %v3660 = vpop.f32.mrf.mxu0
        %v3661 = vadd.f32 0.0, %v3660
        %3662 = vmatmul.f32.gmra.mxu0 %v3314
        %v3663 = vpop.f32.mrf.mxu0
        %v3664 = vadd.f32 0.0, %v3663
        %3665 = vdwg.mxu0
        %3666 = vmatpush.msra.mxu0 0.0
        %3667 = vmatpush.msra.mxu0 0.0
        %3668 = vmatpush.msra.mxu0 %v3504
        %3669 = vmatpush.msra.mxu0 %v3502
        %3670 = vmatpush.msra.mxu0 %v3500
        %3671 = vmatpush.msra.mxu0 %v3498
        %3672 = vmatpush.msra.mxu0 %v3496
        %3673 = vmatpush.msra.mxu0 %v3494
        %3674 = vmatpush.msra.mxu0 %v3492
        %3675 = vmatpush.msra.mxu0 %v3490
        %3676 = vmatpush.msra.mxu0 %v3488
        %3677 = vmatpush.msra.mxu0 %v3486
        %3678 = vmatpush.msra.mxu0 %v3484
        %3679 = vmatpush.msra.mxu0 %v3482
        %3680 = vmatpush.msra.mxu0 %v3480
        %3681 = vmatpush.msra.mxu0 %v3478
        %3682 = vmatmul.f32.gmra.mxu0 %v3568
        %v3683 = vpop.f32.mrf.mxu0
        %v3684 = vadd.f32 %v3655, %v3683
        %3685 = vmatmul.f32.gmra.mxu0 %v3571
        %v3686 = vpop.f32.mrf.mxu0
        %v3687 = vadd.f32 %v3658, %v3686
        %3688 = vmatmul.f32.gmra.mxu0 %v3574
        %v3689 = vpop.f32.mrf.mxu0
        %v3690 = vadd.f32 %v3661, %v3689
        %3691 = vmatmul.f32.gmra.mxu0 %v3577
        %v3692 = vpop.f32.mrf.mxu0
        %v3693 = vadd.f32 %v3664, %v3692
        %3694 = vdwg.mxu0
        %v3696 = vsel %vm3566, %v3301, 0
        %v3699 = vsel %vm3566, %v3305, 0
        %v3702 = vsel %vm3566, %v3309, 0
        %v3705 = vsel %vm3566, %v3313, 0
        %3707 = vmatpush.msra.mxu0 %v3354
        %3708 = vmatpush.msra.mxu0 %v3352
        %3709 = vmatpush.msra.mxu0 %v3350
        %3710 = vmatpush.msra.mxu0 %v3348
        %3711 = vmatpush.msra.mxu0 %v3346
        %3712 = vmatpush.msra.mxu0 %v3344
        %3713 = vmatpush.msra.mxu0 %v3342
        %3714 = vmatpush.msra.mxu0 %v3340
        %3715 = vmatpush.msra.mxu0 %v3338
        %3716 = vmatpush.msra.mxu0 %v3336
        %3717 = vmatpush.msra.mxu0 %v3334
        %3718 = vmatpush.msra.mxu0 %v3332
        %3719 = vmatpush.msra.mxu0 %v3330
        %3720 = vmatpush.msra.mxu0 %v3328
        %3721 = vmatpush.msra.mxu0 %v3326
        %3722 = vmatpush.msra.mxu0 %v3324
        %3723 = vmatmul.f32.gmra.mxu0 %v3300
        %v3724 = vpop.f32.mrf.mxu0
        %v3725 = vadd.f32 %v3626, %v3724
        %3726 = vmatmul.f32.gmra.mxu0 %v3304
        %v3727 = vpop.f32.mrf.mxu0
        %v3728 = vadd.f32 %v3629, %v3727
        %3729 = vmatmul.f32.gmra.mxu0 %v3308
        %v3730 = vpop.f32.mrf.mxu0
        %v3731 = vadd.f32 %v3632, %v3730
        %3732 = vmatmul.f32.gmra.mxu0 %v3312
        %v3733 = vpop.f32.mrf.mxu0
        %v3734 = vadd.f32 %v3635, %v3733
        %3735 = vdwg.mxu0
        %3736 = vmatpush.msra.mxu0 0.0
        %3737 = vmatpush.msra.mxu0 0.0
        %3738 = vmatpush.msra.mxu0 %v3382
        %3739 = vmatpush.msra.mxu0 %v3380
        %3740 = vmatpush.msra.mxu0 %v3378
        %3741 = vmatpush.msra.mxu0 %v3376
        %3742 = vmatpush.msra.mxu0 %v3374
        %3743 = vmatpush.msra.mxu0 %v3372
        %3744 = vmatpush.msra.mxu0 %v3370
        %3745 = vmatpush.msra.mxu0 %v3368
        %3746 = vmatpush.msra.mxu0 %v3366
        %3747 = vmatpush.msra.mxu0 %v3364
        %3748 = vmatpush.msra.mxu0 %v3362
        %3749 = vmatpush.msra.mxu0 %v3360
        %3750 = vmatpush.msra.mxu0 %v3358
        %3751 = vmatpush.msra.mxu0 %v3356
        %3752 = vmatmul.f32.gmra.mxu0 %v3696
        %v3753 = vpop.f32.mrf.mxu0
        %v3754 = vadd.f32 %v3725, %v3753
        %3755 = vmatmul.f32.gmra.mxu0 %v3699
        %v3756 = vpop.f32.mrf.mxu0
        %v3757 = vadd.f32 %v3728, %v3756
        %3758 = vmatmul.f32.gmra.mxu0 %v3702
        %v3759 = vpop.f32.mrf.mxu0
        %v3760 = vadd.f32 %v3731, %v3759
        %3761 = vmatmul.f32.gmra.mxu0 %v3705
        %v3762 = vpop.f32.mrf.mxu0
        %v3763 = vadd.f32 %v3734, %v3762
        %3764 = vdwg.mxu0
        %3765 = vmatpush.msra.mxu0 %v3355
        %3766 = vmatpush.msra.mxu0 %v3353
        %3767 = vmatpush.msra.mxu0 %v3351
        %3768 = vmatpush.msra.mxu0 %v3349
        %3769 = vmatpush.msra.mxu0 %v3347
        %3770 = vmatpush.msra.mxu0 %v3345
        %3771 = vmatpush.msra.mxu0 %v3343
        %3772 = vmatpush.msra.mxu0 %v3341
        %3773 = vmatpush.msra.mxu0 %v3339
        %3774 = vmatpush.msra.mxu0 %v3337
        %3775 = vmatpush.msra.mxu0 %v3335
        %3776 = vmatpush.msra.mxu0 %v3333
        %3777 = vmatpush.msra.mxu0 %v3331
        %3778 = vmatpush.msra.mxu0 %v3329
        %3779 = vmatpush.msra.mxu0 %v3327
        %3780 = vmatpush.msra.mxu0 %v3325
        %3781 = vmatmul.f32.gmra.mxu0 %v3300
        %v3782 = vpop.f32.mrf.mxu0
        %v3783 = vadd.f32 %v3684, %v3782
        %3784 = vmatmul.f32.gmra.mxu0 %v3304
        %v3785 = vpop.f32.mrf.mxu0
        %v3786 = vadd.f32 %v3687, %v3785
        %3787 = vmatmul.f32.gmra.mxu0 %v3308
        %v3788 = vpop.f32.mrf.mxu0
        %v3789 = vadd.f32 %v3690, %v3788
        %3790 = vmatmul.f32.gmra.mxu0 %v3312
        %v3791 = vpop.f32.mrf.mxu0
        %v3792 = vadd.f32 %v3693, %v3791
        %3793 = vdwg.mxu0
        %3794 = vmatpush.msra.mxu0 0.0
        %3795 = vmatpush.msra.mxu0 0.0
        %3796 = vmatpush.msra.mxu0 %v3383
        %3797 = vmatpush.msra.mxu0 %v3381
        %3798 = vmatpush.msra.mxu0 %v3379
        %3799 = vmatpush.msra.mxu0 %v3377
        %3800 = vmatpush.msra.mxu0 %v3375
        %3801 = vmatpush.msra.mxu0 %v3373
        %3802 = vmatpush.msra.mxu0 %v3371
        %3803 = vmatpush.msra.mxu0 %v3369
        %3804 = vmatpush.msra.mxu0 %v3367
        %3805 = vmatpush.msra.mxu0 %v3365
        %3806 = vmatpush.msra.mxu0 %v3363
        %3807 = vmatpush.msra.mxu0 %v3361
        %3808 = vmatpush.msra.mxu0 %v3359
        %3809 = vmatpush.msra.mxu0 %v3357
        %3810 = vmatmul.f32.gmra.mxu0 %v3696
        %v3811 = vpop.f32.mrf.mxu0
        %v3812 = vadd.f32 %v3783, %v3811
        %3813 = vmatmul.f32.gmra.mxu0 %v3699
        %v3814 = vpop.f32.mrf.mxu0
        %v3815 = vadd.f32 %v3786, %v3814
        %3816 = vmatmul.f32.gmra.mxu0 %v3702
        %v3817 = vpop.f32.mrf.mxu0
        %v3818 = vadd.f32 %v3789, %v3817
        %3819 = vmatmul.f32.gmra.mxu0 %v3705
        %v3820 = vpop.f32.mrf.mxu0
        %v3821 = vadd.f32 %v3792, %v3820
        %3822 = vdwg.mxu0
        %3823 = vmatpush.msra.mxu0 %v3536
        %3824 = vmatpush.msra.mxu0 %v3534
        %3825 = vmatpush.msra.mxu0 %v3532
        %3826 = vmatpush.msra.mxu0 %v3530
        %3827 = vmatpush.msra.mxu0 %v3528
        %3828 = vmatpush.msra.mxu0 %v3526
        %3829 = vmatpush.msra.mxu0 %v3524
        %3830 = vmatpush.msra.mxu0 %v3522
        %3831 = vmatpush.msra.mxu0 %v3520
        %3832 = vmatpush.msra.mxu0 %v3518
        %3833 = vmatpush.msra.mxu0 %v3516
        %3834 = vmatpush.msra.mxu0 %v3514
        %3835 = vmatpush.msra.mxu0 %v3512
        %3836 = vmatpush.msra.mxu0 %v3510
        %3837 = vmatpush.msra.mxu0 %v3508
        %3838 = vmatpush.msra.mxu0 %v3506
        %3839 = vmatmul.f32.gmra.mxu0 %v3302
        %v3840 = vpop.f32.mrf.mxu0
        %v3841 = vadd.f32 0.0, %v3840
        %3842 = vmatmul.f32.gmra.mxu0 %v3306
        %v3843 = vpop.f32.mrf.mxu0
        %v3844 = vadd.f32 0.0, %v3843
        %3845 = vmatmul.f32.gmra.mxu0 %v3310
        %v3846 = vpop.f32.mrf.mxu0
        %v3847 = vadd.f32 0.0, %v3846
        %3848 = vmatmul.f32.gmra.mxu0 %v3314
        %v3849 = vpop.f32.mrf.mxu0
        %v3850 = vadd.f32 0.0, %v3849
        %3851 = vdwg.mxu0
        %3852 = vmatpush.msra.mxu0 0.0
        %3853 = vmatpush.msra.mxu0 0.0
        %3854 = vmatpush.msra.mxu0 %v3564
        %3855 = vmatpush.msra.mxu0 %v3562
        %3856 = vmatpush.msra.mxu0 %v3560
        %3857 = vmatpush.msra.mxu0 %v3558
        %3858 = vmatpush.msra.mxu0 %v3556
        %3859 = vmatpush.msra.mxu0 %v3554
        %3860 = vmatpush.msra.mxu0 %v3552
        %3861 = vmatpush.msra.mxu0 %v3550
        %3862 = vmatpush.msra.mxu0 %v3548
        %3863 = vmatpush.msra.mxu0 %v3546
        %3864 = vmatpush.msra.mxu0 %v3544
        %3865 = vmatpush.msra.mxu0 %v3542
        %3866 = vmatpush.msra.mxu0 %v3540
        %3867 = vmatpush.msra.mxu0 %v3538
        %3868 = vmatmul.f32.gmra.mxu0 %v3568
        %v3869 = vpop.f32.mrf.mxu0
        %v3870 = vadd.f32 %v3841, %v3869
        %3871 = vmatmul.f32.gmra.mxu0 %v3571
        %v3872 = vpop.f32.mrf.mxu0
        %v3873 = vadd.f32 %v3844, %v3872
        %3874 = vmatmul.f32.gmra.mxu0 %v3574
        %v3875 = vpop.f32.mrf.mxu0
        %v3876 = vadd.f32 %v3847, %v3875
        %3877 = vmatmul.f32.gmra.mxu0 %v3577
        %v3878 = vpop.f32.mrf.mxu0
        %v3879 = vadd.f32 %v3850, %v3878
        %3880 = vdwg.mxu0
        %3881 = vmatpush.msra.mxu0 %v3537
        %3882 = vmatpush.msra.mxu0 %v3535
        %3883 = vmatpush.msra.mxu0 %v3533
        %3884 = vmatpush.msra.mxu0 %v3531
        %3885 = vmatpush.msra.mxu0 %v3529
        %3886 = vmatpush.msra.mxu0 %v3527
        %3887 = vmatpush.msra.mxu0 %v3525
        %3888 = vmatpush.msra.mxu0 %v3523
        %3889 = vmatpush.msra.mxu0 %v3521
        %3890 = vmatpush.msra.mxu0 %v3519
        %3891 = vmatpush.msra.mxu0 %v3517
        %3892 = vmatpush.msra.mxu0 %v3515
        %3893 = vmatpush.msra.mxu0 %v3513
        %3894 = vmatpush.msra.mxu0 %v3511
        %3895 = vmatpush.msra.mxu0 %v3509
        %3896 = vmatpush.msra.mxu0 %v3507
        %3897 = vmatmul.f32.gmra.mxu0 %v3302
        %v3898 = vpop.f32.mrf.mxu0
        %v3899 = vadd.f32 0.0, %v3898
        %3900 = vmatmul.f32.gmra.mxu0 %v3306
        %v3901 = vpop.f32.mrf.mxu0
        %v3902 = vadd.f32 0.0, %v3901
        %3903 = vmatmul.f32.gmra.mxu0 %v3310
        %v3904 = vpop.f32.mrf.mxu0
        %v3905 = vadd.f32 0.0, %v3904
        %3906 = vmatmul.f32.gmra.mxu0 %v3314
        %v3907 = vpop.f32.mrf.mxu0
        %v3908 = vadd.f32 0.0, %v3907
        %3909 = vdwg.mxu0
        %3910 = vmatpush.msra.mxu0 0.0
        %3911 = vmatpush.msra.mxu0 0.0
        %3912 = vmatpush.msra.mxu0 %v3565
        %3913 = vmatpush.msra.mxu0 %v3563
        %3914 = vmatpush.msra.mxu0 %v3561
        %3915 = vmatpush.msra.mxu0 %v3559
        %3916 = vmatpush.msra.mxu0 %v3557
        %3917 = vmatpush.msra.mxu0 %v3555
        %3918 = vmatpush.msra.mxu0 %v3553
        %3919 = vmatpush.msra.mxu0 %v3551
        %3920 = vmatpush.msra.mxu0 %v3549
        %3921 = vmatpush.msra.mxu0 %v3547
        %3922 = vmatpush.msra.mxu0 %v3545
        %3923 = vmatpush.msra.mxu0 %v3543
        %3924 = vmatpush.msra.mxu0 %v3541
        %3925 = vmatpush.msra.mxu0 %v3539
        %3926 = vmatmul.f32.gmra.mxu0 %v3568
        %v3927 = vpop.f32.mrf.mxu0
        %v3928 = vadd.f32 %v3899, %v3927
        %3929 = vmatmul.f32.gmra.mxu0 %v3571
        %v3930 = vpop.f32.mrf.mxu0
        %v3931 = vadd.f32 %v3902, %v3930
        %3932 = vmatmul.f32.gmra.mxu0 %v3574
        %v3933 = vpop.f32.mrf.mxu0
        %v3934 = vadd.f32 %v3905, %v3933
        %3935 = vmatmul.f32.gmra.mxu0 %v3577
        %v3936 = vpop.f32.mrf.mxu0
        %v3937 = vadd.f32 %v3908, %v3936
        %3938 = vdwg.mxu0
        %3939 = vmatpush.msra.mxu0 %v3414
        %3940 = vmatpush.msra.mxu0 %v3412
        %3941 = vmatpush.msra.mxu0 %v3410
        %3942 = vmatpush.msra.mxu0 %v3408
        %3943 = vmatpush.msra.mxu0 %v3406
        %3944 = vmatpush.msra.mxu0 %v3404
        %3945 = vmatpush.msra.mxu0 %v3402
        %3946 = vmatpush.msra.mxu0 %v3400
        %3947 = vmatpush.msra.mxu0 %v3398
        %3948 = vmatpush.msra.mxu0 %v3396
        %3949 = vmatpush.msra.mxu0 %v3394
        %3950 = vmatpush.msra.mxu0 %v3392
        %3951 = vmatpush.msra.mxu0 %v3390
        %3952 = vmatpush.msra.mxu0 %v3388
        %3953 = vmatpush.msra.mxu0 %v3386
        %3954 = vmatpush.msra.mxu0 %v3384
        %3955 = vmatmul.f32.gmra.mxu0 %v3300
        %v3956 = vpop.f32.mrf.mxu0
        %v3957 = vadd.f32 %v3870, %v3956
        %3958 = vmatmul.f32.gmra.mxu0 %v3304
        %v3959 = vpop.f32.mrf.mxu0
        %v3960 = vadd.f32 %v3873, %v3959
        %3961 = vmatmul.f32.gmra.mxu0 %v3308
        %v3962 = vpop.f32.mrf.mxu0
        %v3963 = vadd.f32 %v3876, %v3962
        %3964 = vmatmul.f32.gmra.mxu0 %v3312
        %v3965 = vpop.f32.mrf.mxu0
        %v3966 = vadd.f32 %v3879, %v3965
        %3967 = vdwg.mxu0
        %3968 = vmatpush.msra.mxu0 0.0
        %3969 = vmatpush.msra.mxu0 0.0
        %3970 = vmatpush.msra.mxu0 %v3442
        %3971 = vmatpush.msra.mxu0 %v3440
        %3972 = vmatpush.msra.mxu0 %v3438
        %3973 = vmatpush.msra.mxu0 %v3436
        %3974 = vmatpush.msra.mxu0 %v3434
        %3975 = vmatpush.msra.mxu0 %v3432
        %3976 = vmatpush.msra.mxu0 %v3430
        %3977 = vmatpush.msra.mxu0 %v3428
        %3978 = vmatpush.msra.mxu0 %v3426
        %3979 = vmatpush.msra.mxu0 %v3424
        %3980 = vmatpush.msra.mxu0 %v3422
        %3981 = vmatpush.msra.mxu0 %v3420
        %3982 = vmatpush.msra.mxu0 %v3418
        %3983 = vmatpush.msra.mxu0 %v3416
        %3984 = vmatmul.f32.gmra.mxu0 %v3696
        %v3985 = vpop.f32.mrf.mxu0
        %v3986 = vadd.f32 %v3957, %v3985
        %3987 = vmatmul.f32.gmra.mxu0 %v3699
        %v3988 = vpop.f32.mrf.mxu0
        %v3989 = vadd.f32 %v3960, %v3988
        %3990 = vmatmul.f32.gmra.mxu0 %v3702
        %v3991 = vpop.f32.mrf.mxu0
        %v3992 = vadd.f32 %v3963, %v3991
        %3993 = vmatmul.f32.gmra.mxu0 %v3705
        %v3994 = vpop.f32.mrf.mxu0
        %v3995 = vadd.f32 %v3966, %v3994
        %3996 = vdwg.mxu0
        %3997 = vmatpush.msra.mxu0 %v3415
        %3998 = vmatpush.msra.mxu0 %v3413
        %3999 = vmatpush.msra.mxu0 %v3411
        %4000 = vmatpush.msra.mxu0 %v3409
        %4001 = vmatpush.msra.mxu0 %v3407
        %4002 = vmatpush.msra.mxu0 %v3405
        %4003 = vmatpush.msra.mxu0 %v3403
        %4004 = vmatpush.msra.mxu0 %v3401
        %4005 = vmatpush.msra.mxu0 %v3399
        %4006 = vmatpush.msra.mxu0 %v3397
        %4007 = vmatpush.msra.mxu0 %v3395
        %4008 = vmatpush.msra.mxu0 %v3393
        %4009 = vmatpush.msra.mxu0 %v3391
        %4010 = vmatpush.msra.mxu0 %v3389
        %4011 = vmatpush.msra.mxu0 %v3387
        %4012 = vmatpush.msra.mxu0 %v3385
        %4013 = vmatmul.f32.gmra.mxu0 %v3300
        %v4014 = vpop.f32.mrf.mxu0
        %v4015 = vadd.f32 %v3928, %v4014
        %4016 = vmatmul.f32.gmra.mxu0 %v3304
        %v4017 = vpop.f32.mrf.mxu0
        %v4018 = vadd.f32 %v3931, %v4017
        %4019 = vmatmul.f32.gmra.mxu0 %v3308
        %v4020 = vpop.f32.mrf.mxu0
        %v4021 = vadd.f32 %v3934, %v4020
        %4022 = vmatmul.f32.gmra.mxu0 %v3312
        %v4023 = vpop.f32.mrf.mxu0
        %v4024 = vadd.f32 %v3937, %v4023
        %4025 = vdwg.mxu0
        %4026 = vmatpush.msra.mxu0 0.0
        %4027 = vmatpush.msra.mxu0 0.0
        %4028 = vmatpush.msra.mxu0 %v3443
        %4029 = vmatpush.msra.mxu0 %v3441
        %4030 = vmatpush.msra.mxu0 %v3439
        %4031 = vmatpush.msra.mxu0 %v3437
        %4032 = vmatpush.msra.mxu0 %v3435
        %4033 = vmatpush.msra.mxu0 %v3433
        %4034 = vmatpush.msra.mxu0 %v3431
        %4035 = vmatpush.msra.mxu0 %v3429
        %4036 = vmatpush.msra.mxu0 %v3427
        %4037 = vmatpush.msra.mxu0 %v3425
        %4038 = vmatpush.msra.mxu0 %v3423
        %4039 = vmatpush.msra.mxu0 %v3421
        %4040 = vmatpush.msra.mxu0 %v3419
        %4041 = vmatpush.msra.mxu0 %v3417
        %4042 = vmatmul.f32.gmra.mxu0 %v3696
        %v4043 = vpop.f32.mrf.mxu0
        %v4044 = vadd.f32 %v4015, %v4043
        %4045 = vmatmul.f32.gmra.mxu0 %v3699
        %v4046 = vpop.f32.mrf.mxu0
        %v4047 = vadd.f32 %v4018, %v4046
        %4048 = vmatmul.f32.gmra.mxu0 %v3702
        %v4049 = vpop.f32.mrf.mxu0
        %v4050 = vadd.f32 %v4021, %v4049
        %4051 = vmatmul.f32.gmra.mxu0 %v3705
        %v4052 = vpop.f32.mrf.mxu0
        %v4053 = vadd.f32 %v4024, %v4052
        %4054 = vdwg.mxu0
        %v4056 = vsel %vm3566, %v3317, 0
        %4058 = vmatpush.msra.mxu0 %v3475
        %4059 = vmatpush.msra.mxu0 %v3473
        %4060 = vmatpush.msra.mxu0 %v3471
        %4061 = vmatpush.msra.mxu0 %v3469
        %4062 = vmatpush.msra.mxu0 %v3467
        %4063 = vmatpush.msra.mxu0 %v3465
        %4064 = vmatpush.msra.mxu0 %v3463
        %4065 = vmatpush.msra.mxu0 %v3461
        %4066 = vmatpush.msra.mxu0 %v3459
        %4067 = vmatpush.msra.mxu0 %v3457
        %4068 = vmatpush.msra.mxu0 %v3455
        %4069 = vmatpush.msra.mxu0 %v3453
        %4070 = vmatpush.msra.mxu0 %v3451
        %4071 = vmatpush.msra.mxu0 %v3449
        %4072 = vmatpush.msra.mxu0 %v3447
        %4073 = vmatpush.msra.mxu0 %v3445
        %4074 = vmatmul.f32.gmra.mxu0 %v3304
        %v4075 = vpop.f32.mrf.mxu0
        %v4076 = vadd.f32 0.0, %v4075
        %4077 = vmatmul.f32.gmra.mxu0 %v3308
        %v4078 = vpop.f32.mrf.mxu0
        %v4079 = vadd.f32 0.0, %v4078
        %4080 = vmatmul.f32.gmra.mxu0 %v3312
        %v4081 = vpop.f32.mrf.mxu0
        %v4082 = vadd.f32 0.0, %v4081
        %4083 = vmatmul.f32.gmra.mxu0 %v3316
        %v4084 = vpop.f32.mrf.mxu0
        %v4085 = vadd.f32 0.0, %v4084
        %4086 = vdwg.mxu0
        %4087 = vmatpush.msra.mxu0 0.0
        %4088 = vmatpush.msra.mxu0 0.0
        %4089 = vmatpush.msra.mxu0 %v3503
        %4090 = vmatpush.msra.mxu0 %v3501
        %4091 = vmatpush.msra.mxu0 %v3499
        %4092 = vmatpush.msra.mxu0 %v3497
        %4093 = vmatpush.msra.mxu0 %v3495
        %4094 = vmatpush.msra.mxu0 %v3493
        %4095 = vmatpush.msra.mxu0 %v3491
        %4096 = vmatpush.msra.mxu0 %v3489
        %4097 = vmatpush.msra.mxu0 %v3487
        %4098 = vmatpush.msra.mxu0 %v3485
        %4099 = vmatpush.msra.mxu0 %v3483
        %4100 = vmatpush.msra.mxu0 %v3481
        %4101 = vmatpush.msra.mxu0 %v3479
        %4102 = vmatpush.msra.mxu0 %v3477
        %4103 = vmatmul.f32.gmra.mxu0 %v3699
        %v4104 = vpop.f32.mrf.mxu0
        %v4105 = vadd.f32 %v4076, %v4104
        %4106 = vmatmul.f32.gmra.mxu0 %v3702
        %v4107 = vpop.f32.mrf.mxu0
        %v4108 = vadd.f32 %v4079, %v4107
        %4109 = vmatmul.f32.gmra.mxu0 %v3705
        %v4110 = vpop.f32.mrf.mxu0
        %v4111 = vadd.f32 %v4082, %v4110
        %4112 = vmatmul.f32.gmra.mxu0 %v4056
        %v4113 = vpop.f32.mrf.mxu0
        %v4114 = vadd.f32 %v4085, %v4113
        %4115 = vdwg.mxu0
        %4116 = vmatpush.msra.mxu0 %v3476
        %4117 = vmatpush.msra.mxu0 %v3474
        %4118 = vmatpush.msra.mxu0 %v3472
        %4119 = vmatpush.msra.mxu0 %v3470
        %4120 = vmatpush.msra.mxu0 %v3468
        %4121 = vmatpush.msra.mxu0 %v3466
        %4122 = vmatpush.msra.mxu0 %v3464
        %4123 = vmatpush.msra.mxu0 %v3462
        %4124 = vmatpush.msra.mxu0 %v3460
        %4125 = vmatpush.msra.mxu0 %v3458
        %4126 = vmatpush.msra.mxu0 %v3456
        %4127 = vmatpush.msra.mxu0 %v3454
        %4128 = vmatpush.msra.mxu0 %v3452
        %4129 = vmatpush.msra.mxu0 %v3450
        %4130 = vmatpush.msra.mxu0 %v3448
        %4131 = vmatpush.msra.mxu0 %v3446
        %4132 = vmatmul.f32.gmra.mxu0 %v3304
        %v4133 = vpop.f32.mrf.mxu0
        %v4134 = vadd.f32 0.0, %v4133
        %4135 = vmatmul.f32.gmra.mxu0 %v3308
        %v4136 = vpop.f32.mrf.mxu0
        %v4137 = vadd.f32 0.0, %v4136
        %4138 = vmatmul.f32.gmra.mxu0 %v3312
        %v4139 = vpop.f32.mrf.mxu0
        %v4140 = vadd.f32 0.0, %v4139
        %4141 = vmatmul.f32.gmra.mxu0 %v3316
        %v4142 = vpop.f32.mrf.mxu0
        %v4143 = vadd.f32 0.0, %v4142
        %4144 = vdwg.mxu0
        %4145 = vmatpush.msra.mxu0 0.0
        %4146 = vmatpush.msra.mxu0 0.0
        %4147 = vmatpush.msra.mxu0 %v3504
        %4148 = vmatpush.msra.mxu0 %v3502
        %4149 = vmatpush.msra.mxu0 %v3500
        %4150 = vmatpush.msra.mxu0 %v3498
        %4151 = vmatpush.msra.mxu0 %v3496
        %4152 = vmatpush.msra.mxu0 %v3494
        %4153 = vmatpush.msra.mxu0 %v3492
        %4154 = vmatpush.msra.mxu0 %v3490
        %4155 = vmatpush.msra.mxu0 %v3488
        %4156 = vmatpush.msra.mxu0 %v3486
        %4157 = vmatpush.msra.mxu0 %v3484
        %4158 = vmatpush.msra.mxu0 %v3482
        %4159 = vmatpush.msra.mxu0 %v3480
        %4160 = vmatpush.msra.mxu0 %v3478
        %4161 = vmatmul.f32.gmra.mxu0 %v3699
        %v4162 = vpop.f32.mrf.mxu0
        %v4163 = vadd.f32 %v4134, %v4162
        %4164 = vmatmul.f32.gmra.mxu0 %v3702
        %v4165 = vpop.f32.mrf.mxu0
        %v4166 = vadd.f32 %v4137, %v4165
        %4167 = vmatmul.f32.gmra.mxu0 %v3705
        %v4168 = vpop.f32.mrf.mxu0
        %v4169 = vadd.f32 %v4140, %v4168
        %4170 = vmatmul.f32.gmra.mxu0 %v4056
        %v4171 = vpop.f32.mrf.mxu0
        %v4172 = vadd.f32 %v4143, %v4171
        %4173 = vdwg.mxu0
        %4174 = vmatpush.msra.mxu0 %v3354
        %4175 = vmatpush.msra.mxu0 %v3352
        %4176 = vmatpush.msra.mxu0 %v3350
        %4177 = vmatpush.msra.mxu0 %v3348
        %4178 = vmatpush.msra.mxu0 %v3346
        %4179 = vmatpush.msra.mxu0 %v3344
        %4180 = vmatpush.msra.mxu0 %v3342
        %4181 = vmatpush.msra.mxu0 %v3340
        %4182 = vmatpush.msra.mxu0 %v3338
        %4183 = vmatpush.msra.mxu0 %v3336
        %4184 = vmatpush.msra.mxu0 %v3334
        %4185 = vmatpush.msra.mxu0 %v3332
        %4186 = vmatpush.msra.mxu0 %v3330
        %4187 = vmatpush.msra.mxu0 %v3328
        %4188 = vmatpush.msra.mxu0 %v3326
        %4189 = vmatpush.msra.mxu0 %v3324
        %4190 = vmatmul.f32.gmra.mxu0 %v3302
        %v4191 = vpop.f32.mrf.mxu0
        %v4192 = vadd.f32 %v4105, %v4191
        %4193 = vmatmul.f32.gmra.mxu0 %v3306
        %v4194 = vpop.f32.mrf.mxu0
        %v4195 = vadd.f32 %v4108, %v4194
        %4196 = vmatmul.f32.gmra.mxu0 %v3310
        %v4197 = vpop.f32.mrf.mxu0
        %v4198 = vadd.f32 %v4111, %v4197
        %4199 = vmatmul.f32.gmra.mxu0 %v3314
        %v4200 = vpop.f32.mrf.mxu0
        %v4201 = vadd.f32 %v4114, %v4200
        %4202 = vdwg.mxu0
        %4203 = vmatpush.msra.mxu0 0.0
        %4204 = vmatpush.msra.mxu0 0.0
        %4205 = vmatpush.msra.mxu0 %v3382
        %4206 = vmatpush.msra.mxu0 %v3380
        %4207 = vmatpush.msra.mxu0 %v3378
        %4208 = vmatpush.msra.mxu0 %v3376
        %4209 = vmatpush.msra.mxu0 %v3374
        %4210 = vmatpush.msra.mxu0 %v3372
        %4211 = vmatpush.msra.mxu0 %v3370
        %4212 = vmatpush.msra.mxu0 %v3368
        %4213 = vmatpush.msra.mxu0 %v3366
        %4214 = vmatpush.msra.mxu0 %v3364
        %4215 = vmatpush.msra.mxu0 %v3362
        %4216 = vmatpush.msra.mxu0 %v3360
        %4217 = vmatpush.msra.mxu0 %v3358
        %4218 = vmatpush.msra.mxu0 %v3356
        %4219 = vmatmul.f32.gmra.mxu0 %v3568
        %v4220 = vpop.f32.mrf.mxu0
        %v4221 = vadd.f32 %v4192, %v4220
        %4222 = vmatmul.f32.gmra.mxu0 %v3571
        %v4223 = vpop.f32.mrf.mxu0
        %v4224 = vadd.f32 %v4195, %v4223
        %4225 = vmatmul.f32.gmra.mxu0 %v3574
        %v4226 = vpop.f32.mrf.mxu0
        %v4227 = vadd.f32 %v4198, %v4226
        %4228 = vmatmul.f32.gmra.mxu0 %v3577
        %v4229 = vpop.f32.mrf.mxu0
        %v4230 = vadd.f32 %v4201, %v4229
        %4231 = vdwg.mxu0
        %4232 = vmatpush.msra.mxu0 %v3355
        %4233 = vmatpush.msra.mxu0 %v3353
        %4234 = vmatpush.msra.mxu0 %v3351
        %4235 = vmatpush.msra.mxu0 %v3349
        %4236 = vmatpush.msra.mxu0 %v3347
        %4237 = vmatpush.msra.mxu0 %v3345
        %4238 = vmatpush.msra.mxu0 %v3343
        %4239 = vmatpush.msra.mxu0 %v3341
        %4240 = vmatpush.msra.mxu0 %v3339
        %4241 = vmatpush.msra.mxu0 %v3337
        %4242 = vmatpush.msra.mxu0 %v3335
        %4243 = vmatpush.msra.mxu0 %v3333
        %4244 = vmatpush.msra.mxu0 %v3331
        %4245 = vmatpush.msra.mxu0 %v3329
        %4246 = vmatpush.msra.mxu0 %v3327
        %4247 = vmatpush.msra.mxu0 %v3325
        %4248 = vmatmul.f32.gmra.mxu0 %v3302
        %v4249 = vpop.f32.mrf.mxu0
        %v4250 = vadd.f32 %v4163, %v4249
        %4251 = vmatmul.f32.gmra.mxu0 %v3306
        %v4252 = vpop.f32.mrf.mxu0
        %v4253 = vadd.f32 %v4166, %v4252
        %4254 = vmatmul.f32.gmra.mxu0 %v3310
        %v4255 = vpop.f32.mrf.mxu0
        %v4256 = vadd.f32 %v4169, %v4255
        %4257 = vmatmul.f32.gmra.mxu0 %v3314
        %v4258 = vpop.f32.mrf.mxu0
        %v4259 = vadd.f32 %v4172, %v4258
        %4260 = vdwg.mxu0
        %4261 = vmatpush.msra.mxu0 0.0
        %4262 = vmatpush.msra.mxu0 0.0
        %4263 = vmatpush.msra.mxu0 %v3383
        %4264 = vmatpush.msra.mxu0 %v3381
        %4265 = vmatpush.msra.mxu0 %v3379
        %4266 = vmatpush.msra.mxu0 %v3377
        %4267 = vmatpush.msra.mxu0 %v3375
        %4268 = vmatpush.msra.mxu0 %v3373
        %4269 = vmatpush.msra.mxu0 %v3371
        %4270 = vmatpush.msra.mxu0 %v3369
        %4271 = vmatpush.msra.mxu0 %v3367
        %4272 = vmatpush.msra.mxu0 %v3365
        %4273 = vmatpush.msra.mxu0 %v3363
        %4274 = vmatpush.msra.mxu0 %v3361
        %4275 = vmatpush.msra.mxu0 %v3359
        %4276 = vmatpush.msra.mxu0 %v3357
        %4277 = vmatmul.f32.gmra.mxu0 %v3568
        %v4278 = vpop.f32.mrf.mxu0
        %v4279 = vadd.f32 %v4250, %v4278
        %4280 = vmatmul.f32.gmra.mxu0 %v3571
        %v4281 = vpop.f32.mrf.mxu0
        %v4282 = vadd.f32 %v4253, %v4281
        %4283 = vmatmul.f32.gmra.mxu0 %v3574
        %v4284 = vpop.f32.mrf.mxu0
        %v4285 = vadd.f32 %v4256, %v4284
        %4286 = vmatmul.f32.gmra.mxu0 %v3577
        %v4287 = vpop.f32.mrf.mxu0
        %v4288 = vadd.f32 %v4259, %v4287
        %4289 = vdwg.mxu0
        %4290 = vmatpush.msra.mxu0 %v3536
        %4291 = vmatpush.msra.mxu0 %v3534
        %4292 = vmatpush.msra.mxu0 %v3532
        %4293 = vmatpush.msra.mxu0 %v3530
        %4294 = vmatpush.msra.mxu0 %v3528
        %4295 = vmatpush.msra.mxu0 %v3526
        %4296 = vmatpush.msra.mxu0 %v3524
        %4297 = vmatpush.msra.mxu0 %v3522
        %4298 = vmatpush.msra.mxu0 %v3520
        %4299 = vmatpush.msra.mxu0 %v3518
        %4300 = vmatpush.msra.mxu0 %v3516
        %4301 = vmatpush.msra.mxu0 %v3514
        %4302 = vmatpush.msra.mxu0 %v3512
        %4303 = vmatpush.msra.mxu0 %v3510
        %4304 = vmatpush.msra.mxu0 %v3508
        %4305 = vmatpush.msra.mxu0 %v3506
        %4306 = vmatmul.f32.gmra.mxu0 %v3304
        %v4307 = vpop.f32.mrf.mxu0
        %v4308 = vadd.f32 0.0, %v4307
        %4309 = vmatmul.f32.gmra.mxu0 %v3308
        %v4310 = vpop.f32.mrf.mxu0
        %v4311 = vadd.f32 0.0, %v4310
        %4312 = vmatmul.f32.gmra.mxu0 %v3312
        %v4313 = vpop.f32.mrf.mxu0
        %v4314 = vadd.f32 0.0, %v4313
        %4315 = vmatmul.f32.gmra.mxu0 %v3316
        %v4316 = vpop.f32.mrf.mxu0
        %v4317 = vadd.f32 0.0, %v4316
        %4318 = vdwg.mxu0
        %4319 = vmatpush.msra.mxu0 0.0
        %4320 = vmatpush.msra.mxu0 0.0
        %4321 = vmatpush.msra.mxu0 %v3564
        %4322 = vmatpush.msra.mxu0 %v3562
        %4323 = vmatpush.msra.mxu0 %v3560
        %4324 = vmatpush.msra.mxu0 %v3558
        %4325 = vmatpush.msra.mxu0 %v3556
        %4326 = vmatpush.msra.mxu0 %v3554
        %4327 = vmatpush.msra.mxu0 %v3552
        %4328 = vmatpush.msra.mxu0 %v3550
        %4329 = vmatpush.msra.mxu0 %v3548
        %4330 = vmatpush.msra.mxu0 %v3546
        %4331 = vmatpush.msra.mxu0 %v3544
        %4332 = vmatpush.msra.mxu0 %v3542
        %4333 = vmatpush.msra.mxu0 %v3540
        %4334 = vmatpush.msra.mxu0 %v3538
        %4335 = vmatmul.f32.gmra.mxu0 %v3699
        %v4336 = vpop.f32.mrf.mxu0
        %v4337 = vadd.f32 %v4308, %v4336
        %4338 = vmatmul.f32.gmra.mxu0 %v3702
        %v4339 = vpop.f32.mrf.mxu0
        %v4340 = vadd.f32 %v4311, %v4339
        %4341 = vmatmul.f32.gmra.mxu0 %v3705
        %v4342 = vpop.f32.mrf.mxu0
        %v4343 = vadd.f32 %v4314, %v4342
        %4344 = vmatmul.f32.gmra.mxu0 %v4056
        %v4345 = vpop.f32.mrf.mxu0
        %v4346 = vadd.f32 %v4317, %v4345
        %4347 = vdwg.mxu0
        %4348 = vmatpush.msra.mxu0 %v3537
        %4349 = vmatpush.msra.mxu0 %v3535
        %4350 = vmatpush.msra.mxu0 %v3533
        %4351 = vmatpush.msra.mxu0 %v3531
        %4352 = vmatpush.msra.mxu0 %v3529
        %4353 = vmatpush.msra.mxu0 %v3527
        %4354 = vmatpush.msra.mxu0 %v3525
        %4355 = vmatpush.msra.mxu0 %v3523
        %4356 = vmatpush.msra.mxu0 %v3521
        %4357 = vmatpush.msra.mxu0 %v3519
        %4358 = vmatpush.msra.mxu0 %v3517
        %4359 = vmatpush.msra.mxu0 %v3515
        %4360 = vmatpush.msra.mxu0 %v3513
        %4361 = vmatpush.msra.mxu0 %v3511
        %4362 = vmatpush.msra.mxu0 %v3509
        %4363 = vmatpush.msra.mxu0 %v3507
        %4364 = vmatmul.f32.gmra.mxu0 %v3304
        %v4365 = vpop.f32.mrf.mxu0
        %v4366 = vadd.f32 0.0, %v4365
        %4367 = vmatmul.f32.gmra.mxu0 %v3308
        %v4368 = vpop.f32.mrf.mxu0
        %v4369 = vadd.f32 0.0, %v4368
        %4370 = vmatmul.f32.gmra.mxu0 %v3312
        %v4371 = vpop.f32.mrf.mxu0
        %v4372 = vadd.f32 0.0, %v4371
        %4373 = vmatmul.f32.gmra.mxu0 %v3316
        %v4374 = vpop.f32.mrf.mxu0
        %v4375 = vadd.f32 0.0, %v4374
        %4376 = vdwg.mxu0
        %4377 = vmatpush.msra.mxu0 0.0
        %4378 = vmatpush.msra.mxu0 0.0
        %4379 = vmatpush.msra.mxu0 %v3565
        %4380 = vmatpush.msra.mxu0 %v3563
        %4381 = vmatpush.msra.mxu0 %v3561
        %4382 = vmatpush.msra.mxu0 %v3559
        %4383 = vmatpush.msra.mxu0 %v3557
        %4384 = vmatpush.msra.mxu0 %v3555
        %4385 = vmatpush.msra.mxu0 %v3553
        %4386 = vmatpush.msra.mxu0 %v3551
        %4387 = vmatpush.msra.mxu0 %v3549
        %4388 = vmatpush.msra.mxu0 %v3547
        %4389 = vmatpush.msra.mxu0 %v3545
        %4390 = vmatpush.msra.mxu0 %v3543
        %4391 = vmatpush.msra.mxu0 %v3541
        %4392 = vmatpush.msra.mxu0 %v3539
        %4393 = vmatmul.f32.gmra.mxu0 %v3699
        %v4394 = vpop.f32.mrf.mxu0
        %v4395 = vadd.f32 %v4366, %v4394
        %4396 = vmatmul.f32.gmra.mxu0 %v3702
        %v4397 = vpop.f32.mrf.mxu0
        %v4398 = vadd.f32 %v4369, %v4397
        %4399 = vmatmul.f32.gmra.mxu0 %v3705
        %v4400 = vpop.f32.mrf.mxu0
        %v4401 = vadd.f32 %v4372, %v4400
        %4402 = vmatmul.f32.gmra.mxu0 %v4056
        %v4403 = vpop.f32.mrf.mxu0
        %v4404 = vadd.f32 %v4375, %v4403
        %4405 = vdwg.mxu0
        %4406 = vmatpush.msra.mxu0 %v3414
        %4407 = vmatpush.msra.mxu0 %v3412
        %4408 = vmatpush.msra.mxu0 %v3410
        %4409 = vmatpush.msra.mxu0 %v3408
        %4410 = vmatpush.msra.mxu0 %v3406
        %4411 = vmatpush.msra.mxu0 %v3404
        %4412 = vmatpush.msra.mxu0 %v3402
        %4413 = vmatpush.msra.mxu0 %v3400
        %4414 = vmatpush.msra.mxu0 %v3398
        %4415 = vmatpush.msra.mxu0 %v3396
        %4416 = vmatpush.msra.mxu0 %v3394
        %4417 = vmatpush.msra.mxu0 %v3392
        %4418 = vmatpush.msra.mxu0 %v3390
        %4419 = vmatpush.msra.mxu0 %v3388
        %4420 = vmatpush.msra.mxu0 %v3386
        %4421 = vmatpush.msra.mxu0 %v3384
        %4422 = vmatmul.f32.gmra.mxu0 %v3302
        %v4423 = vpop.f32.mrf.mxu0
        %v4424 = vadd.f32 %v4337, %v4423
        %4425 = vmatmul.f32.gmra.mxu0 %v3306
        %v4426 = vpop.f32.mrf.mxu0
        %v4427 = vadd.f32 %v4340, %v4426
        %4428 = vmatmul.f32.gmra.mxu0 %v3310
        %v4429 = vpop.f32.mrf.mxu0
        %v4430 = vadd.f32 %v4343, %v4429
        %4431 = vmatmul.f32.gmra.mxu0 %v3314
        %v4432 = vpop.f32.mrf.mxu0
        %v4433 = vadd.f32 %v4346, %v4432
        %4434 = vdwg.mxu0
        %4435 = vmatpush.msra.mxu0 0.0
        %4436 = vmatpush.msra.mxu0 0.0
        %4437 = vmatpush.msra.mxu0 %v3442
        %4438 = vmatpush.msra.mxu0 %v3440
        %4439 = vmatpush.msra.mxu0 %v3438
        %4440 = vmatpush.msra.mxu0 %v3436
        %4441 = vmatpush.msra.mxu0 %v3434
        %4442 = vmatpush.msra.mxu0 %v3432
        %4443 = vmatpush.msra.mxu0 %v3430
        %4444 = vmatpush.msra.mxu0 %v3428
        %4445 = vmatpush.msra.mxu0 %v3426
        %4446 = vmatpush.msra.mxu0 %v3424
        %4447 = vmatpush.msra.mxu0 %v3422
        %4448 = vmatpush.msra.mxu0 %v3420
        %4449 = vmatpush.msra.mxu0 %v3418
        %4450 = vmatpush.msra.mxu0 %v3416
        %4451 = vmatmul.f32.gmra.mxu0 %v3568
        %v4452 = vpop.f32.mrf.mxu0
        %v4453 = vadd.f32 %v4424, %v4452
        %4454 = vmatmul.f32.gmra.mxu0 %v3571
        %v4455 = vpop.f32.mrf.mxu0
        %v4456 = vadd.f32 %v4427, %v4455
        %4457 = vmatmul.f32.gmra.mxu0 %v3574
        %v4458 = vpop.f32.mrf.mxu0
        %v4459 = vadd.f32 %v4430, %v4458
        %4460 = vmatmul.f32.gmra.mxu0 %v3577
        %v4461 = vpop.f32.mrf.mxu0
        %v4462 = vadd.f32 %v4433, %v4461
        %4463 = vdwg.mxu0
        %4464 = vmatpush.msra.mxu0 %v3415
        %4465 = vmatpush.msra.mxu0 %v3413
        %4466 = vmatpush.msra.mxu0 %v3411
        %4467 = vmatpush.msra.mxu0 %v3409
        %4468 = vmatpush.msra.mxu0 %v3407
        %4469 = vmatpush.msra.mxu0 %v3405
        %4470 = vmatpush.msra.mxu0 %v3403
        %4471 = vmatpush.msra.mxu0 %v3401
        %4472 = vmatpush.msra.mxu0 %v3399
        %4473 = vmatpush.msra.mxu0 %v3397
        %4474 = vmatpush.msra.mxu0 %v3395
        %4475 = vmatpush.msra.mxu0 %v3393
        %4476 = vmatpush.msra.mxu0 %v3391
        %4477 = vmatpush.msra.mxu0 %v3389
        %4478 = vmatpush.msra.mxu0 %v3387
        %4479 = vmatpush.msra.mxu0 %v3385
        %4480 = vmatmul.f32.gmra.mxu0 %v3302
        %v4481 = vpop.f32.mrf.mxu0
        %v4482 = vadd.f32 %v4395, %v4481
        %4483 = vmatmul.f32.gmra.mxu0 %v3306
        %v4484 = vpop.f32.mrf.mxu0
        %v4485 = vadd.f32 %v4398, %v4484
        %4486 = vmatmul.f32.gmra.mxu0 %v3310
        %v4487 = vpop.f32.mrf.mxu0
        %v4488 = vadd.f32 %v4401, %v4487
        %4489 = vmatmul.f32.gmra.mxu0 %v3314
        %v4490 = vpop.f32.mrf.mxu0
        %v4491 = vadd.f32 %v4404, %v4490
        %4492 = vdwg.mxu0
        %4493 = vmatpush.msra.mxu0 0.0
        %4494 = vmatpush.msra.mxu0 0.0
        %4495 = vmatpush.msra.mxu0 %v3443
        %4496 = vmatpush.msra.mxu0 %v3441
        %4497 = vmatpush.msra.mxu0 %v3439
        %4498 = vmatpush.msra.mxu0 %v3437
        %4499 = vmatpush.msra.mxu0 %v3435
        %4500 = vmatpush.msra.mxu0 %v3433
        %4501 = vmatpush.msra.mxu0 %v3431
        %4502 = vmatpush.msra.mxu0 %v3429
        %4503 = vmatpush.msra.mxu0 %v3427
        %4504 = vmatpush.msra.mxu0 %v3425
        %4505 = vmatpush.msra.mxu0 %v3423
        %4506 = vmatpush.msra.mxu0 %v3421
        %4507 = vmatpush.msra.mxu0 %v3419
        %4508 = vmatpush.msra.mxu0 %v3417
        %4509 = vmatmul.f32.gmra.mxu0 %v3568
        %v4510 = vpop.f32.mrf.mxu0
        %v4511 = vadd.f32 %v4482, %v4510
        %4512 = vmatmul.f32.gmra.mxu0 %v3571
        %v4513 = vpop.f32.mrf.mxu0
        %v4514 = vadd.f32 %v4485, %v4513
        %4515 = vmatmul.f32.gmra.mxu0 %v3574
        %v4516 = vpop.f32.mrf.mxu0
        %v4517 = vadd.f32 %v4488, %v4516
        %4518 = vmatmul.f32.gmra.mxu0 %v3577
        %v4519 = vpop.f32.mrf.mxu0
        %v4520 = vadd.f32 %v4491, %v4519
        %4521 = vdwg.mxu0
        %s4522 = scalar_lea.vmem %s4, 960
        %v4523 = vld [vmem:[%s4522] sm:$0xff]
        %v4524 = vld [vmem:[%s4522 + $0x8] sm:$0xff]
        %v4525 = vld [vmem:[%s4522 + $0x10] sm:$0xff]
        %v4526 = vld [vmem:[%s4522 + $0x18] sm:$0xff]
        %v4527 = vld [vmem:[%s4522 + $0x20] sm:$0xff]
        %v4528 = vld [vmem:[%s4522 + $0x28] sm:$0xff]
        %v4529 = vld [vmem:[%s4522 + $0x30] sm:$0xff]
        %v4530 = vld [vmem:[%s4522 + $0x38] sm:$0xff]
        %v4531 = vld [vmem:[%s4522 + $0x40] sm:$0xff]
        %v4532 = vld [vmem:[%s4522 + $0x48] sm:$0xff]
        %v4533 = vld [vmem:[%s4522 + $0x50] sm:$0xff]
        %v4534 = vld [vmem:[%s4522 + $0x58] sm:$0xff]
        %v4535 = vld [vmem:[%s4522 + $0x60] sm:$0xff]
        %v4536 = vld [vmem:[%s4522 + $0x68] sm:$0xff]
        %v4537 = vld [vmem:[%s4522 + $0x70] sm:$0xff]
        %v4538 = vld [vmem:[%s4522 + $0x78] sm:$0xff]
        %v4539 = vld [vmem:[%s4522 + $0x80] sm:$0xff]
        %v4540 = vld [vmem:[%s4522 + $0x88] sm:$0xff]
        %v4541 = vld [vmem:[%s4522 + $0x90] sm:$0xff]
        %v4542 = vld [vmem:[%s4522 + $0x98] sm:$0xff]
        %v4543 = vld [vmem:[%s4522 + $0xa0] sm:$0xff]
        %v4544 = vld [vmem:[%s4522 + $0xa8] sm:$0xff]
        %v4545 = vld [vmem:[%s4522 + $0xb0] sm:$0xff]
        %v4546 = vld [vmem:[%s4522 + $0xb8] sm:$0xff]
        %v4547 = vld [vmem:[%s4522 + $0xc0] sm:$0xff]
        %v4548 = vld [vmem:[%s4522 + $0xc8] sm:$0xff]
        %v4549 = vld [vmem:[%s4522 + $0xd0] sm:$0xff]
        %v4550 = vld [vmem:[%s4522 + $0xd8] sm:$0xff]
        %v4551 = vld [vmem:[%s4522 + $0xe0] sm:$0xff]
        %v4552 = vld [vmem:[%s4522 + $0xe8] sm:$0xff]
        %v4553 = vld [vmem:[%s4522 + $0xf0] sm:$0xff]
        %v4554 = vld [vmem:[%s4522 + $0xf8] sm:$0xff]
        %v4555 = vld [vmem:[%s4522 + $0x100] sm:$0xff]
        %v4556 = vld [vmem:[%s4522 + $0x108] sm:$0xff]
        %v4557 = vld [vmem:[%s4522 + $0x110] sm:$0xff]
        %v4558 = vld [vmem:[%s4522 + $0x118] sm:$0xff]
        %v4559 = vld [vmem:[%s4522 + $0x120] sm:$0xff]
        %v4560 = vld [vmem:[%s4522 + $0x128] sm:$0xff]
        %v4561 = vld [vmem:[%s4522 + $0x130] sm:$0xff]
        %v4562 = vld [vmem:[%s4522 + $0x138] sm:$0xff]
        %v4563 = vld [vmem:[%s4522 + $0x140] sm:$0xff]
        %v4564 = vld [vmem:[%s4522 + $0x148] sm:$0xff]
        %v4565 = vld [vmem:[%s4522 + $0x150] sm:$0xff]
        %v4566 = vld [vmem:[%s4522 + $0x158] sm:$0xff]
        %v4567 = vld [vmem:[%s4522 + $0x160] sm:$0xff]
        %v4568 = vld [vmem:[%s4522 + $0x168] sm:$0xff]
        %v4569 = vld [vmem:[%s4522 + $0x170] sm:$0xff]
        %v4570 = vld [vmem:[%s4522 + $0x178] sm:$0xff]
        %v4571 = vld [vmem:[%s4522 + $0x180] sm:$0xff]
        %v4572 = vld [vmem:[%s4522 + $0x188] sm:$0xff]
        %v4573 = vld [vmem:[%s4522 + $0x190] sm:$0xff]
        %v4574 = vld [vmem:[%s4522 + $0x198] sm:$0xff]
        %v4575 = vld [vmem:[%s4522 + $0x1a0] sm:$0xff]
        %v4576 = vld [vmem:[%s4522 + $0x1a8] sm:$0xff]
        %v4577 = vld [vmem:[%s4522 + $0x1b0] sm:$0xff]
        %v4578 = vld [vmem:[%s4522 + $0x1b8] sm:$0xff]
        %v4579 = vld [vmem:[%s4522 + $0x1c0] sm:$0xff]
        %v4580 = vld [vmem:[%s4522 + $0x1c8] sm:$0xff]
        %v4581 = vld [vmem:[%s4522 + $0x1d0] sm:$0xff]
        %v4582 = vld [vmem:[%s4522 + $0x1d8] sm:$0xff]
        %s4583 = scalar_lea.vmem %s5, 960
        %v4584 = vld [vmem:[%s4583] sm:$0xff]
        %v4585 = vld [vmem:[%s4583 + $0x8] sm:$0xff]
        %v4586 = vld [vmem:[%s4583 + $0x10] sm:$0xff]
        %v4587 = vld [vmem:[%s4583 + $0x18] sm:$0xff]
        %v4588 = vld [vmem:[%s4583 + $0x20] sm:$0xff]
        %v4589 = vld [vmem:[%s4583 + $0x28] sm:$0xff]
        %v4590 = vld [vmem:[%s4583 + $0x30] sm:$0xff]
        %v4591 = vld [vmem:[%s4583 + $0x38] sm:$0xff]
        %v4592 = vld [vmem:[%s4583 + $0x40] sm:$0xff]
        %v4593 = vld [vmem:[%s4583 + $0x48] sm:$0xff]
        %v4594 = vld [vmem:[%s4583 + $0x50] sm:$0xff]
        %v4595 = vld [vmem:[%s4583 + $0x58] sm:$0xff]
        %v4596 = vld [vmem:[%s4583 + $0x60] sm:$0xff]
        %v4597 = vld [vmem:[%s4583 + $0x68] sm:$0xff]
        %v4598 = vld [vmem:[%s4583 + $0x70] sm:$0xff]
        %v4599 = vld [vmem:[%s4583 + $0x78] sm:$0xff]
        %v4600 = vld [vmem:[%s4583 + $0x80] sm:$0xff]
        %v4601 = vld [vmem:[%s4583 + $0x88] sm:$0xff]
        %v4602 = vld [vmem:[%s4583 + $0x90] sm:$0xff]
        %v4603 = vld [vmem:[%s4583 + $0x98] sm:$0xff]
        %v4604 = vld [vmem:[%s4583 + $0xa0] sm:$0xff]
        %v4605 = vld [vmem:[%s4583 + $0xa8] sm:$0xff]
        %v4606 = vld [vmem:[%s4583 + $0xb0] sm:$0xff]
        %v4607 = vld [vmem:[%s4583 + $0xb8] sm:$0xff]
        %v4608 = vld [vmem:[%s4583 + $0xc0] sm:$0xff]
        %v4609 = vld [vmem:[%s4583 + $0xc8] sm:$0xff]
        %v4610 = vld [vmem:[%s4583 + $0xd0] sm:$0xff]
        %v4611 = vld [vmem:[%s4583 + $0xd8] sm:$0xff]
        %v4612 = vld [vmem:[%s4583 + $0xe0] sm:$0xff]
        %v4613 = vld [vmem:[%s4583 + $0xe8] sm:$0xff]
        %v4614 = vld [vmem:[%s4583 + $0xf0] sm:$0xff]
        %v4615 = vld [vmem:[%s4583 + $0xf8] sm:$0xff]
        %v4616 = vld [vmem:[%s4583 + $0x100] sm:$0xff]
        %v4617 = vld [vmem:[%s4583 + $0x108] sm:$0xff]
        %v4618 = vld [vmem:[%s4583 + $0x110] sm:$0xff]
        %v4619 = vld [vmem:[%s4583 + $0x118] sm:$0xff]
        %v4620 = vld [vmem:[%s4583 + $0x120] sm:$0xff]
        %v4621 = vld [vmem:[%s4583 + $0x128] sm:$0xff]
        %v4622 = vld [vmem:[%s4583 + $0x130] sm:$0xff]
        %v4623 = vld [vmem:[%s4583 + $0x138] sm:$0xff]
        %v4624 = vld [vmem:[%s4583 + $0x140] sm:$0xff]
        %v4625 = vld [vmem:[%s4583 + $0x148] sm:$0xff]
        %v4626 = vld [vmem:[%s4583 + $0x150] sm:$0xff]
        %v4627 = vld [vmem:[%s4583 + $0x158] sm:$0xff]
        %v4628 = vld [vmem:[%s4583 + $0x160] sm:$0xff]
        %v4629 = vld [vmem:[%s4583 + $0x168] sm:$0xff]
        %v4630 = vld [vmem:[%s4583 + $0x170] sm:$0xff]
        %v4631 = vld [vmem:[%s4583 + $0x178] sm:$0xff]
        %v4632 = vld [vmem:[%s4583 + $0x180] sm:$0xff]
        %v4633 = vld [vmem:[%s4583 + $0x188] sm:$0xff]
        %v4634 = vld [vmem:[%s4583 + $0x190] sm:$0xff]
        %v4635 = vld [vmem:[%s4583 + $0x198] sm:$0xff]
        %v4636 = vld [vmem:[%s4583 + $0x1a0] sm:$0xff]
        %v4637 = vld [vmem:[%s4583 + $0x1a8] sm:$0xff]
        %v4638 = vld [vmem:[%s4583 + $0x1b0] sm:$0xff]
        %v4639 = vld [vmem:[%s4583 + $0x1b8] sm:$0xff]
        %v4640 = vld [vmem:[%s4583 + $0x1c0] sm:$0xff]
        %v4641 = vld [vmem:[%s4583 + $0x1c8] sm:$0xff]
        %v4642 = vld [vmem:[%s4583 + $0x1d0] sm:$0xff]
        %v4643 = vld [vmem:[%s4583 + $0x1d8] sm:$0xff]
        %4644 = vmatpush.msra.mxu0 %v4553
        %4645 = vmatpush.msra.mxu0 %v4551
        %4646 = vmatpush.msra.mxu0 %v4549
        %4647 = vmatpush.msra.mxu0 %v4547
        %4648 = vmatpush.msra.mxu0 %v4545
        %4649 = vmatpush.msra.mxu0 %v4543
        %4650 = vmatpush.msra.mxu0 %v4541
        %4651 = vmatpush.msra.mxu0 %v4539
        %4652 = vmatpush.msra.mxu0 %v4537
        %4653 = vmatpush.msra.mxu0 %v4535
        %4654 = vmatpush.msra.mxu0 %v4533
        %4655 = vmatpush.msra.mxu0 %v4531
        %4656 = vmatpush.msra.mxu0 %v4529
        %4657 = vmatpush.msra.mxu0 %v4527
        %4658 = vmatpush.msra.mxu0 %v4525
        %4659 = vmatpush.msra.mxu0 %v4523
        %4660 = vmatmul.f32.gmra.mxu0 %v3304
        %v4661 = vpop.f32.mrf.mxu0
        %v4662 = vadd.f32 0.0, %v4661
        %4663 = vmatmul.f32.gmra.mxu0 %v3308
        %v4664 = vpop.f32.mrf.mxu0
        %v4665 = vadd.f32 0.0, %v4664
        %4666 = vmatmul.f32.gmra.mxu0 %v3312
        %v4667 = vpop.f32.mrf.mxu0
        %v4668 = vadd.f32 0.0, %v4667
        %4669 = vmatmul.f32.gmra.mxu0 %v3316
        %v4670 = vpop.f32.mrf.mxu0
        %v4671 = vadd.f32 0.0, %v4670
        %4672 = vdwg.mxu0
        %4673 = vmatpush.msra.mxu0 0.0
        %4674 = vmatpush.msra.mxu0 0.0
        %4675 = vmatpush.msra.mxu0 %v4581
        %4676 = vmatpush.msra.mxu0 %v4579
        %4677 = vmatpush.msra.mxu0 %v4577
        %4678 = vmatpush.msra.mxu0 %v4575
        %4679 = vmatpush.msra.mxu0 %v4573
        %4680 = vmatpush.msra.mxu0 %v4571
        %4681 = vmatpush.msra.mxu0 %v4569
        %4682 = vmatpush.msra.mxu0 %v4567
        %4683 = vmatpush.msra.mxu0 %v4565
        %4684 = vmatpush.msra.mxu0 %v4563
        %4685 = vmatpush.msra.mxu0 %v4561
        %4686 = vmatpush.msra.mxu0 %v4559
        %4687 = vmatpush.msra.mxu0 %v4557
        %4688 = vmatpush.msra.mxu0 %v4555
        %4689 = vmatmul.f32.gmra.mxu0 %v3699
        %v4690 = vpop.f32.mrf.mxu0
        %v4691 = vadd.f32 %v4662, %v4690
        %4692 = vmatmul.f32.gmra.mxu0 %v3702
        %v4693 = vpop.f32.mrf.mxu0
        %v4694 = vadd.f32 %v4665, %v4693
        %4695 = vmatmul.f32.gmra.mxu0 %v3705
        %v4696 = vpop.f32.mrf.mxu0
        %v4697 = vadd.f32 %v4668, %v4696
        %4698 = vmatmul.f32.gmra.mxu0 %v4056
        %v4699 = vpop.f32.mrf.mxu0
        %v4700 = vadd.f32 %v4671, %v4699
        %4701 = vdwg.mxu0
        %4702 = vmatpush.msra.mxu0 %v4554
        %4703 = vmatpush.msra.mxu0 %v4552
        %4704 = vmatpush.msra.mxu0 %v4550
        %4705 = vmatpush.msra.mxu0 %v4548
        %4706 = vmatpush.msra.mxu0 %v4546
        %4707 = vmatpush.msra.mxu0 %v4544
        %4708 = vmatpush.msra.mxu0 %v4542
        %4709 = vmatpush.msra.mxu0 %v4540
        %4710 = vmatpush.msra.mxu0 %v4538
        %4711 = vmatpush.msra.mxu0 %v4536
        %4712 = vmatpush.msra.mxu0 %v4534
        %4713 = vmatpush.msra.mxu0 %v4532
        %4714 = vmatpush.msra.mxu0 %v4530
        %4715 = vmatpush.msra.mxu0 %v4528
        %4716 = vmatpush.msra.mxu0 %v4526
        %4717 = vmatpush.msra.mxu0 %v4524
        %4718 = vmatmul.f32.gmra.mxu0 %v3304
        %v4719 = vpop.f32.mrf.mxu0
        %v4720 = vadd.f32 0.0, %v4719
        %4721 = vmatmul.f32.gmra.mxu0 %v3308
        %v4722 = vpop.f32.mrf.mxu0
        %v4723 = vadd.f32 0.0, %v4722
        %4724 = vmatmul.f32.gmra.mxu0 %v3312
        %v4725 = vpop.f32.mrf.mxu0
        %v4726 = vadd.f32 0.0, %v4725
        %4727 = vmatmul.f32.gmra.mxu0 %v3316
        %v4728 = vpop.f32.mrf.mxu0
        %v4729 = vadd.f32 0.0, %v4728
        %4730 = vdwg.mxu0
        %4731 = vmatpush.msra.mxu0 0.0
        %4732 = vmatpush.msra.mxu0 0.0
        %4733 = vmatpush.msra.mxu0 %v4582
        %4734 = vmatpush.msra.mxu0 %v4580
        %4735 = vmatpush.msra.mxu0 %v4578
        %4736 = vmatpush.msra.mxu0 %v4576
        %4737 = vmatpush.msra.mxu0 %v4574
        %4738 = vmatpush.msra.mxu0 %v4572
        %4739 = vmatpush.msra.mxu0 %v4570
        %4740 = vmatpush.msra.mxu0 %v4568
        %4741 = vmatpush.msra.mxu0 %v4566
        %4742 = vmatpush.msra.mxu0 %v4564
        %4743 = vmatpush.msra.mxu0 %v4562
        %4744 = vmatpush.msra.mxu0 %v4560
        %4745 = vmatpush.msra.mxu0 %v4558
        %4746 = vmatpush.msra.mxu0 %v4556
        %4747 = vmatmul.f32.gmra.mxu0 %v3699
        %v4748 = vpop.f32.mrf.mxu0
        %v4749 = vadd.f32 %v4720, %v4748
        %4750 = vmatmul.f32.gmra.mxu0 %v3702
        %v4751 = vpop.f32.mrf.mxu0
        %v4752 = vadd.f32 %v4723, %v4751
        %4753 = vmatmul.f32.gmra.mxu0 %v3705
        %v4754 = vpop.f32.mrf.mxu0
        %v4755 = vadd.f32 %v4726, %v4754
        %4756 = vmatmul.f32.gmra.mxu0 %v4056
        %v4757 = vpop.f32.mrf.mxu0
        %v4758 = vadd.f32 %v4729, %v4757
        %4759 = vdwg.mxu0
        %v4760 = vadd.f32 %v3754, %v4691
        %v4761 = vadd.f32 %v3812, %v4749
        %v4762 = vadd.f32 %v3757, %v4694
        %v4763 = vadd.f32 %v3815, %v4752
        %v4764 = vadd.f32 %v3760, %v4697
        %v4765 = vadd.f32 %v3818, %v4755
        %v4766 = vadd.f32 %v3763, %v4700
        %v4767 = vadd.f32 %v3821, %v4758
        %4768 = vmatpush.msra.mxu0 %v4614
        %4769 = vmatpush.msra.mxu0 %v4612
        %4770 = vmatpush.msra.mxu0 %v4610
        %4771 = vmatpush.msra.mxu0 %v4608
        %4772 = vmatpush.msra.mxu0 %v4606
        %4773 = vmatpush.msra.mxu0 %v4604
        %4774 = vmatpush.msra.mxu0 %v4602
        %4775 = vmatpush.msra.mxu0 %v4600
        %4776 = vmatpush.msra.mxu0 %v4598
        %4777 = vmatpush.msra.mxu0 %v4596
        %4778 = vmatpush.msra.mxu0 %v4594
        %4779 = vmatpush.msra.mxu0 %v4592
        %4780 = vmatpush.msra.mxu0 %v4590
        %4781 = vmatpush.msra.mxu0 %v4588
        %4782 = vmatpush.msra.mxu0 %v4586
        %4783 = vmatpush.msra.mxu0 %v4584
        %4784 = vmatmul.f32.gmra.mxu0 %v3304
        %v4785 = vpop.f32.mrf.mxu0
        %v4786 = vadd.f32 0.0, %v4785
        %4787 = vmatmul.f32.gmra.mxu0 %v3308
        %v4788 = vpop.f32.mrf.mxu0
        %v4789 = vadd.f32 0.0, %v4788
        %4790 = vmatmul.f32.gmra.mxu0 %v3312
        %v4791 = vpop.f32.mrf.mxu0
        %v4792 = vadd.f32 0.0, %v4791
        %4793 = vmatmul.f32.gmra.mxu0 %v3316
        %v4794 = vpop.f32.mrf.mxu0
        %v4795 = vadd.f32 0.0, %v4794
        %4796 = vdwg.mxu0
        %4797 = vmatpush.msra.mxu0 0.0
        %4798 = vmatpush.msra.mxu0 0.0
        %4799 = vmatpush.msra.mxu0 %v4642
        %4800 = vmatpush.msra.mxu0 %v4640
        %4801 = vmatpush.msra.mxu0 %v4638
        %4802 = vmatpush.msra.mxu0 %v4636
        %4803 = vmatpush.msra.mxu0 %v4634
        %4804 = vmatpush.msra.mxu0 %v4632
        %4805 = vmatpush.msra.mxu0 %v4630
        %4806 = vmatpush.msra.mxu0 %v4628
        %4807 = vmatpush.msra.mxu0 %v4626
        %4808 = vmatpush.msra.mxu0 %v4624
        %4809 = vmatpush.msra.mxu0 %v4622
        %4810 = vmatpush.msra.mxu0 %v4620
        %4811 = vmatpush.msra.mxu0 %v4618
        %4812 = vmatpush.msra.mxu0 %v4616
        %4813 = vmatmul.f32.gmra.mxu0 %v3699
        %v4814 = vpop.f32.mrf.mxu0
        %v4815 = vadd.f32 %v4786, %v4814
        %4816 = vmatmul.f32.gmra.mxu0 %v3702
        %v4817 = vpop.f32.mrf.mxu0
        %v4818 = vadd.f32 %v4789, %v4817
        %4819 = vmatmul.f32.gmra.mxu0 %v3705
        %v4820 = vpop.f32.mrf.mxu0
        %v4821 = vadd.f32 %v4792, %v4820
        %4822 = vmatmul.f32.gmra.mxu0 %v4056
        %v4823 = vpop.f32.mrf.mxu0
        %v4824 = vadd.f32 %v4795, %v4823
        %4825 = vdwg.mxu0
        %4826 = vmatpush.msra.mxu0 %v4615
        %4827 = vmatpush.msra.mxu0 %v4613
        %4828 = vmatpush.msra.mxu0 %v4611
        %4829 = vmatpush.msra.mxu0 %v4609
        %4830 = vmatpush.msra.mxu0 %v4607
        %4831 = vmatpush.msra.mxu0 %v4605
        %4832 = vmatpush.msra.mxu0 %v4603
        %4833 = vmatpush.msra.mxu0 %v4601
        %4834 = vmatpush.msra.mxu0 %v4599
        %4835 = vmatpush.msra.mxu0 %v4597
        %4836 = vmatpush.msra.mxu0 %v4595
        %4837 = vmatpush.msra.mxu0 %v4593
        %4838 = vmatpush.msra.mxu0 %v4591
        %4839 = vmatpush.msra.mxu0 %v4589
        %4840 = vmatpush.msra.mxu0 %v4587
        %4841 = vmatpush.msra.mxu0 %v4585
        %4842 = vmatmul.f32.gmra.mxu0 %v3304
        %v4843 = vpop.f32.mrf.mxu0
        %v4844 = vadd.f32 0.0, %v4843
        %4845 = vmatmul.f32.gmra.mxu0 %v3308
        %v4846 = vpop.f32.mrf.mxu0
        %v4847 = vadd.f32 0.0, %v4846
        %4848 = vmatmul.f32.gmra.mxu0 %v3312
        %v4849 = vpop.f32.mrf.mxu0
        %v4850 = vadd.f32 0.0, %v4849
        %4851 = vmatmul.f32.gmra.mxu0 %v3316
        %v4852 = vpop.f32.mrf.mxu0
        %v4853 = vadd.f32 0.0, %v4852
        %4854 = vdwg.mxu0
        %4855 = vmatpush.msra.mxu0 0.0
        %4856 = vmatpush.msra.mxu0 0.0
        %4857 = vmatpush.msra.mxu0 %v4643
        %4858 = vmatpush.msra.mxu0 %v4641
        %4859 = vmatpush.msra.mxu0 %v4639
        %4860 = vmatpush.msra.mxu0 %v4637
        %4861 = vmatpush.msra.mxu0 %v4635
        %4862 = vmatpush.msra.mxu0 %v4633
        %4863 = vmatpush.msra.mxu0 %v4631
        %4864 = vmatpush.msra.mxu0 %v4629
        %4865 = vmatpush.msra.mxu0 %v4627
        %4866 = vmatpush.msra.mxu0 %v4625
        %4867 = vmatpush.msra.mxu0 %v4623
        %4868 = vmatpush.msra.mxu0 %v4621
        %4869 = vmatpush.msra.mxu0 %v4619
        %4870 = vmatpush.msra.mxu0 %v4617
        %4871 = vmatmul.f32.gmra.mxu0 %v3699
        %v4872 = vpop.f32.mrf.mxu0
        %v4873 = vadd.f32 %v4844, %v4872
        %4874 = vmatmul.f32.gmra.mxu0 %v3702
        %v4875 = vpop.f32.mrf.mxu0
        %v4876 = vadd.f32 %v4847, %v4875
        %4877 = vmatmul.f32.gmra.mxu0 %v3705
        %v4878 = vpop.f32.mrf.mxu0
        %v4879 = vadd.f32 %v4850, %v4878
        %4880 = vmatmul.f32.gmra.mxu0 %v4056
        %v4881 = vpop.f32.mrf.mxu0
        %v4882 = vadd.f32 %v4853, %v4881
        %4883 = vdwg.mxu0
        %v4884 = vadd.f32 %v3986, %v4815
        %v4885 = vadd.f32 %v4044, %v4873
        %v4886 = vadd.f32 %v3989, %v4818
        %v4887 = vadd.f32 %v4047, %v4876
        %v4888 = vadd.f32 %v3992, %v4821
        %v4889 = vadd.f32 %v4050, %v4879
        %v4890 = vadd.f32 %v3995, %v4824
        %v4891 = vadd.f32 %v4053, %v4882
        %v4893 = vsel %vm3566, %v3319, 0
        %4895 = vmatpush.msra.mxu0 %v4553
        %4896 = vmatpush.msra.mxu0 %v4551
        %4897 = vmatpush.msra.mxu0 %v4549
        %4898 = vmatpush.msra.mxu0 %v4547
        %4899 = vmatpush.msra.mxu0 %v4545
        %4900 = vmatpush.msra.mxu0 %v4543
        %4901 = vmatpush.msra.mxu0 %v4541
        %4902 = vmatpush.msra.mxu0 %v4539
        %4903 = vmatpush.msra.mxu0 %v4537
        %4904 = vmatpush.msra.mxu0 %v4535
        %4905 = vmatpush.msra.mxu0 %v4533
        %4906 = vmatpush.msra.mxu0 %v4531
        %4907 = vmatpush.msra.mxu0 %v4529
        %4908 = vmatpush.msra.mxu0 %v4527
        %4909 = vmatpush.msra.mxu0 %v4525
        %4910 = vmatpush.msra.mxu0 %v4523
        %4911 = vmatmul.f32.gmra.mxu0 %v3306
        %v4912 = vpop.f32.mrf.mxu0
        %v4913 = vadd.f32 0.0, %v4912
        %4914 = vmatmul.f32.gmra.mxu0 %v3310
        %v4915 = vpop.f32.mrf.mxu0
        %v4916 = vadd.f32 0.0, %v4915
        %4917 = vmatmul.f32.gmra.mxu0 %v3314
        %v4918 = vpop.f32.mrf.mxu0
        %v4919 = vadd.f32 0.0, %v4918
        %4920 = vmatmul.f32.gmra.mxu0 %v3318
        %v4921 = vpop.f32.mrf.mxu0
        %v4922 = vadd.f32 0.0, %v4921
        %4923 = vdwg.mxu0
        %4924 = vmatpush.msra.mxu0 0.0
        %4925 = vmatpush.msra.mxu0 0.0
        %4926 = vmatpush.msra.mxu0 %v4581
        %4927 = vmatpush.msra.mxu0 %v4579
        %4928 = vmatpush.msra.mxu0 %v4577
        %4929 = vmatpush.msra.mxu0 %v4575
        %4930 = vmatpush.msra.mxu0 %v4573
        %4931 = vmatpush.msra.mxu0 %v4571
        %4932 = vmatpush.msra.mxu0 %v4569
        %4933 = vmatpush.msra.mxu0 %v4567
        %4934 = vmatpush.msra.mxu0 %v4565
        %4935 = vmatpush.msra.mxu0 %v4563
        %4936 = vmatpush.msra.mxu0 %v4561
        %4937 = vmatpush.msra.mxu0 %v4559
        %4938 = vmatpush.msra.mxu0 %v4557
        %4939 = vmatpush.msra.mxu0 %v4555
        %4940 = vmatmul.f32.gmra.mxu0 %v3571
        %v4941 = vpop.f32.mrf.mxu0
        %v4942 = vadd.f32 %v4913, %v4941
        %4943 = vmatmul.f32.gmra.mxu0 %v3574
        %v4944 = vpop.f32.mrf.mxu0
        %v4945 = vadd.f32 %v4916, %v4944
        %4946 = vmatmul.f32.gmra.mxu0 %v3577
        %v4947 = vpop.f32.mrf.mxu0
        %v4948 = vadd.f32 %v4919, %v4947
        %4949 = vmatmul.f32.gmra.mxu0 %v4893
        %v4950 = vpop.f32.mrf.mxu0
        %v4951 = vadd.f32 %v4922, %v4950
        %4952 = vdwg.mxu0
        %4953 = vmatpush.msra.mxu0 %v4554
        %4954 = vmatpush.msra.mxu0 %v4552
        %4955 = vmatpush.msra.mxu0 %v4550
        %4956 = vmatpush.msra.mxu0 %v4548
        %4957 = vmatpush.msra.mxu0 %v4546
        %4958 = vmatpush.msra.mxu0 %v4544
        %4959 = vmatpush.msra.mxu0 %v4542
        %4960 = vmatpush.msra.mxu0 %v4540
        %4961 = vmatpush.msra.mxu0 %v4538
        %4962 = vmatpush.msra.mxu0 %v4536
        %4963 = vmatpush.msra.mxu0 %v4534
        %4964 = vmatpush.msra.mxu0 %v4532
        %4965 = vmatpush.msra.mxu0 %v4530
        %4966 = vmatpush.msra.mxu0 %v4528
        %4967 = vmatpush.msra.mxu0 %v4526
        %4968 = vmatpush.msra.mxu0 %v4524
        %4969 = vmatmul.f32.gmra.mxu0 %v3306
        %v4970 = vpop.f32.mrf.mxu0
        %v4971 = vadd.f32 0.0, %v4970
        %4972 = vmatmul.f32.gmra.mxu0 %v3310
        %v4973 = vpop.f32.mrf.mxu0
        %v4974 = vadd.f32 0.0, %v4973
        %4975 = vmatmul.f32.gmra.mxu0 %v3314
        %v4976 = vpop.f32.mrf.mxu0
        %v4977 = vadd.f32 0.0, %v4976
        %4978 = vmatmul.f32.gmra.mxu0 %v3318
        %v4979 = vpop.f32.mrf.mxu0
        %v4980 = vadd.f32 0.0, %v4979
        %4981 = vdwg.mxu0
        %4982 = vmatpush.msra.mxu0 0.0
        %4983 = vmatpush.msra.mxu0 0.0
        %4984 = vmatpush.msra.mxu0 %v4582
        %4985 = vmatpush.msra.mxu0 %v4580
        %4986 = vmatpush.msra.mxu0 %v4578
        %4987 = vmatpush.msra.mxu0 %v4576
        %4988 = vmatpush.msra.mxu0 %v4574
        %4989 = vmatpush.msra.mxu0 %v4572
        %4990 = vmatpush.msra.mxu0 %v4570
        %4991 = vmatpush.msra.mxu0 %v4568
        %4992 = vmatpush.msra.mxu0 %v4566
        %4993 = vmatpush.msra.mxu0 %v4564
        %4994 = vmatpush.msra.mxu0 %v4562
        %4995 = vmatpush.msra.mxu0 %v4560
        %4996 = vmatpush.msra.mxu0 %v4558
        %4997 = vmatpush.msra.mxu0 %v4556
        %4998 = vmatmul.f32.gmra.mxu0 %v3571
        %v4999 = vpop.f32.mrf.mxu0
        %v5000 = vadd.f32 %v4971, %v4999
        %5001 = vmatmul.f32.gmra.mxu0 %v3574
        %v5002 = vpop.f32.mrf.mxu0
        %v5003 = vadd.f32 %v4974, %v5002
        %5004 = vmatmul.f32.gmra.mxu0 %v3577
        %v5005 = vpop.f32.mrf.mxu0
        %v5006 = vadd.f32 %v4977, %v5005
        %5007 = vmatmul.f32.gmra.mxu0 %v4893
        %v5008 = vpop.f32.mrf.mxu0
        %v5009 = vadd.f32 %v4980, %v5008
        %5010 = vdwg.mxu0
        %v5011 = vadd.f32 %v4221, %v4942
        %v5012 = vadd.f32 %v4279, %v5000
        %v5013 = vadd.f32 %v4224, %v4945
        %v5014 = vadd.f32 %v4282, %v5003
        %v5015 = vadd.f32 %v4227, %v4948
        %v5016 = vadd.f32 %v4285, %v5006
        %v5017 = vadd.f32 %v4230, %v4951
        %v5018 = vadd.f32 %v4288, %v5009
        %5019 = vmatpush.msra.mxu0 %v4614
        %5020 = vmatpush.msra.mxu0 %v4612
        %5021 = vmatpush.msra.mxu0 %v4610
        %5022 = vmatpush.msra.mxu0 %v4608
        %5023 = vmatpush.msra.mxu0 %v4606
        %5024 = vmatpush.msra.mxu0 %v4604
        %5025 = vmatpush.msra.mxu0 %v4602
        %5026 = vmatpush.msra.mxu0 %v4600
        %5027 = vmatpush.msra.mxu0 %v4598
        %5028 = vmatpush.msra.mxu0 %v4596
        %5029 = vmatpush.msra.mxu0 %v4594
        %5030 = vmatpush.msra.mxu0 %v4592
        %5031 = vmatpush.msra.mxu0 %v4590
        %5032 = vmatpush.msra.mxu0 %v4588
        %5033 = vmatpush.msra.mxu0 %v4586
        %5034 = vmatpush.msra.mxu0 %v4584
        %5035 = vmatmul.f32.gmra.mxu0 %v3306
        %v5036 = vpop.f32.mrf.mxu0
        %v5037 = vadd.f32 0.0, %v5036
        %5038 = vmatmul.f32.gmra.mxu0 %v3310
        %v5039 = vpop.f32.mrf.mxu0
        %v5040 = vadd.f32 0.0, %v5039
        %5041 = vmatmul.f32.gmra.mxu0 %v3314
        %v5042 = vpop.f32.mrf.mxu0
        %v5043 = vadd.f32 0.0, %v5042
        %5044 = vmatmul.f32.gmra.mxu0 %v3318
        %v5045 = vpop.f32.mrf.mxu0
        %v5046 = vadd.f32 0.0, %v5045
        %5047 = vdwg.mxu0
        %5048 = vmatpush.msra.mxu0 0.0
        %5049 = vmatpush.msra.mxu0 0.0
        %5050 = vmatpush.msra.mxu0 %v4642
        %5051 = vmatpush.msra.mxu0 %v4640
        %5052 = vmatpush.msra.mxu0 %v4638
        %5053 = vmatpush.msra.mxu0 %v4636
        %5054 = vmatpush.msra.mxu0 %v4634
        %5055 = vmatpush.msra.mxu0 %v4632
        %5056 = vmatpush.msra.mxu0 %v4630
        %5057 = vmatpush.msra.mxu0 %v4628
        %5058 = vmatpush.msra.mxu0 %v4626
        %5059 = vmatpush.msra.mxu0 %v4624
        %5060 = vmatpush.msra.mxu0 %v4622
        %5061 = vmatpush.msra.mxu0 %v4620
        %5062 = vmatpush.msra.mxu0 %v4618
        %5063 = vmatpush.msra.mxu0 %v4616
        %5064 = vmatmul.f32.gmra.mxu0 %v3571
        %v5065 = vpop.f32.mrf.mxu0
        %v5066 = vadd.f32 %v5037, %v5065
        %5067 = vmatmul.f32.gmra.mxu0 %v3574
        %v5068 = vpop.f32.mrf.mxu0
        %v5069 = vadd.f32 %v5040, %v5068
        %5070 = vmatmul.f32.gmra.mxu0 %v3577
        %v5071 = vpop.f32.mrf.mxu0
        %v5072 = vadd.f32 %v5043, %v5071
        %5073 = vmatmul.f32.gmra.mxu0 %v4893
        %v5074 = vpop.f32.mrf.mxu0
        %v5075 = vadd.f32 %v5046, %v5074
        %5076 = vdwg.mxu0
        %5077 = vmatpush.msra.mxu0 %v4615
        %5078 = vmatpush.msra.mxu0 %v4613
        %5079 = vmatpush.msra.mxu0 %v4611
        %5080 = vmatpush.msra.mxu0 %v4609
        %5081 = vmatpush.msra.mxu0 %v4607
        %5082 = vmatpush.msra.mxu0 %v4605
        %5083 = vmatpush.msra.mxu0 %v4603
        %5084 = vmatpush.msra.mxu0 %v4601
        %5085 = vmatpush.msra.mxu0 %v4599
        %5086 = vmatpush.msra.mxu0 %v4597
        %5087 = vmatpush.msra.mxu0 %v4595
        %5088 = vmatpush.msra.mxu0 %v4593
        %5089 = vmatpush.msra.mxu0 %v4591
        %5090 = vmatpush.msra.mxu0 %v4589
        %5091 = vmatpush.msra.mxu0 %v4587
        %5092 = vmatpush.msra.mxu0 %v4585
        %5093 = vmatmul.f32.gmra.mxu0 %v3306
        %v5094 = vpop.f32.mrf.mxu0
        %v5095 = vadd.f32 0.0, %v5094
        %5096 = vmatmul.f32.gmra.mxu0 %v3310
        %v5097 = vpop.f32.mrf.mxu0
        %v5098 = vadd.f32 0.0, %v5097
        %5099 = vmatmul.f32.gmra.mxu0 %v3314
        %v5100 = vpop.f32.mrf.mxu0
        %v5101 = vadd.f32 0.0, %v5100
        %5102 = vmatmul.f32.gmra.mxu0 %v3318
        %v5103 = vpop.f32.mrf.mxu0
        %v5104 = vadd.f32 0.0, %v5103
        %5105 = vdwg.mxu0
        %5106 = vmatpush.msra.mxu0 0.0
        %5107 = vmatpush.msra.mxu0 0.0
        %5108 = vmatpush.msra.mxu0 %v4643
        %5109 = vmatpush.msra.mxu0 %v4641
        %5110 = vmatpush.msra.mxu0 %v4639
        %5111 = vmatpush.msra.mxu0 %v4637
        %5112 = vmatpush.msra.mxu0 %v4635
        %5113 = vmatpush.msra.mxu0 %v4633
        %5114 = vmatpush.msra.mxu0 %v4631
        %5115 = vmatpush.msra.mxu0 %v4629
        %5116 = vmatpush.msra.mxu0 %v4627
        %5117 = vmatpush.msra.mxu0 %v4625
        %5118 = vmatpush.msra.mxu0 %v4623
        %5119 = vmatpush.msra.mxu0 %v4621
        %5120 = vmatpush.msra.mxu0 %v4619
        %5121 = vmatpush.msra.mxu0 %v4617
        %5122 = vmatmul.f32.gmra.mxu0 %v3571
        %v5123 = vpop.f32.mrf.mxu0
        %v5124 = vadd.f32 %v5095, %v5123
        %5125 = vmatmul.f32.gmra.mxu0 %v3574
        %v5126 = vpop.f32.mrf.mxu0
        %v5127 = vadd.f32 %v5098, %v5126
        %5128 = vmatmul.f32.gmra.mxu0 %v3577
        %v5129 = vpop.f32.mrf.mxu0
        %v5130 = vadd.f32 %v5101, %v5129
        %5131 = vmatmul.f32.gmra.mxu0 %v4893
        %v5132 = vpop.f32.mrf.mxu0
        %v5133 = vadd.f32 %v5104, %v5132
        %5134 = vdwg.mxu0
        %v5135 = vadd.f32 %v4453, %v5066
        %v5136 = vadd.f32 %v4511, %v5124
        %v5137 = vadd.f32 %v4456, %v5069
        %v5138 = vadd.f32 %v4514, %v5127
        %v5139 = vadd.f32 %v4459, %v5072
        %v5140 = vadd.f32 %v4517, %v5130
        %v5141 = vadd.f32 %v4462, %v5075
        %v5142 = vadd.f32 %v4520, %v5133
        %s5143 = scalar_lea.vmem %s4, 1440
        %v5144 = vld [vmem:[%s5143] sm:$0xff]
        %v5145 = vld [vmem:[%s5143 + $0x8] sm:$0xff]
        %v5146 = vld [vmem:[%s5143 + $0x10] sm:$0xff]
        %v5147 = vld [vmem:[%s5143 + $0x18] sm:$0xff]
        %v5148 = vld [vmem:[%s5143 + $0x20] sm:$0xff]
        %v5149 = vld [vmem:[%s5143 + $0x28] sm:$0xff]
        %v5150 = vld [vmem:[%s5143 + $0x30] sm:$0xff]
        %v5151 = vld [vmem:[%s5143 + $0x38] sm:$0xff]
        %v5152 = vld [vmem:[%s5143 + $0x40] sm:$0xff]
        %v5153 = vld [vmem:[%s5143 + $0x48] sm:$0xff]
        %v5154 = vld [vmem:[%s5143 + $0x50] sm:$0xff]
        %v5155 = vld [vmem:[%s5143 + $0x58] sm:$0xff]
        %v5156 = vld [vmem:[%s5143 + $0x60] sm:$0xff]
        %v5157 = vld [vmem:[%s5143 + $0x68] sm:$0xff]
        %v5158 = vld [vmem:[%s5143 + $0x70] sm:$0xff]
        %v5159 = vld [vmem:[%s5143 + $0x78] sm:$0xff]
        %v5160 = vld [vmem:[%s5143 + $0x80] sm:$0xff]
        %v5161 = vld [vmem:[%s5143 + $0x88] sm:$0xff]
        %v5162 = vld [vmem:[%s5143 + $0x90] sm:$0xff]
        %v5163 = vld [vmem:[%s5143 + $0x98] sm:$0xff]
        %v5164 = vld [vmem:[%s5143 + $0xa0] sm:$0xff]
        %v5165 = vld [vmem:[%s5143 + $0xa8] sm:$0xff]
        %v5166 = vld [vmem:[%s5143 + $0xb0] sm:$0xff]
        %v5167 = vld [vmem:[%s5143 + $0xb8] sm:$0xff]
        %v5168 = vld [vmem:[%s5143 + $0xc0] sm:$0xff]
        %v5169 = vld [vmem:[%s5143 + $0xc8] sm:$0xff]
        %v5170 = vld [vmem:[%s5143 + $0xd0] sm:$0xff]
        %v5171 = vld [vmem:[%s5143 + $0xd8] sm:$0xff]
        %v5172 = vld [vmem:[%s5143 + $0xe0] sm:$0xff]
        %v5173 = vld [vmem:[%s5143 + $0xe8] sm:$0xff]
        %v5174 = vld [vmem:[%s5143 + $0xf0] sm:$0xff]
        %v5175 = vld [vmem:[%s5143 + $0xf8] sm:$0xff]
        %v5176 = vld [vmem:[%s5143 + $0x100] sm:$0xff]
        %v5177 = vld [vmem:[%s5143 + $0x108] sm:$0xff]
        %v5178 = vld [vmem:[%s5143 + $0x110] sm:$0xff]
        %v5179 = vld [vmem:[%s5143 + $0x118] sm:$0xff]
        %v5180 = vld [vmem:[%s5143 + $0x120] sm:$0xff]
        %v5181 = vld [vmem:[%s5143 + $0x128] sm:$0xff]
        %v5182 = vld [vmem:[%s5143 + $0x130] sm:$0xff]
        %v5183 = vld [vmem:[%s5143 + $0x138] sm:$0xff]
        %v5184 = vld [vmem:[%s5143 + $0x140] sm:$0xff]
        %v5185 = vld [vmem:[%s5143 + $0x148] sm:$0xff]
        %v5186 = vld [vmem:[%s5143 + $0x150] sm:$0xff]
        %v5187 = vld [vmem:[%s5143 + $0x158] sm:$0xff]
        %v5188 = vld [vmem:[%s5143 + $0x160] sm:$0xff]
        %v5189 = vld [vmem:[%s5143 + $0x168] sm:$0xff]
        %v5190 = vld [vmem:[%s5143 + $0x170] sm:$0xff]
        %v5191 = vld [vmem:[%s5143 + $0x178] sm:$0xff]
        %v5192 = vld [vmem:[%s5143 + $0x180] sm:$0xff]
        %v5193 = vld [vmem:[%s5143 + $0x188] sm:$0xff]
        %v5194 = vld [vmem:[%s5143 + $0x190] sm:$0xff]
        %v5195 = vld [vmem:[%s5143 + $0x198] sm:$0xff]
        %v5196 = vld [vmem:[%s5143 + $0x1a0] sm:$0xff]
        %v5197 = vld [vmem:[%s5143 + $0x1a8] sm:$0xff]
        %v5198 = vld [vmem:[%s5143 + $0x1b0] sm:$0xff]
        %v5199 = vld [vmem:[%s5143 + $0x1b8] sm:$0xff]
        %v5200 = vld [vmem:[%s5143 + $0x1c0] sm:$0xff]
        %v5201 = vld [vmem:[%s5143 + $0x1c8] sm:$0xff]
        %v5202 = vld [vmem:[%s5143 + $0x1d0] sm:$0xff]
        %v5203 = vld [vmem:[%s5143 + $0x1d8] sm:$0xff]
        %s5204 = scalar_lea.vmem %s5, 1440
        %v5205 = vld [vmem:[%s5204] sm:$0xff]
        %v5206 = vld [vmem:[%s5204 + $0x8] sm:$0xff]
        %v5207 = vld [vmem:[%s5204 + $0x10] sm:$0xff]
        %v5208 = vld [vmem:[%s5204 + $0x18] sm:$0xff]
        %v5209 = vld [vmem:[%s5204 + $0x20] sm:$0xff]
        %v5210 = vld [vmem:[%s5204 + $0x28] sm:$0xff]
        %v5211 = vld [vmem:[%s5204 + $0x30] sm:$0xff]
        %v5212 = vld [vmem:[%s5204 + $0x38] sm:$0xff]
        %v5213 = vld [vmem:[%s5204 + $0x40] sm:$0xff]
        %v5214 = vld [vmem:[%s5204 + $0x48] sm:$0xff]
        %v5215 = vld [vmem:[%s5204 + $0x50] sm:$0xff]
        %v5216 = vld [vmem:[%s5204 + $0x58] sm:$0xff]
        %v5217 = vld [vmem:[%s5204 + $0x60] sm:$0xff]
        %v5218 = vld [vmem:[%s5204 + $0x68] sm:$0xff]
        %v5219 = vld [vmem:[%s5204 + $0x70] sm:$0xff]
        %v5220 = vld [vmem:[%s5204 + $0x78] sm:$0xff]
        %v5221 = vld [vmem:[%s5204 + $0x80] sm:$0xff]
        %v5222 = vld [vmem:[%s5204 + $0x88] sm:$0xff]
        %v5223 = vld [vmem:[%s5204 + $0x90] sm:$0xff]
        %v5224 = vld [vmem:[%s5204 + $0x98] sm:$0xff]
        %v5225 = vld [vmem:[%s5204 + $0xa0] sm:$0xff]
        %v5226 = vld [vmem:[%s5204 + $0xa8] sm:$0xff]
        %v5227 = vld [vmem:[%s5204 + $0xb0] sm:$0xff]
        %v5228 = vld [vmem:[%s5204 + $0xb8] sm:$0xff]
        %v5229 = vld [vmem:[%s5204 + $0xc0] sm:$0xff]
        %v5230 = vld [vmem:[%s5204 + $0xc8] sm:$0xff]
        %v5231 = vld [vmem:[%s5204 + $0xd0] sm:$0xff]
        %v5232 = vld [vmem:[%s5204 + $0xd8] sm:$0xff]
        %v5233 = vld [vmem:[%s5204 + $0xe0] sm:$0xff]
        %v5234 = vld [vmem:[%s5204 + $0xe8] sm:$0xff]
        %v5235 = vld [vmem:[%s5204 + $0xf0] sm:$0xff]
        %v5236 = vld [vmem:[%s5204 + $0xf8] sm:$0xff]
        %v5237 = vld [vmem:[%s5204 + $0x100] sm:$0xff]
        %v5238 = vld [vmem:[%s5204 + $0x108] sm:$0xff]
        %v5239 = vld [vmem:[%s5204 + $0x110] sm:$0xff]
        %v5240 = vld [vmem:[%s5204 + $0x118] sm:$0xff]
        %v5241 = vld [vmem:[%s5204 + $0x120] sm:$0xff]
        %v5242 = vld [vmem:[%s5204 + $0x128] sm:$0xff]
        %v5243 = vld [vmem:[%s5204 + $0x130] sm:$0xff]
        %v5244 = vld [vmem:[%s5204 + $0x138] sm:$0xff]
        %v5245 = vld [vmem:[%s5204 + $0x140] sm:$0xff]
        %v5246 = vld [vmem:[%s5204 + $0x148] sm:$0xff]
        %v5247 = vld [vmem:[%s5204 + $0x150] sm:$0xff]
        %v5248 = vld [vmem:[%s5204 + $0x158] sm:$0xff]
        %v5249 = vld [vmem:[%s5204 + $0x160] sm:$0xff]
        %v5250 = vld [vmem:[%s5204 + $0x168] sm:$0xff]
        %v5251 = vld [vmem:[%s5204 + $0x170] sm:$0xff]
        %v5252 = vld [vmem:[%s5204 + $0x178] sm:$0xff]
        %v5253 = vld [vmem:[%s5204 + $0x180] sm:$0xff]
        %v5254 = vld [vmem:[%s5204 + $0x188] sm:$0xff]
        %v5255 = vld [vmem:[%s5204 + $0x190] sm:$0xff]
        %v5256 = vld [vmem:[%s5204 + $0x198] sm:$0xff]
        %v5257 = vld [vmem:[%s5204 + $0x1a0] sm:$0xff]
        %v5258 = vld [vmem:[%s5204 + $0x1a8] sm:$0xff]
        %v5259 = vld [vmem:[%s5204 + $0x1b0] sm:$0xff]
        %v5260 = vld [vmem:[%s5204 + $0x1b8] sm:$0xff]
        %v5261 = vld [vmem:[%s5204 + $0x1c0] sm:$0xff]
        %v5262 = vld [vmem:[%s5204 + $0x1c8] sm:$0xff]
        %v5263 = vld [vmem:[%s5204 + $0x1d0] sm:$0xff]
        %v5264 = vld [vmem:[%s5204 + $0x1d8] sm:$0xff]
        %5265 = vmatpush.msra.mxu0 %v5174
        %5266 = vmatpush.msra.mxu0 %v5172
        %5267 = vmatpush.msra.mxu0 %v5170
        %5268 = vmatpush.msra.mxu0 %v5168
        %5269 = vmatpush.msra.mxu0 %v5166
        %5270 = vmatpush.msra.mxu0 %v5164
        %5271 = vmatpush.msra.mxu0 %v5162
        %5272 = vmatpush.msra.mxu0 %v5160
        %5273 = vmatpush.msra.mxu0 %v5158
        %5274 = vmatpush.msra.mxu0 %v5156
        %5275 = vmatpush.msra.mxu0 %v5154
        %5276 = vmatpush.msra.mxu0 %v5152
        %5277 = vmatpush.msra.mxu0 %v5150
        %5278 = vmatpush.msra.mxu0 %v5148
        %5279 = vmatpush.msra.mxu0 %v5146
        %5280 = vmatpush.msra.mxu0 %v5144
        %5281 = vmatmul.f32.gmra.mxu0 %v3306
        %v5282 = vpop.f32.mrf.mxu0
        %v5283 = vadd.f32 0.0, %v5282
        %5284 = vmatmul.f32.gmra.mxu0 %v3310
        %v5285 = vpop.f32.mrf.mxu0
        %v5286 = vadd.f32 0.0, %v5285
        %5287 = vmatmul.f32.gmra.mxu0 %v3314
        %v5288 = vpop.f32.mrf.mxu0
        %v5289 = vadd.f32 0.0, %v5288
        %5290 = vmatmul.f32.gmra.mxu0 %v3318
        %v5291 = vpop.f32.mrf.mxu0
        %v5292 = vadd.f32 0.0, %v5291
        %5293 = vdwg.mxu0
        %5294 = vmatpush.msra.mxu0 0.0
        %5295 = vmatpush.msra.mxu0 0.0
        %5296 = vmatpush.msra.mxu0 %v5202
        %5297 = vmatpush.msra.mxu0 %v5200
        %5298 = vmatpush.msra.mxu0 %v5198
        %5299 = vmatpush.msra.mxu0 %v5196
        %5300 = vmatpush.msra.mxu0 %v5194
        %5301 = vmatpush.msra.mxu0 %v5192
        %5302 = vmatpush.msra.mxu0 %v5190
        %5303 = vmatpush.msra.mxu0 %v5188
        %5304 = vmatpush.msra.mxu0 %v5186
        %5305 = vmatpush.msra.mxu0 %v5184
        %5306 = vmatpush.msra.mxu0 %v5182
        %5307 = vmatpush.msra.mxu0 %v5180
        %5308 = vmatpush.msra.mxu0 %v5178
        %5309 = vmatpush.msra.mxu0 %v5176
        %5310 = vmatmul.f32.gmra.mxu0 %v3571
        %v5311 = vpop.f32.mrf.mxu0
        %v5312 = vadd.f32 %v5283, %v5311
        %5313 = vmatmul.f32.gmra.mxu0 %v3574
        %v5314 = vpop.f32.mrf.mxu0
        %v5315 = vadd.f32 %v5286, %v5314
        %5316 = vmatmul.f32.gmra.mxu0 %v3577
        %v5317 = vpop.f32.mrf.mxu0
        %v5318 = vadd.f32 %v5289, %v5317
        %5319 = vmatmul.f32.gmra.mxu0 %v4893
        %v5320 = vpop.f32.mrf.mxu0
        %v5321 = vadd.f32 %v5292, %v5320
        %5322 = vdwg.mxu0
        %5323 = vmatpush.msra.mxu0 %v5175
        %5324 = vmatpush.msra.mxu0 %v5173
        %5325 = vmatpush.msra.mxu0 %v5171
        %5326 = vmatpush.msra.mxu0 %v5169
        %5327 = vmatpush.msra.mxu0 %v5167
        %5328 = vmatpush.msra.mxu0 %v5165
        %5329 = vmatpush.msra.mxu0 %v5163
        %5330 = vmatpush.msra.mxu0 %v5161
        %5331 = vmatpush.msra.mxu0 %v5159
        %5332 = vmatpush.msra.mxu0 %v5157
        %5333 = vmatpush.msra.mxu0 %v5155
        %5334 = vmatpush.msra.mxu0 %v5153
        %5335 = vmatpush.msra.mxu0 %v5151
        %5336 = vmatpush.msra.mxu0 %v5149
        %5337 = vmatpush.msra.mxu0 %v5147
        %5338 = vmatpush.msra.mxu0 %v5145
        %5339 = vmatmul.f32.gmra.mxu0 %v3306
        %v5340 = vpop.f32.mrf.mxu0
        %v5341 = vadd.f32 0.0, %v5340
        %5342 = vmatmul.f32.gmra.mxu0 %v3310
        %v5343 = vpop.f32.mrf.mxu0
        %v5344 = vadd.f32 0.0, %v5343
        %5345 = vmatmul.f32.gmra.mxu0 %v3314
        %v5346 = vpop.f32.mrf.mxu0
        %v5347 = vadd.f32 0.0, %v5346
        %5348 = vmatmul.f32.gmra.mxu0 %v3318
        %v5349 = vpop.f32.mrf.mxu0
        %v5350 = vadd.f32 0.0, %v5349
        %5351 = vdwg.mxu0
        %5352 = vmatpush.msra.mxu0 0.0
        %5353 = vmatpush.msra.mxu0 0.0
        %5354 = vmatpush.msra.mxu0 %v5203
        %5355 = vmatpush.msra.mxu0 %v5201
        %5356 = vmatpush.msra.mxu0 %v5199
        %5357 = vmatpush.msra.mxu0 %v5197
        %5358 = vmatpush.msra.mxu0 %v5195
        %5359 = vmatpush.msra.mxu0 %v5193
        %5360 = vmatpush.msra.mxu0 %v5191
        %5361 = vmatpush.msra.mxu0 %v5189
        %5362 = vmatpush.msra.mxu0 %v5187
        %5363 = vmatpush.msra.mxu0 %v5185
        %5364 = vmatpush.msra.mxu0 %v5183
        %5365 = vmatpush.msra.mxu0 %v5181
        %5366 = vmatpush.msra.mxu0 %v5179
        %5367 = vmatpush.msra.mxu0 %v5177
        %5368 = vmatmul.f32.gmra.mxu0 %v3571
        %v5369 = vpop.f32.mrf.mxu0
        %v5370 = vadd.f32 %v5341, %v5369
        %5371 = vmatmul.f32.gmra.mxu0 %v3574
        %v5372 = vpop.f32.mrf.mxu0
        %v5373 = vadd.f32 %v5344, %v5372
        %5374 = vmatmul.f32.gmra.mxu0 %v3577
        %v5375 = vpop.f32.mrf.mxu0
        %v5376 = vadd.f32 %v5347, %v5375
        %5377 = vmatmul.f32.gmra.mxu0 %v4893
        %v5378 = vpop.f32.mrf.mxu0
        %v5379 = vadd.f32 %v5350, %v5378
        %5380 = vdwg.mxu0
        %v5381 = vadd.f32 %v4760, %v5312
        %v5382 = vadd.f32 %v4761, %v5370
        %v5383 = vadd.f32 %v4762, %v5315
        %v5384 = vadd.f32 %v4763, %v5373
        %v5385 = vadd.f32 %v4764, %v5318
        %v5386 = vadd.f32 %v4765, %v5376
        %v5387 = vadd.f32 %v4766, %v5321
        %v5388 = vadd.f32 %v4767, %v5379
        %5389 = vmatpush.msra.mxu0 %v5235
        %5390 = vmatpush.msra.mxu0 %v5233
        %5391 = vmatpush.msra.mxu0 %v5231
        %5392 = vmatpush.msra.mxu0 %v5229
        %5393 = vmatpush.msra.mxu0 %v5227
        %5394 = vmatpush.msra.mxu0 %v5225
        %5395 = vmatpush.msra.mxu0 %v5223
        %5396 = vmatpush.msra.mxu0 %v5221
        %5397 = vmatpush.msra.mxu0 %v5219
        %5398 = vmatpush.msra.mxu0 %v5217
        %5399 = vmatpush.msra.mxu0 %v5215
        %5400 = vmatpush.msra.mxu0 %v5213
        %5401 = vmatpush.msra.mxu0 %v5211
        %5402 = vmatpush.msra.mxu0 %v5209
        %5403 = vmatpush.msra.mxu0 %v5207
        %5404 = vmatpush.msra.mxu0 %v5205
        %5405 = vmatmul.f32.gmra.mxu0 %v3306
        %v5406 = vpop.f32.mrf.mxu0
        %v5407 = vadd.f32 0.0, %v5406
        %5408 = vmatmul.f32.gmra.mxu0 %v3310
        %v5409 = vpop.f32.mrf.mxu0
        %v5410 = vadd.f32 0.0, %v5409
        %5411 = vmatmul.f32.gmra.mxu0 %v3314
        %v5412 = vpop.f32.mrf.mxu0
        %v5413 = vadd.f32 0.0, %v5412
        %5414 = vmatmul.f32.gmra.mxu0 %v3318
        %v5415 = vpop.f32.mrf.mxu0
        %v5416 = vadd.f32 0.0, %v5415
        %5417 = vdwg.mxu0
        %5418 = vmatpush.msra.mxu0 0.0
        %5419 = vmatpush.msra.mxu0 0.0
        %5420 = vmatpush.msra.mxu0 %v5263
        %5421 = vmatpush.msra.mxu0 %v5261
        %5422 = vmatpush.msra.mxu0 %v5259
        %5423 = vmatpush.msra.mxu0 %v5257
        %5424 = vmatpush.msra.mxu0 %v5255
        %5425 = vmatpush.msra.mxu0 %v5253
        %5426 = vmatpush.msra.mxu0 %v5251
        %5427 = vmatpush.msra.mxu0 %v5249
        %5428 = vmatpush.msra.mxu0 %v5247
        %5429 = vmatpush.msra.mxu0 %v5245
        %5430 = vmatpush.msra.mxu0 %v5243
        %5431 = vmatpush.msra.mxu0 %v5241
        %5432 = vmatpush.msra.mxu0 %v5239
        %5433 = vmatpush.msra.mxu0 %v5237
        %5434 = vmatmul.f32.gmra.mxu0 %v3571
        %v5435 = vpop.f32.mrf.mxu0
        %v5436 = vadd.f32 %v5407, %v5435
        %5437 = vmatmul.f32.gmra.mxu0 %v3574
        %v5438 = vpop.f32.mrf.mxu0
        %v5439 = vadd.f32 %v5410, %v5438
        %5440 = vmatmul.f32.gmra.mxu0 %v3577
        %v5441 = vpop.f32.mrf.mxu0
        %v5442 = vadd.f32 %v5413, %v5441
        %5443 = vmatmul.f32.gmra.mxu0 %v4893
        %v5444 = vpop.f32.mrf.mxu0
        %v5445 = vadd.f32 %v5416, %v5444
        %5446 = vdwg.mxu0
        %5447 = vmatpush.msra.mxu0 %v5236
        %5448 = vmatpush.msra.mxu0 %v5234
        %5449 = vmatpush.msra.mxu0 %v5232
        %5450 = vmatpush.msra.mxu0 %v5230
        %5451 = vmatpush.msra.mxu0 %v5228
        %5452 = vmatpush.msra.mxu0 %v5226
        %5453 = vmatpush.msra.mxu0 %v5224
        %5454 = vmatpush.msra.mxu0 %v5222
        %5455 = vmatpush.msra.mxu0 %v5220
        %5456 = vmatpush.msra.mxu0 %v5218
        %5457 = vmatpush.msra.mxu0 %v5216
        %5458 = vmatpush.msra.mxu0 %v5214
        %5459 = vmatpush.msra.mxu0 %v5212
        %5460 = vmatpush.msra.mxu0 %v5210
        %5461 = vmatpush.msra.mxu0 %v5208
        %5462 = vmatpush.msra.mxu0 %v5206
        %5463 = vmatmul.f32.gmra.mxu0 %v3306
        %v5464 = vpop.f32.mrf.mxu0
        %v5465 = vadd.f32 0.0, %v5464
        %5466 = vmatmul.f32.gmra.mxu0 %v3310
        %v5467 = vpop.f32.mrf.mxu0
        %v5468 = vadd.f32 0.0, %v5467
        %5469 = vmatmul.f32.gmra.mxu0 %v3314
        %v5470 = vpop.f32.mrf.mxu0
        %v5471 = vadd.f32 0.0, %v5470
        %5472 = vmatmul.f32.gmra.mxu0 %v3318
        %v5473 = vpop.f32.mrf.mxu0
        %v5474 = vadd.f32 0.0, %v5473
        %5475 = vdwg.mxu0
        %5476 = vmatpush.msra.mxu0 0.0
        %5477 = vmatpush.msra.mxu0 0.0
        %5478 = vmatpush.msra.mxu0 %v5264
        %5479 = vmatpush.msra.mxu0 %v5262
        %5480 = vmatpush.msra.mxu0 %v5260
        %5481 = vmatpush.msra.mxu0 %v5258
        %5482 = vmatpush.msra.mxu0 %v5256
        %5483 = vmatpush.msra.mxu0 %v5254
        %5484 = vmatpush.msra.mxu0 %v5252
        %5485 = vmatpush.msra.mxu0 %v5250
        %5486 = vmatpush.msra.mxu0 %v5248
        %5487 = vmatpush.msra.mxu0 %v5246
        %5488 = vmatpush.msra.mxu0 %v5244
        %5489 = vmatpush.msra.mxu0 %v5242
        %5490 = vmatpush.msra.mxu0 %v5240
        %5491 = vmatpush.msra.mxu0 %v5238
        %5492 = vmatmul.f32.gmra.mxu0 %v3571
        %v5493 = vpop.f32.mrf.mxu0
        %v5494 = vadd.f32 %v5465, %v5493
        %5495 = vmatmul.f32.gmra.mxu0 %v3574
        %v5496 = vpop.f32.mrf.mxu0
        %v5497 = vadd.f32 %v5468, %v5496
        %5498 = vmatmul.f32.gmra.mxu0 %v3577
        %v5499 = vpop.f32.mrf.mxu0
        %v5500 = vadd.f32 %v5471, %v5499
        %5501 = vmatmul.f32.gmra.mxu0 %v4893
        %v5502 = vpop.f32.mrf.mxu0
        %v5503 = vadd.f32 %v5474, %v5502
        %5504 = vdwg.mxu0
        %v5505 = vadd.f32 %v4884, %v5436
        %v5506 = vadd.f32 %v4885, %v5494
        %v5507 = vadd.f32 %v4886, %v5439
        %v5508 = vadd.f32 %v4887, %v5497
        %v5509 = vadd.f32 %v4888, %v5442
        %v5510 = vadd.f32 %v4889, %v5500
        %v5511 = vadd.f32 %v4890, %v5445
        %v5512 = vadd.f32 %v4891, %v5503
        %v5514 = vsel %vm3566, %v3321, 0
        %5516 = vmatpush.msra.mxu0 %v5174
        %5517 = vmatpush.msra.mxu0 %v5172
        %5518 = vmatpush.msra.mxu0 %v5170
        %5519 = vmatpush.msra.mxu0 %v5168
        %5520 = vmatpush.msra.mxu0 %v5166
        %5521 = vmatpush.msra.mxu0 %v5164
        %5522 = vmatpush.msra.mxu0 %v5162
        %5523 = vmatpush.msra.mxu0 %v5160
        %5524 = vmatpush.msra.mxu0 %v5158
        %5525 = vmatpush.msra.mxu0 %v5156
        %5526 = vmatpush.msra.mxu0 %v5154
        %5527 = vmatpush.msra.mxu0 %v5152
        %5528 = vmatpush.msra.mxu0 %v5150
        %5529 = vmatpush.msra.mxu0 %v5148
        %5530 = vmatpush.msra.mxu0 %v5146
        %5531 = vmatpush.msra.mxu0 %v5144
        %5532 = vmatmul.f32.gmra.mxu0 %v3308
        %v5533 = vpop.f32.mrf.mxu0
        %v5534 = vadd.f32 0.0, %v5533
        %5535 = vmatmul.f32.gmra.mxu0 %v3312
        %v5536 = vpop.f32.mrf.mxu0
        %v5537 = vadd.f32 0.0, %v5536
        %5538 = vmatmul.f32.gmra.mxu0 %v3316
        %v5539 = vpop.f32.mrf.mxu0
        %v5540 = vadd.f32 0.0, %v5539
        %5541 = vmatmul.f32.gmra.mxu0 %v3320
        %v5542 = vpop.f32.mrf.mxu0
        %v5543 = vadd.f32 0.0, %v5542
        %5544 = vdwg.mxu0
        %5545 = vmatpush.msra.mxu0 0.0
        %5546 = vmatpush.msra.mxu0 0.0
        %5547 = vmatpush.msra.mxu0 %v5202
        %5548 = vmatpush.msra.mxu0 %v5200
        %5549 = vmatpush.msra.mxu0 %v5198
        %5550 = vmatpush.msra.mxu0 %v5196
        %5551 = vmatpush.msra.mxu0 %v5194
        %5552 = vmatpush.msra.mxu0 %v5192
        %5553 = vmatpush.msra.mxu0 %v5190
        %5554 = vmatpush.msra.mxu0 %v5188
        %5555 = vmatpush.msra.mxu0 %v5186
        %5556 = vmatpush.msra.mxu0 %v5184
        %5557 = vmatpush.msra.mxu0 %v5182
        %5558 = vmatpush.msra.mxu0 %v5180
        %5559 = vmatpush.msra.mxu0 %v5178
        %5560 = vmatpush.msra.mxu0 %v5176
        %5561 = vmatmul.f32.gmra.mxu0 %v3702
        %v5562 = vpop.f32.mrf.mxu0
        %v5563 = vadd.f32 %v5534, %v5562
        %5564 = vmatmul.f32.gmra.mxu0 %v3705
        %v5565 = vpop.f32.mrf.mxu0
        %v5566 = vadd.f32 %v5537, %v5565
        %5567 = vmatmul.f32.gmra.mxu0 %v4056
        %v5568 = vpop.f32.mrf.mxu0
        %v5569 = vadd.f32 %v5540, %v5568
        %5570 = vmatmul.f32.gmra.mxu0 %v5514
        %v5571 = vpop.f32.mrf.mxu0
        %v5572 = vadd.f32 %v5543, %v5571
        %5573 = vdwg.mxu0
        %5574 = vmatpush.msra.mxu0 %v5175
        %5575 = vmatpush.msra.mxu0 %v5173
        %5576 = vmatpush.msra.mxu0 %v5171
        %5577 = vmatpush.msra.mxu0 %v5169
        %5578 = vmatpush.msra.mxu0 %v5167
        %5579 = vmatpush.msra.mxu0 %v5165
        %5580 = vmatpush.msra.mxu0 %v5163
        %5581 = vmatpush.msra.mxu0 %v5161
        %5582 = vmatpush.msra.mxu0 %v5159
        %5583 = vmatpush.msra.mxu0 %v5157
        %5584 = vmatpush.msra.mxu0 %v5155
        %5585 = vmatpush.msra.mxu0 %v5153
        %5586 = vmatpush.msra.mxu0 %v5151
        %5587 = vmatpush.msra.mxu0 %v5149
        %5588 = vmatpush.msra.mxu0 %v5147
        %5589 = vmatpush.msra.mxu0 %v5145
        %5590 = vmatmul.f32.gmra.mxu0 %v3308
        %v5591 = vpop.f32.mrf.mxu0
        %v5592 = vadd.f32 0.0, %v5591
        %5593 = vmatmul.f32.gmra.mxu0 %v3312
        %v5594 = vpop.f32.mrf.mxu0
        %v5595 = vadd.f32 0.0, %v5594
        %5596 = vmatmul.f32.gmra.mxu0 %v3316
        %v5597 = vpop.f32.mrf.mxu0
        %v5598 = vadd.f32 0.0, %v5597
        %5599 = vmatmul.f32.gmra.mxu0 %v3320
        %v5600 = vpop.f32.mrf.mxu0
        %v5601 = vadd.f32 0.0, %v5600
        %5602 = vdwg.mxu0
        %5603 = vmatpush.msra.mxu0 0.0
        %5604 = vmatpush.msra.mxu0 0.0
        %5605 = vmatpush.msra.mxu0 %v5203
        %5606 = vmatpush.msra.mxu0 %v5201
        %5607 = vmatpush.msra.mxu0 %v5199
        %5608 = vmatpush.msra.mxu0 %v5197
        %5609 = vmatpush.msra.mxu0 %v5195
        %5610 = vmatpush.msra.mxu0 %v5193
        %5611 = vmatpush.msra.mxu0 %v5191
        %5612 = vmatpush.msra.mxu0 %v5189
        %5613 = vmatpush.msra.mxu0 %v5187
        %5614 = vmatpush.msra.mxu0 %v5185
        %5615 = vmatpush.msra.mxu0 %v5183
        %5616 = vmatpush.msra.mxu0 %v5181
        %5617 = vmatpush.msra.mxu0 %v5179
        %5618 = vmatpush.msra.mxu0 %v5177
        %5619 = vmatmul.f32.gmra.mxu0 %v3702
        %v5620 = vpop.f32.mrf.mxu0
        %v5621 = vadd.f32 %v5592, %v5620
        %5622 = vmatmul.f32.gmra.mxu0 %v3705
        %v5623 = vpop.f32.mrf.mxu0
        %v5624 = vadd.f32 %v5595, %v5623
        %5625 = vmatmul.f32.gmra.mxu0 %v4056
        %v5626 = vpop.f32.mrf.mxu0
        %v5627 = vadd.f32 %v5598, %v5626
        %5628 = vmatmul.f32.gmra.mxu0 %v5514
        %v5629 = vpop.f32.mrf.mxu0
        %v5630 = vadd.f32 %v5601, %v5629
        %5631 = vdwg.mxu0
        %v5632 = vadd.f32 %v5011, %v5563
        %v5633 = vadd.f32 %v5012, %v5621
        %v5634 = vadd.f32 %v5013, %v5566
        %v5635 = vadd.f32 %v5014, %v5624
        %v5636 = vadd.f32 %v5015, %v5569
        %v5637 = vadd.f32 %v5016, %v5627
        %v5638 = vadd.f32 %v5017, %v5572
        %v5639 = vadd.f32 %v5018, %v5630
        %5640 = vmatpush.msra.mxu0 %v5235
        %5641 = vmatpush.msra.mxu0 %v5233
        %5642 = vmatpush.msra.mxu0 %v5231
        %5643 = vmatpush.msra.mxu0 %v5229
        %5644 = vmatpush.msra.mxu0 %v5227
        %5645 = vmatpush.msra.mxu0 %v5225
        %5646 = vmatpush.msra.mxu0 %v5223
        %5647 = vmatpush.msra.mxu0 %v5221
        %5648 = vmatpush.msra.mxu0 %v5219
        %5649 = vmatpush.msra.mxu0 %v5217
        %5650 = vmatpush.msra.mxu0 %v5215
        %5651 = vmatpush.msra.mxu0 %v5213
        %5652 = vmatpush.msra.mxu0 %v5211
        %5653 = vmatpush.msra.mxu0 %v5209
        %5654 = vmatpush.msra.mxu0 %v5207
        %5655 = vmatpush.msra.mxu0 %v5205
        %5656 = vmatmul.f32.gmra.mxu0 %v3308
        %v5657 = vpop.f32.mrf.mxu0
        %v5658 = vadd.f32 0.0, %v5657
        %5659 = vmatmul.f32.gmra.mxu0 %v3312
        %v5660 = vpop.f32.mrf.mxu0
        %v5661 = vadd.f32 0.0, %v5660
        %5662 = vmatmul.f32.gmra.mxu0 %v3316
        %v5663 = vpop.f32.mrf.mxu0
        %v5664 = vadd.f32 0.0, %v5663
        %5665 = vmatmul.f32.gmra.mxu0 %v3320
        %v5666 = vpop.f32.mrf.mxu0
        %v5667 = vadd.f32 0.0, %v5666
        %5668 = vdwg.mxu0
        %5669 = vmatpush.msra.mxu0 0.0
        %5670 = vmatpush.msra.mxu0 0.0
        %5671 = vmatpush.msra.mxu0 %v5263
        %5672 = vmatpush.msra.mxu0 %v5261
        %5673 = vmatpush.msra.mxu0 %v5259
        %5674 = vmatpush.msra.mxu0 %v5257
        %5675 = vmatpush.msra.mxu0 %v5255
        %5676 = vmatpush.msra.mxu0 %v5253
        %5677 = vmatpush.msra.mxu0 %v5251
        %5678 = vmatpush.msra.mxu0 %v5249
        %5679 = vmatpush.msra.mxu0 %v5247
        %5680 = vmatpush.msra.mxu0 %v5245
        %5681 = vmatpush.msra.mxu0 %v5243
        %5682 = vmatpush.msra.mxu0 %v5241
        %5683 = vmatpush.msra.mxu0 %v5239
        %5684 = vmatpush.msra.mxu0 %v5237
        %5685 = vmatmul.f32.gmra.mxu0 %v3702
        %v5686 = vpop.f32.mrf.mxu0
        %v5687 = vadd.f32 %v5658, %v5686
        %5688 = vmatmul.f32.gmra.mxu0 %v3705
        %v5689 = vpop.f32.mrf.mxu0
        %v5690 = vadd.f32 %v5661, %v5689
        %5691 = vmatmul.f32.gmra.mxu0 %v4056
        %v5692 = vpop.f32.mrf.mxu0
        %v5693 = vadd.f32 %v5664, %v5692
        %5694 = vmatmul.f32.gmra.mxu0 %v5514
        %v5695 = vpop.f32.mrf.mxu0
        %v5696 = vadd.f32 %v5667, %v5695
        %5697 = vdwg.mxu0
        %5698 = vmatpush.msra.mxu0 %v5236
        %5699 = vmatpush.msra.mxu0 %v5234
        %5700 = vmatpush.msra.mxu0 %v5232
        %5701 = vmatpush.msra.mxu0 %v5230
        %5702 = vmatpush.msra.mxu0 %v5228
        %5703 = vmatpush.msra.mxu0 %v5226
        %5704 = vmatpush.msra.mxu0 %v5224
        %5705 = vmatpush.msra.mxu0 %v5222
        %5706 = vmatpush.msra.mxu0 %v5220
        %5707 = vmatpush.msra.mxu0 %v5218
        %5708 = vmatpush.msra.mxu0 %v5216
        %5709 = vmatpush.msra.mxu0 %v5214
        %5710 = vmatpush.msra.mxu0 %v5212
        %5711 = vmatpush.msra.mxu0 %v5210
        %5712 = vmatpush.msra.mxu0 %v5208
        %5713 = vmatpush.msra.mxu0 %v5206
        %5714 = vmatmul.f32.gmra.mxu0 %v3308
        %v5715 = vpop.f32.mrf.mxu0
        %v5716 = vadd.f32 0.0, %v5715
        %5717 = vmatmul.f32.gmra.mxu0 %v3312
        %v5718 = vpop.f32.mrf.mxu0
        %v5719 = vadd.f32 0.0, %v5718
        %5720 = vmatmul.f32.gmra.mxu0 %v3316
        %v5721 = vpop.f32.mrf.mxu0
        %v5722 = vadd.f32 0.0, %v5721
        %5723 = vmatmul.f32.gmra.mxu0 %v3320
        %v5724 = vpop.f32.mrf.mxu0
        %v5725 = vadd.f32 0.0, %v5724
        %5726 = vdwg.mxu0
        %5727 = vmatpush.msra.mxu0 0.0
        %5728 = vmatpush.msra.mxu0 0.0
        %5729 = vmatpush.msra.mxu0 %v5264
        %5730 = vmatpush.msra.mxu0 %v5262
        %5731 = vmatpush.msra.mxu0 %v5260
        %5732 = vmatpush.msra.mxu0 %v5258
        %5733 = vmatpush.msra.mxu0 %v5256
        %5734 = vmatpush.msra.mxu0 %v5254
        %5735 = vmatpush.msra.mxu0 %v5252
        %5736 = vmatpush.msra.mxu0 %v5250
        %5737 = vmatpush.msra.mxu0 %v5248
        %5738 = vmatpush.msra.mxu0 %v5246
        %5739 = vmatpush.msra.mxu0 %v5244
        %5740 = vmatpush.msra.mxu0 %v5242
        %5741 = vmatpush.msra.mxu0 %v5240
        %5742 = vmatpush.msra.mxu0 %v5238
        %5743 = vmatmul.f32.gmra.mxu0 %v3702
        %v5744 = vpop.f32.mrf.mxu0
        %v5745 = vadd.f32 %v5716, %v5744
        %5746 = vmatmul.f32.gmra.mxu0 %v3705
        %v5747 = vpop.f32.mrf.mxu0
        %v5748 = vadd.f32 %v5719, %v5747
        %5749 = vmatmul.f32.gmra.mxu0 %v4056
        %v5750 = vpop.f32.mrf.mxu0
        %v5751 = vadd.f32 %v5722, %v5750
        %5752 = vmatmul.f32.gmra.mxu0 %v5514
        %v5753 = vpop.f32.mrf.mxu0
        %v5754 = vadd.f32 %v5725, %v5753
        %5755 = vdwg.mxu0
        %v5756 = vadd.f32 %v5135, %v5687
        %v5757 = vadd.f32 %v5136, %v5745
        %v5758 = vadd.f32 %v5137, %v5690
        %v5759 = vadd.f32 %v5138, %v5748
        %v5760 = vadd.f32 %v5139, %v5693
        %v5761 = vadd.f32 %v5140, %v5751
        %v5762 = vadd.f32 %v5141, %v5696
        %v5763 = vadd.f32 %v5142, %v5754
        %s5764 = scalar_lea.vmem %s4, 1920
        %v5765 = vld [vmem:[%s5764] sm:$0xff]
        %v5766 = vld [vmem:[%s5764 + $0x8] sm:$0xff]
        %v5767 = vld [vmem:[%s5764 + $0x10] sm:$0xff]
        %v5768 = vld [vmem:[%s5764 + $0x18] sm:$0xff]
        %v5769 = vld [vmem:[%s5764 + $0x20] sm:$0xff]
        %v5770 = vld [vmem:[%s5764 + $0x28] sm:$0xff]
        %v5771 = vld [vmem:[%s5764 + $0x30] sm:$0xff]
        %v5772 = vld [vmem:[%s5764 + $0x38] sm:$0xff]
        %v5773 = vld [vmem:[%s5764 + $0x40] sm:$0xff]
        %v5774 = vld [vmem:[%s5764 + $0x48] sm:$0xff]
        %v5775 = vld [vmem:[%s5764 + $0x50] sm:$0xff]
        %v5776 = vld [vmem:[%s5764 + $0x58] sm:$0xff]
        %v5777 = vld [vmem:[%s5764 + $0x60] sm:$0xff]
        %v5778 = vld [vmem:[%s5764 + $0x68] sm:$0xff]
        %v5779 = vld [vmem:[%s5764 + $0x70] sm:$0xff]
        %v5780 = vld [vmem:[%s5764 + $0x78] sm:$0xff]
        %v5781 = vld [vmem:[%s5764 + $0x80] sm:$0xff]
        %v5782 = vld [vmem:[%s5764 + $0x88] sm:$0xff]
        %v5783 = vld [vmem:[%s5764 + $0x90] sm:$0xff]
        %v5784 = vld [vmem:[%s5764 + $0x98] sm:$0xff]
        %v5785 = vld [vmem:[%s5764 + $0xa0] sm:$0xff]
        %v5786 = vld [vmem:[%s5764 + $0xa8] sm:$0xff]
        %v5787 = vld [vmem:[%s5764 + $0xb0] sm:$0xff]
        %v5788 = vld [vmem:[%s5764 + $0xb8] sm:$0xff]
        %v5789 = vld [vmem:[%s5764 + $0xc0] sm:$0xff]
        %v5790 = vld [vmem:[%s5764 + $0xc8] sm:$0xff]
        %v5791 = vld [vmem:[%s5764 + $0xd0] sm:$0xff]
        %v5792 = vld [vmem:[%s5764 + $0xd8] sm:$0xff]
        %v5793 = vld [vmem:[%s5764 + $0xe0] sm:$0xff]
        %v5794 = vld [vmem:[%s5764 + $0xe8] sm:$0xff]
        %v5795 = vld [vmem:[%s5764 + $0xf0] sm:$0xff]
        %v5796 = vld [vmem:[%s5764 + $0xf8] sm:$0xff]
        %v5797 = vld [vmem:[%s5764 + $0x100] sm:$0xff]
        %v5798 = vld [vmem:[%s5764 + $0x108] sm:$0xff]
        %v5799 = vld [vmem:[%s5764 + $0x110] sm:$0xff]
        %v5800 = vld [vmem:[%s5764 + $0x118] sm:$0xff]
        %v5801 = vld [vmem:[%s5764 + $0x120] sm:$0xff]
        %v5802 = vld [vmem:[%s5764 + $0x128] sm:$0xff]
        %v5803 = vld [vmem:[%s5764 + $0x130] sm:$0xff]
        %v5804 = vld [vmem:[%s5764 + $0x138] sm:$0xff]
        %v5805 = vld [vmem:[%s5764 + $0x140] sm:$0xff]
        %v5806 = vld [vmem:[%s5764 + $0x148] sm:$0xff]
        %v5807 = vld [vmem:[%s5764 + $0x150] sm:$0xff]
        %v5808 = vld [vmem:[%s5764 + $0x158] sm:$0xff]
        %v5809 = vld [vmem:[%s5764 + $0x160] sm:$0xff]
        %v5810 = vld [vmem:[%s5764 + $0x168] sm:$0xff]
        %v5811 = vld [vmem:[%s5764 + $0x170] sm:$0xff]
        %v5812 = vld [vmem:[%s5764 + $0x178] sm:$0xff]
        %v5813 = vld [vmem:[%s5764 + $0x180] sm:$0xff]
        %v5814 = vld [vmem:[%s5764 + $0x188] sm:$0xff]
        %v5815 = vld [vmem:[%s5764 + $0x190] sm:$0xff]
        %v5816 = vld [vmem:[%s5764 + $0x198] sm:$0xff]
        %v5817 = vld [vmem:[%s5764 + $0x1a0] sm:$0xff]
        %v5818 = vld [vmem:[%s5764 + $0x1a8] sm:$0xff]
        %v5819 = vld [vmem:[%s5764 + $0x1b0] sm:$0xff]
        %v5820 = vld [vmem:[%s5764 + $0x1b8] sm:$0xff]
        %v5821 = vld [vmem:[%s5764 + $0x1c0] sm:$0xff]
        %v5822 = vld [vmem:[%s5764 + $0x1c8] sm:$0xff]
        %v5823 = vld [vmem:[%s5764 + $0x1d0] sm:$0xff]
        %v5824 = vld [vmem:[%s5764 + $0x1d8] sm:$0xff]
        %s5825 = scalar_lea.vmem %s5, 1920
        %v5826 = vld [vmem:[%s5825] sm:$0xff]
        %v5827 = vld [vmem:[%s5825 + $0x8] sm:$0xff]
        %v5828 = vld [vmem:[%s5825 + $0x10] sm:$0xff]
        %v5829 = vld [vmem:[%s5825 + $0x18] sm:$0xff]
        %v5830 = vld [vmem:[%s5825 + $0x20] sm:$0xff]
        %v5831 = vld [vmem:[%s5825 + $0x28] sm:$0xff]
        %v5832 = vld [vmem:[%s5825 + $0x30] sm:$0xff]
        %v5833 = vld [vmem:[%s5825 + $0x38] sm:$0xff]
        %v5834 = vld [vmem:[%s5825 + $0x40] sm:$0xff]
        %v5835 = vld [vmem:[%s5825 + $0x48] sm:$0xff]
        %v5836 = vld [vmem:[%s5825 + $0x50] sm:$0xff]
        %v5837 = vld [vmem:[%s5825 + $0x58] sm:$0xff]
        %v5838 = vld [vmem:[%s5825 + $0x60] sm:$0xff]
        %v5839 = vld [vmem:[%s5825 + $0x68] sm:$0xff]
        %v5840 = vld [vmem:[%s5825 + $0x70] sm:$0xff]
        %v5841 = vld [vmem:[%s5825 + $0x78] sm:$0xff]
        %v5842 = vld [vmem:[%s5825 + $0x80] sm:$0xff]
        %v5843 = vld [vmem:[%s5825 + $0x88] sm:$0xff]
        %v5844 = vld [vmem:[%s5825 + $0x90] sm:$0xff]
        %v5845 = vld [vmem:[%s5825 + $0x98] sm:$0xff]
        %v5846 = vld [vmem:[%s5825 + $0xa0] sm:$0xff]
        %v5847 = vld [vmem:[%s5825 + $0xa8] sm:$0xff]
        %v5848 = vld [vmem:[%s5825 + $0xb0] sm:$0xff]
        %v5849 = vld [vmem:[%s5825 + $0xb8] sm:$0xff]
        %v5850 = vld [vmem:[%s5825 + $0xc0] sm:$0xff]
        %v5851 = vld [vmem:[%s5825 + $0xc8] sm:$0xff]
        %v5852 = vld [vmem:[%s5825 + $0xd0] sm:$0xff]
        %v5853 = vld [vmem:[%s5825 + $0xd8] sm:$0xff]
        %v5854 = vld [vmem:[%s5825 + $0xe0] sm:$0xff]
        %v5855 = vld [vmem:[%s5825 + $0xe8] sm:$0xff]
        %v5856 = vld [vmem:[%s5825 + $0xf0] sm:$0xff]
        %v5857 = vld [vmem:[%s5825 + $0xf8] sm:$0xff]
        %v5858 = vld [vmem:[%s5825 + $0x100] sm:$0xff]
        %v5859 = vld [vmem:[%s5825 + $0x108] sm:$0xff]
        %v5860 = vld [vmem:[%s5825 + $0x110] sm:$0xff]
        %v5861 = vld [vmem:[%s5825 + $0x118] sm:$0xff]
        %v5862 = vld [vmem:[%s5825 + $0x120] sm:$0xff]
        %v5863 = vld [vmem:[%s5825 + $0x128] sm:$0xff]
        %v5864 = vld [vmem:[%s5825 + $0x130] sm:$0xff]
        %v5865 = vld [vmem:[%s5825 + $0x138] sm:$0xff]
        %v5866 = vld [vmem:[%s5825 + $0x140] sm:$0xff]
        %v5867 = vld [vmem:[%s5825 + $0x148] sm:$0xff]
        %v5868 = vld [vmem:[%s5825 + $0x150] sm:$0xff]
        %v5869 = vld [vmem:[%s5825 + $0x158] sm:$0xff]
        %v5870 = vld [vmem:[%s5825 + $0x160] sm:$0xff]
        %v5871 = vld [vmem:[%s5825 + $0x168] sm:$0xff]
        %v5872 = vld [vmem:[%s5825 + $0x170] sm:$0xff]
        %v5873 = vld [vmem:[%s5825 + $0x178] sm:$0xff]
        %v5874 = vld [vmem:[%s5825 + $0x180] sm:$0xff]
        %v5875 = vld [vmem:[%s5825 + $0x188] sm:$0xff]
        %v5876 = vld [vmem:[%s5825 + $0x190] sm:$0xff]
        %v5877 = vld [vmem:[%s5825 + $0x198] sm:$0xff]
        %v5878 = vld [vmem:[%s5825 + $0x1a0] sm:$0xff]
        %v5879 = vld [vmem:[%s5825 + $0x1a8] sm:$0xff]
        %v5880 = vld [vmem:[%s5825 + $0x1b0] sm:$0xff]
        %v5881 = vld [vmem:[%s5825 + $0x1b8] sm:$0xff]
        %v5882 = vld [vmem:[%s5825 + $0x1c0] sm:$0xff]
        %v5883 = vld [vmem:[%s5825 + $0x1c8] sm:$0xff]
        %v5884 = vld [vmem:[%s5825 + $0x1d0] sm:$0xff]
        %v5885 = vld [vmem:[%s5825 + $0x1d8] sm:$0xff]
        %5886 = vmatpush.msra.mxu0 %v5795
        %5887 = vmatpush.msra.mxu0 %v5793
        %5888 = vmatpush.msra.mxu0 %v5791
        %5889 = vmatpush.msra.mxu0 %v5789
        %5890 = vmatpush.msra.mxu0 %v5787
        %5891 = vmatpush.msra.mxu0 %v5785
        %5892 = vmatpush.msra.mxu0 %v5783
        %5893 = vmatpush.msra.mxu0 %v5781
        %5894 = vmatpush.msra.mxu0 %v5779
        %5895 = vmatpush.msra.mxu0 %v5777
        %5896 = vmatpush.msra.mxu0 %v5775
        %5897 = vmatpush.msra.mxu0 %v5773
        %5898 = vmatpush.msra.mxu0 %v5771
        %5899 = vmatpush.msra.mxu0 %v5769
        %5900 = vmatpush.msra.mxu0 %v5767
        %5901 = vmatpush.msra.mxu0 %v5765
        %5902 = vmatmul.f32.gmra.mxu0 %v3308
        %v5903 = vpop.f32.mrf.mxu0
        %v5904 = vadd.f32 0.0, %v5903
        %5905 = vmatmul.f32.gmra.mxu0 %v3312
        %v5906 = vpop.f32.mrf.mxu0
        %v5907 = vadd.f32 0.0, %v5906
        %5908 = vmatmul.f32.gmra.mxu0 %v3316
        %v5909 = vpop.f32.mrf.mxu0
        %v5910 = vadd.f32 0.0, %v5909
        %5911 = vmatmul.f32.gmra.mxu0 %v3320
        %v5912 = vpop.f32.mrf.mxu0
        %v5913 = vadd.f32 0.0, %v5912
        %5914 = vdwg.mxu0
        %5915 = vmatpush.msra.mxu0 0.0
        %5916 = vmatpush.msra.mxu0 0.0
        %5917 = vmatpush.msra.mxu0 %v5823
        %5918 = vmatpush.msra.mxu0 %v5821
        %5919 = vmatpush.msra.mxu0 %v5819
        %5920 = vmatpush.msra.mxu0 %v5817
        %5921 = vmatpush.msra.mxu0 %v5815
        %5922 = vmatpush.msra.mxu0 %v5813
        %5923 = vmatpush.msra.mxu0 %v5811
        %5924 = vmatpush.msra.mxu0 %v5809
        %5925 = vmatpush.msra.mxu0 %v5807
        %5926 = vmatpush.msra.mxu0 %v5805
        %5927 = vmatpush.msra.mxu0 %v5803
        %5928 = vmatpush.msra.mxu0 %v5801
        %5929 = vmatpush.msra.mxu0 %v5799
        %5930 = vmatpush.msra.mxu0 %v5797
        %5931 = vmatmul.f32.gmra.mxu0 %v3702
        %v5932 = vpop.f32.mrf.mxu0
        %v5933 = vadd.f32 %v5904, %v5932
        %5934 = vmatmul.f32.gmra.mxu0 %v3705
        %v5935 = vpop.f32.mrf.mxu0
        %v5936 = vadd.f32 %v5907, %v5935
        %5937 = vmatmul.f32.gmra.mxu0 %v4056
        %v5938 = vpop.f32.mrf.mxu0
        %v5939 = vadd.f32 %v5910, %v5938
        %5940 = vmatmul.f32.gmra.mxu0 %v5514
        %v5941 = vpop.f32.mrf.mxu0
        %v5942 = vadd.f32 %v5913, %v5941
        %5943 = vdwg.mxu0
        %5944 = vmatpush.msra.mxu0 %v5796
        %5945 = vmatpush.msra.mxu0 %v5794
        %5946 = vmatpush.msra.mxu0 %v5792
        %5947 = vmatpush.msra.mxu0 %v5790
        %5948 = vmatpush.msra.mxu0 %v5788
        %5949 = vmatpush.msra.mxu0 %v5786
        %5950 = vmatpush.msra.mxu0 %v5784
        %5951 = vmatpush.msra.mxu0 %v5782
        %5952 = vmatpush.msra.mxu0 %v5780
        %5953 = vmatpush.msra.mxu0 %v5778
        %5954 = vmatpush.msra.mxu0 %v5776
        %5955 = vmatpush.msra.mxu0 %v5774
        %5956 = vmatpush.msra.mxu0 %v5772
        %5957 = vmatpush.msra.mxu0 %v5770
        %5958 = vmatpush.msra.mxu0 %v5768
        %5959 = vmatpush.msra.mxu0 %v5766
        %5960 = vmatmul.f32.gmra.mxu0 %v3308
        %v5961 = vpop.f32.mrf.mxu0
        %v5962 = vadd.f32 0.0, %v5961
        %5963 = vmatmul.f32.gmra.mxu0 %v3312
        %v5964 = vpop.f32.mrf.mxu0
        %v5965 = vadd.f32 0.0, %v5964
        %5966 = vmatmul.f32.gmra.mxu0 %v3316
        %v5967 = vpop.f32.mrf.mxu0
        %v5968 = vadd.f32 0.0, %v5967
        %5969 = vmatmul.f32.gmra.mxu0 %v3320
        %v5970 = vpop.f32.mrf.mxu0
        %v5971 = vadd.f32 0.0, %v5970
        %5972 = vdwg.mxu0
        %5973 = vmatpush.msra.mxu0 0.0
        %5974 = vmatpush.msra.mxu0 0.0
        %5975 = vmatpush.msra.mxu0 %v5824
        %5976 = vmatpush.msra.mxu0 %v5822
        %5977 = vmatpush.msra.mxu0 %v5820
        %5978 = vmatpush.msra.mxu0 %v5818
        %5979 = vmatpush.msra.mxu0 %v5816
        %5980 = vmatpush.msra.mxu0 %v5814
        %5981 = vmatpush.msra.mxu0 %v5812
        %5982 = vmatpush.msra.mxu0 %v5810
        %5983 = vmatpush.msra.mxu0 %v5808
        %5984 = vmatpush.msra.mxu0 %v5806
        %5985 = vmatpush.msra.mxu0 %v5804
        %5986 = vmatpush.msra.mxu0 %v5802
        %5987 = vmatpush.msra.mxu0 %v5800
        %5988 = vmatpush.msra.mxu0 %v5798
        %5989 = vmatmul.f32.gmra.mxu0 %v3702
        %v5990 = vpop.f32.mrf.mxu0
        %v5991 = vadd.f32 %v5962, %v5990
        %5992 = vmatmul.f32.gmra.mxu0 %v3705
        %v5993 = vpop.f32.mrf.mxu0
        %v5994 = vadd.f32 %v5965, %v5993
        %5995 = vmatmul.f32.gmra.mxu0 %v4056
        %v5996 = vpop.f32.mrf.mxu0
        %v5997 = vadd.f32 %v5968, %v5996
        %5998 = vmatmul.f32.gmra.mxu0 %v5514
        %v5999 = vpop.f32.mrf.mxu0
        %v6000 = vadd.f32 %v5971, %v5999
        %6001 = vdwg.mxu0
        %v6002 = vadd.f32 %v5381, %v5933
        %v6003 = vadd.f32 %v5382, %v5991
        %v6004 = vadd.f32 %v5383, %v5936
        %v6005 = vadd.f32 %v5384, %v5994
        %v6006 = vadd.f32 %v5385, %v5939
        %v6007 = vadd.f32 %v5386, %v5997
        %v6008 = vadd.f32 %v5387, %v5942
        %v6009 = vadd.f32 %v5388, %v6000
        %6010 = vmatpush.msra.mxu0 %v5856
        %6011 = vmatpush.msra.mxu0 %v5854
        %6012 = vmatpush.msra.mxu0 %v5852
        %6013 = vmatpush.msra.mxu0 %v5850
        %6014 = vmatpush.msra.mxu0 %v5848
        %6015 = vmatpush.msra.mxu0 %v5846
        %6016 = vmatpush.msra.mxu0 %v5844
        %6017 = vmatpush.msra.mxu0 %v5842
        %6018 = vmatpush.msra.mxu0 %v5840
        %6019 = vmatpush.msra.mxu0 %v5838
        %6020 = vmatpush.msra.mxu0 %v5836
        %6021 = vmatpush.msra.mxu0 %v5834
        %6022 = vmatpush.msra.mxu0 %v5832
        %6023 = vmatpush.msra.mxu0 %v5830
        %6024 = vmatpush.msra.mxu0 %v5828
        %6025 = vmatpush.msra.mxu0 %v5826
        %6026 = vmatmul.f32.gmra.mxu0 %v3308
        %v6027 = vpop.f32.mrf.mxu0
        %v6028 = vadd.f32 0.0, %v6027
        %6029 = vmatmul.f32.gmra.mxu0 %v3312
        %v6030 = vpop.f32.mrf.mxu0
        %v6031 = vadd.f32 0.0, %v6030
        %6032 = vmatmul.f32.gmra.mxu0 %v3316
        %v6033 = vpop.f32.mrf.mxu0
        %v6034 = vadd.f32 0.0, %v6033
        %6035 = vmatmul.f32.gmra.mxu0 %v3320
        %v6036 = vpop.f32.mrf.mxu0
        %v6037 = vadd.f32 0.0, %v6036
        %6038 = vdwg.mxu0
        %6039 = vmatpush.msra.mxu0 0.0
        %6040 = vmatpush.msra.mxu0 0.0
        %6041 = vmatpush.msra.mxu0 %v5884
        %6042 = vmatpush.msra.mxu0 %v5882
        %6043 = vmatpush.msra.mxu0 %v5880
        %6044 = vmatpush.msra.mxu0 %v5878
        %6045 = vmatpush.msra.mxu0 %v5876
        %6046 = vmatpush.msra.mxu0 %v5874
        %6047 = vmatpush.msra.mxu0 %v5872
        %6048 = vmatpush.msra.mxu0 %v5870
        %6049 = vmatpush.msra.mxu0 %v5868
        %6050 = vmatpush.msra.mxu0 %v5866
        %6051 = vmatpush.msra.mxu0 %v5864
        %6052 = vmatpush.msra.mxu0 %v5862
        %6053 = vmatpush.msra.mxu0 %v5860
        %6054 = vmatpush.msra.mxu0 %v5858
        %6055 = vmatmul.f32.gmra.mxu0 %v3702
        %v6056 = vpop.f32.mrf.mxu0
        %v6057 = vadd.f32 %v6028, %v6056
        %6058 = vmatmul.f32.gmra.mxu0 %v3705
        %v6059 = vpop.f32.mrf.mxu0
        %v6060 = vadd.f32 %v6031, %v6059
        %6061 = vmatmul.f32.gmra.mxu0 %v4056
        %v6062 = vpop.f32.mrf.mxu0
        %v6063 = vadd.f32 %v6034, %v6062
        %6064 = vmatmul.f32.gmra.mxu0 %v5514
        %v6065 = vpop.f32.mrf.mxu0
        %v6066 = vadd.f32 %v6037, %v6065
        %6067 = vdwg.mxu0
        %6068 = vmatpush.msra.mxu0 %v5857
        %6069 = vmatpush.msra.mxu0 %v5855
        %6070 = vmatpush.msra.mxu0 %v5853
        %6071 = vmatpush.msra.mxu0 %v5851
        %6072 = vmatpush.msra.mxu0 %v5849
        %6073 = vmatpush.msra.mxu0 %v5847
        %6074 = vmatpush.msra.mxu0 %v5845
        %6075 = vmatpush.msra.mxu0 %v5843
        %6076 = vmatpush.msra.mxu0 %v5841
        %6077 = vmatpush.msra.mxu0 %v5839
        %6078 = vmatpush.msra.mxu0 %v5837
        %6079 = vmatpush.msra.mxu0 %v5835
        %6080 = vmatpush.msra.mxu0 %v5833
        %6081 = vmatpush.msra.mxu0 %v5831
        %6082 = vmatpush.msra.mxu0 %v5829
        %6083 = vmatpush.msra.mxu0 %v5827
        %6084 = vmatmul.f32.gmra.mxu0 %v3308
        %v6085 = vpop.f32.mrf.mxu0
        %v6086 = vadd.f32 0.0, %v6085
        %6087 = vmatmul.f32.gmra.mxu0 %v3312
        %v6088 = vpop.f32.mrf.mxu0
        %v6089 = vadd.f32 0.0, %v6088
        %6090 = vmatmul.f32.gmra.mxu0 %v3316
        %v6091 = vpop.f32.mrf.mxu0
        %v6092 = vadd.f32 0.0, %v6091
        %6093 = vmatmul.f32.gmra.mxu0 %v3320
        %v6094 = vpop.f32.mrf.mxu0
        %v6095 = vadd.f32 0.0, %v6094
        %6096 = vdwg.mxu0
        %6097 = vmatpush.msra.mxu0 0.0
        %6098 = vmatpush.msra.mxu0 0.0
        %6099 = vmatpush.msra.mxu0 %v5885
        %6100 = vmatpush.msra.mxu0 %v5883
        %6101 = vmatpush.msra.mxu0 %v5881
        %6102 = vmatpush.msra.mxu0 %v5879
        %6103 = vmatpush.msra.mxu0 %v5877
        %6104 = vmatpush.msra.mxu0 %v5875
        %6105 = vmatpush.msra.mxu0 %v5873
        %6106 = vmatpush.msra.mxu0 %v5871
        %6107 = vmatpush.msra.mxu0 %v5869
        %6108 = vmatpush.msra.mxu0 %v5867
        %6109 = vmatpush.msra.mxu0 %v5865
        %6110 = vmatpush.msra.mxu0 %v5863
        %6111 = vmatpush.msra.mxu0 %v5861
        %6112 = vmatpush.msra.mxu0 %v5859
        %6113 = vmatmul.f32.gmra.mxu0 %v3702
        %v6114 = vpop.f32.mrf.mxu0
        %v6115 = vadd.f32 %v6086, %v6114
        %6116 = vmatmul.f32.gmra.mxu0 %v3705
        %v6117 = vpop.f32.mrf.mxu0
        %v6118 = vadd.f32 %v6089, %v6117
        %6119 = vmatmul.f32.gmra.mxu0 %v4056
        %v6120 = vpop.f32.mrf.mxu0
        %v6121 = vadd.f32 %v6092, %v6120
        %6122 = vmatmul.f32.gmra.mxu0 %v5514
        %v6123 = vpop.f32.mrf.mxu0
        %v6124 = vadd.f32 %v6095, %v6123
        %6125 = vdwg.mxu0
        %v6126 = vadd.f32 %v5505, %v6057
        %v6127 = vadd.f32 %v5506, %v6115
        %v6128 = vadd.f32 %v5507, %v6060
        %v6129 = vadd.f32 %v5508, %v6118
        %v6130 = vadd.f32 %v5509, %v6063
        %v6131 = vadd.f32 %v5510, %v6121
        %v6132 = vadd.f32 %v5511, %v6066
        %v6133 = vadd.f32 %v5512, %v6124
        %v6135 = vsel %vm3566, %v3323, 0
        %6137 = vmatpush.msra.mxu0 %v5795
        %6138 = vmatpush.msra.mxu0 %v5793
        %6139 = vmatpush.msra.mxu0 %v5791
        %6140 = vmatpush.msra.mxu0 %v5789
        %6141 = vmatpush.msra.mxu0 %v5787
        %6142 = vmatpush.msra.mxu0 %v5785
        %6143 = vmatpush.msra.mxu0 %v5783
        %6144 = vmatpush.msra.mxu0 %v5781
        %6145 = vmatpush.msra.mxu0 %v5779
        %6146 = vmatpush.msra.mxu0 %v5777
        %6147 = vmatpush.msra.mxu0 %v5775
        %6148 = vmatpush.msra.mxu0 %v5773
        %6149 = vmatpush.msra.mxu0 %v5771
        %6150 = vmatpush.msra.mxu0 %v5769
        %6151 = vmatpush.msra.mxu0 %v5767
        %6152 = vmatpush.msra.mxu0 %v5765
        %6153 = vmatmul.f32.gmra.mxu0 %v3310
        %v6154 = vpop.f32.mrf.mxu0
        %v6155 = vadd.f32 0.0, %v6154
        %6156 = vmatmul.f32.gmra.mxu0 %v3314
        %v6157 = vpop.f32.mrf.mxu0
        %v6158 = vadd.f32 0.0, %v6157
        %6159 = vmatmul.f32.gmra.mxu0 %v3318
        %v6160 = vpop.f32.mrf.mxu0
        %v6161 = vadd.f32 0.0, %v6160
        %6162 = vmatmul.f32.gmra.mxu0 %v3322
        %v6163 = vpop.f32.mrf.mxu0
        %v6164 = vadd.f32 0.0, %v6163
        %6165 = vdwg.mxu0
        %6166 = vmatpush.msra.mxu0 0.0
        %6167 = vmatpush.msra.mxu0 0.0
        %6168 = vmatpush.msra.mxu0 %v5823
        %6169 = vmatpush.msra.mxu0 %v5821
        %6170 = vmatpush.msra.mxu0 %v5819
        %6171 = vmatpush.msra.mxu0 %v5817
        %6172 = vmatpush.msra.mxu0 %v5815
        %6173 = vmatpush.msra.mxu0 %v5813
        %6174 = vmatpush.msra.mxu0 %v5811
        %6175 = vmatpush.msra.mxu0 %v5809
        %6176 = vmatpush.msra.mxu0 %v5807
        %6177 = vmatpush.msra.mxu0 %v5805
        %6178 = vmatpush.msra.mxu0 %v5803
        %6179 = vmatpush.msra.mxu0 %v5801
        %6180 = vmatpush.msra.mxu0 %v5799
        %6181 = vmatpush.msra.mxu0 %v5797
        %6182 = vmatmul.f32.gmra.mxu0 %v3574
        %v6183 = vpop.f32.mrf.mxu0
        %v6184 = vadd.f32 %v6155, %v6183
        %6185 = vmatmul.f32.gmra.mxu0 %v3577
        %v6186 = vpop.f32.mrf.mxu0
        %v6187 = vadd.f32 %v6158, %v6186
        %6188 = vmatmul.f32.gmra.mxu0 %v4893
        %v6189 = vpop.f32.mrf.mxu0
        %v6190 = vadd.f32 %v6161, %v6189
        %6191 = vmatmul.f32.gmra.mxu0 %v6135
        %v6192 = vpop.f32.mrf.mxu0
        %v6193 = vadd.f32 %v6164, %v6192
        %6194 = vdwg.mxu0
        %6195 = vmatpush.msra.mxu0 %v5796
        %6196 = vmatpush.msra.mxu0 %v5794
        %6197 = vmatpush.msra.mxu0 %v5792
        %6198 = vmatpush.msra.mxu0 %v5790
        %6199 = vmatpush.msra.mxu0 %v5788
        %6200 = vmatpush.msra.mxu0 %v5786
        %6201 = vmatpush.msra.mxu0 %v5784
        %6202 = vmatpush.msra.mxu0 %v5782
        %6203 = vmatpush.msra.mxu0 %v5780
        %6204 = vmatpush.msra.mxu0 %v5778
        %6205 = vmatpush.msra.mxu0 %v5776
        %6206 = vmatpush.msra.mxu0 %v5774
        %6207 = vmatpush.msra.mxu0 %v5772
        %6208 = vmatpush.msra.mxu0 %v5770
        %6209 = vmatpush.msra.mxu0 %v5768
        %6210 = vmatpush.msra.mxu0 %v5766
        %6211 = vmatmul.f32.gmra.mxu0 %v3310
        %v6212 = vpop.f32.mrf.mxu0
        %v6213 = vadd.f32 0.0, %v6212
        %6214 = vmatmul.f32.gmra.mxu0 %v3314
        %v6215 = vpop.f32.mrf.mxu0
        %v6216 = vadd.f32 0.0, %v6215
        %6217 = vmatmul.f32.gmra.mxu0 %v3318
        %v6218 = vpop.f32.mrf.mxu0
        %v6219 = vadd.f32 0.0, %v6218
        %6220 = vmatmul.f32.gmra.mxu0 %v3322
        %v6221 = vpop.f32.mrf.mxu0
        %v6222 = vadd.f32 0.0, %v6221
        %6223 = vdwg.mxu0
        %6224 = vmatpush.msra.mxu0 0.0
        %6225 = vmatpush.msra.mxu0 0.0
        %6226 = vmatpush.msra.mxu0 %v5824
        %6227 = vmatpush.msra.mxu0 %v5822
        %6228 = vmatpush.msra.mxu0 %v5820
        %6229 = vmatpush.msra.mxu0 %v5818
        %6230 = vmatpush.msra.mxu0 %v5816
        %6231 = vmatpush.msra.mxu0 %v5814
        %6232 = vmatpush.msra.mxu0 %v5812
        %6233 = vmatpush.msra.mxu0 %v5810
        %6234 = vmatpush.msra.mxu0 %v5808
        %6235 = vmatpush.msra.mxu0 %v5806
        %6236 = vmatpush.msra.mxu0 %v5804
        %6237 = vmatpush.msra.mxu0 %v5802
        %6238 = vmatpush.msra.mxu0 %v5800
        %6239 = vmatpush.msra.mxu0 %v5798
        %6240 = vmatmul.f32.gmra.mxu0 %v3574
        %v6241 = vpop.f32.mrf.mxu0
        %v6242 = vadd.f32 %v6213, %v6241
        %6243 = vmatmul.f32.gmra.mxu0 %v3577
        %v6244 = vpop.f32.mrf.mxu0
        %v6245 = vadd.f32 %v6216, %v6244
        %6246 = vmatmul.f32.gmra.mxu0 %v4893
        %v6247 = vpop.f32.mrf.mxu0
        %v6248 = vadd.f32 %v6219, %v6247
        %6249 = vmatmul.f32.gmra.mxu0 %v6135
        %v6250 = vpop.f32.mrf.mxu0
        %v6251 = vadd.f32 %v6222, %v6250
        %6252 = vdwg.mxu0
        %v6253 = vadd.f32 %v5632, %v6184
        %v6254 = vadd.f32 %v5633, %v6242
        %v6255 = vadd.f32 %v5634, %v6187
        %v6256 = vadd.f32 %v5635, %v6245
        %v6257 = vadd.f32 %v5636, %v6190
        %v6258 = vadd.f32 %v5637, %v6248
        %v6259 = vadd.f32 %v5638, %v6193
        %v6260 = vadd.f32 %v5639, %v6251
        %6261 = vmatpush.msra.mxu0 %v5856
        %6262 = vmatpush.msra.mxu0 %v5854
        %6263 = vmatpush.msra.mxu0 %v5852
        %6264 = vmatpush.msra.mxu0 %v5850
        %6265 = vmatpush.msra.mxu0 %v5848
        %6266 = vmatpush.msra.mxu0 %v5846
        %6267 = vmatpush.msra.mxu0 %v5844
        %6268 = vmatpush.msra.mxu0 %v5842
        %6269 = vmatpush.msra.mxu0 %v5840
        %6270 = vmatpush.msra.mxu0 %v5838
        %6271 = vmatpush.msra.mxu0 %v5836
        %6272 = vmatpush.msra.mxu0 %v5834
        %6273 = vmatpush.msra.mxu0 %v5832
        %6274 = vmatpush.msra.mxu0 %v5830
        %6275 = vmatpush.msra.mxu0 %v5828
        %6276 = vmatpush.msra.mxu0 %v5826
        %6277 = vmatmul.f32.gmra.mxu0 %v3310
        %v6278 = vpop.f32.mrf.mxu0
        %v6279 = vadd.f32 0.0, %v6278
        %6280 = vmatmul.f32.gmra.mxu0 %v3314
        %v6281 = vpop.f32.mrf.mxu0
        %v6282 = vadd.f32 0.0, %v6281
        %6283 = vmatmul.f32.gmra.mxu0 %v3318
        %v6284 = vpop.f32.mrf.mxu0
        %v6285 = vadd.f32 0.0, %v6284
        %6286 = vmatmul.f32.gmra.mxu0 %v3322
        %v6287 = vpop.f32.mrf.mxu0
        %v6288 = vadd.f32 0.0, %v6287
        %6289 = vdwg.mxu0
        %6290 = vmatpush.msra.mxu0 0.0
        %6291 = vmatpush.msra.mxu0 0.0
        %6292 = vmatpush.msra.mxu0 %v5884
        %6293 = vmatpush.msra.mxu0 %v5882
        %6294 = vmatpush.msra.mxu0 %v5880
        %6295 = vmatpush.msra.mxu0 %v5878
        %6296 = vmatpush.msra.mxu0 %v5876
        %6297 = vmatpush.msra.mxu0 %v5874
        %6298 = vmatpush.msra.mxu0 %v5872
        %6299 = vmatpush.msra.mxu0 %v5870
        %6300 = vmatpush.msra.mxu0 %v5868
        %6301 = vmatpush.msra.mxu0 %v5866
        %6302 = vmatpush.msra.mxu0 %v5864
        %6303 = vmatpush.msra.mxu0 %v5862
        %6304 = vmatpush.msra.mxu0 %v5860
        %6305 = vmatpush.msra.mxu0 %v5858
        %6306 = vmatmul.f32.gmra.mxu0 %v3574
        %v6307 = vpop.f32.mrf.mxu0
        %v6308 = vadd.f32 %v6279, %v6307
        %6309 = vmatmul.f32.gmra.mxu0 %v3577
        %v6310 = vpop.f32.mrf.mxu0
        %v6311 = vadd.f32 %v6282, %v6310
        %6312 = vmatmul.f32.gmra.mxu0 %v4893
        %v6313 = vpop.f32.mrf.mxu0
        %v6314 = vadd.f32 %v6285, %v6313
        %6315 = vmatmul.f32.gmra.mxu0 %v6135
        %v6316 = vpop.f32.mrf.mxu0
        %v6317 = vadd.f32 %v6288, %v6316
        %6318 = vdwg.mxu0
        %6319 = vmatpush.msra.mxu0 %v5857
        %6320 = vmatpush.msra.mxu0 %v5855
        %6321 = vmatpush.msra.mxu0 %v5853
        %6322 = vmatpush.msra.mxu0 %v5851
        %6323 = vmatpush.msra.mxu0 %v5849
        %6324 = vmatpush.msra.mxu0 %v5847
        %6325 = vmatpush.msra.mxu0 %v5845
        %6326 = vmatpush.msra.mxu0 %v5843
        %6327 = vmatpush.msra.mxu0 %v5841
        %6328 = vmatpush.msra.mxu0 %v5839
        %6329 = vmatpush.msra.mxu0 %v5837
        %6330 = vmatpush.msra.mxu0 %v5835
        %6331 = vmatpush.msra.mxu0 %v5833
        %6332 = vmatpush.msra.mxu0 %v5831
        %6333 = vmatpush.msra.mxu0 %v5829
        %6334 = vmatpush.msra.mxu0 %v5827
        %6335 = vmatmul.f32.gmra.mxu0 %v3310
        %v6336 = vpop.f32.mrf.mxu0
        %v6337 = vadd.f32 0.0, %v6336
        %6338 = vmatmul.f32.gmra.mxu0 %v3314
        %v6339 = vpop.f32.mrf.mxu0
        %v6340 = vadd.f32 0.0, %v6339
        %6341 = vmatmul.f32.gmra.mxu0 %v3318
        %v6342 = vpop.f32.mrf.mxu0
        %v6343 = vadd.f32 0.0, %v6342
        %6344 = vmatmul.f32.gmra.mxu0 %v3322
        %v6345 = vpop.f32.mrf.mxu0
        %v6346 = vadd.f32 0.0, %v6345
        %6347 = vdwg.mxu0
        %6348 = vmatpush.msra.mxu0 0.0
        %6349 = vmatpush.msra.mxu0 0.0
        %6350 = vmatpush.msra.mxu0 %v5885
        %6351 = vmatpush.msra.mxu0 %v5883
        %6352 = vmatpush.msra.mxu0 %v5881
        %6353 = vmatpush.msra.mxu0 %v5879
        %6354 = vmatpush.msra.mxu0 %v5877
        %6355 = vmatpush.msra.mxu0 %v5875
        %6356 = vmatpush.msra.mxu0 %v5873
        %6357 = vmatpush.msra.mxu0 %v5871
        %6358 = vmatpush.msra.mxu0 %v5869
        %6359 = vmatpush.msra.mxu0 %v5867
        %6360 = vmatpush.msra.mxu0 %v5865
        %6361 = vmatpush.msra.mxu0 %v5863
        %6362 = vmatpush.msra.mxu0 %v5861
        %6363 = vmatpush.msra.mxu0 %v5859
        %6364 = vmatmul.f32.gmra.mxu0 %v3574
        %v6365 = vpop.f32.mrf.mxu0
        %v6366 = vadd.f32 %v6337, %v6365
        %6367 = vmatmul.f32.gmra.mxu0 %v3577
        %v6368 = vpop.f32.mrf.mxu0
        %v6369 = vadd.f32 %v6340, %v6368
        %6370 = vmatmul.f32.gmra.mxu0 %v4893
        %v6371 = vpop.f32.mrf.mxu0
        %v6372 = vadd.f32 %v6343, %v6371
        %6373 = vmatmul.f32.gmra.mxu0 %v6135
        %v6374 = vpop.f32.mrf.mxu0
        %v6375 = vadd.f32 %v6346, %v6374
        %6376 = vdwg.mxu0
        %v6377 = vadd.f32 %v5756, %v6308
        %v6378 = vadd.f32 %v5757, %v6366
        %v6379 = vadd.f32 %v5758, %v6311
        %v6380 = vadd.f32 %v5759, %v6369
        %v6381 = vadd.f32 %v5760, %v6314
        %v6382 = vadd.f32 %v5761, %v6372
        %v6383 = vadd.f32 %v5762, %v6317
        %v6384 = vadd.f32 %v5763, %v6375
        %v6385 = vmax.f32 %v6002, %v6126
        %v6386 = vmax.f32 %v6003, %v6127
        %v6387 = vmax.f32 %v6004, %v6128
        %v6388 = vmax.f32 %v6005, %v6129
        %v6389 = vmax.f32 %v6006, %v6130
        %v6390 = vmax.f32 %v6007, %v6131
        %v6391 = vmax.f32 %v6008, %v6132
        %v6392 = vmax.f32 %v6009, %v6133
        %v6393 = vmax.f32 %v6253, %v6377
        %v6394 = vmax.f32 %v6254, %v6378
        %v6395 = vmax.f32 %v6255, %v6379
        %v6396 = vmax.f32 %v6256, %v6380
        %v6397 = vmax.f32 %v6257, %v6381
        %v6398 = vmax.f32 %v6258, %v6382
        %v6399 = vmax.f32 %v6259, %v6383
        %v6400 = vmax.f32 %v6260, %v6384
        %v6401 = vmax.f32 %v6385, %v6393
        %v6402 = vmax.f32 %v6386, %v6394
        %v6403 = vmax.f32 %v6387, %v6395
        %v6404 = vmax.f32 %v6388, %v6396
        %v6405 = vmax.f32 %v6389, %v6397
        %v6406 = vmax.f32 %v6390, %v6398
        %v6407 = vmax.f32 %v6391, %v6399
        %v6408 = vmax.f32 %v6392, %v6400
        %v6409 = vld [vmem:[%s6] sm:$0x3]
        %v6411 = vperm.slane %v6409, 0
        %v6412 = vperm.slane %v6409, 1
        %v6415 = vadd.f32 %v6401, %v6411
        %v6416 = vadd.f32 %v6402, %v6412
        %v6417 = vadd.f32 %v6403, %v6411
        %v6418 = vadd.f32 %v6404, %v6412
        %v6419 = vadd.f32 %v6405, %v6411
        %v6420 = vadd.f32 %v6406, %v6412
        %v6421 = vadd.f32 %v6407, %v6411
        %v6422 = vadd.f32 %v6408, %v6412
        %v6423 = vmax.f32 %v6415, 0.0
        %v6424 = vmax.f32 %v6416, 0.0
        %v6425 = vmax.f32 %v6417, 0.0
        %v6426 = vmax.f32 %v6418, 0.0
        %v6427 = vmax.f32 %v6419, 0.0
        %v6428 = vmax.f32 %v6420, 0.0
        %v6429 = vmax.f32 %v6421, 0.0
        %v6430 = vmax.f32 %v6422, 0.0
        %v6431 = vld [vmem:[%s7] sm:$0xff]
        %v6432 = vld [vmem:[%s7 + $0x8] sm:$0xff]
        %v6433 = vld [vmem:[%s7 + $0x10] sm:$0xff]
        %v6434 = vld [vmem:[%s7 + $0x18] sm:$0xff]
        %v6435 = vld [vmem:[%s7 + $0x20] sm:$0xff]
        %v6436 = vld [vmem:[%s7 + $0x28] sm:$0xff]
        %v6437 = vld [vmem:[%s7 + $0x30] sm:$0xff]
        %v6438 = vld [vmem:[%s7 + $0x38] sm:$0xff]
        %v6439 = vld [vmem:[%s7 + $0x40] sm:$0xff]
        %v6440 = vld [vmem:[%s7 + $0x48] sm:$0xff]
        %v6441 = vld [vmem:[%s7 + $0x50] sm:$0xff]
        %v6442 = vld [vmem:[%s7 + $0x58] sm:$0xff]
        %v6443 = vld [vmem:[%s7 + $0x60] sm:$0xff]
        %v6444 = vld [vmem:[%s7 + $0x68] sm:$0xff]
        %v6445 = vld [vmem:[%s7 + $0x70] sm:$0xff]
        %v6446 = vld [vmem:[%s7 + $0x78] sm:$0xff]
        %v6447 = vld [vmem:[%s7 + $0x80] sm:$0xff]
        %v6448 = vld [vmem:[%s7 + $0x88] sm:$0xff]
        %v6449 = vld [vmem:[%s7 + $0x90] sm:$0xff]
        %v6450 = vld [vmem:[%s7 + $0x98] sm:$0xff]
        %v6451 = vld [vmem:[%s7 + $0xa0] sm:$0xff]
        %v6452 = vld [vmem:[%s7 + $0xa8] sm:$0xff]
        %v6453 = vld [vmem:[%s7 + $0xb0] sm:$0xff]
        %v6454 = vld [vmem:[%s7 + $0xb8] sm:$0xff]
        %v6455 = vld [vmem:[%s7 + $0xc0] sm:$0xff]
        %v6456 = vld [vmem:[%s7 + $0xc8] sm:$0xff]
        %v6457 = vld [vmem:[%s7 + $0xd0] sm:$0xff]
        %v6458 = vld [vmem:[%s7 + $0xd8] sm:$0xff]
        %v6459 = vld [vmem:[%s7 + $0xe0] sm:$0xff]
        %v6460 = vld [vmem:[%s7 + $0xe8] sm:$0xff]
        %v6461 = vld [vmem:[%s7 + $0xf0] sm:$0xff]
        %v6462 = vld [vmem:[%s7 + $0xf8] sm:$0xff]
        %v6463 = vld [vmem:[%s7 + $0x100] sm:$0xff]
        %v6464 = vld [vmem:[%s7 + $0x108] sm:$0xff]
        %v6465 = vld [vmem:[%s7 + $0x110] sm:$0xff]
        %v6466 = vld [vmem:[%s7 + $0x118] sm:$0xff]
        %v6467 = vld [vmem:[%s7 + $0x120] sm:$0xff]
        %v6468 = vld [vmem:[%s7 + $0x128] sm:$0xff]
        %v6469 = vld [vmem:[%s7 + $0x130] sm:$0xff]
        %v6470 = vld [vmem:[%s7 + $0x138] sm:$0xff]
        %v6471 = vld [vmem:[%s7 + $0x140] sm:$0xff]
        %v6472 = vld [vmem:[%s7 + $0x148] sm:$0xff]
        %v6473 = vld [vmem:[%s7 + $0x150] sm:$0xff]
        %v6474 = vld [vmem:[%s7 + $0x158] sm:$0xff]
        %v6475 = vld [vmem:[%s7 + $0x160] sm:$0xff]
        %v6476 = vld [vmem:[%s7 + $0x168] sm:$0xff]
        %v6477 = vld [vmem:[%s7 + $0x170] sm:$0xff]
        %v6478 = vld [vmem:[%s7 + $0x178] sm:$0xff]
        %v6479 = vld [vmem:[%s7 + $0x180] sm:$0xff]
        %v6480 = vld [vmem:[%s7 + $0x188] sm:$0xff]
        %v6481 = vld [vmem:[%s7 + $0x190] sm:$0xff]
        %v6482 = vld [vmem:[%s7 + $0x198] sm:$0xff]
        %v6483 = vld [vmem:[%s7 + $0x1a0] sm:$0xff]
        %v6484 = vld [vmem:[%s7 + $0x1a8] sm:$0xff]
        %v6485 = vld [vmem:[%s7 + $0x1b0] sm:$0xff]
        %v6486 = vld [vmem:[%s7 + $0x1b8] sm:$0xff]
        %v6487 = vld [vmem:[%s7 + $0x1c0] sm:$0xff]
        %v6488 = vld [vmem:[%s7 + $0x1c8] sm:$0xff]
        %v6489 = vld [vmem:[%s7 + $0x1d0] sm:$0xff]
        %v6490 = vld [vmem:[%s7 + $0x1d8] sm:$0xff]
        %v6491 = vld [vmem:[%s7 + $0x1e0] sm:$0xff]
        %v6492 = vld [vmem:[%s7 + $0x1e8] sm:$0xff]
        %v6493 = vld [vmem:[%s7 + $0x1f0] sm:$0xff]
        %v6494 = vld [vmem:[%s7 + $0x1f8] sm:$0xff]
        %v6495 = vld [vmem:[%s7 + $0x200] sm:$0xff]
        %v6496 = vld [vmem:[%s7 + $0x208] sm:$0xff]
        %v6497 = vld [vmem:[%s7 + $0x210] sm:$0xff]
        %v6498 = vld [vmem:[%s7 + $0x218] sm:$0xff]
        %v6499 = vld [vmem:[%s7 + $0x220] sm:$0xff]
        %v6500 = vld [vmem:[%s7 + $0x228] sm:$0xff]
        %v6501 = vld [vmem:[%s7 + $0x230] sm:$0xff]
        %v6502 = vld [vmem:[%s7 + $0x238] sm:$0xff]
        %v6503 = vld [vmem:[%s7 + $0x240] sm:$0xff]
        %v6504 = vld [vmem:[%s7 + $0x248] sm:$0xff]
        %v6505 = vld [vmem:[%s7 + $0x250] sm:$0xff]
        %v6506 = vld [vmem:[%s7 + $0x258] sm:$0xff]
        %v6507 = vld [vmem:[%s7 + $0x260] sm:$0xff]
        %v6508 = vld [vmem:[%s7 + $0x268] sm:$0xff]
        %v6509 = vld [vmem:[%s7 + $0x270] sm:$0xff]
        %v6510 = vld [vmem:[%s7 + $0x278] sm:$0xff]
        %v6511 = vld [vmem:[%s7 + $0x280] sm:$0xff]
        %v6512 = vld [vmem:[%s7 + $0x288] sm:$0xff]
        %v6513 = vld [vmem:[%s7 + $0x290] sm:$0xff]
        %v6514 = vld [vmem:[%s7 + $0x298] sm:$0xff]
        %v6515 = vld [vmem:[%s7 + $0x2a0] sm:$0xff]
        %v6516 = vld [vmem:[%s7 + $0x2a8] sm:$0xff]
        %v6517 = vld [vmem:[%s7 + $0x2b0] sm:$0xff]
        %v6518 = vld [vmem:[%s7 + $0x2b8] sm:$0xff]
        %v6519 = vld [vmem:[%s7 + $0x2c0] sm:$0xff]
        %v6520 = vld [vmem:[%s7 + $0x2c8] sm:$0xff]
        %v6521 = vld [vmem:[%s7 + $0x2d0] sm:$0xff]
        %v6522 = vld [vmem:[%s7 + $0x2d8] sm:$0xff]
        %v6523 = vld [vmem:[%s7 + $0x2e0] sm:$0xff]
        %v6524 = vld [vmem:[%s7 + $0x2e8] sm:$0xff]
        %v6525 = vld [vmem:[%s7 + $0x2f0] sm:$0xff]
        %v6526 = vld [vmem:[%s7 + $0x2f8] sm:$0xff]
        %v6527 = vld [vmem:[%s7 + $0x300] sm:$0xff]
        %v6528 = vld [vmem:[%s7 + $0x308] sm:$0xff]
        %v6529 = vld [vmem:[%s7 + $0x310] sm:$0xff]
        %v6530 = vld [vmem:[%s7 + $0x318] sm:$0xff]
        %s6531 = scalar_lea.vmem %s7, 800
        %v6532 = vld [vmem:[%s6531] sm:$0xff]
        %v6533 = vld [vmem:[%s6531 + $0x8] sm:$0xff]
        %v6534 = vld [vmem:[%s6531 + $0x10] sm:$0xff]
        %v6535 = vld [vmem:[%s6531 + $0x18] sm:$0xff]
        %v6536 = vld [vmem:[%s6531 + $0x20] sm:$0xff]
        %v6537 = vld [vmem:[%s6531 + $0x28] sm:$0xff]
        %v6538 = vld [vmem:[%s6531 + $0x30] sm:$0xff]
        %v6539 = vld [vmem:[%s6531 + $0x38] sm:$0xff]
        %v6540 = vld [vmem:[%s6531 + $0x40] sm:$0xff]
        %v6541 = vld [vmem:[%s6531 + $0x48] sm:$0xff]
        %v6542 = vld [vmem:[%s6531 + $0x50] sm:$0xff]
        %v6543 = vld [vmem:[%s6531 + $0x58] sm:$0xff]
        %v6544 = vld [vmem:[%s6531 + $0x60] sm:$0xff]
        %v6545 = vld [vmem:[%s6531 + $0x68] sm:$0xff]
        %v6546 = vld [vmem:[%s6531 + $0x70] sm:$0xff]
        %v6547 = vld [vmem:[%s6531 + $0x78] sm:$0xff]
        %v6548 = vld [vmem:[%s6531 + $0x80] sm:$0xff]
        %v6549 = vld [vmem:[%s6531 + $0x88] sm:$0xff]
        %v6550 = vld [vmem:[%s6531 + $0x90] sm:$0xff]
        %v6551 = vld [vmem:[%s6531 + $0x98] sm:$0xff]
        %v6552 = vld [vmem:[%s6531 + $0xa0] sm:$0xff]
        %v6553 = vld [vmem:[%s6531 + $0xa8] sm:$0xff]
        %v6554 = vld [vmem:[%s6531 + $0xb0] sm:$0xff]
        %v6555 = vld [vmem:[%s6531 + $0xb8] sm:$0xff]
        %v6556 = vld [vmem:[%s6531 + $0xc0] sm:$0xff]
        %v6557 = vld [vmem:[%s6531 + $0xc8] sm:$0xff]
        %v6558 = vld [vmem:[%s6531 + $0xd0] sm:$0xff]
        %v6559 = vld [vmem:[%s6531 + $0xd8] sm:$0xff]
        %v6560 = vld [vmem:[%s6531 + $0xe0] sm:$0xff]
        %v6561 = vld [vmem:[%s6531 + $0xe8] sm:$0xff]
        %v6562 = vld [vmem:[%s6531 + $0xf0] sm:$0xff]
        %v6563 = vld [vmem:[%s6531 + $0xf8] sm:$0xff]
        %v6564 = vld [vmem:[%s6531 + $0x100] sm:$0xff]
        %v6565 = vld [vmem:[%s6531 + $0x108] sm:$0xff]
        %v6566 = vld [vmem:[%s6531 + $0x110] sm:$0xff]
        %v6567 = vld [vmem:[%s6531 + $0x118] sm:$0xff]
        %v6568 = vld [vmem:[%s6531 + $0x120] sm:$0xff]
        %v6569 = vld [vmem:[%s6531 + $0x128] sm:$0xff]
        %v6570 = vld [vmem:[%s6531 + $0x130] sm:$0xff]
        %v6571 = vld [vmem:[%s6531 + $0x138] sm:$0xff]
        %v6572 = vld [vmem:[%s6531 + $0x140] sm:$0xff]
        %v6573 = vld [vmem:[%s6531 + $0x148] sm:$0xff]
        %v6574 = vld [vmem:[%s6531 + $0x150] sm:$0xff]
        %v6575 = vld [vmem:[%s6531 + $0x158] sm:$0xff]
        %v6576 = vld [vmem:[%s6531 + $0x160] sm:$0xff]
        %v6577 = vld [vmem:[%s6531 + $0x168] sm:$0xff]
        %v6578 = vld [vmem:[%s6531 + $0x170] sm:$0xff]
        %v6579 = vld [vmem:[%s6531 + $0x178] sm:$0xff]
        %v6580 = vld [vmem:[%s6531 + $0x180] sm:$0xff]
        %v6581 = vld [vmem:[%s6531 + $0x188] sm:$0xff]
        %v6582 = vld [vmem:[%s6531 + $0x190] sm:$0xff]
        %v6583 = vld [vmem:[%s6531 + $0x198] sm:$0xff]
        %v6584 = vld [vmem:[%s6531 + $0x1a0] sm:$0xff]
        %v6585 = vld [vmem:[%s6531 + $0x1a8] sm:$0xff]
        %v6586 = vld [vmem:[%s6531 + $0x1b0] sm:$0xff]
        %v6587 = vld [vmem:[%s6531 + $0x1b8] sm:$0xff]
        %v6588 = vld [vmem:[%s6531 + $0x1c0] sm:$0xff]
        %v6589 = vld [vmem:[%s6531 + $0x1c8] sm:$0xff]
        %v6590 = vld [vmem:[%s6531 + $0x1d0] sm:$0xff]
        %v6591 = vld [vmem:[%s6531 + $0x1d8] sm:$0xff]
        %v6592 = vld [vmem:[%s6531 + $0x1e0] sm:$0xff]
        %v6593 = vld [vmem:[%s6531 + $0x1e8] sm:$0xff]
        %v6594 = vld [vmem:[%s6531 + $0x1f0] sm:$0xff]
        %v6595 = vld [vmem:[%s6531 + $0x1f8] sm:$0xff]
        %v6596 = vld [vmem:[%s6531 + $0x200] sm:$0xff]
        %v6597 = vld [vmem:[%s6531 + $0x208] sm:$0xff]
        %v6598 = vld [vmem:[%s6531 + $0x210] sm:$0xff]
        %v6599 = vld [vmem:[%s6531 + $0x218] sm:$0xff]
        %v6600 = vld [vmem:[%s6531 + $0x220] sm:$0xff]
        %v6601 = vld [vmem:[%s6531 + $0x228] sm:$0xff]
        %v6602 = vld [vmem:[%s6531 + $0x230] sm:$0xff]
        %v6603 = vld [vmem:[%s6531 + $0x238] sm:$0xff]
        %v6604 = vld [vmem:[%s6531 + $0x240] sm:$0xff]
        %v6605 = vld [vmem:[%s6531 + $0x248] sm:$0xff]
        %v6606 = vld [vmem:[%s6531 + $0x250] sm:$0xff]
        %v6607 = vld [vmem:[%s6531 + $0x258] sm:$0xff]
        %v6608 = vld [vmem:[%s6531 + $0x260] sm:$0xff]
        %v6609 = vld [vmem:[%s6531 + $0x268] sm:$0xff]
        %v6610 = vld [vmem:[%s6531 + $0x270] sm:$0xff]
        %v6611 = vld [vmem:[%s6531 + $0x278] sm:$0xff]
        %v6612 = vld [vmem:[%s6531 + $0x280] sm:$0xff]
        %v6613 = vld [vmem:[%s6531 + $0x288] sm:$0xff]
        %v6614 = vld [vmem:[%s6531 + $0x290] sm:$0xff]
        %v6615 = vld [vmem:[%s6531 + $0x298] sm:$0xff]
        %v6616 = vld [vmem:[%s6531 + $0x2a0] sm:$0xff]
        %v6617 = vld [vmem:[%s6531 + $0x2a8] sm:$0xff]
        %v6618 = vld [vmem:[%s6531 + $0x2b0] sm:$0xff]
        %v6619 = vld [vmem:[%s6531 + $0x2b8] sm:$0xff]
        %v6620 = vld [vmem:[%s6531 + $0x2c0] sm:$0xff]
        %v6621 = vld [vmem:[%s6531 + $0x2c8] sm:$0xff]
        %v6622 = vld [vmem:[%s6531 + $0x2d0] sm:$0xff]
        %v6623 = vld [vmem:[%s6531 + $0x2d8] sm:$0xff]
        %v6624 = vld [vmem:[%s6531 + $0x2e0] sm:$0xff]
        %v6625 = vld [vmem:[%s6531 + $0x2e8] sm:$0xff]
        %v6626 = vld [vmem:[%s6531 + $0x2f0] sm:$0xff]
        %v6627 = vld [vmem:[%s6531 + $0x2f8] sm:$0xff]
        %v6628 = vld [vmem:[%s6531 + $0x300] sm:$0xff]
        %v6629 = vld [vmem:[%s6531 + $0x308] sm:$0xff]
        %v6630 = vld [vmem:[%s6531 + $0x310] sm:$0xff]
        %v6631 = vld [vmem:[%s6531 + $0x318] sm:$0xff]
        %vm6632 = vcmask 588800
        %v6634 = vsel %vm6632, %v6426, 0
        %6636 = vmatpush.msra.mxu0 %v6592
        %6637 = vmatpush.msra.mxu0 %v6588
        %6638 = vmatpush.msra.mxu0 %v6584
        %6639 = vmatpush.msra.mxu0 %v6580
        %6640 = vmatpush.msra.mxu0 %v6576
        %6641 = vmatpush.msra.mxu0 %v6572
        %6642 = vmatpush.msra.mxu0 %v6568
        %6643 = vmatpush.msra.mxu0 %v6564
        %6644 = vmatpush.msra.mxu0 %v6560
        %6645 = vmatpush.msra.mxu0 %v6556
        %6646 = vmatpush.msra.mxu0 %v6552
        %6647 = vmatpush.msra.mxu0 %v6548
        %6648 = vmatpush.msra.mxu0 %v6544
        %6649 = vmatpush.msra.mxu0 %v6540
        %6650 = vmatpush.msra.mxu0 %v6536
        %6651 = vmatpush.msra.mxu0 %v6532
        %6652 = vmatmul.f32.gmra.mxu0 %v6425
        %v6653 = vpop.f32.mrf.mxu0
        %v6654 = vadd.f32 0.0, %v6653
        %6655 = vdwg.mxu0
        %6656 = vmatpush.msra.mxu0 0.0
        %6657 = vmatpush.msra.mxu0 0.0
        %6658 = vmatpush.msra.mxu0 0.0
        %6659 = vmatpush.msra.mxu0 0.0
        %6660 = vmatpush.msra.mxu0 0.0
        %6661 = vmatpush.msra.mxu0 0.0
        %6662 = vmatpush.msra.mxu0 0.0
        %6663 = vmatpush.msra.mxu0 %v6628
        %6664 = vmatpush.msra.mxu0 %v6624
        %6665 = vmatpush.msra.mxu0 %v6620
        %6666 = vmatpush.msra.mxu0 %v6616
        %6667 = vmatpush.msra.mxu0 %v6612
        %6668 = vmatpush.msra.mxu0 %v6608
        %6669 = vmatpush.msra.mxu0 %v6604
        %6670 = vmatpush.msra.mxu0 %v6600
        %6671 = vmatpush.msra.mxu0 %v6596
        %6672 = vmatmul.f32.gmra.mxu0 %v6634
        %v6673 = vpop.f32.mrf.mxu0
        %v6674 = vadd.f32 %v6654, %v6673
        %6675 = vdwg.mxu0
        %6676 = vmatpush.msra.mxu0 %v6593
        %6677 = vmatpush.msra.mxu0 %v6589
        %6678 = vmatpush.msra.mxu0 %v6585
        %6679 = vmatpush.msra.mxu0 %v6581
        %6680 = vmatpush.msra.mxu0 %v6577
        %6681 = vmatpush.msra.mxu0 %v6573
        %6682 = vmatpush.msra.mxu0 %v6569
        %6683 = vmatpush.msra.mxu0 %v6565
        %6684 = vmatpush.msra.mxu0 %v6561
        %6685 = vmatpush.msra.mxu0 %v6557
        %6686 = vmatpush.msra.mxu0 %v6553
        %6687 = vmatpush.msra.mxu0 %v6549
        %6688 = vmatpush.msra.mxu0 %v6545
        %6689 = vmatpush.msra.mxu0 %v6541
        %6690 = vmatpush.msra.mxu0 %v6537
        %6691 = vmatpush.msra.mxu0 %v6533
        %6692 = vmatmul.f32.gmra.mxu0 %v6425
        %v6693 = vpop.f32.mrf.mxu0
        %v6694 = vadd.f32 0.0, %v6693
        %6695 = vdwg.mxu0
        %6696 = vmatpush.msra.mxu0 0.0
        %6697 = vmatpush.msra.mxu0 0.0
        %6698 = vmatpush.msra.mxu0 0.0
        %6699 = vmatpush.msra.mxu0 0.0
        %6700 = vmatpush.msra.mxu0 0.0
        %6701 = vmatpush.msra.mxu0 0.0
        %6702 = vmatpush.msra.mxu0 0.0
        %6703 = vmatpush.msra.mxu0 %v6629
        %6704 = vmatpush.msra.mxu0 %v6625
        %6705 = vmatpush.msra.mxu0 %v6621
        %6706 = vmatpush.msra.mxu0 %v6617
        %6707 = vmatpush.msra.mxu0 %v6613
        %6708 = vmatpush.msra.mxu0 %v6609
        %6709 = vmatpush.msra.mxu0 %v6605
        %6710 = vmatpush.msra.mxu0 %v6601
        %6711 = vmatpush.msra.mxu0 %v6597
        %6712 = vmatmul.f32.gmra.mxu0 %v6634
        %v6713 = vpop.f32.mrf.mxu0
        %v6714 = vadd.f32 %v6694, %v6713
        %6715 = vdwg.mxu0
        %6716 = vmatpush.msra.mxu0 %v6594
        %6717 = vmatpush.msra.mxu0 %v6590
        %6718 = vmatpush.msra.mxu0 %v6586
        %6719 = vmatpush.msra.mxu0 %v6582
        %6720 = vmatpush.msra.mxu0 %v6578
        %6721 = vmatpush.msra.mxu0 %v6574
        %6722 = vmatpush.msra.mxu0 %v6570
        %6723 = vmatpush.msra.mxu0 %v6566
        %6724 = vmatpush.msra.mxu0 %v6562
        %6725 = vmatpush.msra.mxu0 %v6558
        %6726 = vmatpush.msra.mxu0 %v6554
        %6727 = vmatpush.msra.mxu0 %v6550
        %6728 = vmatpush.msra.mxu0 %v6546
        %6729 = vmatpush.msra.mxu0 %v6542
        %6730 = vmatpush.msra.mxu0 %v6538
        %6731 = vmatpush.msra.mxu0 %v6534
        %6732 = vmatmul.f32.gmra.mxu0 %v6425
        %v6733 = vpop.f32.mrf.mxu0
        %v6734 = vadd.f32 0.0, %v6733
        %6735 = vdwg.mxu0
        %6736 = vmatpush.msra.mxu0 0.0
        %6737 = vmatpush.msra.mxu0 0.0
        %6738 = vmatpush.msra.mxu0 0.0
        %6739 = vmatpush.msra.mxu0 0.0
        %6740 = vmatpush.msra.mxu0 0.0
        %6741 = vmatpush.msra.mxu0 0.0
        %6742 = vmatpush.msra.mxu0 0.0
        %6743 = vmatpush.msra.mxu0 %v6630
        %6744 = vmatpush.msra.mxu0 %v6626
        %6745 = vmatpush.msra.mxu0 %v6622
        %6746 = vmatpush.msra.mxu0 %v6618
        %6747 = vmatpush.msra.mxu0 %v6614
        %6748 = vmatpush.msra.mxu0 %v6610
        %6749 = vmatpush.msra.mxu0 %v6606
        %6750 = vmatpush.msra.mxu0 %v6602
        %6751 = vmatpush.msra.mxu0 %v6598
        %6752 = vmatmul.f32.gmra.mxu0 %v6634
        %v6753 = vpop.f32.mrf.mxu0
        %v6754 = vadd.f32 %v6734, %v6753
        %6755 = vdwg.mxu0
        %6756 = vmatpush.msra.mxu0 %v6595
        %6757 = vmatpush.msra.mxu0 %v6591
        %6758 = vmatpush.msra.mxu0 %v6587
        %6759 = vmatpush.msra.mxu0 %v6583
        %6760 = vmatpush.msra.mxu0 %v6579
        %6761 = vmatpush.msra.mxu0 %v6575
        %6762 = vmatpush.msra.mxu0 %v6571
        %6763 = vmatpush.msra.mxu0 %v6567
        %6764 = vmatpush.msra.mxu0 %v6563
        %6765 = vmatpush.msra.mxu0 %v6559
        %6766 = vmatpush.msra.mxu0 %v6555
        %6767 = vmatpush.msra.mxu0 %v6551
        %6768 = vmatpush.msra.mxu0 %v6547
        %6769 = vmatpush.msra.mxu0 %v6543
        %6770 = vmatpush.msra.mxu0 %v6539
        %6771 = vmatpush.msra.mxu0 %v6535
        %6772 = vmatmul.f32.gmra.mxu0 %v6425
        %v6773 = vpop.f32.mrf.mxu0
        %v6774 = vadd.f32 0.0, %v6773
        %6775 = vdwg.mxu0
        %6776 = vmatpush.msra.mxu0 0.0
        %6777 = vmatpush.msra.mxu0 0.0
        %6778 = vmatpush.msra.mxu0 0.0
        %6779 = vmatpush.msra.mxu0 0.0
        %6780 = vmatpush.msra.mxu0 0.0
        %6781 = vmatpush.msra.mxu0 0.0
        %6782 = vmatpush.msra.mxu0 0.0
        %6783 = vmatpush.msra.mxu0 %v6631
        %6784 = vmatpush.msra.mxu0 %v6627
        %6785 = vmatpush.msra.mxu0 %v6623
        %6786 = vmatpush.msra.mxu0 %v6619
        %6787 = vmatpush.msra.mxu0 %v6615
        %6788 = vmatpush.msra.mxu0 %v6611
        %6789 = vmatpush.msra.mxu0 %v6607
        %6790 = vmatpush.msra.mxu0 %v6603
        %6791 = vmatpush.msra.mxu0 %v6599
        %6792 = vmatmul.f32.gmra.mxu0 %v6634
        %v6793 = vpop.f32.mrf.mxu0
        %v6794 = vadd.f32 %v6774, %v6793
        %6795 = vdwg.mxu0
        %v6797 = vsel %vm6632, %v6424, 0
        %6799 = vmatpush.msra.mxu0 %v6491
        %6800 = vmatpush.msra.mxu0 %v6487
        %6801 = vmatpush.msra.mxu0 %v6483
        %6802 = vmatpush.msra.mxu0 %v6479
        %6803 = vmatpush.msra.mxu0 %v6475
        %6804 = vmatpush.msra.mxu0 %v6471
        %6805 = vmatpush.msra.mxu0 %v6467
        %6806 = vmatpush.msra.mxu0 %v6463
        %6807 = vmatpush.msra.mxu0 %v6459
        %6808 = vmatpush.msra.mxu0 %v6455
        %6809 = vmatpush.msra.mxu0 %v6451
        %6810 = vmatpush.msra.mxu0 %v6447
        %6811 = vmatpush.msra.mxu0 %v6443
        %6812 = vmatpush.msra.mxu0 %v6439
        %6813 = vmatpush.msra.mxu0 %v6435
        %6814 = vmatpush.msra.mxu0 %v6431
        %6815 = vmatmul.f32.gmra.mxu0 %v6423
        %v6816 = vpop.f32.mrf.mxu0
        %v6817 = vadd.f32 %v6674, %v6816
        %6818 = vdwg.mxu0
        %6819 = vmatpush.msra.mxu0 0.0
        %6820 = vmatpush.msra.mxu0 0.0
        %6821 = vmatpush.msra.mxu0 0.0
        %6822 = vmatpush.msra.mxu0 0.0
        %6823 = vmatpush.msra.mxu0 0.0
        %6824 = vmatpush.msra.mxu0 0.0
        %6825 = vmatpush.msra.mxu0 0.0
        %6826 = vmatpush.msra.mxu0 %v6527
        %6827 = vmatpush.msra.mxu0 %v6523
        %6828 = vmatpush.msra.mxu0 %v6519
        %6829 = vmatpush.msra.mxu0 %v6515
        %6830 = vmatpush.msra.mxu0 %v6511
        %6831 = vmatpush.msra.mxu0 %v6507
        %6832 = vmatpush.msra.mxu0 %v6503
        %6833 = vmatpush.msra.mxu0 %v6499
        %6834 = vmatpush.msra.mxu0 %v6495
        %6835 = vmatmul.f32.gmra.mxu0 %v6797
        %v6836 = vpop.f32.mrf.mxu0
        %v6837 = vadd.f32 %v6817, %v6836
        %6838 = vdwg.mxu0
        %6839 = vmatpush.msra.mxu0 %v6492
        %6840 = vmatpush.msra.mxu0 %v6488
        %6841 = vmatpush.msra.mxu0 %v6484
        %6842 = vmatpush.msra.mxu0 %v6480
        %6843 = vmatpush.msra.mxu0 %v6476
        %6844 = vmatpush.msra.mxu0 %v6472
        %6845 = vmatpush.msra.mxu0 %v6468
        %6846 = vmatpush.msra.mxu0 %v6464
        %6847 = vmatpush.msra.mxu0 %v6460
        %6848 = vmatpush.msra.mxu0 %v6456
        %6849 = vmatpush.msra.mxu0 %v6452
        %6850 = vmatpush.msra.mxu0 %v6448
        %6851 = vmatpush.msra.mxu0 %v6444
        %6852 = vmatpush.msra.mxu0 %v6440
        %6853 = vmatpush.msra.mxu0 %v6436
        %6854 = vmatpush.msra.mxu0 %v6432
        %6855 = vmatmul.f32.gmra.mxu0 %v6423
        %v6856 = vpop.f32.mrf.mxu0
        %v6857 = vadd.f32 %v6714, %v6856
        %6858 = vdwg.mxu0
        %6859 = vmatpush.msra.mxu0 0.0
        %6860 = vmatpush.msra.mxu0 0.0
        %6861 = vmatpush.msra.mxu0 0.0
        %6862 = vmatpush.msra.mxu0 0.0
        %6863 = vmatpush.msra.mxu0 0.0
        %6864 = vmatpush.msra.mxu0 0.0
        %6865 = vmatpush.msra.mxu0 0.0
        %6866 = vmatpush.msra.mxu0 %v6528
        %6867 = vmatpush.msra.mxu0 %v6524
        %6868 = vmatpush.msra.mxu0 %v6520
        %6869 = vmatpush.msra.mxu0 %v6516
        %6870 = vmatpush.msra.mxu0 %v6512
        %6871 = vmatpush.msra.mxu0 %v6508
        %6872 = vmatpush.msra.mxu0 %v6504
        %6873 = vmatpush.msra.mxu0 %v6500
        %6874 = vmatpush.msra.mxu0 %v6496
        %6875 = vmatmul.f32.gmra.mxu0 %v6797
        %v6876 = vpop.f32.mrf.mxu0
        %v6877 = vadd.f32 %v6857, %v6876
        %6878 = vdwg.mxu0
        %6879 = vmatpush.msra.mxu0 %v6493
        %6880 = vmatpush.msra.mxu0 %v6489
        %6881 = vmatpush.msra.mxu0 %v6485
        %6882 = vmatpush.msra.mxu0 %v6481
        %6883 = vmatpush.msra.mxu0 %v6477
        %6884 = vmatpush.msra.mxu0 %v6473
        %6885 = vmatpush.msra.mxu0 %v6469
        %6886 = vmatpush.msra.mxu0 %v6465
        %6887 = vmatpush.msra.mxu0 %v6461
        %6888 = vmatpush.msra.mxu0 %v6457
        %6889 = vmatpush.msra.mxu0 %v6453
        %6890 = vmatpush.msra.mxu0 %v6449
        %6891 = vmatpush.msra.mxu0 %v6445
        %6892 = vmatpush.msra.mxu0 %v6441
        %6893 = vmatpush.msra.mxu0 %v6437
        %6894 = vmatpush.msra.mxu0 %v6433
        %6895 = vmatmul.f32.gmra.mxu0 %v6423
        %v6896 = vpop.f32.mrf.mxu0
        %v6897 = vadd.f32 %v6754, %v6896
        %6898 = vdwg.mxu0
        %6899 = vmatpush.msra.mxu0 0.0
        %6900 = vmatpush.msra.mxu0 0.0
        %6901 = vmatpush.msra.mxu0 0.0
        %6902 = vmatpush.msra.mxu0 0.0
        %6903 = vmatpush.msra.mxu0 0.0
        %6904 = vmatpush.msra.mxu0 0.0
        %6905 = vmatpush.msra.mxu0 0.0
        %6906 = vmatpush.msra.mxu0 %v6529
        %6907 = vmatpush.msra.mxu0 %v6525
        %6908 = vmatpush.msra.mxu0 %v6521
        %6909 = vmatpush.msra.mxu0 %v6517
        %6910 = vmatpush.msra.mxu0 %v6513
        %6911 = vmatpush.msra.mxu0 %v6509
        %6912 = vmatpush.msra.mxu0 %v6505
        %6913 = vmatpush.msra.mxu0 %v6501
        %6914 = vmatpush.msra.mxu0 %v6497
        %6915 = vmatmul.f32.gmra.mxu0 %v6797
        %v6916 = vpop.f32.mrf.mxu0
        %v6917 = vadd.f32 %v6897, %v6916
        %6918 = vdwg.mxu0
        %6919 = vmatpush.msra.mxu0 %v6494
        %6920 = vmatpush.msra.mxu0 %v6490
        %6921 = vmatpush.msra.mxu0 %v6486
        %6922 = vmatpush.msra.mxu0 %v6482
        %6923 = vmatpush.msra.mxu0 %v6478
        %6924 = vmatpush.msra.mxu0 %v6474
        %6925 = vmatpush.msra.mxu0 %v6470
        %6926 = vmatpush.msra.mxu0 %v6466
        %6927 = vmatpush.msra.mxu0 %v6462
        %6928 = vmatpush.msra.mxu0 %v6458
        %6929 = vmatpush.msra.mxu0 %v6454
        %6930 = vmatpush.msra.mxu0 %v6450
        %6931 = vmatpush.msra.mxu0 %v6446
        %6932 = vmatpush.msra.mxu0 %v6442
        %6933 = vmatpush.msra.mxu0 %v6438
        %6934 = vmatpush.msra.mxu0 %v6434
        %6935 = vmatmul.f32.gmra.mxu0 %v6423
        %v6936 = vpop.f32.mrf.mxu0
        %v6937 = vadd.f32 %v6794, %v6936
        %6938 = vdwg.mxu0
        %6939 = vmatpush.msra.mxu0 0.0
        %6940 = vmatpush.msra.mxu0 0.0
        %6941 = vmatpush.msra.mxu0 0.0
        %6942 = vmatpush.msra.mxu0 0.0
        %6943 = vmatpush.msra.mxu0 0.0
        %6944 = vmatpush.msra.mxu0 0.0
        %6945 = vmatpush.msra.mxu0 0.0
        %6946 = vmatpush.msra.mxu0 %v6530
        %6947 = vmatpush.msra.mxu0 %v6526
        %6948 = vmatpush.msra.mxu0 %v6522
        %6949 = vmatpush.msra.mxu0 %v6518
        %6950 = vmatpush.msra.mxu0 %v6514
        %6951 = vmatpush.msra.mxu0 %v6510
        %6952 = vmatpush.msra.mxu0 %v6506
        %6953 = vmatpush.msra.mxu0 %v6502
        %6954 = vmatpush.msra.mxu0 %v6498
        %6955 = vmatmul.f32.gmra.mxu0 %v6797
        %v6956 = vpop.f32.mrf.mxu0
        %v6957 = vadd.f32 %v6937, %v6956
        %6958 = vdwg.mxu0
        %s6959 = scalar_lea.vmem %s7, 1600
        %v6960 = vld [vmem:[%s6959] sm:$0xff]
        %v6961 = vld [vmem:[%s6959 + $0x8] sm:$0xff]
        %v6962 = vld [vmem:[%s6959 + $0x10] sm:$0xff]
        %v6963 = vld [vmem:[%s6959 + $0x18] sm:$0xff]
        %v6964 = vld [vmem:[%s6959 + $0x20] sm:$0xff]
        %v6965 = vld [vmem:[%s6959 + $0x28] sm:$0xff]
        %v6966 = vld [vmem:[%s6959 + $0x30] sm:$0xff]
        %v6967 = vld [vmem:[%s6959 + $0x38] sm:$0xff]
        %v6968 = vld [vmem:[%s6959 + $0x40] sm:$0xff]
        %v6969 = vld [vmem:[%s6959 + $0x48] sm:$0xff]
        %v6970 = vld [vmem:[%s6959 + $0x50] sm:$0xff]
        %v6971 = vld [vmem:[%s6959 + $0x58] sm:$0xff]
        %v6972 = vld [vmem:[%s6959 + $0x60] sm:$0xff]
        %v6973 = vld [vmem:[%s6959 + $0x68] sm:$0xff]
        %v6974 = vld [vmem:[%s6959 + $0x70] sm:$0xff]
        %v6975 = vld [vmem:[%s6959 + $0x78] sm:$0xff]
        %v6976 = vld [vmem:[%s6959 + $0x80] sm:$0xff]
        %v6977 = vld [vmem:[%s6959 + $0x88] sm:$0xff]
        %v6978 = vld [vmem:[%s6959 + $0x90] sm:$0xff]
        %v6979 = vld [vmem:[%s6959 + $0x98] sm:$0xff]
        %v6980 = vld [vmem:[%s6959 + $0xa0] sm:$0xff]
        %v6981 = vld [vmem:[%s6959 + $0xa8] sm:$0xff]
        %v6982 = vld [vmem:[%s6959 + $0xb0] sm:$0xff]
        %v6983 = vld [vmem:[%s6959 + $0xb8] sm:$0xff]
        %v6984 = vld [vmem:[%s6959 + $0xc0] sm:$0xff]
        %v6985 = vld [vmem:[%s6959 + $0xc8] sm:$0xff]
        %v6986 = vld [vmem:[%s6959 + $0xd0] sm:$0xff]
        %v6987 = vld [vmem:[%s6959 + $0xd8] sm:$0xff]
        %v6988 = vld [vmem:[%s6959 + $0xe0] sm:$0xff]
        %v6989 = vld [vmem:[%s6959 + $0xe8] sm:$0xff]
        %v6990 = vld [vmem:[%s6959 + $0xf0] sm:$0xff]
        %v6991 = vld [vmem:[%s6959 + $0xf8] sm:$0xff]
        %v6992 = vld [vmem:[%s6959 + $0x100] sm:$0xff]
        %v6993 = vld [vmem:[%s6959 + $0x108] sm:$0xff]
        %v6994 = vld [vmem:[%s6959 + $0x110] sm:$0xff]
        %v6995 = vld [vmem:[%s6959 + $0x118] sm:$0xff]
        %v6996 = vld [vmem:[%s6959 + $0x120] sm:$0xff]
        %v6997 = vld [vmem:[%s6959 + $0x128] sm:$0xff]
        %v6998 = vld [vmem:[%s6959 + $0x130] sm:$0xff]
        %v6999 = vld [vmem:[%s6959 + $0x138] sm:$0xff]
        %v7000 = vld [vmem:[%s6959 + $0x140] sm:$0xff]
        %v7001 = vld [vmem:[%s6959 + $0x148] sm:$0xff]
        %v7002 = vld [vmem:[%s6959 + $0x150] sm:$0xff]
        %v7003 = vld [vmem:[%s6959 + $0x158] sm:$0xff]
        %v7004 = vld [vmem:[%s6959 + $0x160] sm:$0xff]
        %v7005 = vld [vmem:[%s6959 + $0x168] sm:$0xff]
        %v7006 = vld [vmem:[%s6959 + $0x170] sm:$0xff]
        %v7007 = vld [vmem:[%s6959 + $0x178] sm:$0xff]
        %v7008 = vld [vmem:[%s6959 + $0x180] sm:$0xff]
        %v7009 = vld [vmem:[%s6959 + $0x188] sm:$0xff]
        %v7010 = vld [vmem:[%s6959 + $0x190] sm:$0xff]
        %v7011 = vld [vmem:[%s6959 + $0x198] sm:$0xff]
        %v7012 = vld [vmem:[%s6959 + $0x1a0] sm:$0xff]
        %v7013 = vld [vmem:[%s6959 + $0x1a8] sm:$0xff]
        %v7014 = vld [vmem:[%s6959 + $0x1b0] sm:$0xff]
        %v7015 = vld [vmem:[%s6959 + $0x1b8] sm:$0xff]
        %v7016 = vld [vmem:[%s6959 + $0x1c0] sm:$0xff]
        %v7017 = vld [vmem:[%s6959 + $0x1c8] sm:$0xff]
        %v7018 = vld [vmem:[%s6959 + $0x1d0] sm:$0xff]
        %v7019 = vld [vmem:[%s6959 + $0x1d8] sm:$0xff]
        %v7020 = vld [vmem:[%s6959 + $0x1e0] sm:$0xff]
        %v7021 = vld [vmem:[%s6959 + $0x1e8] sm:$0xff]
        %v7022 = vld [vmem:[%s6959 + $0x1f0] sm:$0xff]
        %v7023 = vld [vmem:[%s6959 + $0x1f8] sm:$0xff]
        %v7024 = vld [vmem:[%s6959 + $0x200] sm:$0xff]
        %v7025 = vld [vmem:[%s6959 + $0x208] sm:$0xff]
        %v7026 = vld [vmem:[%s6959 + $0x210] sm:$0xff]
        %v7027 = vld [vmem:[%s6959 + $0x218] sm:$0xff]
        %v7028 = vld [vmem:[%s6959 + $0x220] sm:$0xff]
        %v7029 = vld [vmem:[%s6959 + $0x228] sm:$0xff]
        %v7030 = vld [vmem:[%s6959 + $0x230] sm:$0xff]
        %v7031 = vld [vmem:[%s6959 + $0x238] sm:$0xff]
        %v7032 = vld [vmem:[%s6959 + $0x240] sm:$0xff]
        %v7033 = vld [vmem:[%s6959 + $0x248] sm:$0xff]
        %v7034 = vld [vmem:[%s6959 + $0x250] sm:$0xff]
        %v7035 = vld [vmem:[%s6959 + $0x258] sm:$0xff]
        %v7036 = vld [vmem:[%s6959 + $0x260] sm:$0xff]
        %v7037 = vld [vmem:[%s6959 + $0x268] sm:$0xff]
        %v7038 = vld [vmem:[%s6959 + $0x270] sm:$0xff]
        %v7039 = vld [vmem:[%s6959 + $0x278] sm:$0xff]
        %v7040 = vld [vmem:[%s6959 + $0x280] sm:$0xff]
        %v7041 = vld [vmem:[%s6959 + $0x288] sm:$0xff]
        %v7042 = vld [vmem:[%s6959 + $0x290] sm:$0xff]
        %v7043 = vld [vmem:[%s6959 + $0x298] sm:$0xff]
        %v7044 = vld [vmem:[%s6959 + $0x2a0] sm:$0xff]
        %v7045 = vld [vmem:[%s6959 + $0x2a8] sm:$0xff]
        %v7046 = vld [vmem:[%s6959 + $0x2b0] sm:$0xff]
        %v7047 = vld [vmem:[%s6959 + $0x2b8] sm:$0xff]
        %v7048 = vld [vmem:[%s6959 + $0x2c0] sm:$0xff]
        %v7049 = vld [vmem:[%s6959 + $0x2c8] sm:$0xff]
        %v7050 = vld [vmem:[%s6959 + $0x2d0] sm:$0xff]
        %v7051 = vld [vmem:[%s6959 + $0x2d8] sm:$0xff]
        %v7052 = vld [vmem:[%s6959 + $0x2e0] sm:$0xff]
        %v7053 = vld [vmem:[%s6959 + $0x2e8] sm:$0xff]
        %v7054 = vld [vmem:[%s6959 + $0x2f0] sm:$0xff]
        %v7055 = vld [vmem:[%s6959 + $0x2f8] sm:$0xff]
        %v7056 = vld [vmem:[%s6959 + $0x300] sm:$0xff]
        %v7057 = vld [vmem:[%s6959 + $0x308] sm:$0xff]
        %v7058 = vld [vmem:[%s6959 + $0x310] sm:$0xff]
        %v7059 = vld [vmem:[%s6959 + $0x318] sm:$0xff]
        %v7061 = vsel %vm6632, %v6428, 0
        %7063 = vmatpush.msra.mxu0 %v7020
        %7064 = vmatpush.msra.mxu0 %v7016
        %7065 = vmatpush.msra.mxu0 %v7012
        %7066 = vmatpush.msra.mxu0 %v7008
        %7067 = vmatpush.msra.mxu0 %v7004
        %7068 = vmatpush.msra.mxu0 %v7000
        %7069 = vmatpush.msra.mxu0 %v6996
        %7070 = vmatpush.msra.mxu0 %v6992
        %7071 = vmatpush.msra.mxu0 %v6988
        %7072 = vmatpush.msra.mxu0 %v6984
        %7073 = vmatpush.msra.mxu0 %v6980
        %7074 = vmatpush.msra.mxu0 %v6976
        %7075 = vmatpush.msra.mxu0 %v6972
        %7076 = vmatpush.msra.mxu0 %v6968
        %7077 = vmatpush.msra.mxu0 %v6964
        %7078 = vmatpush.msra.mxu0 %v6960
        %7079 = vmatmul.f32.gmra.mxu0 %v6427
        %v7080 = vpop.f32.mrf.mxu0
        %v7081 = vadd.f32 0.0, %v7080
        %7082 = vdwg.mxu0
        %7083 = vmatpush.msra.mxu0 0.0
        %7084 = vmatpush.msra.mxu0 0.0
        %7085 = vmatpush.msra.mxu0 0.0
        %7086 = vmatpush.msra.mxu0 0.0
        %7087 = vmatpush.msra.mxu0 0.0
        %7088 = vmatpush.msra.mxu0 0.0
        %7089 = vmatpush.msra.mxu0 0.0
        %7090 = vmatpush.msra.mxu0 %v7056
        %7091 = vmatpush.msra.mxu0 %v7052
        %7092 = vmatpush.msra.mxu0 %v7048
        %7093 = vmatpush.msra.mxu0 %v7044
        %7094 = vmatpush.msra.mxu0 %v7040
        %7095 = vmatpush.msra.mxu0 %v7036
        %7096 = vmatpush.msra.mxu0 %v7032
        %7097 = vmatpush.msra.mxu0 %v7028
        %7098 = vmatpush.msra.mxu0 %v7024
        %7099 = vmatmul.f32.gmra.mxu0 %v7061
        %v7100 = vpop.f32.mrf.mxu0
        %v7101 = vadd.f32 %v7081, %v7100
        %7102 = vdwg.mxu0
        %7103 = vmatpush.msra.mxu0 %v7021
        %7104 = vmatpush.msra.mxu0 %v7017
        %7105 = vmatpush.msra.mxu0 %v7013
        %7106 = vmatpush.msra.mxu0 %v7009
        %7107 = vmatpush.msra.mxu0 %v7005
        %7108 = vmatpush.msra.mxu0 %v7001
        %7109 = vmatpush.msra.mxu0 %v6997
        %7110 = vmatpush.msra.mxu0 %v6993
        %7111 = vmatpush.msra.mxu0 %v6989
        %7112 = vmatpush.msra.mxu0 %v6985
        %7113 = vmatpush.msra.mxu0 %v6981
        %7114 = vmatpush.msra.mxu0 %v6977
        %7115 = vmatpush.msra.mxu0 %v6973
        %7116 = vmatpush.msra.mxu0 %v6969
        %7117 = vmatpush.msra.mxu0 %v6965
        %7118 = vmatpush.msra.mxu0 %v6961
        %7119 = vmatmul.f32.gmra.mxu0 %v6427
        %v7120 = vpop.f32.mrf.mxu0
        %v7121 = vadd.f32 0.0, %v7120
        %7122 = vdwg.mxu0
        %7123 = vmatpush.msra.mxu0 0.0
        %7124 = vmatpush.msra.mxu0 0.0
        %7125 = vmatpush.msra.mxu0 0.0
        %7126 = vmatpush.msra.mxu0 0.0
        %7127 = vmatpush.msra.mxu0 0.0
        %7128 = vmatpush.msra.mxu0 0.0
        %7129 = vmatpush.msra.mxu0 0.0
        %7130 = vmatpush.msra.mxu0 %v7057
        %7131 = vmatpush.msra.mxu0 %v7053
        %7132 = vmatpush.msra.mxu0 %v7049
        %7133 = vmatpush.msra.mxu0 %v7045
        %7134 = vmatpush.msra.mxu0 %v7041
        %7135 = vmatpush.msra.mxu0 %v7037
        %7136 = vmatpush.msra.mxu0 %v7033
        %7137 = vmatpush.msra.mxu0 %v7029
        %7138 = vmatpush.msra.mxu0 %v7025
        %7139 = vmatmul.f32.gmra.mxu0 %v7061
        %v7140 = vpop.f32.mrf.mxu0
        %v7141 = vadd.f32 %v7121, %v7140
        %7142 = vdwg.mxu0
        %7143 = vmatpush.msra.mxu0 %v7022
        %7144 = vmatpush.msra.mxu0 %v7018
        %7145 = vmatpush.msra.mxu0 %v7014
        %7146 = vmatpush.msra.mxu0 %v7010
        %7147 = vmatpush.msra.mxu0 %v7006
        %7148 = vmatpush.msra.mxu0 %v7002
        %7149 = vmatpush.msra.mxu0 %v6998
        %7150 = vmatpush.msra.mxu0 %v6994
        %7151 = vmatpush.msra.mxu0 %v6990
        %7152 = vmatpush.msra.mxu0 %v6986
        %7153 = vmatpush.msra.mxu0 %v6982
        %7154 = vmatpush.msra.mxu0 %v6978
        %7155 = vmatpush.msra.mxu0 %v6974
        %7156 = vmatpush.msra.mxu0 %v6970
        %7157 = vmatpush.msra.mxu0 %v6966
        %7158 = vmatpush.msra.mxu0 %v6962
        %7159 = vmatmul.f32.gmra.mxu0 %v6427
        %v7160 = vpop.f32.mrf.mxu0
        %v7161 = vadd.f32 0.0, %v7160
        %7162 = vdwg.mxu0
        %7163 = vmatpush.msra.mxu0 0.0
        %7164 = vmatpush.msra.mxu0 0.0
        %7165 = vmatpush.msra.mxu0 0.0
        %7166 = vmatpush.msra.mxu0 0.0
        %7167 = vmatpush.msra.mxu0 0.0
        %7168 = vmatpush.msra.mxu0 0.0
        %7169 = vmatpush.msra.mxu0 0.0
        %7170 = vmatpush.msra.mxu0 %v7058
        %7171 = vmatpush.msra.mxu0 %v7054
        %7172 = vmatpush.msra.mxu0 %v7050
        %7173 = vmatpush.msra.mxu0 %v7046
        %7174 = vmatpush.msra.mxu0 %v7042
        %7175 = vmatpush.msra.mxu0 %v7038
        %7176 = vmatpush.msra.mxu0 %v7034
        %7177 = vmatpush.msra.mxu0 %v7030
        %7178 = vmatpush.msra.mxu0 %v7026
        %7179 = vmatmul.f32.gmra.mxu0 %v7061
        %v7180 = vpop.f32.mrf.mxu0
        %v7181 = vadd.f32 %v7161, %v7180
        %7182 = vdwg.mxu0
        %7183 = vmatpush.msra.mxu0 %v7023
        %7184 = vmatpush.msra.mxu0 %v7019
        %7185 = vmatpush.msra.mxu0 %v7015
        %7186 = vmatpush.msra.mxu0 %v7011
        %7187 = vmatpush.msra.mxu0 %v7007
        %7188 = vmatpush.msra.mxu0 %v7003
        %7189 = vmatpush.msra.mxu0 %v6999
        %7190 = vmatpush.msra.mxu0 %v6995
        %7191 = vmatpush.msra.mxu0 %v6991
        %7192 = vmatpush.msra.mxu0 %v6987
        %7193 = vmatpush.msra.mxu0 %v6983
        %7194 = vmatpush.msra.mxu0 %v6979
        %7195 = vmatpush.msra.mxu0 %v6975
        %7196 = vmatpush.msra.mxu0 %v6971
        %7197 = vmatpush.msra.mxu0 %v6967
        %7198 = vmatpush.msra.mxu0 %v6963
        %7199 = vmatmul.f32.gmra.mxu0 %v6427
        %v7200 = vpop.f32.mrf.mxu0
        %v7201 = vadd.f32 0.0, %v7200
        %7202 = vdwg.mxu0
        %7203 = vmatpush.msra.mxu0 0.0
        %7204 = vmatpush.msra.mxu0 0.0
        %7205 = vmatpush.msra.mxu0 0.0
        %7206 = vmatpush.msra.mxu0 0.0
        %7207 = vmatpush.msra.mxu0 0.0
        %7208 = vmatpush.msra.mxu0 0.0
        %7209 = vmatpush.msra.mxu0 0.0
        %7210 = vmatpush.msra.mxu0 %v7059
        %7211 = vmatpush.msra.mxu0 %v7055
        %7212 = vmatpush.msra.mxu0 %v7051
        %7213 = vmatpush.msra.mxu0 %v7047
        %7214 = vmatpush.msra.mxu0 %v7043
        %7215 = vmatpush.msra.mxu0 %v7039
        %7216 = vmatpush.msra.mxu0 %v7035
        %7217 = vmatpush.msra.mxu0 %v7031
        %7218 = vmatpush.msra.mxu0 %v7027
        %7219 = vmatmul.f32.gmra.mxu0 %v7061
        %v7220 = vpop.f32.mrf.mxu0
        %v7221 = vadd.f32 %v7201, %v7220
        %7222 = vdwg.mxu0
        %v7223 = vadd.f32 %v6837, %v7101
        %v7224 = vadd.f32 %v6877, %v7141
        %v7225 = vadd.f32 %v6917, %v7181
        %v7226 = vadd.f32 %v6957, %v7221
        %s7227 = scalar_lea.vmem %s7, 2400
        %v7228 = vld [vmem:[%s7227] sm:$0xff]
        %v7229 = vld [vmem:[%s7227 + $0x8] sm:$0xff]
        %v7230 = vld [vmem:[%s7227 + $0x10] sm:$0xff]
        %v7231 = vld [vmem:[%s7227 + $0x18] sm:$0xff]
        %v7232 = vld [vmem:[%s7227 + $0x20] sm:$0xff]
        %v7233 = vld [vmem:[%s7227 + $0x28] sm:$0xff]
        %v7234 = vld [vmem:[%s7227 + $0x30] sm:$0xff]
        %v7235 = vld [vmem:[%s7227 + $0x38] sm:$0xff]
        %v7236 = vld [vmem:[%s7227 + $0x40] sm:$0xff]
        %v7237 = vld [vmem:[%s7227 + $0x48] sm:$0xff]
        %v7238 = vld [vmem:[%s7227 + $0x50] sm:$0xff]
        %v7239 = vld [vmem:[%s7227 + $0x58] sm:$0xff]
        %v7240 = vld [vmem:[%s7227 + $0x60] sm:$0xff]
        %v7241 = vld [vmem:[%s7227 + $0x68] sm:$0xff]
        %v7242 = vld [vmem:[%s7227 + $0x70] sm:$0xff]
        %v7243 = vld [vmem:[%s7227 + $0x78] sm:$0xff]
        %v7244 = vld [vmem:[%s7227 + $0x80] sm:$0xff]
        %v7245 = vld [vmem:[%s7227 + $0x88] sm:$0xff]
        %v7246 = vld [vmem:[%s7227 + $0x90] sm:$0xff]
        %v7247 = vld [vmem:[%s7227 + $0x98] sm:$0xff]
        %v7248 = vld [vmem:[%s7227 + $0xa0] sm:$0xff]
        %v7249 = vld [vmem:[%s7227 + $0xa8] sm:$0xff]
        %v7250 = vld [vmem:[%s7227 + $0xb0] sm:$0xff]
        %v7251 = vld [vmem:[%s7227 + $0xb8] sm:$0xff]
        %v7252 = vld [vmem:[%s7227 + $0xc0] sm:$0xff]
        %v7253 = vld [vmem:[%s7227 + $0xc8] sm:$0xff]
        %v7254 = vld [vmem:[%s7227 + $0xd0] sm:$0xff]
        %v7255 = vld [vmem:[%s7227 + $0xd8] sm:$0xff]
        %v7256 = vld [vmem:[%s7227 + $0xe0] sm:$0xff]
        %v7257 = vld [vmem:[%s7227 + $0xe8] sm:$0xff]
        %v7258 = vld [vmem:[%s7227 + $0xf0] sm:$0xff]
        %v7259 = vld [vmem:[%s7227 + $0xf8] sm:$0xff]
        %v7260 = vld [vmem:[%s7227 + $0x100] sm:$0xff]
        %v7261 = vld [vmem:[%s7227 + $0x108] sm:$0xff]
        %v7262 = vld [vmem:[%s7227 + $0x110] sm:$0xff]
        %v7263 = vld [vmem:[%s7227 + $0x118] sm:$0xff]
        %v7264 = vld [vmem:[%s7227 + $0x120] sm:$0xff]
        %v7265 = vld [vmem:[%s7227 + $0x128] sm:$0xff]
        %v7266 = vld [vmem:[%s7227 + $0x130] sm:$0xff]
        %v7267 = vld [vmem:[%s7227 + $0x138] sm:$0xff]
        %v7268 = vld [vmem:[%s7227 + $0x140] sm:$0xff]
        %v7269 = vld [vmem:[%s7227 + $0x148] sm:$0xff]
        %v7270 = vld [vmem:[%s7227 + $0x150] sm:$0xff]
        %v7271 = vld [vmem:[%s7227 + $0x158] sm:$0xff]
        %v7272 = vld [vmem:[%s7227 + $0x160] sm:$0xff]
        %v7273 = vld [vmem:[%s7227 + $0x168] sm:$0xff]
        %v7274 = vld [vmem:[%s7227 + $0x170] sm:$0xff]
        %v7275 = vld [vmem:[%s7227 + $0x178] sm:$0xff]
        %v7276 = vld [vmem:[%s7227 + $0x180] sm:$0xff]
        %v7277 = vld [vmem:[%s7227 + $0x188] sm:$0xff]
        %v7278 = vld [vmem:[%s7227 + $0x190] sm:$0xff]
        %v7279 = vld [vmem:[%s7227 + $0x198] sm:$0xff]
        %v7280 = vld [vmem:[%s7227 + $0x1a0] sm:$0xff]
        %v7281 = vld [vmem:[%s7227 + $0x1a8] sm:$0xff]
        %v7282 = vld [vmem:[%s7227 + $0x1b0] sm:$0xff]
        %v7283 = vld [vmem:[%s7227 + $0x1b8] sm:$0xff]
        %v7284 = vld [vmem:[%s7227 + $0x1c0] sm:$0xff]
        %v7285 = vld [vmem:[%s7227 + $0x1c8] sm:$0xff]
        %v7286 = vld [vmem:[%s7227 + $0x1d0] sm:$0xff]
        %v7287 = vld [vmem:[%s7227 + $0x1d8] sm:$0xff]
        %v7288 = vld [vmem:[%s7227 + $0x1e0] sm:$0xff]
        %v7289 = vld [vmem:[%s7227 + $0x1e8] sm:$0xff]
        %v7290 = vld [vmem:[%s7227 + $0x1f0] sm:$0xff]
        %v7291 = vld [vmem:[%s7227 + $0x1f8] sm:$0xff]
        %v7292 = vld [vmem:[%s7227 + $0x200] sm:$0xff]
        %v7293 = vld [vmem:[%s7227 + $0x208] sm:$0xff]
        %v7294 = vld [vmem:[%s7227 + $0x210] sm:$0xff]
        %v7295 = vld [vmem:[%s7227 + $0x218] sm:$0xff]
        %v7296 = vld [vmem:[%s7227 + $0x220] sm:$0xff]
        %v7297 = vld [vmem:[%s7227 + $0x228] sm:$0xff]
        %v7298 = vld [vmem:[%s7227 + $0x230] sm:$0xff]
        %v7299 = vld [vmem:[%s7227 + $0x238] sm:$0xff]
        %v7300 = vld [vmem:[%s7227 + $0x240] sm:$0xff]
        %v7301 = vld [vmem:[%s7227 + $0x248] sm:$0xff]
        %v7302 = vld [vmem:[%s7227 + $0x250] sm:$0xff]
        %v7303 = vld [vmem:[%s7227 + $0x258] sm:$0xff]
        %v7304 = vld [vmem:[%s7227 + $0x260] sm:$0xff]
        %v7305 = vld [vmem:[%s7227 + $0x268] sm:$0xff]
        %v7306 = vld [vmem:[%s7227 + $0x270] sm:$0xff]
        %v7307 = vld [vmem:[%s7227 + $0x278] sm:$0xff]
        %v7308 = vld [vmem:[%s7227 + $0x280] sm:$0xff]
        %v7309 = vld [vmem:[%s7227 + $0x288] sm:$0xff]
        %v7310 = vld [vmem:[%s7227 + $0x290] sm:$0xff]
        %v7311 = vld [vmem:[%s7227 + $0x298] sm:$0xff]
        %v7312 = vld [vmem:[%s7227 + $0x2a0] sm:$0xff]
        %v7313 = vld [vmem:[%s7227 + $0x2a8] sm:$0xff]
        %v7314 = vld [vmem:[%s7227 + $0x2b0] sm:$0xff]
        %v7315 = vld [vmem:[%s7227 + $0x2b8] sm:$0xff]
        %v7316 = vld [vmem:[%s7227 + $0x2c0] sm:$0xff]
        %v7317 = vld [vmem:[%s7227 + $0x2c8] sm:$0xff]
        %v7318 = vld [vmem:[%s7227 + $0x2d0] sm:$0xff]
        %v7319 = vld [vmem:[%s7227 + $0x2d8] sm:$0xff]
        %v7320 = vld [vmem:[%s7227 + $0x2e0] sm:$0xff]
        %v7321 = vld [vmem:[%s7227 + $0x2e8] sm:$0xff]
        %v7322 = vld [vmem:[%s7227 + $0x2f0] sm:$0xff]
        %v7323 = vld [vmem:[%s7227 + $0x2f8] sm:$0xff]
        %v7324 = vld [vmem:[%s7227 + $0x300] sm:$0xff]
        %v7325 = vld [vmem:[%s7227 + $0x308] sm:$0xff]
        %v7326 = vld [vmem:[%s7227 + $0x310] sm:$0xff]
        %v7327 = vld [vmem:[%s7227 + $0x318] sm:$0xff]
        %v7329 = vsel %vm6632, %v6430, 0
        %7331 = vmatpush.msra.mxu0 %v7288
        %7332 = vmatpush.msra.mxu0 %v7284
        %7333 = vmatpush.msra.mxu0 %v7280
        %7334 = vmatpush.msra.mxu0 %v7276
        %7335 = vmatpush.msra.mxu0 %v7272
        %7336 = vmatpush.msra.mxu0 %v7268
        %7337 = vmatpush.msra.mxu0 %v7264
        %7338 = vmatpush.msra.mxu0 %v7260
        %7339 = vmatpush.msra.mxu0 %v7256
        %7340 = vmatpush.msra.mxu0 %v7252
        %7341 = vmatpush.msra.mxu0 %v7248
        %7342 = vmatpush.msra.mxu0 %v7244
        %7343 = vmatpush.msra.mxu0 %v7240
        %7344 = vmatpush.msra.mxu0 %v7236
        %7345 = vmatpush.msra.mxu0 %v7232
        %7346 = vmatpush.msra.mxu0 %v7228
        %7347 = vmatmul.f32.gmra.mxu0 %v6429
        %v7348 = vpop.f32.mrf.mxu0
        %v7349 = vadd.f32 0.0, %v7348
        %7350 = vdwg.mxu0
        %7351 = vmatpush.msra.mxu0 0.0
        %7352 = vmatpush.msra.mxu0 0.0
        %7353 = vmatpush.msra.mxu0 0.0
        %7354 = vmatpush.msra.mxu0 0.0
        %7355 = vmatpush.msra.mxu0 0.0
        %7356 = vmatpush.msra.mxu0 0.0
        %7357 = vmatpush.msra.mxu0 0.0
        %7358 = vmatpush.msra.mxu0 %v7324
        %7359 = vmatpush.msra.mxu0 %v7320
        %7360 = vmatpush.msra.mxu0 %v7316
        %7361 = vmatpush.msra.mxu0 %v7312
        %7362 = vmatpush.msra.mxu0 %v7308
        %7363 = vmatpush.msra.mxu0 %v7304
        %7364 = vmatpush.msra.mxu0 %v7300
        %7365 = vmatpush.msra.mxu0 %v7296
        %7366 = vmatpush.msra.mxu0 %v7292
        %7367 = vmatmul.f32.gmra.mxu0 %v7329
        %v7368 = vpop.f32.mrf.mxu0
        %v7369 = vadd.f32 %v7349, %v7368
        %7370 = vdwg.mxu0
        %7371 = vmatpush.msra.mxu0 %v7289
        %7372 = vmatpush.msra.mxu0 %v7285
        %7373 = vmatpush.msra.mxu0 %v7281
        %7374 = vmatpush.msra.mxu0 %v7277
        %7375 = vmatpush.msra.mxu0 %v7273
        %7376 = vmatpush.msra.mxu0 %v7269
        %7377 = vmatpush.msra.mxu0 %v7265
        %7378 = vmatpush.msra.mxu0 %v7261
        %7379 = vmatpush.msra.mxu0 %v7257
        %7380 = vmatpush.msra.mxu0 %v7253
        %7381 = vmatpush.msra.mxu0 %v7249
        %7382 = vmatpush.msra.mxu0 %v7245
        %7383 = vmatpush.msra.mxu0 %v7241
        %7384 = vmatpush.msra.mxu0 %v7237
        %7385 = vmatpush.msra.mxu0 %v7233
        %7386 = vmatpush.msra.mxu0 %v7229
        %7387 = vmatmul.f32.gmra.mxu0 %v6429
        %v7388 = vpop.f32.mrf.mxu0
        %v7389 = vadd.f32 0.0, %v7388
        %7390 = vdwg.mxu0
        %7391 = vmatpush.msra.mxu0 0.0
        %7392 = vmatpush.msra.mxu0 0.0
        %7393 = vmatpush.msra.mxu0 0.0
        %7394 = vmatpush.msra.mxu0 0.0
        %7395 = vmatpush.msra.mxu0 0.0
        %7396 = vmatpush.msra.mxu0 0.0
        %7397 = vmatpush.msra.mxu0 0.0
        %7398 = vmatpush.msra.mxu0 %v7325
        %7399 = vmatpush.msra.mxu0 %v7321
        %7400 = vmatpush.msra.mxu0 %v7317
        %7401 = vmatpush.msra.mxu0 %v7313
        %7402 = vmatpush.msra.mxu0 %v7309
        %7403 = vmatpush.msra.mxu0 %v7305
        %7404 = vmatpush.msra.mxu0 %v7301
        %7405 = vmatpush.msra.mxu0 %v7297
        %7406 = vmatpush.msra.mxu0 %v7293
        %7407 = vmatmul.f32.gmra.mxu0 %v7329
        %v7408 = vpop.f32.mrf.mxu0
        %v7409 = vadd.f32 %v7389, %v7408
        %7410 = vdwg.mxu0
        %7411 = vmatpush.msra.mxu0 %v7290
        %7412 = vmatpush.msra.mxu0 %v7286
        %7413 = vmatpush.msra.mxu0 %v7282
        %7414 = vmatpush.msra.mxu0 %v7278
        %7415 = vmatpush.msra.mxu0 %v7274
        %7416 = vmatpush.msra.mxu0 %v7270
        %7417 = vmatpush.msra.mxu0 %v7266
        %7418 = vmatpush.msra.mxu0 %v7262
        %7419 = vmatpush.msra.mxu0 %v7258
        %7420 = vmatpush.msra.mxu0 %v7254
        %7421 = vmatpush.msra.mxu0 %v7250
        %7422 = vmatpush.msra.mxu0 %v7246
        %7423 = vmatpush.msra.mxu0 %v7242
        %7424 = vmatpush.msra.mxu0 %v7238
        %7425 = vmatpush.msra.mxu0 %v7234
        %7426 = vmatpush.msra.mxu0 %v7230
        %7427 = vmatmul.f32.gmra.mxu0 %v6429
        %v7428 = vpop.f32.mrf.mxu0
        %v7429 = vadd.f32 0.0, %v7428
        %7430 = vdwg.mxu0
        %7431 = vmatpush.msra.mxu0 0.0
        %7432 = vmatpush.msra.mxu0 0.0
        %7433 = vmatpush.msra.mxu0 0.0
        %7434 = vmatpush.msra.mxu0 0.0
        %7435 = vmatpush.msra.mxu0 0.0
        %7436 = vmatpush.msra.mxu0 0.0
        %7437 = vmatpush.msra.mxu0 0.0
        %7438 = vmatpush.msra.mxu0 %v7326
        %7439 = vmatpush.msra.mxu0 %v7322
        %7440 = vmatpush.msra.mxu0 %v7318
        %7441 = vmatpush.msra.mxu0 %v7314
        %7442 = vmatpush.msra.mxu0 %v7310
        %7443 = vmatpush.msra.mxu0 %v7306
        %7444 = vmatpush.msra.mxu0 %v7302
        %7445 = vmatpush.msra.mxu0 %v7298
        %7446 = vmatpush.msra.mxu0 %v7294
        %7447 = vmatmul.f32.gmra.mxu0 %v7329
        %v7448 = vpop.f32.mrf.mxu0
        %v7449 = vadd.f32 %v7429, %v7448
        %7450 = vdwg.mxu0
        %7451 = vmatpush.msra.mxu0 %v7291
        %7452 = vmatpush.msra.mxu0 %v7287
        %7453 = vmatpush.msra.mxu0 %v7283
        %7454 = vmatpush.msra.mxu0 %v7279
        %7455 = vmatpush.msra.mxu0 %v7275
        %7456 = vmatpush.msra.mxu0 %v7271
        %7457 = vmatpush.msra.mxu0 %v7267
        %7458 = vmatpush.msra.mxu0 %v7263
        %7459 = vmatpush.msra.mxu0 %v7259
        %7460 = vmatpush.msra.mxu0 %v7255
        %7461 = vmatpush.msra.mxu0 %v7251
        %7462 = vmatpush.msra.mxu0 %v7247
        %7463 = vmatpush.msra.mxu0 %v7243
        %7464 = vmatpush.msra.mxu0 %v7239
        %7465 = vmatpush.msra.mxu0 %v7235
        %7466 = vmatpush.msra.mxu0 %v7231
        %7467 = vmatmul.f32.gmra.mxu0 %v6429
        %v7468 = vpop.f32.mrf.mxu0
        %v7469 = vadd.f32 0.0, %v7468
        %7470 = vdwg.mxu0
        %7471 = vmatpush.msra.mxu0 0.0
        %7472 = vmatpush.msra.mxu0 0.0
        %7473 = vmatpush.msra.mxu0 0.0
        %7474 = vmatpush.msra.mxu0 0.0
        %7475 = vmatpush.msra.mxu0 0.0
        %7476 = vmatpush.msra.mxu0 0.0
        %7477 = vmatpush.msra.mxu0 0.0
        %7478 = vmatpush.msra.mxu0 %v7327
        %7479 = vmatpush.msra.mxu0 %v7323
        %7480 = vmatpush.msra.mxu0 %v7319
        %7481 = vmatpush.msra.mxu0 %v7315
        %7482 = vmatpush.msra.mxu0 %v7311
        %7483 = vmatpush.msra.mxu0 %v7307
        %7484 = vmatpush.msra.mxu0 %v7303
        %7485 = vmatpush.msra.mxu0 %v7299
        %7486 = vmatpush.msra.mxu0 %v7295
        %7487 = vmatmul.f32.gmra.mxu0 %v7329
        %v7488 = vpop.f32.mrf.mxu0
        %v7489 = vadd.f32 %v7469, %v7488
        %7490 = vdwg.mxu0
        %v7491 = vadd.f32 %v7223, %v7369
        %v7492 = vadd.f32 %v7224, %v7409
        %v7493 = vadd.f32 %v7225, %v7449
        %v7494 = vadd.f32 %v7226, %v7489
        %v7495 = vld [vmem:[%s8] sm:$0xf]
        %v7497 = vperm.slane %v7495, 0
        %v7498 = vperm.slane %v7495, 1
        %v7499 = vperm.slane %v7495, 2
        %v7500 = vperm.slane %v7495, 3
        %v7505 = vadd.f32 %v7491, %v7497
        %v7506 = vadd.f32 %v7492, %v7498
        %v7507 = vadd.f32 %v7493, %v7499
        %v7508 = vadd.f32 %v7494, %v7500
        %v7509 = vmax.f32 %v7505, 0.0
        %v7510 = vmax.f32 %v7506, 0.0
        %v7511 = vmax.f32 %v7507, 0.0
        %v7512 = vmax.f32 %v7508, 0.0
        %v7513 = vld [vmem:[%s9] sm:$0xff]
        %v7514 = vld [vmem:[%s9 + $0x8] sm:$0xff]
        %v7515 = vld [vmem:[%s9 + $0x10] sm:$0xff]
        %v7516 = vld [vmem:[%s9 + $0x18] sm:$0xff]
        %v7517 = vld [vmem:[%s9 + $0x20] sm:$0xff]
        %v7518 = vld [vmem:[%s9 + $0x28] sm:$0xff]
        %v7519 = vld [vmem:[%s9 + $0x30] sm:$0xff]
        %v7520 = vld [vmem:[%s9 + $0x38] sm:$0xff]
        %v7521 = vld [vmem:[%s9 + $0x40] sm:$0xff]
        %v7522 = vld [vmem:[%s9 + $0x48] sm:$0xff]
        %v7523 = vld [vmem:[%s9 + $0x50] sm:$0xff]
        %v7524 = vld [vmem:[%s9 + $0x58] sm:$0xff]
        %v7525 = vld [vmem:[%s9 + $0x60] sm:$0xff]
        %v7526 = vld [vmem:[%s9 + $0x68] sm:$0xff]
        %v7527 = vld [vmem:[%s9 + $0x70] sm:$0xff]
        %v7528 = vld [vmem:[%s9 + $0x78] sm:$0xff]
        %v7529 = vld [vmem:[%s9 + $0x80] sm:$0xff]
        %v7530 = vld [vmem:[%s9 + $0x88] sm:$0xff]
        %v7531 = vld [vmem:[%s9 + $0x90] sm:$0xff]
        %v7532 = vld [vmem:[%s9 + $0x98] sm:$0xff]
        %v7533 = vld [vmem:[%s9 + $0xa0] sm:$0xff]
        %v7534 = vld [vmem:[%s9 + $0xa8] sm:$0xff]
        %v7535 = vld [vmem:[%s9 + $0xb0] sm:$0xff]
        %v7536 = vld [vmem:[%s9 + $0xb8] sm:$0xff]
        %v7537 = vld [vmem:[%s9 + $0xc0] sm:$0xff]
        %v7538 = vld [vmem:[%s9 + $0xc8] sm:$0xff]
        %v7539 = vld [vmem:[%s9 + $0xd0] sm:$0xff]
        %v7540 = vld [vmem:[%s9 + $0xd8] sm:$0xff]
        %v7541 = vld [vmem:[%s9 + $0xe0] sm:$0xff]
        %v7542 = vld [vmem:[%s9 + $0xe8] sm:$0xff]
        %v7543 = vld [vmem:[%s9 + $0xf0] sm:$0xff]
        %v7544 = vld [vmem:[%s9 + $0xf8] sm:$0xff]
        %v7545 = vld [vmem:[%s9 + $0x100] sm:$0xff]
        %v7546 = vld [vmem:[%s9 + $0x108] sm:$0xff]
        %v7547 = vld [vmem:[%s9 + $0x110] sm:$0xff]
        %v7548 = vld [vmem:[%s9 + $0x118] sm:$0xff]
        %v7549 = vld [vmem:[%s9 + $0x120] sm:$0xff]
        %v7550 = vld [vmem:[%s9 + $0x128] sm:$0xff]
        %v7551 = vld [vmem:[%s9 + $0x130] sm:$0xff]
        %v7552 = vld [vmem:[%s9 + $0x138] sm:$0xff]
        %v7553 = vld [vmem:[%s9 + $0x140] sm:$0xff]
        %v7554 = vld [vmem:[%s9 + $0x148] sm:$0xff]
        %v7555 = vld [vmem:[%s9 + $0x150] sm:$0xff]
        %v7556 = vld [vmem:[%s9 + $0x158] sm:$0xff]
        %v7557 = vld [vmem:[%s9 + $0x160] sm:$0xff]
        %v7558 = vld [vmem:[%s9 + $0x168] sm:$0xff]
        %v7559 = vld [vmem:[%s9 + $0x170] sm:$0xff]
        %v7560 = vld [vmem:[%s9 + $0x178] sm:$0xff]
        %v7561 = vld [vmem:[%s9 + $0x180] sm:$0xff]
        %v7562 = vld [vmem:[%s9 + $0x188] sm:$0xff]
        %v7563 = vld [vmem:[%s9 + $0x190] sm:$0xff]
        %v7564 = vld [vmem:[%s9 + $0x198] sm:$0xff]
        %v7565 = vld [vmem:[%s9 + $0x1a0] sm:$0xff]
        %v7566 = vld [vmem:[%s9 + $0x1a8] sm:$0xff]
        %v7567 = vld [vmem:[%s9 + $0x1b0] sm:$0xff]
        %v7568 = vld [vmem:[%s9 + $0x1b8] sm:$0xff]
        %v7569 = vld [vmem:[%s9 + $0x1c0] sm:$0xff]
        %v7570 = vld [vmem:[%s9 + $0x1c8] sm:$0xff]
        %v7571 = vld [vmem:[%s9 + $0x1d0] sm:$0xff]
        %v7572 = vld [vmem:[%s9 + $0x1d8] sm:$0xff]
        %v7573 = vld [vmem:[%s9 + $0x1e0] sm:$0xff]
        %v7574 = vld [vmem:[%s9 + $0x1e8] sm:$0xff]
        %v7575 = vld [vmem:[%s9 + $0x1f0] sm:$0xff]
        %v7576 = vld [vmem:[%s9 + $0x1f8] sm:$0xff]
        %v7577 = vld [vmem:[%s10] sm:$0x1]
        %v7579 = vperm.slane %v7577, 0
        %7581 = vmatpush.msra.mxu0 %v7528
        %7582 = vmatpush.msra.mxu0 %v7527
        %7583 = vmatpush.msra.mxu0 %v7526
        %7584 = vmatpush.msra.mxu0 %v7525
        %7585 = vmatpush.msra.mxu0 %v7524
        %7586 = vmatpush.msra.mxu0 %v7523
        %7587 = vmatpush.msra.mxu0 %v7522
        %7588 = vmatpush.msra.mxu0 %v7521
        %7589 = vmatpush.msra.mxu0 %v7520
        %7590 = vmatpush.msra.mxu0 %v7519
        %7591 = vmatpush.msra.mxu0 %v7518
        %7592 = vmatpush.msra.mxu0 %v7517
        %7593 = vmatpush.msra.mxu0 %v7516
        %7594 = vmatpush.msra.mxu0 %v7515
        %7595 = vmatpush.msra.mxu0 %v7514
        %7596 = vmatpush.msra.mxu0 %v7513
        %7597 = vmatmul.f32.gmra.mxu0 %v7509
        %v7598 = vpop.f32.mrf.mxu0
        %v7599 = vadd.f32 %v7579, %v7598
        %7600 = vdwg.mxu0
        %7601 = vmatpush.msra.mxu0 %v7544
        %7602 = vmatpush.msra.mxu0 %v7543
        %7603 = vmatpush.msra.mxu0 %v7542
        %7604 = vmatpush.msra.mxu0 %v7541
        %7605 = vmatpush.msra.mxu0 %v7540
        %7606 = vmatpush.msra.mxu0 %v7539
        %7607 = vmatpush.msra.mxu0 %v7538
        %7608 = vmatpush.msra.mxu0 %v7537
        %7609 = vmatpush.msra.mxu0 %v7536
        %7610 = vmatpush.msra.mxu0 %v7535
        %7611 = vmatpush.msra.mxu0 %v7534
        %7612 = vmatpush.msra.mxu0 %v7533
        %7613 = vmatpush.msra.mxu0 %v7532
        %7614 = vmatpush.msra.mxu0 %v7531
        %7615 = vmatpush.msra.mxu0 %v7530
        %7616 = vmatpush.msra.mxu0 %v7529
        %7617 = vmatmul.f32.gmra.mxu0 %v7510
        %v7618 = vpop.f32.mrf.mxu0
        %v7619 = vadd.f32 %v7599, %v7618
        %7620 = vdwg.mxu0
        %7621 = vmatpush.msra.mxu0 %v7560
        %7622 = vmatpush.msra.mxu0 %v7559
        %7623 = vmatpush.msra.mxu0 %v7558
        %7624 = vmatpush.msra.mxu0 %v7557
        %7625 = vmatpush.msra.mxu0 %v7556
        %7626 = vmatpush.msra.mxu0 %v7555
        %7627 = vmatpush.msra.mxu0 %v7554
        %7628 = vmatpush.msra.mxu0 %v7553
        %7629 = vmatpush.msra.mxu0 %v7552
        %7630 = vmatpush.msra.mxu0 %v7551
        %7631 = vmatpush.msra.mxu0 %v7550
        %7632 = vmatpush.msra.mxu0 %v7549
        %7633 = vmatpush.msra.mxu0 %v7548
        %7634 = vmatpush.msra.mxu0 %v7547
        %7635 = vmatpush.msra.mxu0 %v7546
        %7636 = vmatpush.msra.mxu0 %v7545
        %7637 = vmatmul.f32.gmra.mxu0 %v7511
        %v7638 = vpop.f32.mrf.mxu0
        %v7639 = vadd.f32 %v7619, %v7638
        %7640 = vdwg.mxu0
        %7641 = vmatpush.msra.mxu0 %v7576
        %7642 = vmatpush.msra.mxu0 %v7575
        %7643 = vmatpush.msra.mxu0 %v7574
        %7644 = vmatpush.msra.mxu0 %v7573
        %7645 = vmatpush.msra.mxu0 %v7572
        %7646 = vmatpush.msra.mxu0 %v7571
        %7647 = vmatpush.msra.mxu0 %v7570
        %7648 = vmatpush.msra.mxu0 %v7569
        %7649 = vmatpush.msra.mxu0 %v7568
        %7650 = vmatpush.msra.mxu0 %v7567
        %7651 = vmatpush.msra.mxu0 %v7566
        %7652 = vmatpush.msra.mxu0 %v7565
        %7653 = vmatpush.msra.mxu0 %v7564
        %7654 = vmatpush.msra.mxu0 %v7563
        %7655 = vmatpush.msra.mxu0 %v7562
        %7656 = vmatpush.msra.mxu0 %v7561
        %7657 = vmatmul.f32.gmra.mxu0 %v7512
        %v7658 = vpop.f32.mrf.mxu0
        %v7659 = vadd.f32 %v7639, %v7658
        %7660 = vdwg.mxu0
        %vm7661 = vcmask 80896
        %v7662 = vsel %vm7661, %v7659, -inf
        %7663 = vmax.xlane.f32.xlu0 %v7662
        %v7664 = vpop.xlane.xlu0 %7663
        %v7665 = vsub.f32 %v7659, %v7664
        %v7666 = vmul.f32 %v7665, 1.442695
        %v7667 = vpow.pop %v7666
        %v7668 = vsel %vm7661, %v7667, 0.0
        %7669 = vadd.xlane.f32.xlu0 %v7668
        %v7670 = vpop.xlane.xlu0 %7669
        %v7671 = vlog2.pop %v7670
        %v7672 = vmul.f32 %v7671, 0.6931472
        %v7673 = vsub.f32 %v7665, %v7672
        %7674 = vst.msk [vmem:[%s527] sm:$0xff] %vm7661, %v7673
        %s7675 = sand.u32 %s269, 1
        %s7676 = scalar_lea.sflag [#allocation4], %s7675
        %s7677 = sand.u32 %s269, 1
        %s7678 = smul.addr %s7677, 8
        %s7679 = scalar_lea.vmem [#allocation3], %s7678
        // Predicated region
        $region103: #{net_forward.1} parent=97 // pred_check
          %p7680 = pneg %p279
        $region104: #{net_forward.1} parent=97 // pred_check_branch
          %7682 = sbr.rel (%p7680) target = $region106
        $region105: #{net_forward.1} parent=97 // pred_region
          %7684 = vsyncadd %s7676, 0
          %s7685 = smul.addr %s25, 8
          %s7686 = scalar_lea.hbm %s11, %s7685
          %s7688 = sshll.u32 %s7679, 4
          %s7689 = int_to_ptr.vmem [resolvable:$true] %s7688
          %s7690 = sshll.u32 %s7686, 4
          %s7691 = int_to_ptr.hbm [resolvable:$true] %s7690
          %7693 = dma.vmem_to_hbm [thread:$0]  %s7689, 128, %s7691, %s7676
        $region106: #{net_forward.1} parent=97 // pred_fallthru
          _
      $region98: #{net_forward.1} parent=5 // pred_fallthru
        _
      %p7694 = scmp.le.s32.totalorder 2, %s20
      // Predicated region
      $region107: #{net_forward.1} parent=5 // pred_check
        %p7695 = pneg %p7694
      $region108: #{net_forward.1} parent=5 // pred_check_branch
        %7697 = sbr.rel (%p7695) target = $region110
      $region109: #{net_forward.1} parent=5 // pred_region
        %s7698 = ssub.s32 %s20, 2
        // Predicated region
        $region111: #{net_forward.1} parent=109 // pred_check
          %p7699 = pneg %p285
        $region112: #{net_forward.1} parent=109 // pred_check_branch
          %7701 = sbr.rel (%p7699) target = $region114
        $region113: #{net_forward.1} parent=109 // pred_region
          %s7702 = sand.u32 %s270, 1
          %s7703 = scalar_lea.sflag [#allocation4], %s7702
          %s7704 = sand.u32 %s270, 1
          %s7705 = smul.addr %s7704, 8
          %s7706 = scalar_lea.vmem [#allocation3], %s7705
          %7708 = dma.done %s7703, 128
        $region114: #{net_forward.1} parent=109 // pred_fallthru
          _
      $region110: #{net_forward.1} parent=5 // pred_fallthru
        _
    $region6: #{net_forward.1} parent=1 // loop_footer
      %s24 = sadd.s32 1, %s20
    $region7: #{net_forward.1} parent=1 // loop_footer_branch
      %19 = sbr.rel target = $region3
    $region8: #{net_forward.1} parent=1 // loop_exit
      _
    %7709 = vsyncpa [#allocation4], 1
    %s7710 = scalar_lea.sflag [#allocation4], 1
    %7711 = vsyncpa %s7710, 1

</llo_original>
